<compile_context>
chip_gen: v7x
topology: tpu7x:2x2x1
jax: 0.10.0
libtpu: 0.0.40
codegen_flags: <defaults>
</compile_context>

<pallas_src>
import jax
import jax.numpy as jnp
from jax.experimental import pallas as pl
from jax.experimental.pallas import tpu as pltpu

LANES = 128   # lane-dense channel padding for all Pallas outputs
SP = 16       # padded spatial extent for layer-1 output / layer-2 input (14 -> 16)


# ----------------------------------------------------------------------------
# Small in-kernel helper
# ----------------------------------------------------------------------------
def _shift_rows_up(a, s):
    """out[p] = a[p + s] (rows), last s rows become zeros.  s is a small static int."""
    if s == 0:
        return a
    tail = jnp.zeros((s,) + a.shape[1:], a.dtype)
    return jnp.concatenate([a[s:], tail], axis=0)


# ----------------------------------------------------------------------------
# Pallas kernels
# ----------------------------------------------------------------------------
def _conv1_bn_relu_pool_kernel(p_ref, w_ref, shift_ref, o_ref):
    """Layer 1: Conv(1->32, pad=1) + BN + ReLU + MaxPool2x2 as one 4-corner-window GEMM.

    p_ref:     (Bt*16, 16, 16) bf16  4x4 input-window patches, [b*16+i, j, 4*wy+wx]
    w_ref:     (16, 512)       bf16  per-corner scattered 3x3 weights (BN scale folded)
    shift_ref: (1, 128)        f32   folded BN shift (conv bias included)
    o_ref:     (Bt*16, 16, 128) bf16 pooled output, [b*16+i, j, channel] (32 real ch)
    """
    g, w, t = p_ref.shape
    x = p_ref[...].reshape(g * w, t)
    y = jnp.dot(x, w_ref[...], preferred_element_type=jnp.float32)        # (M, 512)
    # 2x2 max-pool = max over the four 128-lane corner groups (commutes with shift+ReLU).
    m = jnp.maximum(jnp.maximum(y[:, 0:128], y[:, 128:256]),
                    jnp.maximum(y[:, 256:384], y[:, 384:512]))
    out = jnp.maximum(m + shift_ref[...], 0.0)                             # BN shift + ReLU
    o_ref[...] = out.reshape(g, w, LANES).astype(o_ref.dtype)


def _conv2_bn_relu_pool_kernel(y1_ref, w_ref, shift_ref, o_ref):
    """Layer 2: Conv(32->64) + BN + ReLU + MaxPool2x2, 9 tap-GEMMs directly on y1.

    y1_ref:    (Bt*16, 16, 128) bf16  layer-1 output, [b*16+h, w, cin] (32 real cin)
    w_ref:     (9, 128, 128)    bf16  per-tap weights [3*ky+kx, cin, cout], BN scale folded
    shift_ref: (1, 128)         f32
    o_ref:     (Bt*8, 16, 128)  bf16  pooled output [b*8+i, w(=2j valid), cout] (64 real)
    """
    g, wdim, c = y1_ref.shape
    x = y1_ref[...].reshape(g * wdim, c)                 # flat rows p = b*256 + h*16 + w
    acc = None
    for kx in range(3):
        pk = None
        for ky in range(3):
            lhs = _shift_rows_up(x, SP * ky)             # vreg-aligned row shift (bf16)
            z = jnp.dot(lhs, w_ref[3 * ky + kx], preferred_element_type=jnp.float32)
            pk = z if pk is None else pk + z
        pk = _shift_rows_up(pk, kx)                      # 0/1/2-row shift on f32 partial
        acc = pk if acc is None else acc + pk
    # 2x2 max-pool first (max commutes with the monotone shift+ReLU epilogue).
    acc = jnp.maximum(acc, _shift_rows_up(acc, 1))       # pool over w: rows p, p+1
    acc = acc.reshape(g // 2, 2, wdim, c)                # pair h rows (free reshape)
    acc = jnp.maximum(acc[:, 0], acc[:, 1])              # pool over h -> (Bt*8, 16, 128)
    o_ref[...] = jnp.maximum(acc + shift_ref[...], 0.0).astype(o_ref.dtype)


def _head_kernel(x_ref, w_ref, b_ref, o_ref):
    """Folded fc1 -> Dropout(eval id) -> fc2 -> fc3: y = x @ w + b, f32 accumulation."""
    y = jnp.dot(x_ref[...], w_ref[...], preferred_element_type=jnp.float32)
    o_ref[...] = (y + b_ref[...]).astype(o_ref.dtype)


# ----------------------------------------------------------------------------
# pallas_call wrappers
# ----------------------------------------------------------------------------
def _conv1(patches, w1, shift1, *, bt):
    G = patches.shape[0]                                  # Bpad * 16
    return pl.pallas_call(
        _conv1_bn_relu_pool_kernel,
        out_shape=jax.ShapeDtypeStruct((G, SP, LANES), jnp.bfloat16),
        grid=(G // (bt * SP),),
        in_specs=[
            pl.BlockSpec((bt * SP, SP, 16), lambda b: (b, 0, 0)),
            pl.BlockSpec((16, 4 * LANES), lambda b: (0, 0)),
            pl.BlockSpec((1, LANES), lambda b: (0, 0)),
        ],
        out_specs=pl.BlockSpec((bt * SP, SP, LANES), lambda b: (b, 0, 0)),
        compiler_params=pltpu.CompilerParams(dimension_semantics=("parallel",)),
    )(patches, w1, shift1)


def _conv2(y1, w2, shift2, *, bt):
    G = y1.shape[0]                                       # Bpad * 16
    bpad = G // SP
    return pl.pallas_call(
        _conv2_bn_relu_pool_kernel,
        out_shape=jax.ShapeDtypeStruct((bpad * 8, SP, LANES), jnp.bfloat16),
        grid=(bpad // bt,),
        in_specs=[
            pl.BlockSpec((bt * SP, SP, LANES), lambda b: (b, 0, 0)),
            pl.BlockSpec((9, LANES, LANES), lambda b: (0, 0, 0)),
            pl.BlockSpec((1, LANES), lambda b: (0, 0)),
        ],
        out_specs=pl.BlockSpec((bt * 8, SP, LANES), lambda b: (b, 0, 0)),
        compiler_params=pltpu.CompilerParams(dimension_semantics=("parallel",)),
    )(y1, w2, shift2)


def _head(flat, w_head, b_head, *, mt):
    M, K = flat.shape
    return pl.pallas_call(
        _head_kernel,
        out_shape=jax.ShapeDtypeStruct((M, LANES), jnp.float32),
        grid=(M // mt,),
        in_specs=[
            pl.BlockSpec((mt, K), lambda m: (m, 0)),
            pl.BlockSpec((K, LANES), lambda m: (0, 0)),
            pl.BlockSpec((1, LANES), lambda m: (0, 0)),
        ],
        out_specs=pl.BlockSpec((mt, LANES), lambda m: (m, 0)),
        compiler_params=pltpu.CompilerParams(dimension_semantics=("parallel",)),
    )(flat, w_head, b_head)


# ----------------------------------------------------------------------------
# Parameters (deterministic init; shapes follow FashionCNN.__init__)
# ----------------------------------------------------------------------------
def init_params(key):
    ks = jax.random.split(key, 8)
    p = {}
    p["w1"] = jax.random.normal(ks[0], (32, 1, 3, 3), jnp.float32) * 0.1    # Conv2d(1,32,3,pad=1)
    p["b1"] = jax.random.normal(ks[1], (32,), jnp.float32) * 0.01
    p["w2"] = jax.random.normal(ks[2], (64, 32, 3, 3), jnp.float32) * 0.05  # Conv2d(32,64,3)
    p["b2"] = jax.random.normal(ks[3], (64,), jnp.float32) * 0.01
    p["fc1_w"] = jax.random.normal(ks[4], (600, 64 * 6 * 6), jnp.float32) * 0.02
    p["fc1_b"] = jnp.zeros((600,), jnp.float32)
    p["fc2_w"] = jax.random.normal(ks[5], (120, 600), jnp.float32) * 0.05
    p["fc2_b"] = jnp.zeros((120,), jnp.float32)
    p["fc3_w"] = jax.random.normal(ks[6], (10, 120), jnp.float32) * 0.05
    p["fc3_b"] = jnp.zeros((10,), jnp.float32)
    for name, nc in (("bn1", 32), ("bn2", 64)):           # BatchNorm2d fresh-init (eval)
        p[name + "_gamma"] = jnp.ones((nc,), jnp.float32)
        p[name + "_beta"] = jnp.zeros((nc,), jnp.float32)
        p[name + "_mean"] = jnp.zeros((nc,), jnp.float32)
        p[name + "_var"] = jnp.ones((nc,), jnp.float32)
    return p


def prepare_params(p):
    """One-time weight folding / re-layout (all in f32, cast to bf16 at the end)."""
    eps = 1e-5
    q = {}

    # Eval-mode BN fold: bn(conv(x)+bias) = scale*conv(x) + shift.
    s1 = p["bn1_gamma"] / jnp.sqrt(p["bn1_var"] + eps)
    sh1 = p["bn1_beta"] + (p["b1"] - p["bn1_mean"]) * s1
    s2 = p["bn2_gamma"] / jnp.sqrt(p["bn2_var"] + eps)
    sh2 = p["bn2_beta"] + (p["b2"] - p["bn2_mean"]) * s2

    # Layer 1: (16, 4*128) weight; one 128-col block per pool corner, BN scale folded in.
    w1s = p["w1"][:, 0] * s1[:, None, None]               # (32, 3, 3), scaled
    W1 = jnp.zeros((16, 4 * LANES), jnp.float32)
    for cidx, (cy, cx) in enumerate(((0, 0), (0, 1), (1, 0), (1, 1))):
        for ky in range(3):
            for kx in range(3):
                t = 4 * (ky + cy) + (kx + cx)             # position in the 4x4 window
                W1 = W1.at[t, cidx * LANES: cidx * LANES + 32].set(w1s[:, ky, kx])
    q["w1"] = W1.astype(jnp.bfloat16)
    q["shift1"] = jnp.pad(sh1, (0, LANES - 32)).reshape(1, LANES).astype(jnp.float32)

    # Layer 2: per-tap (cin, cout) weights, BN scale folded; channels zero-padded to 128.
    w2s = p["w2"] * s2[:, None, None, None]               # (64, 32, 3, 3)
    w2m = jnp.transpose(w2s, (2, 3, 1, 0))                # (ky, kx, cin, cout)
    w2m = jnp.pad(w2m, ((0, 0), (0, 0), (0, LANES - 32), (0, LANES - 64)))
    q["w2"] = w2m.reshape(9, LANES, LANES).astype(jnp.bfloat16)
    q["shift2"] = jnp.pad(sh2, (0, LANES - 64)).reshape(1, LANES).astype(jnp.float32)

    # Head: fold fc1 -> Dropout2d(eval identity) -> fc2 -> fc3 (exact; no nonlinearity).
    w23 = p["fc2_w"].T @ p["fc3_w"].T                     # (600, 10)
    w_fold = p["fc1_w"].T @ w23                           # (2304, 10), rows c*36 + h*6 + w
    b_fold = p["fc1_b"] @ w23 + p["fc2_b"] @ p["fc3_w"].T + p["fc3_b"]
    wf = w_fold.reshape(64, 6, 6, 10)                     # (c, h, w, o)
    wf = jnp.transpose(wf, (1, 2, 0, 3)).reshape(6 * 6 * 64, 10)   # rows (h, w, c)
    # bf16 head weight (fold + cast rounding); keep f32 if bit-level parity is required.
    q["w_head"] = jnp.pad(wf, ((0, 0), (0, LANES - 10))).astype(jnp.bfloat16)
    q["b_head"] = jnp.pad(b_fold, (0, LANES - 10)).reshape(1, LANES).astype(jnp.float32)
    return q


# ----------------------------------------------------------------------------
# Forward pass (matches FashionCNN.forward, eval mode)
# ----------------------------------------------------------------------------
def _batch_plan(B):
    """Padded batch + per-grid-step batch tile (>=2 grid steps for v7x megacore)."""
    if B <= 4:
        return 4, 2
    bpad = ((B + 7) // 8) * 8
    return bpad, (4 if bpad == 8 else 8)


def _head_m_tile(bpad):
    for t in (256, 128, 64, 32, 16, 8):
        if bpad % t == 0 and bpad // t >= 2:
            return t
    return bpad


def fashion_cnn_forward(x_nchw, q):
    B = x_nchw.shape[0]
    bpad, bt = _batch_plan(B)

    # --- layer-1 patch build (tiny XLA gather): 4x4 padded-input window per pool block ---
    x = x_nchw[:, 0, :, :].astype(jnp.float32)            # (B, 28, 28)
    if bpad != B:
        x = jnp.pad(x, ((0, bpad - B), (0, 0), (0, 0)))
    xp = jnp.pad(x, ((0, 0), (1, 1), (1, 1)))             # conv padding=1 -> (bpad, 30, 30)
    slabs = [xp[:, wy: wy + 28: 2, wx: wx + 28: 2]
             for wy in range(4) for wx in range(4)]       # 16 x (bpad, 14, 14)
    patches = jnp.stack(slabs, axis=-1)                   # (bpad, 14, 14, 16)
    patches = jnp.pad(patches, ((0, 0), (0, 2), (0, 2), (0, 0)))       # spatial 14 -> 16
    patches = patches.reshape(bpad * SP, SP, 16).astype(jnp.bfloat16)

    # --- fused conv+BN+ReLU+maxpool Pallas kernels (layer2 consumes layer1 directly) ---
    y1 = _conv1(patches, q["w1"], q["shift1"], bt=bt)      # (bpad*16, 16, 128)
    y2 = _conv2(y1, q["w2"], q["shift2"], bt=bt)           # (bpad*8, 16, 128)

    # --- drop pool/channel padding, flatten in (h, w, c) order for the folded FC head ---
    y2 = y2.reshape(bpad, 8, SP, LANES)[:, :6, 0:12:2, :64]    # (bpad, 6, 6, 64)
    flat = y2.reshape(bpad, 6 * 6 * 64)                        # (bpad, 2304) bf16

    logits = _head(flat, q["w_head"], q["b_head"], mt=_head_m_tile(bpad))
    return logits[:B, :10]


if __name__ == "__main__":
    key = jax.random.PRNGKey(0)
    k_x, k_p = jax.random.split(key)
    # Input shape implied by fc1 (64*6*6): 1x28x28 images; small batch of 2.
    x = jax.random.normal(k_x, (2, 1, 28, 28), jnp.float32)
    params = prepare_params(init_params(k_p))

    logits = jax.jit(fashion_cnn_forward)(x, params)
    logits = jax.block_until_ready(logits)
    assert logits.shape == (2, 10), logits.shape
    assert bool(jnp.all(jnp.isfinite(logits)))
    print("KERNEL_OK")
</pallas_src>

<mosaic_0001>
module attributes {stable_mosaic.version = 11 : i64} {
  func.func @_conv2_bn_relu_pool_kernel(%arg0: i32, %arg1: memref<32x16x128xbf16, #tpu.memory_space<vmem>>, %arg2: memref<9x128x128xbf16, #tpu.memory_space<vmem>>, %arg3: memref<1x128xf32, #tpu.memory_space<vmem>>, %arg4: memref<16x16x128xbf16, #tpu.memory_space<vmem>>) attributes {dimension_semantics = [#tpu.dimension_semantics<parallel>], iteration_bounds = array<i64: 2>, scalar_prefetch = 0 : i64, scratch_operands = 0 : i64, tpu.core_type = #tpu.core_type<tc>, window_params = [{transform_indices = @transform_0, window_bounds = array<i64: 32, 16, 128>}, {pipeline_mode = #tpu.pipeline_mode<synchronous>, transform_indices = @transform_1, window_bounds = array<i64: 9, 128, 128>}, {pipeline_mode = #tpu.pipeline_mode<synchronous>, transform_indices = @transform_2, window_bounds = array<i64: 1, 128>}, {transform_indices = @transform_3, window_bounds = array<i64: 16, 16, 128>}]} {
    %c0 = arith.constant 0 : index
    %c0_0 = arith.constant 0 : index
    %c0_1 = arith.constant 0 : index
    %0 = vector.load %arg1[%c0, %c0_0, %c0_1] : memref<32x16x128xbf16, #tpu.memory_space<vmem>>, vector<32x16x128xbf16>
    %1 = vector.shape_cast %0 : vector<32x16x128xbf16> to vector<512x128xbf16>
    %c0_2 = arith.constant 0 : index
    %c0_3 = arith.constant 0 : index
    %c0_4 = arith.constant 0 : index
    %2 = vector.load %arg2[%c0_2, %c0_3, %c0_4] : memref<9x128x128xbf16, #tpu.memory_space<vmem>>, vector<1x128x128xbf16>
    %3 = vector.shape_cast %2 : vector<1x128x128xbf16> to vector<128x128xbf16>
    %cst = arith.constant dense<0.000000e+00> : vector<512x128xf32>
    %4 = tpu.matmul %1, %3, %cst {dimension_numbers = #tpu.dot_dimension_numbers<[1], [0], [0], [1], [0, 0, 1, 1], [], []>} : vector<512x128xbf16>, vector<128x128xbf16>, vector<512x128xf32> -> vector<512x128xf32>
    %cst_5 = arith.constant 0.000000e+00 : bf16
    %5 = vector.broadcast %cst_5 : bf16 to vector<16x128xbf16>
    %6 = vector.extract_strided_slice %1 {offsets = [16, 0], sizes = [496, 128], strides = [1, 1]} : vector<512x128xbf16> to vector<496x128xbf16>
    %7 = tpu.concatenate %6, %5 in 0 : vector<496x128xbf16>, vector<16x128xbf16> -> vector<512x128xbf16>
    %c3 = arith.constant 3 : index
    %c0_6 = arith.constant 0 : index
    %c0_7 = arith.constant 0 : index
    %8 = vector.load %arg2[%c3, %c0_6, %c0_7] : memref<9x128x128xbf16, #tpu.memory_space<vmem>>, vector<1x128x128xbf16>
    %9 = vector.shape_cast %8 : vector<1x128x128xbf16> to vector<128x128xbf16>
    %cst_8 = arith.constant dense<0.000000e+00> : vector<512x128xf32>
    %10 = tpu.matmul %7, %9, %cst_8 {dimension_numbers = #tpu.dot_dimension_numbers<[1], [0], [0], [1], [0, 0, 1, 1], [], []>} : vector<512x128xbf16>, vector<128x128xbf16>, vector<512x128xf32> -> vector<512x128xf32>
    %11 = arith.addf %4, %10 : vector<512x128xf32>
    %cst_9 = arith.constant 0.000000e+00 : bf16
    %12 = vector.broadcast %cst_9 : bf16 to vector<32x128xbf16>
    %13 = vector.extract_strided_slice %1 {offsets = [32, 0], sizes = [480, 128], strides = [1, 1]} : vector<512x128xbf16> to vector<480x128xbf16>
    %14 = tpu.concatenate %13, %12 in 0 : vector<480x128xbf16>, vector<32x128xbf16> -> vector<512x128xbf16>
    %c6 = arith.constant 6 : index
    %c0_10 = arith.constant 0 : index
    %c0_11 = arith.constant 0 : index
    %15 = vector.load %arg2[%c6, %c0_10, %c0_11] : memref<9x128x128xbf16, #tpu.memory_space<vmem>>, vector<1x128x128xbf16>
    %16 = vector.shape_cast %15 : vector<1x128x128xbf16> to vector<128x128xbf16>
    %cst_12 = arith.constant dense<0.000000e+00> : vector<512x128xf32>
    %17 = tpu.matmul %14, %16, %cst_12 {dimension_numbers = #tpu.dot_dimension_numbers<[1], [0], [0], [1], [0, 0, 1, 1], [], []>} : vector<512x128xbf16>, vector<128x128xbf16>, vector<512x128xf32> -> vector<512x128xf32>
    %18 = arith.addf %11, %17 : vector<512x128xf32>
    %c1 = arith.constant 1 : index
    %c0_13 = arith.constant 0 : index
    %c0_14 = arith.constant 0 : index
    %19 = vector.load %arg2[%c1, %c0_13, %c0_14] : memref<9x128x128xbf16, #tpu.memory_space<vmem>>, vector<1x128x128xbf16>
    %20 = vector.shape_cast %19 : vector<1x128x128xbf16> to vector<128x128xbf16>
    %cst_15 = arith.constant dense<0.000000e+00> : vector<512x128xf32>
    %21 = tpu.matmul %1, %20, %cst_15 {dimension_numbers = #tpu.dot_dimension_numbers<[1], [0], [0], [1], [0, 0, 1, 1], [], []>} : vector<512x128xbf16>, vector<128x128xbf16>, vector<512x128xf32> -> vector<512x128xf32>
    %cst_16 = arith.constant 0.000000e+00 : bf16
    %22 = vector.broadcast %cst_16 : bf16 to vector<16x128xbf16>
    %23 = vector.extract_strided_slice %1 {offsets = [16, 0], sizes = [496, 128], strides = [1, 1]} : vector<512x128xbf16> to vector<496x128xbf16>
    %24 = tpu.concatenate %23, %22 in 0 : vector<496x128xbf16>, vector<16x128xbf16> -> vector<512x128xbf16>
    %c4 = arith.constant 4 : index
    %c0_17 = arith.constant 0 : index
    %c0_18 = arith.constant 0 : index
    %25 = vector.load %arg2[%c4, %c0_17, %c0_18] : memref<9x128x128xbf16, #tpu.memory_space<vmem>>, vector<1x128x128xbf16>
    %26 = vector.shape_cast %25 : vector<1x128x128xbf16> to vector<128x128xbf16>
    %cst_19 = arith.constant dense<0.000000e+00> : vector<512x128xf32>
    %27 = tpu.matmul %24, %26, %cst_19 {dimension_numbers = #tpu.dot_dimension_numbers<[1], [0], [0], [1], [0, 0, 1, 1], [], []>} : vector<512x128xbf16>, vector<128x128xbf16>, vector<512x128xf32> -> vector<512x128xf32>
    %28 = arith.addf %21, %27 : vector<512x128xf32>
    %cst_20 = arith.constant 0.000000e+00 : bf16
    %29 = vector.broadcast %cst_20 : bf16 to vector<32x128xbf16>
    %30 = vector.extract_strided_slice %1 {offsets = [32, 0], sizes = [480, 128], strides = [1, 1]} : vector<512x128xbf16> to vector<480x128xbf16>
    %31 = tpu.concatenate %30, %29 in 0 : vector<480x128xbf16>, vector<32x128xbf16> -> vector<512x128xbf16>
    %c7 = arith.constant 7 : index
    %c0_21 = arith.constant 0 : index
    %c0_22 = arith.constant 0 : index
    %32 = vector.load %arg2[%c7, %c0_21, %c0_22] : memref<9x128x128xbf16, #tpu.memory_space<vmem>>, vector<1x128x128xbf16>
    %33 = vector.shape_cast %32 : vector<1x128x128xbf16> to vector<128x128xbf16>
    %cst_23 = arith.constant dense<0.000000e+00> : vector<512x128xf32>
    %34 = tpu.matmul %31, %33, %cst_23 {dimension_numbers = #tpu.dot_dimension_numbers<[1], [0], [0], [1], [0, 0, 1, 1], [], []>} : vector<512x128xbf16>, vector<128x128xbf16>, vector<512x128xf32> -> vector<512x128xf32>
    %35 = arith.addf %28, %34 : vector<512x128xf32>
    %cst_24 = arith.constant 0.000000e+00 : f32
    %36 = vector.broadcast %cst_24 : f32 to vector<1x128xf32>
    %37 = vector.extract_strided_slice %35 {offsets = [1, 0], sizes = [511, 128], strides = [1, 1]} : vector<512x128xf32> to vector<511x128xf32>
    %38 = tpu.concatenate %37, %36 in 0 : vector<511x128xf32>, vector<1x128xf32> -> vector<512x128xf32>
    %39 = arith.addf %18, %38 : vector<512x128xf32>
    %c2 = arith.constant 2 : index
    %c0_25 = arith.constant 0 : index
    %c0_26 = arith.constant 0 : index
    %40 = vector.load %arg2[%c2, %c0_25, %c0_26] : memref<9x128x128xbf16, #tpu.memory_space<vmem>>, vector<1x128x128xbf16>
    %41 = vector.shape_cast %40 : vector<1x128x128xbf16> to vector<128x128xbf16>
    %cst_27 = arith.constant dense<0.000000e+00> : vector<512x128xf32>
    %42 = tpu.matmul %1, %41, %cst_27 {dimension_numbers = #tpu.dot_dimension_numbers<[1], [0], [0], [1], [0, 0, 1, 1], [], []>} : vector<512x128xbf16>, vector<128x128xbf16>, vector<512x128xf32> -> vector<512x128xf32>
    %cst_28 = arith.constant 0.000000e+00 : bf16
    %43 = vector.broadcast %cst_28 : bf16 to vector<16x128xbf16>
    %44 = vector.extract_strided_slice %1 {offsets = [16, 0], sizes = [496, 128], strides = [1, 1]} : vector<512x128xbf16> to vector<496x128xbf16>
    %45 = tpu.concatenate %44, %43 in 0 : vector<496x128xbf16>, vector<16x128xbf16> -> vector<512x128xbf16>
    %c5 = arith.constant 5 : index
    %c0_29 = arith.constant 0 : index
    %c0_30 = arith.constant 0 : index
    %46 = vector.load %arg2[%c5, %c0_29, %c0_30] : memref<9x128x128xbf16, #tpu.memory_space<vmem>>, vector<1x128x128xbf16>
    %47 = vector.shape_cast %46 : vector<1x128x128xbf16> to vector<128x128xbf16>
    %cst_31 = arith.constant dense<0.000000e+00> : vector<512x128xf32>
    %48 = tpu.matmul %45, %47, %cst_31 {dimension_numbers = #tpu.dot_dimension_numbers<[1], [0], [0], [1], [0, 0, 1, 1], [], []>} : vector<512x128xbf16>, vector<128x128xbf16>, vector<512x128xf32> -> vector<512x128xf32>
    %49 = arith.addf %42, %48 : vector<512x128xf32>
    %cst_32 = arith.constant 0.000000e+00 : bf16
    %50 = vector.broadcast %cst_32 : bf16 to vector<32x128xbf16>
    %51 = vector.extract_strided_slice %1 {offsets = [32, 0], sizes = [480, 128], strides = [1, 1]} : vector<512x128xbf16> to vector<480x128xbf16>
    %52 = tpu.concatenate %51, %50 in 0 : vector<480x128xbf16>, vector<32x128xbf16> -> vector<512x128xbf16>
    %c8 = arith.constant 8 : index
    %c0_33 = arith.constant 0 : index
    %c0_34 = arith.constant 0 : index
    %53 = vector.load %arg2[%c8, %c0_33, %c0_34] : memref<9x128x128xbf16, #tpu.memory_space<vmem>>, vector<1x128x128xbf16>
    %54 = vector.shape_cast %53 : vector<1x128x128xbf16> to vector<128x128xbf16>
    %cst_35 = arith.constant dense<0.000000e+00> : vector<512x128xf32>
    %55 = tpu.matmul %52, %54, %cst_35 {dimension_numbers = #tpu.dot_dimension_numbers<[1], [0], [0], [1], [0, 0, 1, 1], [], []>} : vector<512x128xbf16>, vector<128x128xbf16>, vector<512x128xf32> -> vector<512x128xf32>
    %56 = arith.addf %49, %55 : vector<512x128xf32>
    %cst_36 = arith.constant 0.000000e+00 : f32
    %57 = vector.broadcast %cst_36 : f32 to vector<2x128xf32>
    %58 = vector.extract_strided_slice %56 {offsets = [2, 0], sizes = [510, 128], strides = [1, 1]} : vector<512x128xf32> to vector<510x128xf32>
    %59 = tpu.concatenate %58, %57 in 0 : vector<510x128xf32>, vector<2x128xf32> -> vector<512x128xf32>
    %60 = arith.addf %39, %59 : vector<512x128xf32>
    %cst_37 = arith.constant 0.000000e+00 : f32
    %61 = vector.broadcast %cst_37 : f32 to vector<1x128xf32>
    %62 = vector.extract_strided_slice %60 {offsets = [1, 0], sizes = [511, 128], strides = [1, 1]} : vector<512x128xf32> to vector<511x128xf32>
    %63 = tpu.concatenate %62, %61 in 0 : vector<511x128xf32>, vector<1x128xf32> -> vector<512x128xf32>
    %64 = arith.maximumf %60, %63 : vector<512x128xf32>
    %65 = vector.shape_cast %64 : vector<512x128xf32> to vector<16x2x16x128xf32>
    %66 = vector.extract_strided_slice %65 {offsets = [0, 0, 0, 0], sizes = [16, 1, 16, 128], strides = [1, 1, 1, 1]} : vector<16x2x16x128xf32> to vector<16x1x16x128xf32>
    %67 = vector.shape_cast %66 : vector<16x1x16x128xf32> to vector<16x16x128xf32>
    %68 = vector.extract_strided_slice %65 {offsets = [0, 1, 0, 0], sizes = [16, 1, 16, 128], strides = [1, 1, 1, 1]} : vector<16x2x16x128xf32> to vector<16x1x16x128xf32>
    %69 = vector.shape_cast %68 : vector<16x1x16x128xf32> to vector<16x16x128xf32>
    %70 = arith.maximumf %67, %69 : vector<16x16x128xf32>
    %c0_38 = arith.constant 0 : index
    %c0_39 = arith.constant 0 : index
    %71 = vector.load %arg3[%c0_38, %c0_39] : memref<1x128xf32, #tpu.memory_space<vmem>>, vector<1x128xf32>
    %72 = vector.shape_cast %71 : vector<1x128xf32> to vector<1x1x128xf32>
    %73 = vector.broadcast %72 : vector<1x1x128xf32> to vector<16x16x128xf32>
    %74 = arith.addf %70, %73 : vector<16x16x128xf32>
    %cst_40 = arith.constant 0.000000e+00 : f32
    %75 = vector.broadcast %cst_40 : f32 to vector<16x16x128xf32>
    %76 = arith.maximumf %74, %75 : vector<16x16x128xf32>
    %77 = arith.truncf %76 : vector<16x16x128xf32> to vector<16x16x128xbf16>
    %c0_41 = arith.constant 0 : index
    %c0_42 = arith.constant 0 : index
    %c0_43 = arith.constant 0 : index
    %78 = vector.load %arg4[%c0_41, %c0_42, %c0_43] : memref<16x16x128xbf16, #tpu.memory_space<vmem>>, vector<16x16x128xbf16>
    tpu.vector_store %arg4[%c0_41, %c0_42, %c0_43], %77 {strides = array<i32>} : memref<16x16x128xbf16, #tpu.memory_space<vmem>>, vector<16x16x128xbf16>,
    return
  }
  func.func @transform_0(%arg0: i32) -> (i32, i32, i32) {
    %c0_i32 = arith.constant 0 : i32
    %c0_i32_0 = arith.constant 0 : i32
    %c0_i32_1 = arith.constant 0 : i32
    return %arg0, %c0_i32, %c0_i32_0 : i32, i32, i32
  }
  func.func @transform_1(%arg0: i32) -> (i32, i32, i32) {
    %c0_i32 = arith.constant 0 : i32
    %c0_i32_0 = arith.constant 0 : i32
    %c0_i32_1 = arith.constant 0 : i32
    %c0_i32_2 = arith.constant 0 : i32
    return %c0_i32, %c0_i32_0, %c0_i32_1 : i32, i32, i32
  }
  func.func @transform_2(%arg0: i32) -> (i32, i32) {
    %c0_i32 = arith.constant 0 : i32
    %c0_i32_0 = arith.constant 0 : i32
    %c0_i32_1 = arith.constant 0 : i32
    return %c0_i32, %c0_i32_0 : i32, i32
  }
  func.func @transform_3(%arg0: i32) -> (i32, i32, i32) {
    %c0_i32 = arith.constant 0 : i32
    %c0_i32_0 = arith.constant 0 : i32
    %c0_i32_1 = arith.constant 0 : i32
    return %arg0, %c0_i32, %c0_i32_0 : i32, i32, i32
  }
}

module attributes {stable_mosaic.version = 11 : i64} {
  func.func @_conv1_bn_relu_pool_kernel(%arg0: i32, %arg1: memref<32x16x16xbf16, #tpu.memory_space<vmem>>, %arg2: memref<16x512xbf16, #tpu.memory_space<vmem>>, %arg3: memref<1x128xf32, #tpu.memory_space<vmem>>, %arg4: memref<32x16x128xbf16, #tpu.memory_space<vmem>>) attributes {dimension_semantics = [#tpu.dimension_semantics<parallel>], iteration_bounds = array<i64: 2>, scalar_prefetch = 0 : i64, scratch_operands = 0 : i64, tpu.core_type = #tpu.core_type<tc>, window_params = [{transform_indices = @transform_0, window_bounds = array<i64: 32, 16, 16>}, {pipeline_mode = #tpu.pipeline_mode<synchronous>, transform_indices = @transform_1, window_bounds = array<i64: 16, 512>}, {pipeline_mode = #tpu.pipeline_mode<synchronous>, transform_indices = @transform_2, window_bounds = array<i64: 1, 128>}, {transform_indices = @transform_3, window_bounds = array<i64: 32, 16, 128>}]} {
    %c0 = arith.constant 0 : index
    %c0_0 = arith.constant 0 : index
    %c0_1 = arith.constant 0 : index
    %0 = vector.load %arg1[%c0, %c0_0, %c0_1] : memref<32x16x16xbf16, #tpu.memory_space<vmem>>, vector<32x16x16xbf16>
    %1 = vector.shape_cast %0 : vector<32x16x16xbf16> to vector<512x16xbf16>
    %c0_2 = arith.constant 0 : index
    %c0_3 = arith.constant 0 : index
    %2 = vector.load %arg2[%c0_2, %c0_3] : memref<16x512xbf16, #tpu.memory_space<vmem>>, vector<16x512xbf16>
    %cst = arith.constant dense<0.000000e+00> : vector<512x512xf32>
    %3 = tpu.matmul %1, %2, %cst {dimension_numbers = #tpu.dot_dimension_numbers<[1], [0], [0], [1], [0, 0, 1, 1], [], []>} : vector<512x16xbf16>, vector<16x512xbf16>, vector<512x512xf32> -> vector<512x512xf32>
    %4 = vector.extract_strided_slice %3 {offsets = [0, 0], sizes = [512, 128], strides = [1, 1]} : vector<512x512xf32> to vector<512x128xf32>
    %5 = vector.extract_strided_slice %3 {offsets = [0, 128], sizes = [512, 128], strides = [1, 1]} : vector<512x512xf32> to vector<512x128xf32>
    %6 = arith.maximumf %4, %5 : vector<512x128xf32>
    %7 = vector.extract_strided_slice %3 {offsets = [0, 256], sizes = [512, 128], strides = [1, 1]} : vector<512x512xf32> to vector<512x128xf32>
    %8 = vector.extract_strided_slice %3 {offsets = [0, 384], sizes = [512, 128], strides = [1, 1]} : vector<512x512xf32> to vector<512x128xf32>
    %9 = arith.maximumf %7, %8 : vector<512x128xf32>
    %10 = arith.maximumf %6, %9 : vector<512x128xf32>
    %c0_4 = arith.constant 0 : index
    %c0_5 = arith.constant 0 : index
    %11 = vector.load %arg3[%c0_4, %c0_5] : memref<1x128xf32, #tpu.memory_space<vmem>>, vector<1x128xf32>
    %12 = vector.broadcast %11 : vector<1x128xf32> to vector<512x128xf32>
    %13 = arith.addf %10, %12 : vector<512x128xf32>
    %cst_6 = arith.constant 0.000000e+00 : f32
    %14 = vector.broadcast %cst_6 : f32 to vector<512x128xf32>
    %15 = arith.maximumf %13, %14 : vector<512x128xf32>
    %16 = vector.shape_cast %15 : vector<512x128xf32> to vector<32x16x128xf32>
    %17 = arith.truncf %16 : vector<32x16x128xf32> to vector<32x16x128xbf16>
    %c0_7 = arith.constant 0 : index
    %c0_8 = arith.constant 0 : index
    %c0_9 = arith.constant 0 : index
    %18 = vector.load %arg4[%c0_7, %c0_8, %c0_9] : memref<32x16x128xbf16, #tpu.memory_space<vmem>>, vector<32x16x128xbf16>
    tpu.vector_store %arg4[%c0_7, %c0_8, %c0_9], %17 {strides = array<i32>} : memref<32x16x128xbf16, #tpu.memory_space<vmem>>, vector<32x16x128xbf16>,
    return
  }
  func.func @transform_0(%arg0: i32) -> (i32, i32, i32) {
    %c0_i32 = arith.constant 0 : i32
    %c0_i32_0 = arith.constant 0 : i32
    %c0_i32_1 = arith.constant 0 : i32
    return %arg0, %c0_i32, %c0_i32_0 : i32, i32, i32
  }
  func.func @transform_1(%arg0: i32) -> (i32, i32) {
    %c0_i32 = arith.constant 0 : i32
    %c0_i32_0 = arith.constant 0 : i32
    %c0_i32_1 = arith.constant 0 : i32
    return %c0_i32, %c0_i32_0 : i32, i32
  }
  func.func @transform_2(%arg0: i32) -> (i32, i32) {
    %c0_i32 = arith.constant 0 : i32
    %c0_i32_0 = arith.constant 0 : i32
    %c0_i32_1 = arith.constant 0 : i32
    return %c0_i32, %c0_i32_0 : i32, i32
  }
  func.func @transform_3(%arg0: i32) -> (i32, i32, i32) {
    %c0_i32 = arith.constant 0 : i32
    %c0_i32_0 = arith.constant 0 : i32
    %c0_i32_1 = arith.constant 0 : i32
    return %arg0, %c0_i32, %c0_i32_0 : i32, i32, i32
  }
}

module attributes {stable_mosaic.version = 11 : i64} {
  func.func @_head_kernel(%arg0: i32, %arg1: memref<4x2304xbf16, #tpu.memory_space<vmem>>, %arg2: memref<2304x128xbf16, #tpu.memory_space<vmem>>, %arg3: memref<1x128xf32, #tpu.memory_space<vmem>>, %arg4: memref<4x128xf32, #tpu.memory_space<vmem>>) attributes {dimension_semantics = [#tpu.dimension_semantics<parallel>], iteration_bounds = array<i64: 1>, scalar_prefetch = 0 : i64, scratch_operands = 0 : i64, tpu.core_type = #tpu.core_type<tc>, window_params = [{transform_indices = @transform_0, window_bounds = array<i64: 4, 2304>}, {pipeline_mode = #tpu.pipeline_mode<synchronous>, transform_indices = @transform_1, window_bounds = array<i64: 2304, 128>}, {pipeline_mode = #tpu.pipeline_mode<synchronous>, transform_indices = @transform_2, window_bounds = array<i64: 1, 128>}, {transform_indices = @transform_3, window_bounds = array<i64: 4, 128>}]} {
    %c0 = arith.constant 0 : index
    %c0_0 = arith.constant 0 : index
    %0 = vector.load %arg1[%c0, %c0_0] : memref<4x2304xbf16, #tpu.memory_space<vmem>>, vector<4x2304xbf16>
    %c0_1 = arith.constant 0 : index
    %c0_2 = arith.constant 0 : index
    %1 = vector.load %arg2[%c0_1, %c0_2] : memref<2304x128xbf16, #tpu.memory_space<vmem>>, vector<2304x128xbf16>
    %cst = arith.constant dense<0.000000e+00> : vector<4x128xf32>
    %2 = tpu.matmul %0, %1, %cst {dimension_numbers = #tpu.dot_dimension_numbers<[1], [0], [0], [1], [0, 0, 1, 1], [], []>} : vector<4x2304xbf16>, vector<2304x128xbf16>, vector<4x128xf32> -> vector<4x128xf32>
    %c0_3 = arith.constant 0 : index
    %c0_4 = arith.constant 0 : index
    %3 = vector.load %arg3[%c0_3, %c0_4] : memref<1x128xf32, #tpu.memory_space<vmem>>, vector<1x128xf32>
    %4 = vector.broadcast %3 : vector<1x128xf32> to vector<4x128xf32>
    %5 = arith.addf %2, %4 : vector<4x128xf32>
    %c0_5 = arith.constant 0 : index
    %c0_6 = arith.constant 0 : index
    %6 = vector.load %arg4[%c0_5, %c0_6] : memref<4x128xf32, #tpu.memory_space<vmem>>, vector<4x128xf32>
    tpu.vector_store %arg4[%c0_5, %c0_6], %5 {strides = array<i32>} : memref<4x128xf32, #tpu.memory_space<vmem>>, vector<4x128xf32>,
    return
  }
  func.func @transform_0(%arg0: i32) -> (i32, i32) {
    %c0_i32 = arith.constant 0 : i32
    %c0_i32_0 = arith.constant 0 : i32
    return %arg0, %c0_i32 : i32, i32
  }
  func.func @transform_1(%arg0: i32) -> (i32, i32) {
    %c0_i32 = arith.constant 0 : i32
    %c0_i32_0 = arith.constant 0 : i32
    %c0_i32_1 = arith.constant 0 : i32
    return %c0_i32, %c0_i32_0 : i32, i32
  }
  func.func @transform_2(%arg0: i32) -> (i32, i32) {
    %c0_i32 = arith.constant 0 : i32
    %c0_i32_0 = arith.constant 0 : i32
    %c0_i32_1 = arith.constant 0 : i32
    return %c0_i32, %c0_i32_0 : i32, i32
  }
  func.func @transform_3(%arg0: i32) -> (i32, i32) {
    %c0_i32 = arith.constant 0 : i32
    %c0_i32_0 = arith.constant 0 : i32
    return %arg0, %c0_i32 : i32, i32
  }
}

</mosaic_0001>

<llo_original>
// kernel: fashion_cnn_forward.3
$region0: #{fashion_cnn_forward.3}
  #allocation0 [shape = 'u32[]', space=smem, size = 0x4, offset = 0x4, fixed_abs, tag = 'smem constant byte address 0x4 - core index']
  #allocation1 [shape = 'u32[144,128]{1,0:T(1,128)}', space=vmem, size = 0x12000, scoped, tag = 'internal scratch']
  %s0 = inlined_call_operand.vmem [shape: bf16[64,16,16], index: 0, kind: input, shape index: {}]
  %s1 = inlined_call_operand.vmem [shape: bf16[16,512], index: 1, kind: input, shape index: {}]
  %s2 = inlined_call_operand.vmem [shape: f32[1,128], index: 2, kind: input, shape index: {}]
  %s3 = inlined_call_operand.vmem [shape: bf16[64,16,128], index: 3, kind: output, shape index: {}]
  %s4 = sld [smem:[#allocation0]]
  $region45: #{fashion_cnn_forward.3} parent=0
    _
  %s6 = ssub.s32 1, %s4
  %s7 = scalar_select 0, %s6, %s4
  loop: start=0, step=1, limit=4
  $region2: #{fashion_cnn_forward.3} parent=0 // loop_pre_header
    _
  $region3: #{fashion_cnn_forward.3} parent=0 // loop_header
    %s9 = sphi 0, %s13
    %p10 = scmp.ge.s32.totalorder %s9, 4
    %s19 = sphi 0, %s21
    %s22 = sphi 0, %s19
    %s23 = sphi 0, %s22
    %s39 = sphi 0, %s23
    %s43 = sphi 0, %s43
    %s45 = sphi 0, %s43
    %s46 = sphi 0, %s45
    %s60 = sphi 0, %s46
    %s64 = sphi 0, %s64
    %s66 = sphi 0, %s64
    %s67 = sphi 0, %s66
    %s81 = sphi 0, %s67
    %s87 = sphi 0, %s89
    %s90 = sphi 0, %s87
    %s91 = sphi 0, %s90
    %s107 = sphi 0, %s91
  $region4: #{fashion_cnn_forward.3} parent=0 // loop_header_branch
    %12 = sbr.rel (%p10) target = $region8
  $region5: #{fashion_cnn_forward.3} parent=0 // loop_body
    %s14 = ssub.s32 %s9, 1
    %s15 = ssub.s32 %s9, 2
    %s16 = sadd.s32 %s9, 1
    %s17 = ssub.s32 %s9, %s16
    %p18 = scmp.eq.s32.totalorder %s17, 0
    %s20 = sadd.s32 %s19, 1
    %s21 = scalar_select %p18, %s19, %s20
    %p24 = pneg %p18
    %p25 = scmp.eq.s32.totalorder %s9, 1
    %p26 = por %p24, %p25
    %p27 = scmp.ne.s32.totalorder %s19, %s22
    %p28 = scmp.eq.s32.totalorder %s9, 0
    %p29 = por %p27, %p28
    %p30 = scmp.ne.s32.totalorder %s19, %s22
    %p31 = scmp.eq.s32.totalorder %s14, 1
    %p32 = por %p30, %p31
    %p33 = scmp.ne.s32.totalorder %s22, %s23
    %p34 = scmp.eq.s32.totalorder %s14, 0
    %p35 = por %p33, %p34
    %p36 = scmp.ne.s32.totalorder %s22, %s23
    %p37 = scmp.eq.s32.totalorder %s15, 1
    %p38 = por %p36, %p37
    %p40 = scmp.ne.s32.totalorder %s23, %s39
    %p41 = scmp.eq.s32.totalorder %s15, 0
    %p42 = por %p40, %p41
    %s44 = sadd.s32 %s43, 1
    %p47 = scmp.eq.s32.totalorder %s9, 1
    %p48 = scmp.ne.s32.totalorder %s43, %s45
    %p49 = scmp.eq.s32.totalorder %s9, 0
    %p50 = por %p48, %p49
    %p51 = scmp.ne.s32.totalorder %s43, %s45
    %p52 = scmp.eq.s32.totalorder %s14, 1
    %p53 = por %p51, %p52
    %p54 = scmp.ne.s32.totalorder %s45, %s46
    %p55 = scmp.eq.s32.totalorder %s14, 0
    %p56 = por %p54, %p55
    %p57 = scmp.ne.s32.totalorder %s45, %s46
    %p58 = scmp.eq.s32.totalorder %s15, 1
    %p59 = por %p57, %p58
    %p61 = scmp.ne.s32.totalorder %s46, %s60
    %p62 = scmp.eq.s32.totalorder %s15, 0
    %p63 = por %p61, %p62
    %s65 = sadd.s32 %s64, 1
    %p68 = scmp.eq.s32.totalorder %s9, 1
    %p69 = scmp.ne.s32.totalorder %s64, %s66
    %p70 = scmp.eq.s32.totalorder %s9, 0
    %p71 = por %p69, %p70
    %p72 = scmp.ne.s32.totalorder %s64, %s66
    %p73 = scmp.eq.s32.totalorder %s14, 1
    %p74 = por %p72, %p73
    %p75 = scmp.ne.s32.totalorder %s66, %s67
    %p76 = scmp.eq.s32.totalorder %s14, 0
    %p77 = por %p75, %p76
    %p78 = scmp.ne.s32.totalorder %s66, %s67
    %p79 = scmp.eq.s32.totalorder %s15, 1
    %p80 = por %p78, %p79
    %p82 = scmp.ne.s32.totalorder %s67, %s81
    %p83 = scmp.eq.s32.totalorder %s15, 0
    %p84 = por %p82, %p83
    %s85 = ssub.s32 %s9, %s16
    %p86 = scmp.eq.s32.totalorder %s85, 0
    %s88 = sadd.s32 %s87, 1
    %s89 = scalar_select %p86, %s87, %s88
    %p92 = pneg %p86
    %p93 = scmp.eq.s32.totalorder %s9, 1
    %p94 = por %p92, %p93
    %p95 = scmp.ne.s32.totalorder %s87, %s90
    %p96 = scmp.eq.s32.totalorder %s9, 0
    %p97 = por %p95, %p96
    %p98 = scmp.ne.s32.totalorder %s87, %s90
    %p99 = scmp.eq.s32.totalorder %s14, 1
    %p100 = por %p98, %p99
    %p101 = scmp.ne.s32.totalorder %s90, %s91
    %p102 = scmp.eq.s32.totalorder %s14, 0
    %p103 = por %p101, %p102
    %p104 = scmp.ne.s32.totalorder %s90, %s91
    %p105 = scmp.eq.s32.totalorder %s15, 1
    %p106 = por %p104, %p105
    %p108 = scmp.ne.s32.totalorder %s91, %s107
    %p109 = scmp.eq.s32.totalorder %s15, 0
    %p110 = por %p108, %p109
    %p111 = scmp.le.s32.totalorder 1, %s9
    %p112 = scmp.lt.s32.totalorder %s9, 3
    %p113 = pnand %p111, %p112
    %p114 = pneg %p113
    // Predicated region
    $region9: #{fashion_cnn_forward.3} parent=5 // pred_check
      _
    $region10: #{fashion_cnn_forward.3} parent=5 // pred_check_branch
      %116 = sbr.rel (%p113) target = $region12
    $region11: #{fashion_cnn_forward.3} parent=5 // pred_region
      %s117 = ssub.s32 %s9, 1
      // Predicated region
      $region13: #{fashion_cnn_forward.3} parent=11 // pred_check
        %p118 = pneg %p56
      $region14: #{fashion_cnn_forward.3} parent=11 // pred_check_branch
        %120 = sbr.rel (%p118) target = $region16
      $region15: #{fashion_cnn_forward.3} parent=11 // pred_region
        _
      $region16: #{fashion_cnn_forward.3} parent=11 // pred_fallthru
        _
      // Predicated region
      $region17: #{fashion_cnn_forward.3} parent=11 // pred_check
        %p121 = pneg %p77
      $region18: #{fashion_cnn_forward.3} parent=11 // pred_check_branch
        %123 = sbr.rel (%p121) target = $region20
      $region19: #{fashion_cnn_forward.3} parent=11 // pred_region
        _
      $region20: #{fashion_cnn_forward.3} parent=11 // pred_fallthru
        _
    $region12: #{fashion_cnn_forward.3} parent=5 // pred_fallthru
      _
    %p124 = scmp.lt.s32.totalorder %s9, 2
    // Predicated region
    $region21: #{fashion_cnn_forward.3} parent=5 // pred_check
      %p125 = pneg %p124
    $region22: #{fashion_cnn_forward.3} parent=5 // pred_check_branch
      %127 = sbr.rel (%p125) target = $region24
    $region23: #{fashion_cnn_forward.3} parent=5 // pred_region
      // Predicated region
      $region25: #{fashion_cnn_forward.3} parent=23 // pred_check
        %p128 = pneg %p29
      $region26: #{fashion_cnn_forward.3} parent=23 // pred_check_branch
        %130 = sbr.rel (%p128) target = $region28
      $region27: #{fashion_cnn_forward.3} parent=23 // pred_region
        %s131 = smul.u32 32, %s9
        %p132 = scmp.lt.s32.totalorder %s131, 63
        %s133 = scalar_select %p132, %s131, 63
        %s134 = smul.addr %s133, 2
        %s135 = smul.addr %s134, 4
        %s136 = scalar_lea.vmem %s0, %s135
        %s137 = smul.u32 32, %s9
      $region28: #{fashion_cnn_forward.3} parent=23 // pred_fallthru
        _
    $region24: #{fashion_cnn_forward.3} parent=5 // pred_fallthru
      _
    %p138 = scmp.le.s32.totalorder 1, %s9
    %p139 = scmp.lt.s32.totalorder %s9, 3
    %p140 = pnand %p138, %p139
    %p141 = pneg %p140
    // Predicated region
    $region29: #{fashion_cnn_forward.3} parent=5 // pred_check
      _
    $region30: #{fashion_cnn_forward.3} parent=5 // pred_check_branch
      %143 = sbr.rel (%p140) target = $region32
    $region31: #{fashion_cnn_forward.3} parent=5 // pred_region
      %s144 = ssub.s32 %s9, 1
      %s145 = smul.u32 32, %s14
      %p146 = scmp.lt.s32.totalorder %s145, 63
      %s147 = scalar_select %p146, %s145, 63
      %s148 = smul.addr %s147, 2
      %s149 = smul.addr %s148, 4
      %s150 = scalar_lea.vmem %s0, %s149
      %p151 = pneg %p35
      %p152 = pneg %p32
      %p153 = pneg %p56
      %p154 = pneg %p53
      %p155 = pneg %p77
      %p156 = pneg %p74
      %p157 = pneg %p103
      %p158 = pneg %p100
      %s159 = smul.u32 32, %s14
      %p160 = scmp.lt.s32.totalorder %s159, 63
      %s161 = scalar_select %p160, %s159, 63
      %s162 = smul.addr %s161, 2
      %s163 = smul.addr %s162, 4
      %s164 = scalar_lea.vmem %s3, %s163
      %s165 = smul.u32 32, %s14
      %p166 = scmp.lt.s32.totalorder %s165, 63
      %s167 = scalar_select %p166, %s165, 63
      %s168 = smul.addr %s167, 2
      %s169 = smul.addr %s168, 4
      %s170 = scalar_lea.vmem %s0, %s169
      %s171 = smul.u32 32, %s14
      %s172 = smul.u32 32, %s14
      %p173 = scmp.lt.s32.totalorder %s172, 63
      %s174 = scalar_select %p173, %s172, 63
      %s175 = smul.addr %s174, 2
      %s176 = smul.addr %s175, 4
      %s177 = scalar_lea.vmem %s3, %s176
      %s178 = smul.u32 32, %s14
      %v180 = vld [vmem:[%s170] sm:$0xf]
      %v181 = vld [vmem:[%s170 + $0x4] sm:$0xf]
      %v182 = vld [vmem:[%s170 + $0x8] sm:$0xf]
      %v183 = vld [vmem:[%s170 + $0xc] sm:$0xf]
      %v184 = vld [vmem:[%s170 + $0x10] sm:$0xf]
      %v185 = vld [vmem:[%s170 + $0x14] sm:$0xf]
      %v186 = vld [vmem:[%s170 + $0x18] sm:$0xf]
      %v187 = vld [vmem:[%s170 + $0x1c] sm:$0xf]
      %v188 = vld [vmem:[%s170 + $0x20] sm:$0xf]
      %v189 = vld [vmem:[%s170 + $0x24] sm:$0xf]
      %v190 = vld [vmem:[%s170 + $0x28] sm:$0xf]
      %v191 = vld [vmem:[%s170 + $0x2c] sm:$0xf]
      %v192 = vld [vmem:[%s170 + $0x30] sm:$0xf]
      %v193 = vld [vmem:[%s170 + $0x34] sm:$0xf]
      %v194 = vld [vmem:[%s170 + $0x38] sm:$0xf]
      %v195 = vld [vmem:[%s170 + $0x3c] sm:$0xf]
      %v196 = vld [vmem:[%s170 + $0x40] sm:$0xf]
      %v197 = vld [vmem:[%s170 + $0x44] sm:$0xf]
      %v198 = vld [vmem:[%s170 + $0x48] sm:$0xf]
      %v199 = vld [vmem:[%s170 + $0x4c] sm:$0xf]
      %v200 = vld [vmem:[%s170 + $0x50] sm:$0xf]
      %v201 = vld [vmem:[%s170 + $0x54] sm:$0xf]
      %v202 = vld [vmem:[%s170 + $0x58] sm:$0xf]
      %v203 = vld [vmem:[%s170 + $0x5c] sm:$0xf]
      %v204 = vld [vmem:[%s170 + $0x60] sm:$0xf]
      %v205 = vld [vmem:[%s170 + $0x64] sm:$0xf]
      %v206 = vld [vmem:[%s170 + $0x68] sm:$0xf]
      %v207 = vld [vmem:[%s170 + $0x6c] sm:$0xf]
      %v208 = vld [vmem:[%s170 + $0x70] sm:$0xf]
      %v209 = vld [vmem:[%s170 + $0x74] sm:$0xf]
      %v210 = vld [vmem:[%s170 + $0x78] sm:$0xf]
      %v211 = vld [vmem:[%s170 + $0x7c] sm:$0xf]
      %v212 = vld [vmem:[%s170 + $0x80] sm:$0xf]
      %v213 = vld [vmem:[%s170 + $0x84] sm:$0xf]
      %v214 = vld [vmem:[%s170 + $0x88] sm:$0xf]
      %v215 = vld [vmem:[%s170 + $0x8c] sm:$0xf]
      %v216 = vld [vmem:[%s170 + $0x90] sm:$0xf]
      %v217 = vld [vmem:[%s170 + $0x94] sm:$0xf]
      %v218 = vld [vmem:[%s170 + $0x98] sm:$0xf]
      %v219 = vld [vmem:[%s170 + $0x9c] sm:$0xf]
      %v220 = vld [vmem:[%s170 + $0xa0] sm:$0xf]
      %v221 = vld [vmem:[%s170 + $0xa4] sm:$0xf]
      %v222 = vld [vmem:[%s170 + $0xa8] sm:$0xf]
      %v223 = vld [vmem:[%s170 + $0xac] sm:$0xf]
      %v224 = vld [vmem:[%s170 + $0xb0] sm:$0xf]
      %v225 = vld [vmem:[%s170 + $0xb4] sm:$0xf]
      %v226 = vld [vmem:[%s170 + $0xb8] sm:$0xf]
      %v227 = vld [vmem:[%s170 + $0xbc] sm:$0xf]
      %v228 = vld [vmem:[%s170 + $0xc0] sm:$0xf]
      %v229 = vld [vmem:[%s170 + $0xc4] sm:$0xf]
      %v230 = vld [vmem:[%s170 + $0xc8] sm:$0xf]
      %v231 = vld [vmem:[%s170 + $0xcc] sm:$0xf]
      %v232 = vld [vmem:[%s170 + $0xd0] sm:$0xf]
      %v233 = vld [vmem:[%s170 + $0xd4] sm:$0xf]
      %v234 = vld [vmem:[%s170 + $0xd8] sm:$0xf]
      %v235 = vld [vmem:[%s170 + $0xdc] sm:$0xf]
      %v236 = vld [vmem:[%s170 + $0xe0] sm:$0xf]
      %v237 = vld [vmem:[%s170 + $0xe4] sm:$0xf]
      %v238 = vld [vmem:[%s170 + $0xe8] sm:$0xf]
      %v239 = vld [vmem:[%s170 + $0xec] sm:$0xf]
      %v240 = vld [vmem:[%s170 + $0xf0] sm:$0xf]
      %v241 = vld [vmem:[%s170 + $0xf4] sm:$0xf]
      %v242 = vld [vmem:[%s170 + $0xf8] sm:$0xf]
      %v243 = vld [vmem:[%s170 + $0xfc] sm:$0xf]
      %v244 = vld [vmem:[%s1] sm:$0xff]
      %v245 = vld [vmem:[%s1 + $0x8] sm:$0xff]
      %v246 = vld [vmem:[%s1 + $0x10] sm:$0xff]
      %v247 = vld [vmem:[%s1 + $0x18] sm:$0xff]
      %v312 = vunpack.c.l.b16 %v180
      %v313 = vunpack.c.l.b16 %v181
      %v314 = vunpack.c.l.b16 %v182
      %v315 = vunpack.c.l.b16 %v183
      %v316 = vunpack.c.l.b16 %v184
      %v317 = vunpack.c.l.b16 %v185
      %v318 = vunpack.c.l.b16 %v186
      %v319 = vunpack.c.l.b16 %v187
      %v320 = vunpack.c.l.b16 %v188
      %v321 = vunpack.c.l.b16 %v189
      %v322 = vunpack.c.l.b16 %v190
      %v323 = vunpack.c.l.b16 %v191
      %v324 = vunpack.c.l.b16 %v192
      %v325 = vunpack.c.l.b16 %v193
      %v326 = vunpack.c.l.b16 %v194
      %v327 = vunpack.c.l.b16 %v195
      %v328 = vunpack.c.l.b16 %v196
      %v329 = vunpack.c.l.b16 %v197
      %v330 = vunpack.c.l.b16 %v198
      %v331 = vunpack.c.l.b16 %v199
      %v332 = vunpack.c.l.b16 %v200
      %v333 = vunpack.c.l.b16 %v201
      %v334 = vunpack.c.l.b16 %v202
      %v335 = vunpack.c.l.b16 %v203
      %v336 = vunpack.c.l.b16 %v204
      %v337 = vunpack.c.l.b16 %v205
      %v338 = vunpack.c.l.b16 %v206
      %v339 = vunpack.c.l.b16 %v207
      %v340 = vunpack.c.l.b16 %v208
      %v341 = vunpack.c.l.b16 %v209
      %v342 = vunpack.c.l.b16 %v210
      %v343 = vunpack.c.l.b16 %v211
      %v344 = vunpack.c.l.b16 %v212
      %v345 = vunpack.c.l.b16 %v213
      %v346 = vunpack.c.l.b16 %v214
      %v347 = vunpack.c.l.b16 %v215
      %v348 = vunpack.c.l.b16 %v216
      %v349 = vunpack.c.l.b16 %v217
      %v350 = vunpack.c.l.b16 %v218
      %v351 = vunpack.c.l.b16 %v219
      %v352 = vunpack.c.l.b16 %v220
      %v353 = vunpack.c.l.b16 %v221
      %v354 = vunpack.c.l.b16 %v222
      %v355 = vunpack.c.l.b16 %v223
      %v356 = vunpack.c.l.b16 %v224
      %v357 = vunpack.c.l.b16 %v225
      %v358 = vunpack.c.l.b16 %v226
      %v359 = vunpack.c.l.b16 %v227
      %v360 = vunpack.c.l.b16 %v228
      %v361 = vunpack.c.l.b16 %v229
      %v362 = vunpack.c.l.b16 %v230
      %v363 = vunpack.c.l.b16 %v231
      %v364 = vunpack.c.l.b16 %v232
      %v365 = vunpack.c.l.b16 %v233
      %v366 = vunpack.c.l.b16 %v234
      %v367 = vunpack.c.l.b16 %v235
      %v368 = vunpack.c.l.b16 %v236
      %v369 = vunpack.c.l.b16 %v237
      %v370 = vunpack.c.l.b16 %v238
      %v371 = vunpack.c.l.b16 %v239
      %v372 = vunpack.c.l.b16 %v240
      %v373 = vunpack.c.l.b16 %v241
      %v374 = vunpack.c.l.b16 %v242
      %v375 = vunpack.c.l.b16 %v243
      %v376 = vpack.c.b16 %v313, %v312
      %v377 = vpack.c.b16 %v315, %v314
      %v378 = vpack.c.b16 %v317, %v316
      %v379 = vpack.c.b16 %v319, %v318
      %v380 = vpack.c.b16 %v321, %v320
      %v381 = vpack.c.b16 %v323, %v322
      %v382 = vpack.c.b16 %v325, %v324
      %v383 = vpack.c.b16 %v327, %v326
      %v384 = vpack.c.b16 %v329, %v328
      %v385 = vpack.c.b16 %v331, %v330
      %v386 = vpack.c.b16 %v333, %v332
      %v387 = vpack.c.b16 %v335, %v334
      %v388 = vpack.c.b16 %v337, %v336
      %v389 = vpack.c.b16 %v339, %v338
      %v390 = vpack.c.b16 %v341, %v340
      %v391 = vpack.c.b16 %v343, %v342
      %v392 = vpack.c.b16 %v345, %v344
      %v393 = vpack.c.b16 %v347, %v346
      %v394 = vpack.c.b16 %v349, %v348
      %v395 = vpack.c.b16 %v351, %v350
      %v396 = vpack.c.b16 %v353, %v352
      %v397 = vpack.c.b16 %v355, %v354
      %v398 = vpack.c.b16 %v357, %v356
      %v399 = vpack.c.b16 %v359, %v358
      %v400 = vpack.c.b16 %v361, %v360
      %v401 = vpack.c.b16 %v363, %v362
      %v402 = vpack.c.b16 %v365, %v364
      %v403 = vpack.c.b16 %v367, %v366
      %v404 = vpack.c.b16 %v369, %v368
      %v405 = vpack.c.b16 %v371, %v370
      %v406 = vpack.c.b16 %v373, %v372
      %v407 = vpack.c.b16 %v375, %v374
      %v412 = vunpack.c.l.b16 %v244
      %v413 = vunpack.c.h.b16 %v244
      %v414 = vunpack.c.l.b16 %v245
      %v415 = vunpack.c.h.b16 %v245
      %v416 = vunpack.c.l.b16 %v246
      %v417 = vunpack.c.h.b16 %v246
      %v418 = vunpack.c.l.b16 %v247
      %v419 = vunpack.c.h.b16 %v247
      %v420 = vpack.c.b16 %v416, %v412
      %v421 = vpack.c.b16 %v417, %v413
      %v422 = vpack.c.b16 %v418, %v414
      %v423 = vpack.c.b16 %v419, %v415
      %vm428 = vcmask 130048
      %v430 = vsel %vm428, %v376, 0
      %v433 = vsel %vm428, %v377, 0
      %v436 = vsel %vm428, %v378, 0
      %v439 = vsel %vm428, %v379, 0
      %v442 = vsel %vm428, %v380, 0
      %v445 = vsel %vm428, %v381, 0
      %v448 = vsel %vm428, %v382, 0
      %v451 = vsel %vm428, %v383, 0
      %v454 = vsel %vm428, %v384, 0
      %v457 = vsel %vm428, %v385, 0
      %v460 = vsel %vm428, %v386, 0
      %v463 = vsel %vm428, %v387, 0
      %v466 = vsel %vm428, %v388, 0
      %v469 = vsel %vm428, %v389, 0
      %v472 = vsel %vm428, %v390, 0
      %v475 = vsel %vm428, %v391, 0
      %v478 = vsel %vm428, %v392, 0
      %v481 = vsel %vm428, %v393, 0
      %v484 = vsel %vm428, %v394, 0
      %v487 = vsel %vm428, %v395, 0
      %v490 = vsel %vm428, %v396, 0
      %v493 = vsel %vm428, %v397, 0
      %v496 = vsel %vm428, %v398, 0
      %v499 = vsel %vm428, %v399, 0
      %v502 = vsel %vm428, %v400, 0
      %v505 = vsel %vm428, %v401, 0
      %v508 = vsel %vm428, %v402, 0
      %v511 = vsel %vm428, %v403, 0
      %v514 = vsel %vm428, %v404, 0
      %v517 = vsel %vm428, %v405, 0
      %v520 = vsel %vm428, %v406, 0
      %v523 = vsel %vm428, %v407, 0
      %525 = vmatprep.subr.bf16.mxu0 %v421
      %526 = vmatpush1.bf16.msra.mxu0 %v420
      %527 = vmatprep.subr.bf16.mxu0 0
      %528 = vmatpush1.bf16.msra.mxu0 0
      %529 = vmatprep.subr.bf16.mxu0 0
      %530 = vmatpush1.bf16.msra.mxu0 0
      %531 = vmatprep.subr.bf16.mxu0 0
      %532 = vmatpush1.bf16.msra.mxu0 0
      %533 = vmatprep.subr.bf16.mxu0 0
      %534 = vmatpush1.bf16.msra.mxu0 0
      %535 = vmatprep.subr.bf16.mxu0 0
      %536 = vmatpush1.bf16.msra.mxu0 0
      %537 = vmatprep.subr.bf16.mxu0 0
      %538 = vmatpush1.bf16.msra.mxu0 0
      %539 = vmatprep.subr.bf16.mxu0 0
      %540 = vmatpush1.bf16.msra.mxu0 0
      %541 = vmatprep.subr.bf16.mxu0 0
      %542 = vmatpush1.bf16.msra.mxu0 0
      %543 = vmatprep.subr.bf16.mxu0 0
      %544 = vmatpush1.bf16.msra.mxu0 0
      %545 = vmatprep.subr.bf16.mxu0 0
      %546 = vmatpush1.bf16.msra.mxu0 0
      %547 = vmatprep.subr.bf16.mxu0 0
      %548 = vmatpush1.bf16.msra.mxu0 0
      %549 = vmatprep.subr.bf16.mxu0 0
      %550 = vmatpush1.bf16.msra.mxu0 0
      %551 = vmatprep.subr.bf16.mxu0 0
      %552 = vmatpush1.bf16.msra.mxu0 0
      %553 = vmatprep.subr.bf16.mxu0 0
      %554 = vmatpush1.bf16.msra.mxu0 0
      %555 = vmatprep.subr.bf16.mxu0 0
      %556 = vmatpush1.bf16.msra.mxu0 0
      %557 = vmatprep.mubr.bf16.mxu0 0
      %558 = vmatmul.mubr.bf16.gmra.mrb[0].mxu0 %v430
      %v559 = vpop.f32.mrb[0].mxu0
      %v560 = vadd.f32 0.0, %v559
      %v561 = vpop.f32.mrb[0].mxu0
      %v562 = vadd.f32 0.0, %v561
      %v563 = vpop.f32.mrb[0].mxu0
      %v564 = vadd.f32 0.0, %v563
      %v565 = vpop.f32.mrb[0].mxu0
      %v566 = vadd.f32 0.0, %v565
      %567 = vmatprep.mubr.bf16.mxu0 0
      %568 = vmatmul.mubr.bf16.gmra.mrb[0].mxu0 %v433
      %v569 = vpop.f32.mrb[0].mxu0
      %v570 = vadd.f32 0.0, %v569
      %v571 = vpop.f32.mrb[0].mxu0
      %v572 = vadd.f32 0.0, %v571
      %v573 = vpop.f32.mrb[0].mxu0
      %v574 = vadd.f32 0.0, %v573
      %v575 = vpop.f32.mrb[0].mxu0
      %v576 = vadd.f32 0.0, %v575
      %577 = vmatprep.mubr.bf16.mxu0 0
      %578 = vmatmul.mubr.bf16.gmra.mrb[0].mxu0 %v436
      %v579 = vpop.f32.mrb[0].mxu0
      %v580 = vadd.f32 0.0, %v579
      %v581 = vpop.f32.mrb[0].mxu0
      %v582 = vadd.f32 0.0, %v581
      %v583 = vpop.f32.mrb[0].mxu0
      %v584 = vadd.f32 0.0, %v583
      %v585 = vpop.f32.mrb[0].mxu0
      %v586 = vadd.f32 0.0, %v585
      %587 = vmatprep.mubr.bf16.mxu0 0
      %588 = vmatmul.mubr.bf16.gmra.mrb[0].mxu0 %v439
      %v589 = vpop.f32.mrb[0].mxu0
      %v590 = vadd.f32 0.0, %v589
      %v591 = vpop.f32.mrb[0].mxu0
      %v592 = vadd.f32 0.0, %v591
      %v593 = vpop.f32.mrb[0].mxu0
      %v594 = vadd.f32 0.0, %v593
      %v595 = vpop.f32.mrb[0].mxu0
      %v596 = vadd.f32 0.0, %v595
      %597 = vmatprep.mubr.bf16.mxu0 0
      %598 = vmatmul.mubr.bf16.gmra.mrb[0].mxu0 %v442
      %v599 = vpop.f32.mrb[0].mxu0
      %v600 = vadd.f32 0.0, %v599
      %v601 = vpop.f32.mrb[0].mxu0
      %v602 = vadd.f32 0.0, %v601
      %v603 = vpop.f32.mrb[0].mxu0
      %v604 = vadd.f32 0.0, %v603
      %v605 = vpop.f32.mrb[0].mxu0
      %v606 = vadd.f32 0.0, %v605
      %607 = vmatprep.mubr.bf16.mxu0 0
      %608 = vmatmul.mubr.bf16.gmra.mrb[0].mxu0 %v445
      %v609 = vpop.f32.mrb[0].mxu0
      %v610 = vadd.f32 0.0, %v609
      %v611 = vpop.f32.mrb[0].mxu0
      %v612 = vadd.f32 0.0, %v611
      %v613 = vpop.f32.mrb[0].mxu0
      %v614 = vadd.f32 0.0, %v613
      %v615 = vpop.f32.mrb[0].mxu0
      %v616 = vadd.f32 0.0, %v615
      %617 = vmatprep.mubr.bf16.mxu0 0
      %618 = vmatmul.mubr.bf16.gmra.mrb[0].mxu0 %v448
      %v619 = vpop.f32.mrb[0].mxu0
      %v620 = vadd.f32 0.0, %v619
      %v621 = vpop.f32.mrb[0].mxu0
      %v622 = vadd.f32 0.0, %v621
      %v623 = vpop.f32.mrb[0].mxu0
      %v624 = vadd.f32 0.0, %v623
      %v625 = vpop.f32.mrb[0].mxu0
      %v626 = vadd.f32 0.0, %v625
      %627 = vmatprep.mubr.bf16.mxu0 0
      %628 = vmatmul.mubr.bf16.gmra.mrb[0].mxu0 %v451
      %v629 = vpop.f32.mrb[0].mxu0
      %v630 = vadd.f32 0.0, %v629
      %v631 = vpop.f32.mrb[0].mxu0
      %v632 = vadd.f32 0.0, %v631
      %v633 = vpop.f32.mrb[0].mxu0
      %v634 = vadd.f32 0.0, %v633
      %v635 = vpop.f32.mrb[0].mxu0
      %v636 = vadd.f32 0.0, %v635
      %637 = vmatprep.mubr.bf16.mxu0 0
      %638 = vmatmul.mubr.bf16.gmra.mrb[0].mxu0 %v454
      %v639 = vpop.f32.mrb[0].mxu0
      %v640 = vadd.f32 0.0, %v639
      %v641 = vpop.f32.mrb[0].mxu0
      %v642 = vadd.f32 0.0, %v641
      %v643 = vpop.f32.mrb[0].mxu0
      %v644 = vadd.f32 0.0, %v643
      %v645 = vpop.f32.mrb[0].mxu0
      %v646 = vadd.f32 0.0, %v645
      %647 = vmatprep.mubr.bf16.mxu0 0
      %648 = vmatmul.mubr.bf16.gmra.mrb[0].mxu0 %v457
      %v649 = vpop.f32.mrb[0].mxu0
      %v650 = vadd.f32 0.0, %v649
      %v651 = vpop.f32.mrb[0].mxu0
      %v652 = vadd.f32 0.0, %v651
      %v653 = vpop.f32.mrb[0].mxu0
      %v654 = vadd.f32 0.0, %v653
      %v655 = vpop.f32.mrb[0].mxu0
      %v656 = vadd.f32 0.0, %v655
      %657 = vmatprep.mubr.bf16.mxu0 0
      %658 = vmatmul.mubr.bf16.gmra.mrb[0].mxu0 %v460
      %v659 = vpop.f32.mrb[0].mxu0
      %v660 = vadd.f32 0.0, %v659
      %v661 = vpop.f32.mrb[0].mxu0
      %v662 = vadd.f32 0.0, %v661
      %v663 = vpop.f32.mrb[0].mxu0
      %v664 = vadd.f32 0.0, %v663
      %v665 = vpop.f32.mrb[0].mxu0
      %v666 = vadd.f32 0.0, %v665
      %667 = vmatprep.mubr.bf16.mxu0 0
      %668 = vmatmul.mubr.bf16.gmra.mrb[0].mxu0 %v463
      %v669 = vpop.f32.mrb[0].mxu0
      %v670 = vadd.f32 0.0, %v669
      %v671 = vpop.f32.mrb[0].mxu0
      %v672 = vadd.f32 0.0, %v671
      %v673 = vpop.f32.mrb[0].mxu0
      %v674 = vadd.f32 0.0, %v673
      %v675 = vpop.f32.mrb[0].mxu0
      %v676 = vadd.f32 0.0, %v675
      %677 = vmatprep.mubr.bf16.mxu0 0
      %678 = vmatmul.mubr.bf16.gmra.mrb[0].mxu0 %v466
      %v679 = vpop.f32.mrb[0].mxu0
      %v680 = vadd.f32 0.0, %v679
      %v681 = vpop.f32.mrb[0].mxu0
      %v682 = vadd.f32 0.0, %v681
      %v683 = vpop.f32.mrb[0].mxu0
      %v684 = vadd.f32 0.0, %v683
      %v685 = vpop.f32.mrb[0].mxu0
      %v686 = vadd.f32 0.0, %v685
      %687 = vmatprep.mubr.bf16.mxu0 0
      %688 = vmatmul.mubr.bf16.gmra.mrb[0].mxu0 %v469
      %v689 = vpop.f32.mrb[0].mxu0
      %v690 = vadd.f32 0.0, %v689
      %v691 = vpop.f32.mrb[0].mxu0
      %v692 = vadd.f32 0.0, %v691
      %v693 = vpop.f32.mrb[0].mxu0
      %v694 = vadd.f32 0.0, %v693
      %v695 = vpop.f32.mrb[0].mxu0
      %v696 = vadd.f32 0.0, %v695
      %697 = vmatprep.mubr.bf16.mxu0 0
      %698 = vmatmul.mubr.bf16.gmra.mrb[0].mxu0 %v472
      %v699 = vpop.f32.mrb[0].mxu0
      %v700 = vadd.f32 0.0, %v699
      %v701 = vpop.f32.mrb[0].mxu0
      %v702 = vadd.f32 0.0, %v701
      %v703 = vpop.f32.mrb[0].mxu0
      %v704 = vadd.f32 0.0, %v703
      %v705 = vpop.f32.mrb[0].mxu0
      %v706 = vadd.f32 0.0, %v705
      %707 = vmatprep.mubr.bf16.mxu0 0
      %708 = vmatmul.mubr.bf16.gmra.mrb[0].mxu0 %v475
      %v709 = vpop.f32.mrb[0].mxu0
      %v710 = vadd.f32 0.0, %v709
      %v711 = vpop.f32.mrb[0].mxu0
      %v712 = vadd.f32 0.0, %v711
      %v713 = vpop.f32.mrb[0].mxu0
      %v714 = vadd.f32 0.0, %v713
      %v715 = vpop.f32.mrb[0].mxu0
      %v716 = vadd.f32 0.0, %v715
      %717 = vmatprep.mubr.bf16.mxu0 0
      %718 = vmatmul.mubr.bf16.gmra.mrb[0].mxu0 %v478
      %v719 = vpop.f32.mrb[0].mxu0
      %v720 = vadd.f32 0.0, %v719
      %v721 = vpop.f32.mrb[0].mxu0
      %v722 = vadd.f32 0.0, %v721
      %v723 = vpop.f32.mrb[0].mxu0
      %v724 = vadd.f32 0.0, %v723
      %v725 = vpop.f32.mrb[0].mxu0
      %v726 = vadd.f32 0.0, %v725
      %727 = vmatprep.mubr.bf16.mxu0 0
      %728 = vmatmul.mubr.bf16.gmra.mrb[0].mxu0 %v481
      %v729 = vpop.f32.mrb[0].mxu0
      %v730 = vadd.f32 0.0, %v729
      %v731 = vpop.f32.mrb[0].mxu0
      %v732 = vadd.f32 0.0, %v731
      %v733 = vpop.f32.mrb[0].mxu0
      %v734 = vadd.f32 0.0, %v733
      %v735 = vpop.f32.mrb[0].mxu0
      %v736 = vadd.f32 0.0, %v735
      %737 = vmatprep.mubr.bf16.mxu0 0
      %738 = vmatmul.mubr.bf16.gmra.mrb[0].mxu0 %v484
      %v739 = vpop.f32.mrb[0].mxu0
      %v740 = vadd.f32 0.0, %v739
      %v741 = vpop.f32.mrb[0].mxu0
      %v742 = vadd.f32 0.0, %v741
      %v743 = vpop.f32.mrb[0].mxu0
      %v744 = vadd.f32 0.0, %v743
      %v745 = vpop.f32.mrb[0].mxu0
      %v746 = vadd.f32 0.0, %v745
      %747 = vmatprep.mubr.bf16.mxu0 0
      %748 = vmatmul.mubr.bf16.gmra.mrb[0].mxu0 %v487
      %v749 = vpop.f32.mrb[0].mxu0
      %v750 = vadd.f32 0.0, %v749
      %v751 = vpop.f32.mrb[0].mxu0
      %v752 = vadd.f32 0.0, %v751
      %v753 = vpop.f32.mrb[0].mxu0
      %v754 = vadd.f32 0.0, %v753
      %v755 = vpop.f32.mrb[0].mxu0
      %v756 = vadd.f32 0.0, %v755
      %757 = vmatprep.mubr.bf16.mxu0 0
      %758 = vmatmul.mubr.bf16.gmra.mrb[0].mxu0 %v490
      %v759 = vpop.f32.mrb[0].mxu0
      %v760 = vadd.f32 0.0, %v759
      %v761 = vpop.f32.mrb[0].mxu0
      %v762 = vadd.f32 0.0, %v761
      %v763 = vpop.f32.mrb[0].mxu0
      %v764 = vadd.f32 0.0, %v763
      %v765 = vpop.f32.mrb[0].mxu0
      %v766 = vadd.f32 0.0, %v765
      %767 = vmatprep.mubr.bf16.mxu0 0
      %768 = vmatmul.mubr.bf16.gmra.mrb[0].mxu0 %v493
      %v769 = vpop.f32.mrb[0].mxu0
      %v770 = vadd.f32 0.0, %v769
      %v771 = vpop.f32.mrb[0].mxu0
      %v772 = vadd.f32 0.0, %v771
      %v773 = vpop.f32.mrb[0].mxu0
      %v774 = vadd.f32 0.0, %v773
      %v775 = vpop.f32.mrb[0].mxu0
      %v776 = vadd.f32 0.0, %v775
      %777 = vmatprep.mubr.bf16.mxu0 0
      %778 = vmatmul.mubr.bf16.gmra.mrb[0].mxu0 %v496
      %v779 = vpop.f32.mrb[0].mxu0
      %v780 = vadd.f32 0.0, %v779
      %v781 = vpop.f32.mrb[0].mxu0
      %v782 = vadd.f32 0.0, %v781
      %v783 = vpop.f32.mrb[0].mxu0
      %v784 = vadd.f32 0.0, %v783
      %v785 = vpop.f32.mrb[0].mxu0
      %v786 = vadd.f32 0.0, %v785
      %787 = vmatprep.mubr.bf16.mxu0 0
      %788 = vmatmul.mubr.bf16.gmra.mrb[0].mxu0 %v499
      %v789 = vpop.f32.mrb[0].mxu0
      %v790 = vadd.f32 0.0, %v789
      %v791 = vpop.f32.mrb[0].mxu0
      %v792 = vadd.f32 0.0, %v791
      %v793 = vpop.f32.mrb[0].mxu0
      %v794 = vadd.f32 0.0, %v793
      %v795 = vpop.f32.mrb[0].mxu0
      %v796 = vadd.f32 0.0, %v795
      %797 = vmatprep.mubr.bf16.mxu0 0
      %798 = vmatmul.mubr.bf16.gmra.mrb[0].mxu0 %v502
      %v799 = vpop.f32.mrb[0].mxu0
      %v800 = vadd.f32 0.0, %v799
      %v801 = vpop.f32.mrb[0].mxu0
      %v802 = vadd.f32 0.0, %v801
      %v803 = vpop.f32.mrb[0].mxu0
      %v804 = vadd.f32 0.0, %v803
      %v805 = vpop.f32.mrb[0].mxu0
      %v806 = vadd.f32 0.0, %v805
      %807 = vmatprep.mubr.bf16.mxu0 0
      %808 = vmatmul.mubr.bf16.gmra.mrb[0].mxu0 %v505
      %v809 = vpop.f32.mrb[0].mxu0
      %v810 = vadd.f32 0.0, %v809
      %v811 = vpop.f32.mrb[0].mxu0
      %v812 = vadd.f32 0.0, %v811
      %v813 = vpop.f32.mrb[0].mxu0
      %v814 = vadd.f32 0.0, %v813
      %v815 = vpop.f32.mrb[0].mxu0
      %v816 = vadd.f32 0.0, %v815
      %817 = vmatprep.mubr.bf16.mxu0 0
      %818 = vmatmul.mubr.bf16.gmra.mrb[0].mxu0 %v508
      %v819 = vpop.f32.mrb[0].mxu0
      %v820 = vadd.f32 0.0, %v819
      %v821 = vpop.f32.mrb[0].mxu0
      %v822 = vadd.f32 0.0, %v821
      %v823 = vpop.f32.mrb[0].mxu0
      %v824 = vadd.f32 0.0, %v823
      %v825 = vpop.f32.mrb[0].mxu0
      %v826 = vadd.f32 0.0, %v825
      %827 = vmatprep.mubr.bf16.mxu0 0
      %828 = vmatmul.mubr.bf16.gmra.mrb[0].mxu0 %v511
      %v829 = vpop.f32.mrb[0].mxu0
      %v830 = vadd.f32 0.0, %v829
      %v831 = vpop.f32.mrb[0].mxu0
      %v832 = vadd.f32 0.0, %v831
      %v833 = vpop.f32.mrb[0].mxu0
      %v834 = vadd.f32 0.0, %v833
      %v835 = vpop.f32.mrb[0].mxu0
      %v836 = vadd.f32 0.0, %v835
      %837 = vmatprep.mubr.bf16.mxu0 0
      %838 = vmatmul.mubr.bf16.gmra.mrb[0].mxu0 %v514
      %v839 = vpop.f32.mrb[0].mxu0
      %v840 = vadd.f32 0.0, %v839
      %v841 = vpop.f32.mrb[0].mxu0
      %v842 = vadd.f32 0.0, %v841
      %v843 = vpop.f32.mrb[0].mxu0
      %v844 = vadd.f32 0.0, %v843
      %v845 = vpop.f32.mrb[0].mxu0
      %v846 = vadd.f32 0.0, %v845
      %847 = vmatprep.mubr.bf16.mxu0 0
      %848 = vmatmul.mubr.bf16.gmra.mrb[0].mxu0 %v517
      %v849 = vpop.f32.mrb[0].mxu0
      %v850 = vadd.f32 0.0, %v849
      %v851 = vpop.f32.mrb[0].mxu0
      %v852 = vadd.f32 0.0, %v851
      %v853 = vpop.f32.mrb[0].mxu0
      %v854 = vadd.f32 0.0, %v853
      %v855 = vpop.f32.mrb[0].mxu0
      %v856 = vadd.f32 0.0, %v855
      %857 = vmatprep.mubr.bf16.mxu0 0
      %858 = vmatmul.mubr.bf16.gmra.mrb[0].mxu0 %v520
      %v859 = vpop.f32.mrb[0].mxu0
      %v860 = vadd.f32 0.0, %v859
      %v861 = vpop.f32.mrb[0].mxu0
      %v862 = vadd.f32 0.0, %v861
      %v863 = vpop.f32.mrb[0].mxu0
      %v864 = vadd.f32 0.0, %v863
      %v865 = vpop.f32.mrb[0].mxu0
      %v866 = vadd.f32 0.0, %v865
      %867 = vmatprep.mubr.bf16.mxu0 0
      %868 = vmatmul.mubr.bf16.gmra.mrb[0].mxu0 %v523
      %v869 = vpop.f32.mrb[0].mxu0
      %v870 = vadd.f32 0.0, %v869
      %v871 = vpop.f32.mrb[0].mxu0
      %v872 = vadd.f32 0.0, %v871
      %v873 = vpop.f32.mrb[0].mxu0
      %v874 = vadd.f32 0.0, %v873
      %v875 = vpop.f32.mrb[0].mxu0
      %v876 = vadd.f32 0.0, %v875
      %877 = vdwg.mxu0
      %878 = vmatprep.subr.bf16.mxu0 %v423
      %879 = vmatpush1.bf16.msra.mxu0 %v422
      %880 = vmatprep.subr.bf16.mxu0 0
      %881 = vmatpush1.bf16.msra.mxu0 0
      %882 = vmatprep.subr.bf16.mxu0 0
      %883 = vmatpush1.bf16.msra.mxu0 0
      %884 = vmatprep.subr.bf16.mxu0 0
      %885 = vmatpush1.bf16.msra.mxu0 0
      %886 = vmatprep.subr.bf16.mxu0 0
      %887 = vmatpush1.bf16.msra.mxu0 0
      %888 = vmatprep.subr.bf16.mxu0 0
      %889 = vmatpush1.bf16.msra.mxu0 0
      %890 = vmatprep.subr.bf16.mxu0 0
      %891 = vmatpush1.bf16.msra.mxu0 0
      %892 = vmatprep.subr.bf16.mxu0 0
      %893 = vmatpush1.bf16.msra.mxu0 0
      %894 = vmatprep.subr.bf16.mxu0 0
      %895 = vmatpush1.bf16.msra.mxu0 0
      %896 = vmatprep.subr.bf16.mxu0 0
      %897 = vmatpush1.bf16.msra.mxu0 0
      %898 = vmatprep.subr.bf16.mxu0 0
      %899 = vmatpush1.bf16.msra.mxu0 0
      %900 = vmatprep.subr.bf16.mxu0 0
      %901 = vmatpush1.bf16.msra.mxu0 0
      %902 = vmatprep.subr.bf16.mxu0 0
      %903 = vmatpush1.bf16.msra.mxu0 0
      %904 = vmatprep.subr.bf16.mxu0 0
      %905 = vmatpush1.bf16.msra.mxu0 0
      %906 = vmatprep.subr.bf16.mxu0 0
      %907 = vmatpush1.bf16.msra.mxu0 0
      %908 = vmatprep.subr.bf16.mxu0 0
      %909 = vmatpush1.bf16.msra.mxu0 0
      %910 = vmatprep.mubr.bf16.mxu0 0
      %911 = vmatmul.mubr.bf16.gmra.mrb[0].mxu0 %v430
      %v912 = vpop.f32.mrb[0].mxu0
      %v913 = vadd.f32 0.0, %v912
      %v914 = vpop.f32.mrb[0].mxu0
      %v915 = vadd.f32 0.0, %v914
      %v916 = vpop.f32.mrb[0].mxu0
      %v917 = vadd.f32 0.0, %v916
      %v918 = vpop.f32.mrb[0].mxu0
      %v919 = vadd.f32 0.0, %v918
      %920 = vmatprep.mubr.bf16.mxu0 0
      %921 = vmatmul.mubr.bf16.gmra.mrb[0].mxu0 %v433
      %v922 = vpop.f32.mrb[0].mxu0
      %v923 = vadd.f32 0.0, %v922
      %v924 = vpop.f32.mrb[0].mxu0
      %v925 = vadd.f32 0.0, %v924
      %v926 = vpop.f32.mrb[0].mxu0
      %v927 = vadd.f32 0.0, %v926
      %v928 = vpop.f32.mrb[0].mxu0
      %v929 = vadd.f32 0.0, %v928
      %930 = vmatprep.mubr.bf16.mxu0 0
      %931 = vmatmul.mubr.bf16.gmra.mrb[0].mxu0 %v436
      %v932 = vpop.f32.mrb[0].mxu0
      %v933 = vadd.f32 0.0, %v932
      %v934 = vpop.f32.mrb[0].mxu0
      %v935 = vadd.f32 0.0, %v934
      %v936 = vpop.f32.mrb[0].mxu0
      %v937 = vadd.f32 0.0, %v936
      %v938 = vpop.f32.mrb[0].mxu0
      %v939 = vadd.f32 0.0, %v938
      %940 = vmatprep.mubr.bf16.mxu0 0
      %941 = vmatmul.mubr.bf16.gmra.mrb[0].mxu0 %v439
      %v942 = vpop.f32.mrb[0].mxu0
      %v943 = vadd.f32 0.0, %v942
      %v944 = vpop.f32.mrb[0].mxu0
      %v945 = vadd.f32 0.0, %v944
      %v946 = vpop.f32.mrb[0].mxu0
      %v947 = vadd.f32 0.0, %v946
      %v948 = vpop.f32.mrb[0].mxu0
      %v949 = vadd.f32 0.0, %v948
      %950 = vmatprep.mubr.bf16.mxu0 0
      %951 = vmatmul.mubr.bf16.gmra.mrb[0].mxu0 %v442
      %v952 = vpop.f32.mrb[0].mxu0
      %v953 = vadd.f32 0.0, %v952
      %v954 = vpop.f32.mrb[0].mxu0
      %v955 = vadd.f32 0.0, %v954
      %v956 = vpop.f32.mrb[0].mxu0
      %v957 = vadd.f32 0.0, %v956
      %v958 = vpop.f32.mrb[0].mxu0
      %v959 = vadd.f32 0.0, %v958
      %960 = vmatprep.mubr.bf16.mxu0 0
      %961 = vmatmul.mubr.bf16.gmra.mrb[0].mxu0 %v445
      %v962 = vpop.f32.mrb[0].mxu0
      %v963 = vadd.f32 0.0, %v962
      %v964 = vpop.f32.mrb[0].mxu0
      %v965 = vadd.f32 0.0, %v964
      %v966 = vpop.f32.mrb[0].mxu0
      %v967 = vadd.f32 0.0, %v966
      %v968 = vpop.f32.mrb[0].mxu0
      %v969 = vadd.f32 0.0, %v968
      %970 = vmatprep.mubr.bf16.mxu0 0
      %971 = vmatmul.mubr.bf16.gmra.mrb[0].mxu0 %v448
      %v972 = vpop.f32.mrb[0].mxu0
      %v973 = vadd.f32 0.0, %v972
      %v974 = vpop.f32.mrb[0].mxu0
      %v975 = vadd.f32 0.0, %v974
      %v976 = vpop.f32.mrb[0].mxu0
      %v977 = vadd.f32 0.0, %v976
      %v978 = vpop.f32.mrb[0].mxu0
      %v979 = vadd.f32 0.0, %v978
      %980 = vmatprep.mubr.bf16.mxu0 0
      %981 = vmatmul.mubr.bf16.gmra.mrb[0].mxu0 %v451
      %v982 = vpop.f32.mrb[0].mxu0
      %v983 = vadd.f32 0.0, %v982
      %v984 = vpop.f32.mrb[0].mxu0
      %v985 = vadd.f32 0.0, %v984
      %v986 = vpop.f32.mrb[0].mxu0
      %v987 = vadd.f32 0.0, %v986
      %v988 = vpop.f32.mrb[0].mxu0
      %v989 = vadd.f32 0.0, %v988
      %990 = vmatprep.mubr.bf16.mxu0 0
      %991 = vmatmul.mubr.bf16.gmra.mrb[0].mxu0 %v454
      %v992 = vpop.f32.mrb[0].mxu0
      %v993 = vadd.f32 0.0, %v992
      %v994 = vpop.f32.mrb[0].mxu0
      %v995 = vadd.f32 0.0, %v994
      %v996 = vpop.f32.mrb[0].mxu0
      %v997 = vadd.f32 0.0, %v996
      %v998 = vpop.f32.mrb[0].mxu0
      %v999 = vadd.f32 0.0, %v998
      %1000 = vmatprep.mubr.bf16.mxu0 0
      %1001 = vmatmul.mubr.bf16.gmra.mrb[0].mxu0 %v457
      %v1002 = vpop.f32.mrb[0].mxu0
      %v1003 = vadd.f32 0.0, %v1002
      %v1004 = vpop.f32.mrb[0].mxu0
      %v1005 = vadd.f32 0.0, %v1004
      %v1006 = vpop.f32.mrb[0].mxu0
      %v1007 = vadd.f32 0.0, %v1006
      %v1008 = vpop.f32.mrb[0].mxu0
      %v1009 = vadd.f32 0.0, %v1008
      %1010 = vmatprep.mubr.bf16.mxu0 0
      %1011 = vmatmul.mubr.bf16.gmra.mrb[0].mxu0 %v460
      %v1012 = vpop.f32.mrb[0].mxu0
      %v1013 = vadd.f32 0.0, %v1012
      %v1014 = vpop.f32.mrb[0].mxu0
      %v1015 = vadd.f32 0.0, %v1014
      %v1016 = vpop.f32.mrb[0].mxu0
      %v1017 = vadd.f32 0.0, %v1016
      %v1018 = vpop.f32.mrb[0].mxu0
      %v1019 = vadd.f32 0.0, %v1018
      %1020 = vmatprep.mubr.bf16.mxu0 0
      %1021 = vmatmul.mubr.bf16.gmra.mrb[0].mxu0 %v463
      %v1022 = vpop.f32.mrb[0].mxu0
      %v1023 = vadd.f32 0.0, %v1022
      %v1024 = vpop.f32.mrb[0].mxu0
      %v1025 = vadd.f32 0.0, %v1024
      %v1026 = vpop.f32.mrb[0].mxu0
      %v1027 = vadd.f32 0.0, %v1026
      %v1028 = vpop.f32.mrb[0].mxu0
      %v1029 = vadd.f32 0.0, %v1028
      %1030 = vmatprep.mubr.bf16.mxu0 0
      %1031 = vmatmul.mubr.bf16.gmra.mrb[0].mxu0 %v466
      %v1032 = vpop.f32.mrb[0].mxu0
      %v1033 = vadd.f32 0.0, %v1032
      %v1034 = vpop.f32.mrb[0].mxu0
      %v1035 = vadd.f32 0.0, %v1034
      %v1036 = vpop.f32.mrb[0].mxu0
      %v1037 = vadd.f32 0.0, %v1036
      %v1038 = vpop.f32.mrb[0].mxu0
      %v1039 = vadd.f32 0.0, %v1038
      %1040 = vmatprep.mubr.bf16.mxu0 0
      %1041 = vmatmul.mubr.bf16.gmra.mrb[0].mxu0 %v469
      %v1042 = vpop.f32.mrb[0].mxu0
      %v1043 = vadd.f32 0.0, %v1042
      %v1044 = vpop.f32.mrb[0].mxu0
      %v1045 = vadd.f32 0.0, %v1044
      %v1046 = vpop.f32.mrb[0].mxu0
      %v1047 = vadd.f32 0.0, %v1046
      %v1048 = vpop.f32.mrb[0].mxu0
      %v1049 = vadd.f32 0.0, %v1048
      %1050 = vmatprep.mubr.bf16.mxu0 0
      %1051 = vmatmul.mubr.bf16.gmra.mrb[0].mxu0 %v472
      %v1052 = vpop.f32.mrb[0].mxu0
      %v1053 = vadd.f32 0.0, %v1052
      %v1054 = vpop.f32.mrb[0].mxu0
      %v1055 = vadd.f32 0.0, %v1054
      %v1056 = vpop.f32.mrb[0].mxu0
      %v1057 = vadd.f32 0.0, %v1056
      %v1058 = vpop.f32.mrb[0].mxu0
      %v1059 = vadd.f32 0.0, %v1058
      %1060 = vmatprep.mubr.bf16.mxu0 0
      %1061 = vmatmul.mubr.bf16.gmra.mrb[0].mxu0 %v475
      %v1062 = vpop.f32.mrb[0].mxu0
      %v1063 = vadd.f32 0.0, %v1062
      %v1064 = vpop.f32.mrb[0].mxu0
      %v1065 = vadd.f32 0.0, %v1064
      %v1066 = vpop.f32.mrb[0].mxu0
      %v1067 = vadd.f32 0.0, %v1066
      %v1068 = vpop.f32.mrb[0].mxu0
      %v1069 = vadd.f32 0.0, %v1068
      %1070 = vmatprep.mubr.bf16.mxu0 0
      %1071 = vmatmul.mubr.bf16.gmra.mrb[0].mxu0 %v478
      %v1072 = vpop.f32.mrb[0].mxu0
      %v1073 = vadd.f32 0.0, %v1072
      %v1074 = vpop.f32.mrb[0].mxu0
      %v1075 = vadd.f32 0.0, %v1074
      %v1076 = vpop.f32.mrb[0].mxu0
      %v1077 = vadd.f32 0.0, %v1076
      %v1078 = vpop.f32.mrb[0].mxu0
      %v1079 = vadd.f32 0.0, %v1078
      %1080 = vmatprep.mubr.bf16.mxu0 0
      %1081 = vmatmul.mubr.bf16.gmra.mrb[0].mxu0 %v481
      %v1082 = vpop.f32.mrb[0].mxu0
      %v1083 = vadd.f32 0.0, %v1082
      %v1084 = vpop.f32.mrb[0].mxu0
      %v1085 = vadd.f32 0.0, %v1084
      %v1086 = vpop.f32.mrb[0].mxu0
      %v1087 = vadd.f32 0.0, %v1086
      %v1088 = vpop.f32.mrb[0].mxu0
      %v1089 = vadd.f32 0.0, %v1088
      %1090 = vmatprep.mubr.bf16.mxu0 0
      %1091 = vmatmul.mubr.bf16.gmra.mrb[0].mxu0 %v484
      %v1092 = vpop.f32.mrb[0].mxu0
      %v1093 = vadd.f32 0.0, %v1092
      %v1094 = vpop.f32.mrb[0].mxu0
      %v1095 = vadd.f32 0.0, %v1094
      %v1096 = vpop.f32.mrb[0].mxu0
      %v1097 = vadd.f32 0.0, %v1096
      %v1098 = vpop.f32.mrb[0].mxu0
      %v1099 = vadd.f32 0.0, %v1098
      %1100 = vmatprep.mubr.bf16.mxu0 0
      %1101 = vmatmul.mubr.bf16.gmra.mrb[0].mxu0 %v487
      %v1102 = vpop.f32.mrb[0].mxu0
      %v1103 = vadd.f32 0.0, %v1102
      %v1104 = vpop.f32.mrb[0].mxu0
      %v1105 = vadd.f32 0.0, %v1104
      %v1106 = vpop.f32.mrb[0].mxu0
      %v1107 = vadd.f32 0.0, %v1106
      %v1108 = vpop.f32.mrb[0].mxu0
      %v1109 = vadd.f32 0.0, %v1108
      %1110 = vmatprep.mubr.bf16.mxu0 0
      %1111 = vmatmul.mubr.bf16.gmra.mrb[0].mxu0 %v490
      %v1112 = vpop.f32.mrb[0].mxu0
      %v1113 = vadd.f32 0.0, %v1112
      %v1114 = vpop.f32.mrb[0].mxu0
      %v1115 = vadd.f32 0.0, %v1114
      %v1116 = vpop.f32.mrb[0].mxu0
      %v1117 = vadd.f32 0.0, %v1116
      %v1118 = vpop.f32.mrb[0].mxu0
      %v1119 = vadd.f32 0.0, %v1118
      %1120 = vmatprep.mubr.bf16.mxu0 0
      %1121 = vmatmul.mubr.bf16.gmra.mrb[0].mxu0 %v493
      %v1122 = vpop.f32.mrb[0].mxu0
      %v1123 = vadd.f32 0.0, %v1122
      %v1124 = vpop.f32.mrb[0].mxu0
      %v1125 = vadd.f32 0.0, %v1124
      %v1126 = vpop.f32.mrb[0].mxu0
      %v1127 = vadd.f32 0.0, %v1126
      %v1128 = vpop.f32.mrb[0].mxu0
      %v1129 = vadd.f32 0.0, %v1128
      %1130 = vmatprep.mubr.bf16.mxu0 0
      %1131 = vmatmul.mubr.bf16.gmra.mrb[0].mxu0 %v496
      %v1132 = vpop.f32.mrb[0].mxu0
      %v1133 = vadd.f32 0.0, %v1132
      %v1134 = vpop.f32.mrb[0].mxu0
      %v1135 = vadd.f32 0.0, %v1134
      %v1136 = vpop.f32.mrb[0].mxu0
      %v1137 = vadd.f32 0.0, %v1136
      %v1138 = vpop.f32.mrb[0].mxu0
      %v1139 = vadd.f32 0.0, %v1138
      %1140 = vmatprep.mubr.bf16.mxu0 0
      %1141 = vmatmul.mubr.bf16.gmra.mrb[0].mxu0 %v499
      %v1142 = vpop.f32.mrb[0].mxu0
      %v1143 = vadd.f32 0.0, %v1142
      %v1144 = vpop.f32.mrb[0].mxu0
      %v1145 = vadd.f32 0.0, %v1144
      %v1146 = vpop.f32.mrb[0].mxu0
      %v1147 = vadd.f32 0.0, %v1146
      %v1148 = vpop.f32.mrb[0].mxu0
      %v1149 = vadd.f32 0.0, %v1148
      %1150 = vmatprep.mubr.bf16.mxu0 0
      %1151 = vmatmul.mubr.bf16.gmra.mrb[0].mxu0 %v502
      %v1152 = vpop.f32.mrb[0].mxu0
      %v1153 = vadd.f32 0.0, %v1152
      %v1154 = vpop.f32.mrb[0].mxu0
      %v1155 = vadd.f32 0.0, %v1154
      %v1156 = vpop.f32.mrb[0].mxu0
      %v1157 = vadd.f32 0.0, %v1156
      %v1158 = vpop.f32.mrb[0].mxu0
      %v1159 = vadd.f32 0.0, %v1158
      %1160 = vmatprep.mubr.bf16.mxu0 0
      %1161 = vmatmul.mubr.bf16.gmra.mrb[0].mxu0 %v505
      %v1162 = vpop.f32.mrb[0].mxu0
      %v1163 = vadd.f32 0.0, %v1162
      %v1164 = vpop.f32.mrb[0].mxu0
      %v1165 = vadd.f32 0.0, %v1164
      %v1166 = vpop.f32.mrb[0].mxu0
      %v1167 = vadd.f32 0.0, %v1166
      %v1168 = vpop.f32.mrb[0].mxu0
      %v1169 = vadd.f32 0.0, %v1168
      %1170 = vmatprep.mubr.bf16.mxu0 0
      %1171 = vmatmul.mubr.bf16.gmra.mrb[0].mxu0 %v508
      %v1172 = vpop.f32.mrb[0].mxu0
      %v1173 = vadd.f32 0.0, %v1172
      %v1174 = vpop.f32.mrb[0].mxu0
      %v1175 = vadd.f32 0.0, %v1174
      %v1176 = vpop.f32.mrb[0].mxu0
      %v1177 = vadd.f32 0.0, %v1176
      %v1178 = vpop.f32.mrb[0].mxu0
      %v1179 = vadd.f32 0.0, %v1178
      %1180 = vmatprep.mubr.bf16.mxu0 0
      %1181 = vmatmul.mubr.bf16.gmra.mrb[0].mxu0 %v511
      %v1182 = vpop.f32.mrb[0].mxu0
      %v1183 = vadd.f32 0.0, %v1182
      %v1184 = vpop.f32.mrb[0].mxu0
      %v1185 = vadd.f32 0.0, %v1184
      %v1186 = vpop.f32.mrb[0].mxu0
      %v1187 = vadd.f32 0.0, %v1186
      %v1188 = vpop.f32.mrb[0].mxu0
      %v1189 = vadd.f32 0.0, %v1188
      %1190 = vmatprep.mubr.bf16.mxu0 0
      %1191 = vmatmul.mubr.bf16.gmra.mrb[0].mxu0 %v514
      %v1192 = vpop.f32.mrb[0].mxu0
      %v1193 = vadd.f32 0.0, %v1192
      %v1194 = vpop.f32.mrb[0].mxu0
      %v1195 = vadd.f32 0.0, %v1194
      %v1196 = vpop.f32.mrb[0].mxu0
      %v1197 = vadd.f32 0.0, %v1196
      %v1198 = vpop.f32.mrb[0].mxu0
      %v1199 = vadd.f32 0.0, %v1198
      %1200 = vmatprep.mubr.bf16.mxu0 0
      %1201 = vmatmul.mubr.bf16.gmra.mrb[0].mxu0 %v517
      %v1202 = vpop.f32.mrb[0].mxu0
      %v1203 = vadd.f32 0.0, %v1202
      %v1204 = vpop.f32.mrb[0].mxu0
      %v1205 = vadd.f32 0.0, %v1204
      %v1206 = vpop.f32.mrb[0].mxu0
      %v1207 = vadd.f32 0.0, %v1206
      %v1208 = vpop.f32.mrb[0].mxu0
      %v1209 = vadd.f32 0.0, %v1208
      %1210 = vmatprep.mubr.bf16.mxu0 0
      %1211 = vmatmul.mubr.bf16.gmra.mrb[0].mxu0 %v520
      %v1212 = vpop.f32.mrb[0].mxu0
      %v1213 = vadd.f32 0.0, %v1212
      %v1214 = vpop.f32.mrb[0].mxu0
      %v1215 = vadd.f32 0.0, %v1214
      %v1216 = vpop.f32.mrb[0].mxu0
      %v1217 = vadd.f32 0.0, %v1216
      %v1218 = vpop.f32.mrb[0].mxu0
      %v1219 = vadd.f32 0.0, %v1218
      %1220 = vmatprep.mubr.bf16.mxu0 0
      %1221 = vmatmul.mubr.bf16.gmra.mrb[0].mxu0 %v523
      %v1222 = vpop.f32.mrb[0].mxu0
      %v1223 = vadd.f32 0.0, %v1222
      %v1224 = vpop.f32.mrb[0].mxu0
      %v1225 = vadd.f32 0.0, %v1224
      %v1226 = vpop.f32.mrb[0].mxu0
      %v1227 = vadd.f32 0.0, %v1226
      %v1228 = vpop.f32.mrb[0].mxu0
      %v1229 = vadd.f32 0.0, %v1228
      %1230 = vdwg.mxu0
      %v1231 = vmax.f32 %v560, %v562
      %v1232 = vmax.f32 %v564, %v566
      %v1233 = vmax.f32 %v570, %v572
      %v1234 = vmax.f32 %v574, %v576
      %v1235 = vmax.f32 %v580, %v582
      %v1236 = vmax.f32 %v584, %v586
      %v1237 = vmax.f32 %v590, %v592
      %v1238 = vmax.f32 %v594, %v596
      %v1239 = vmax.f32 %v600, %v602
      %v1240 = vmax.f32 %v604, %v606
      %v1241 = vmax.f32 %v610, %v612
      %v1242 = vmax.f32 %v614, %v616
      %v1243 = vmax.f32 %v620, %v622
      %v1244 = vmax.f32 %v624, %v626
      %v1245 = vmax.f32 %v630, %v632
      %v1246 = vmax.f32 %v634, %v636
      %v1247 = vmax.f32 %v640, %v642
      %v1248 = vmax.f32 %v644, %v646
      %v1249 = vmax.f32 %v650, %v652
      %v1250 = vmax.f32 %v654, %v656
      %v1251 = vmax.f32 %v660, %v662
      %v1252 = vmax.f32 %v664, %v666
      %v1253 = vmax.f32 %v670, %v672
      %v1254 = vmax.f32 %v674, %v676
      %v1255 = vmax.f32 %v680, %v682
      %v1256 = vmax.f32 %v684, %v686
      %v1257 = vmax.f32 %v690, %v692
      %v1258 = vmax.f32 %v694, %v696
      %v1259 = vmax.f32 %v700, %v702
      %v1260 = vmax.f32 %v704, %v706
      %v1261 = vmax.f32 %v710, %v712
      %v1262 = vmax.f32 %v714, %v716
      %v1263 = vmax.f32 %v720, %v722
      %v1264 = vmax.f32 %v724, %v726
      %v1265 = vmax.f32 %v730, %v732
      %v1266 = vmax.f32 %v734, %v736
      %v1267 = vmax.f32 %v740, %v742
      %v1268 = vmax.f32 %v744, %v746
      %v1269 = vmax.f32 %v750, %v752
      %v1270 = vmax.f32 %v754, %v756
      %v1271 = vmax.f32 %v760, %v762
      %v1272 = vmax.f32 %v764, %v766
      %v1273 = vmax.f32 %v770, %v772
      %v1274 = vmax.f32 %v774, %v776
      %v1275 = vmax.f32 %v780, %v782
      %v1276 = vmax.f32 %v784, %v786
      %v1277 = vmax.f32 %v790, %v792
      %v1278 = vmax.f32 %v794, %v796
      %v1279 = vmax.f32 %v800, %v802
      %v1280 = vmax.f32 %v804, %v806
      %v1281 = vmax.f32 %v810, %v812
      %v1282 = vmax.f32 %v814, %v816
      %v1283 = vmax.f32 %v820, %v822
      %v1284 = vmax.f32 %v824, %v826
      %v1285 = vmax.f32 %v830, %v832
      %v1286 = vmax.f32 %v834, %v836
      %v1287 = vmax.f32 %v840, %v842
      %v1288 = vmax.f32 %v844, %v846
      %v1289 = vmax.f32 %v850, %v852
      %v1290 = vmax.f32 %v854, %v856
      %v1291 = vmax.f32 %v860, %v862
      %v1292 = vmax.f32 %v864, %v866
      %v1293 = vmax.f32 %v870, %v872
      %v1294 = vmax.f32 %v874, %v876
      %v1295 = vmax.f32 %v913, %v915
      %v1296 = vmax.f32 %v917, %v919
      %v1297 = vmax.f32 %v923, %v925
      %v1298 = vmax.f32 %v927, %v929
      %v1299 = vmax.f32 %v933, %v935
      %v1300 = vmax.f32 %v937, %v939
      %v1301 = vmax.f32 %v943, %v945
      %v1302 = vmax.f32 %v947, %v949
      %v1303 = vmax.f32 %v953, %v955
      %v1304 = vmax.f32 %v957, %v959
      %v1305 = vmax.f32 %v963, %v965
      %v1306 = vmax.f32 %v967, %v969
      %v1307 = vmax.f32 %v973, %v975
      %v1308 = vmax.f32 %v977, %v979
      %v1309 = vmax.f32 %v983, %v985
      %v1310 = vmax.f32 %v987, %v989
      %v1311 = vmax.f32 %v993, %v995
      %v1312 = vmax.f32 %v997, %v999
      %v1313 = vmax.f32 %v1003, %v1005
      %v1314 = vmax.f32 %v1007, %v1009
      %v1315 = vmax.f32 %v1013, %v1015
      %v1316 = vmax.f32 %v1017, %v1019
      %v1317 = vmax.f32 %v1023, %v1025
      %v1318 = vmax.f32 %v1027, %v1029
      %v1319 = vmax.f32 %v1033, %v1035
      %v1320 = vmax.f32 %v1037, %v1039
      %v1321 = vmax.f32 %v1043, %v1045
      %v1322 = vmax.f32 %v1047, %v1049
      %v1323 = vmax.f32 %v1053, %v1055
      %v1324 = vmax.f32 %v1057, %v1059
      %v1325 = vmax.f32 %v1063, %v1065
      %v1326 = vmax.f32 %v1067, %v1069
      %v1327 = vmax.f32 %v1073, %v1075
      %v1328 = vmax.f32 %v1077, %v1079
      %v1329 = vmax.f32 %v1083, %v1085
      %v1330 = vmax.f32 %v1087, %v1089
      %v1331 = vmax.f32 %v1093, %v1095
      %v1332 = vmax.f32 %v1097, %v1099
      %v1333 = vmax.f32 %v1103, %v1105
      %v1334 = vmax.f32 %v1107, %v1109
      %v1335 = vmax.f32 %v1113, %v1115
      %v1336 = vmax.f32 %v1117, %v1119
      %v1337 = vmax.f32 %v1123, %v1125
      %v1338 = vmax.f32 %v1127, %v1129
      %v1339 = vmax.f32 %v1133, %v1135
      %v1340 = vmax.f32 %v1137, %v1139
      %v1341 = vmax.f32 %v1143, %v1145
      %v1342 = vmax.f32 %v1147, %v1149
      %v1343 = vmax.f32 %v1153, %v1155
      %v1344 = vmax.f32 %v1157, %v1159
      %v1345 = vmax.f32 %v1163, %v1165
      %v1346 = vmax.f32 %v1167, %v1169
      %v1347 = vmax.f32 %v1173, %v1175
      %v1348 = vmax.f32 %v1177, %v1179
      %v1349 = vmax.f32 %v1183, %v1185
      %v1350 = vmax.f32 %v1187, %v1189
      %v1351 = vmax.f32 %v1193, %v1195
      %v1352 = vmax.f32 %v1197, %v1199
      %v1353 = vmax.f32 %v1203, %v1205
      %v1354 = vmax.f32 %v1207, %v1209
      %v1355 = vmax.f32 %v1213, %v1215
      %v1356 = vmax.f32 %v1217, %v1219
      %v1357 = vmax.f32 %v1223, %v1225
      %v1358 = vmax.f32 %v1227, %v1229
      %v1359 = vmax.f32 %v1231, %v1295
      %v1360 = vmax.f32 %v1232, %v1296
      %v1361 = vmax.f32 %v1233, %v1297
      %v1362 = vmax.f32 %v1234, %v1298
      %v1363 = vmax.f32 %v1235, %v1299
      %v1364 = vmax.f32 %v1236, %v1300
      %v1365 = vmax.f32 %v1237, %v1301
      %v1366 = vmax.f32 %v1238, %v1302
      %v1367 = vmax.f32 %v1239, %v1303
      %v1368 = vmax.f32 %v1240, %v1304
      %v1369 = vmax.f32 %v1241, %v1305
      %v1370 = vmax.f32 %v1242, %v1306
      %v1371 = vmax.f32 %v1243, %v1307
      %v1372 = vmax.f32 %v1244, %v1308
      %v1373 = vmax.f32 %v1245, %v1309
      %v1374 = vmax.f32 %v1246, %v1310
      %v1375 = vmax.f32 %v1247, %v1311
      %v1376 = vmax.f32 %v1248, %v1312
      %v1377 = vmax.f32 %v1249, %v1313
      %v1378 = vmax.f32 %v1250, %v1314
      %v1379 = vmax.f32 %v1251, %v1315
      %v1380 = vmax.f32 %v1252, %v1316
      %v1381 = vmax.f32 %v1253, %v1317
      %v1382 = vmax.f32 %v1254, %v1318
      %v1383 = vmax.f32 %v1255, %v1319
      %v1384 = vmax.f32 %v1256, %v1320
      %v1385 = vmax.f32 %v1257, %v1321
      %v1386 = vmax.f32 %v1258, %v1322
      %v1387 = vmax.f32 %v1259, %v1323
      %v1388 = vmax.f32 %v1260, %v1324
      %v1389 = vmax.f32 %v1261, %v1325
      %v1390 = vmax.f32 %v1262, %v1326
      %v1391 = vmax.f32 %v1263, %v1327
      %v1392 = vmax.f32 %v1264, %v1328
      %v1393 = vmax.f32 %v1265, %v1329
      %v1394 = vmax.f32 %v1266, %v1330
      %v1395 = vmax.f32 %v1267, %v1331
      %v1396 = vmax.f32 %v1268, %v1332
      %v1397 = vmax.f32 %v1269, %v1333
      %v1398 = vmax.f32 %v1270, %v1334
      %v1399 = vmax.f32 %v1271, %v1335
      %v1400 = vmax.f32 %v1272, %v1336
      %v1401 = vmax.f32 %v1273, %v1337
      %v1402 = vmax.f32 %v1274, %v1338
      %v1403 = vmax.f32 %v1275, %v1339
      %v1404 = vmax.f32 %v1276, %v1340
      %v1405 = vmax.f32 %v1277, %v1341
      %v1406 = vmax.f32 %v1278, %v1342
      %v1407 = vmax.f32 %v1279, %v1343
      %v1408 = vmax.f32 %v1280, %v1344
      %v1409 = vmax.f32 %v1281, %v1345
      %v1410 = vmax.f32 %v1282, %v1346
      %v1411 = vmax.f32 %v1283, %v1347
      %v1412 = vmax.f32 %v1284, %v1348
      %v1413 = vmax.f32 %v1285, %v1349
      %v1414 = vmax.f32 %v1286, %v1350
      %v1415 = vmax.f32 %v1287, %v1351
      %v1416 = vmax.f32 %v1288, %v1352
      %v1417 = vmax.f32 %v1289, %v1353
      %v1418 = vmax.f32 %v1290, %v1354
      %v1419 = vmax.f32 %v1291, %v1355
      %v1420 = vmax.f32 %v1292, %v1356
      %v1421 = vmax.f32 %v1293, %v1357
      %v1422 = vmax.f32 %v1294, %v1358
      %v1423 = vld [vmem:[%s2] sm:$0x1]
      %v1425 = vlaneseq
      %v1426 = vshrl.u32 %v1425, 7
      %v1427 = vsub.s32 0, %v1426
      %v1428 = vrot.slane %v1423, %v1427
      %v1430 = vadd.f32 %v1359, %v1428
      %v1431 = vadd.f32 %v1360, %v1428
      %v1432 = vadd.f32 %v1361, %v1428
      %v1433 = vadd.f32 %v1362, %v1428
      %v1434 = vadd.f32 %v1363, %v1428
      %v1435 = vadd.f32 %v1364, %v1428
      %v1436 = vadd.f32 %v1365, %v1428
      %v1437 = vadd.f32 %v1366, %v1428
      %v1438 = vadd.f32 %v1367, %v1428
      %v1439 = vadd.f32 %v1368, %v1428
      %v1440 = vadd.f32 %v1369, %v1428
      %v1441 = vadd.f32 %v1370, %v1428
      %v1442 = vadd.f32 %v1371, %v1428
      %v1443 = vadd.f32 %v1372, %v1428
      %v1444 = vadd.f32 %v1373, %v1428
      %v1445 = vadd.f32 %v1374, %v1428
      %v1446 = vadd.f32 %v1375, %v1428
      %v1447 = vadd.f32 %v1376, %v1428
      %v1448 = vadd.f32 %v1377, %v1428
      %v1449 = vadd.f32 %v1378, %v1428
      %v1450 = vadd.f32 %v1379, %v1428
      %v1451 = vadd.f32 %v1380, %v1428
      %v1452 = vadd.f32 %v1381, %v1428
      %v1453 = vadd.f32 %v1382, %v1428
      %v1454 = vadd.f32 %v1383, %v1428
      %v1455 = vadd.f32 %v1384, %v1428
      %v1456 = vadd.f32 %v1385, %v1428
      %v1457 = vadd.f32 %v1386, %v1428
      %v1458 = vadd.f32 %v1387, %v1428
      %v1459 = vadd.f32 %v1388, %v1428
      %v1460 = vadd.f32 %v1389, %v1428
      %v1461 = vadd.f32 %v1390, %v1428
      %v1462 = vadd.f32 %v1391, %v1428
      %v1463 = vadd.f32 %v1392, %v1428
      %v1464 = vadd.f32 %v1393, %v1428
      %v1465 = vadd.f32 %v1394, %v1428
      %v1466 = vadd.f32 %v1395, %v1428
      %v1467 = vadd.f32 %v1396, %v1428
      %v1468 = vadd.f32 %v1397, %v1428
      %v1469 = vadd.f32 %v1398, %v1428
      %v1470 = vadd.f32 %v1399, %v1428
      %v1471 = vadd.f32 %v1400, %v1428
      %v1472 = vadd.f32 %v1401, %v1428
      %v1473 = vadd.f32 %v1402, %v1428
      %v1474 = vadd.f32 %v1403, %v1428
      %v1475 = vadd.f32 %v1404, %v1428
      %v1476 = vadd.f32 %v1405, %v1428
      %v1477 = vadd.f32 %v1406, %v1428
      %v1478 = vadd.f32 %v1407, %v1428
      %v1479 = vadd.f32 %v1408, %v1428
      %v1480 = vadd.f32 %v1409, %v1428
      %v1481 = vadd.f32 %v1410, %v1428
      %v1482 = vadd.f32 %v1411, %v1428
      %v1483 = vadd.f32 %v1412, %v1428
      %v1484 = vadd.f32 %v1413, %v1428
      %v1485 = vadd.f32 %v1414, %v1428
      %v1486 = vadd.f32 %v1415, %v1428
      %v1487 = vadd.f32 %v1416, %v1428
      %v1488 = vadd.f32 %v1417, %v1428
      %v1489 = vadd.f32 %v1418, %v1428
      %v1490 = vadd.f32 %v1419, %v1428
      %v1491 = vadd.f32 %v1420, %v1428
      %v1492 = vadd.f32 %v1421, %v1428
      %v1493 = vadd.f32 %v1422, %v1428
      %v1494 = vmax.f32 %v1430, 0.0
      %v1495 = vmax.f32 %v1431, 0.0
      %v1496 = vmax.f32 %v1432, 0.0
      %v1497 = vmax.f32 %v1433, 0.0
      %v1498 = vmax.f32 %v1434, 0.0
      %v1499 = vmax.f32 %v1435, 0.0
      %v1500 = vmax.f32 %v1436, 0.0
      %v1501 = vmax.f32 %v1437, 0.0
      %v1502 = vmax.f32 %v1438, 0.0
      %v1503 = vmax.f32 %v1439, 0.0
      %v1504 = vmax.f32 %v1440, 0.0
      %v1505 = vmax.f32 %v1441, 0.0
      %v1506 = vmax.f32 %v1442, 0.0
      %v1507 = vmax.f32 %v1443, 0.0
      %v1508 = vmax.f32 %v1444, 0.0
      %v1509 = vmax.f32 %v1445, 0.0
      %v1510 = vmax.f32 %v1446, 0.0
      %v1511 = vmax.f32 %v1447, 0.0
      %v1512 = vmax.f32 %v1448, 0.0
      %v1513 = vmax.f32 %v1449, 0.0
      %v1514 = vmax.f32 %v1450, 0.0
      %v1515 = vmax.f32 %v1451, 0.0
      %v1516 = vmax.f32 %v1452, 0.0
      %v1517 = vmax.f32 %v1453, 0.0
      %v1518 = vmax.f32 %v1454, 0.0
      %v1519 = vmax.f32 %v1455, 0.0
      %v1520 = vmax.f32 %v1456, 0.0
      %v1521 = vmax.f32 %v1457, 0.0
      %v1522 = vmax.f32 %v1458, 0.0
      %v1523 = vmax.f32 %v1459, 0.0
      %v1524 = vmax.f32 %v1460, 0.0
      %v1525 = vmax.f32 %v1461, 0.0
      %v1526 = vmax.f32 %v1462, 0.0
      %v1527 = vmax.f32 %v1463, 0.0
      %v1528 = vmax.f32 %v1464, 0.0
      %v1529 = vmax.f32 %v1465, 0.0
      %v1530 = vmax.f32 %v1466, 0.0
      %v1531 = vmax.f32 %v1467, 0.0
      %v1532 = vmax.f32 %v1468, 0.0
      %v1533 = vmax.f32 %v1469, 0.0
      %v1534 = vmax.f32 %v1470, 0.0
      %v1535 = vmax.f32 %v1471, 0.0
      %v1536 = vmax.f32 %v1472, 0.0
      %v1537 = vmax.f32 %v1473, 0.0
      %v1538 = vmax.f32 %v1474, 0.0
      %v1539 = vmax.f32 %v1475, 0.0
      %v1540 = vmax.f32 %v1476, 0.0
      %v1541 = vmax.f32 %v1477, 0.0
      %v1542 = vmax.f32 %v1478, 0.0
      %v1543 = vmax.f32 %v1479, 0.0
      %v1544 = vmax.f32 %v1480, 0.0
      %v1545 = vmax.f32 %v1481, 0.0
      %v1546 = vmax.f32 %v1482, 0.0
      %v1547 = vmax.f32 %v1483, 0.0
      %v1548 = vmax.f32 %v1484, 0.0
      %v1549 = vmax.f32 %v1485, 0.0
      %v1550 = vmax.f32 %v1486, 0.0
      %v1551 = vmax.f32 %v1487, 0.0
      %v1552 = vmax.f32 %v1488, 0.0
      %v1553 = vmax.f32 %v1489, 0.0
      %v1554 = vmax.f32 %v1490, 0.0
      %v1555 = vmax.f32 %v1491, 0.0
      %v1556 = vmax.f32 %v1492, 0.0
      %v1557 = vmax.f32 %v1493, 0.0
      %v1558 = vpack.c.bf16 %v1495, %v1494
      %v1559 = vpack.c.bf16 %v1497, %v1496
      %v1560 = vpack.c.bf16 %v1499, %v1498
      %v1561 = vpack.c.bf16 %v1501, %v1500
      %v1562 = vpack.c.bf16 %v1503, %v1502
      %v1563 = vpack.c.bf16 %v1505, %v1504
      %v1564 = vpack.c.bf16 %v1507, %v1506
      %v1565 = vpack.c.bf16 %v1509, %v1508
      %v1566 = vpack.c.bf16 %v1511, %v1510
      %v1567 = vpack.c.bf16 %v1513, %v1512
      %v1568 = vpack.c.bf16 %v1515, %v1514
      %v1569 = vpack.c.bf16 %v1517, %v1516
      %v1570 = vpack.c.bf16 %v1519, %v1518
      %v1571 = vpack.c.bf16 %v1521, %v1520
      %v1572 = vpack.c.bf16 %v1523, %v1522
      %v1573 = vpack.c.bf16 %v1525, %v1524
      %v1574 = vpack.c.bf16 %v1527, %v1526
      %v1575 = vpack.c.bf16 %v1529, %v1528
      %v1576 = vpack.c.bf16 %v1531, %v1530
      %v1577 = vpack.c.bf16 %v1533, %v1532
      %v1578 = vpack.c.bf16 %v1535, %v1534
      %v1579 = vpack.c.bf16 %v1537, %v1536
      %v1580 = vpack.c.bf16 %v1539, %v1538
      %v1581 = vpack.c.bf16 %v1541, %v1540
      %v1582 = vpack.c.bf16 %v1543, %v1542
      %v1583 = vpack.c.bf16 %v1545, %v1544
      %v1584 = vpack.c.bf16 %v1547, %v1546
      %v1585 = vpack.c.bf16 %v1549, %v1548
      %v1586 = vpack.c.bf16 %v1551, %v1550
      %v1587 = vpack.c.bf16 %v1553, %v1552
      %v1588 = vpack.c.bf16 %v1555, %v1554
      %v1589 = vpack.c.bf16 %v1557, %v1556
      %v1622 = vunpack.c.l.b16 %v1558
      %v1623 = vunpack.c.h.b16 %v1558
      %v1624 = vunpack.c.l.b16 %v1559
      %v1625 = vunpack.c.h.b16 %v1559
      %v1626 = vunpack.c.l.b16 %v1560
      %v1627 = vunpack.c.h.b16 %v1560
      %v1628 = vunpack.c.l.b16 %v1561
      %v1629 = vunpack.c.h.b16 %v1561
      %v1630 = vunpack.c.l.b16 %v1562
      %v1631 = vunpack.c.h.b16 %v1562
      %v1632 = vunpack.c.l.b16 %v1563
      %v1633 = vunpack.c.h.b16 %v1563
      %v1634 = vunpack.c.l.b16 %v1564
      %v1635 = vunpack.c.h.b16 %v1564
      %v1636 = vunpack.c.l.b16 %v1565
      %v1637 = vunpack.c.h.b16 %v1565
      %v1638 = vunpack.c.l.b16 %v1566
      %v1639 = vunpack.c.h.b16 %v1566
      %v1640 = vunpack.c.l.b16 %v1567
      %v1641 = vunpack.c.h.b16 %v1567
      %v1642 = vunpack.c.l.b16 %v1568
      %v1643 = vunpack.c.h.b16 %v1568
      %v1644 = vunpack.c.l.b16 %v1569
      %v1645 = vunpack.c.h.b16 %v1569
      %v1646 = vunpack.c.l.b16 %v1570
      %v1647 = vunpack.c.h.b16 %v1570
      %v1648 = vunpack.c.l.b16 %v1571
      %v1649 = vunpack.c.h.b16 %v1571
      %v1650 = vunpack.c.l.b16 %v1572
      %v1651 = vunpack.c.h.b16 %v1572
      %v1652 = vunpack.c.l.b16 %v1573
      %v1653 = vunpack.c.h.b16 %v1573
      %v1654 = vunpack.c.l.b16 %v1574
      %v1655 = vunpack.c.h.b16 %v1574
      %v1656 = vunpack.c.l.b16 %v1575
      %v1657 = vunpack.c.h.b16 %v1575
      %v1658 = vunpack.c.l.b16 %v1576
      %v1659 = vunpack.c.h.b16 %v1576
      %v1660 = vunpack.c.l.b16 %v1577
      %v1661 = vunpack.c.h.b16 %v1577
      %v1662 = vunpack.c.l.b16 %v1578
      %v1663 = vunpack.c.h.b16 %v1578
      %v1664 = vunpack.c.l.b16 %v1579
      %v1665 = vunpack.c.h.b16 %v1579
      %v1666 = vunpack.c.l.b16 %v1580
      %v1667 = vunpack.c.h.b16 %v1580
      %v1668 = vunpack.c.l.b16 %v1581
      %v1669 = vunpack.c.h.b16 %v1581
      %v1670 = vunpack.c.l.b16 %v1582
      %v1671 = vunpack.c.h.b16 %v1582
      %v1672 = vunpack.c.l.b16 %v1583
      %v1673 = vunpack.c.h.b16 %v1583
      %v1674 = vunpack.c.l.b16 %v1584
      %v1675 = vunpack.c.h.b16 %v1584
      %v1676 = vunpack.c.l.b16 %v1585
      %v1677 = vunpack.c.h.b16 %v1585
      %v1678 = vunpack.c.l.b16 %v1586
      %v1679 = vunpack.c.h.b16 %v1586
      %v1680 = vunpack.c.l.b16 %v1587
      %v1681 = vunpack.c.h.b16 %v1587
      %v1682 = vunpack.c.l.b16 %v1588
      %v1683 = vunpack.c.h.b16 %v1588
      %v1684 = vunpack.c.l.b16 %v1589
      %v1685 = vunpack.c.h.b16 %v1589
      %v1686 = vpack.c.b16 %v1622, %v1622
      %v1687 = vpack.c.b16 %v1623, %v1623
      %v1688 = vpack.c.b16 %v1624, %v1624
      %v1689 = vpack.c.b16 %v1625, %v1625
      %v1690 = vpack.c.b16 %v1626, %v1626
      %v1691 = vpack.c.b16 %v1627, %v1627
      %v1692 = vpack.c.b16 %v1628, %v1628
      %v1693 = vpack.c.b16 %v1629, %v1629
      %v1694 = vpack.c.b16 %v1630, %v1630
      %v1695 = vpack.c.b16 %v1631, %v1631
      %v1696 = vpack.c.b16 %v1632, %v1632
      %v1697 = vpack.c.b16 %v1633, %v1633
      %v1698 = vpack.c.b16 %v1634, %v1634
      %v1699 = vpack.c.b16 %v1635, %v1635
      %v1700 = vpack.c.b16 %v1636, %v1636
      %v1701 = vpack.c.b16 %v1637, %v1637
      %v1702 = vpack.c.b16 %v1638, %v1638
      %v1703 = vpack.c.b16 %v1639, %v1639
      %v1704 = vpack.c.b16 %v1640, %v1640
      %v1705 = vpack.c.b16 %v1641, %v1641
      %v1706 = vpack.c.b16 %v1642, %v1642
      %v1707 = vpack.c.b16 %v1643, %v1643
      %v1708 = vpack.c.b16 %v1644, %v1644
      %v1709 = vpack.c.b16 %v1645, %v1645
      %v1710 = vpack.c.b16 %v1646, %v1646
      %v1711 = vpack.c.b16 %v1647, %v1647
      %v1712 = vpack.c.b16 %v1648, %v1648
      %v1713 = vpack.c.b16 %v1649, %v1649
      %v1714 = vpack.c.b16 %v1650, %v1650
      %v1715 = vpack.c.b16 %v1651, %v1651
      %v1716 = vpack.c.b16 %v1652, %v1652
      %v1717 = vpack.c.b16 %v1653, %v1653
      %v1718 = vpack.c.b16 %v1654, %v1654
      %v1719 = vpack.c.b16 %v1655, %v1655
      %v1720 = vpack.c.b16 %v1656, %v1656
      %v1721 = vpack.c.b16 %v1657, %v1657
      %v1722 = vpack.c.b16 %v1658, %v1658
      %v1723 = vpack.c.b16 %v1659, %v1659
      %v1724 = vpack.c.b16 %v1660, %v1660
      %v1725 = vpack.c.b16 %v1661, %v1661
      %v1726 = vpack.c.b16 %v1662, %v1662
      %v1727 = vpack.c.b16 %v1663, %v1663
      %v1728 = vpack.c.b16 %v1664, %v1664
      %v1729 = vpack.c.b16 %v1665, %v1665
      %v1730 = vpack.c.b16 %v1666, %v1666
      %v1731 = vpack.c.b16 %v1667, %v1667
      %v1732 = vpack.c.b16 %v1668, %v1668
      %v1733 = vpack.c.b16 %v1669, %v1669
      %v1734 = vpack.c.b16 %v1670, %v1670
      %v1735 = vpack.c.b16 %v1671, %v1671
      %v1736 = vpack.c.b16 %v1672, %v1672
      %v1737 = vpack.c.b16 %v1673, %v1673
      %v1738 = vpack.c.b16 %v1674, %v1674
      %v1739 = vpack.c.b16 %v1675, %v1675
      %v1740 = vpack.c.b16 %v1676, %v1676
      %v1741 = vpack.c.b16 %v1677, %v1677
      %v1742 = vpack.c.b16 %v1678, %v1678
      %v1743 = vpack.c.b16 %v1679, %v1679
      %v1744 = vpack.c.b16 %v1680, %v1680
      %v1745 = vpack.c.b16 %v1681, %v1681
      %v1746 = vpack.c.b16 %v1682, %v1682
      %v1747 = vpack.c.b16 %v1683, %v1683
      %v1748 = vpack.c.b16 %v1684, %v1684
      %v1749 = vpack.c.b16 %v1685, %v1685
      %1814 = vst [vmem:[%s177] sm:$0xf] %v1686
      %1815 = vst [vmem:[%s177 + $0x4] sm:$0xf] %v1687
      %1816 = vst [vmem:[%s177 + $0x8] sm:$0xf] %v1688
      %1817 = vst [vmem:[%s177 + $0xc] sm:$0xf] %v1689
      %1818 = vst [vmem:[%s177 + $0x10] sm:$0xf] %v1690
      %1819 = vst [vmem:[%s177 + $0x14] sm:$0xf] %v1691
      %1820 = vst [vmem:[%s177 + $0x18] sm:$0xf] %v1692
      %1821 = vst [vmem:[%s177 + $0x1c] sm:$0xf] %v1693
      %1822 = vst [vmem:[%s177 + $0x20] sm:$0xf] %v1694
      %1823 = vst [vmem:[%s177 + $0x24] sm:$0xf] %v1695
      %1824 = vst [vmem:[%s177 + $0x28] sm:$0xf] %v1696
      %1825 = vst [vmem:[%s177 + $0x2c] sm:$0xf] %v1697
      %1826 = vst [vmem:[%s177 + $0x30] sm:$0xf] %v1698
      %1827 = vst [vmem:[%s177 + $0x34] sm:$0xf] %v1699
      %1828 = vst [vmem:[%s177 + $0x38] sm:$0xf] %v1700
      %1829 = vst [vmem:[%s177 + $0x3c] sm:$0xf] %v1701
      %1830 = vst [vmem:[%s177 + $0x40] sm:$0xf] %v1702
      %1831 = vst [vmem:[%s177 + $0x44] sm:$0xf] %v1703
      %1832 = vst [vmem:[%s177 + $0x48] sm:$0xf] %v1704
      %1833 = vst [vmem:[%s177 + $0x4c] sm:$0xf] %v1705
      %1834 = vst [vmem:[%s177 + $0x50] sm:$0xf] %v1706
      %1835 = vst [vmem:[%s177 + $0x54] sm:$0xf] %v1707
      %1836 = vst [vmem:[%s177 + $0x58] sm:$0xf] %v1708
      %1837 = vst [vmem:[%s177 + $0x5c] sm:$0xf] %v1709
      %1838 = vst [vmem:[%s177 + $0x60] sm:$0xf] %v1710
      %1839 = vst [vmem:[%s177 + $0x64] sm:$0xf] %v1711
      %1840 = vst [vmem:[%s177 + $0x68] sm:$0xf] %v1712
      %1841 = vst [vmem:[%s177 + $0x6c] sm:$0xf] %v1713
      %1842 = vst [vmem:[%s177 + $0x70] sm:$0xf] %v1714
      %1843 = vst [vmem:[%s177 + $0x74] sm:$0xf] %v1715
      %1844 = vst [vmem:[%s177 + $0x78] sm:$0xf] %v1716
      %1845 = vst [vmem:[%s177 + $0x7c] sm:$0xf] %v1717
      %1846 = vst [vmem:[%s177 + $0x80] sm:$0xf] %v1718
      %1847 = vst [vmem:[%s177 + $0x84] sm:$0xf] %v1719
      %1848 = vst [vmem:[%s177 + $0x88] sm:$0xf] %v1720
      %1849 = vst [vmem:[%s177 + $0x8c] sm:$0xf] %v1721
      %1850 = vst [vmem:[%s177 + $0x90] sm:$0xf] %v1722
      %1851 = vst [vmem:[%s177 + $0x94] sm:$0xf] %v1723
      %1852 = vst [vmem:[%s177 + $0x98] sm:$0xf] %v1724
      %1853 = vst [vmem:[%s177 + $0x9c] sm:$0xf] %v1725
      %1854 = vst [vmem:[%s177 + $0xa0] sm:$0xf] %v1726
      %1855 = vst [vmem:[%s177 + $0xa4] sm:$0xf] %v1727
      %1856 = vst [vmem:[%s177 + $0xa8] sm:$0xf] %v1728
      %1857 = vst [vmem:[%s177 + $0xac] sm:$0xf] %v1729
      %1858 = vst [vmem:[%s177 + $0xb0] sm:$0xf] %v1730
      %1859 = vst [vmem:[%s177 + $0xb4] sm:$0xf] %v1731
      %1860 = vst [vmem:[%s177 + $0xb8] sm:$0xf] %v1732
      %1861 = vst [vmem:[%s177 + $0xbc] sm:$0xf] %v1733
      %1862 = vst [vmem:[%s177 + $0xc0] sm:$0xf] %v1734
      %1863 = vst [vmem:[%s177 + $0xc4] sm:$0xf] %v1735
      %1864 = vst [vmem:[%s177 + $0xc8] sm:$0xf] %v1736
      %1865 = vst [vmem:[%s177 + $0xcc] sm:$0xf] %v1737
      %1866 = vst [vmem:[%s177 + $0xd0] sm:$0xf] %v1738
      %1867 = vst [vmem:[%s177 + $0xd4] sm:$0xf] %v1739
      %1868 = vst [vmem:[%s177 + $0xd8] sm:$0xf] %v1740
      %1869 = vst [vmem:[%s177 + $0xdc] sm:$0xf] %v1741
      %1870 = vst [vmem:[%s177 + $0xe0] sm:$0xf] %v1742
      %1871 = vst [vmem:[%s177 + $0xe4] sm:$0xf] %v1743
      %1872 = vst [vmem:[%s177 + $0xe8] sm:$0xf] %v1744
      %1873 = vst [vmem:[%s177 + $0xec] sm:$0xf] %v1745
      %1874 = vst [vmem:[%s177 + $0xf0] sm:$0xf] %v1746
      %1875 = vst [vmem:[%s177 + $0xf4] sm:$0xf] %v1747
      %1876 = vst [vmem:[%s177 + $0xf8] sm:$0xf] %v1748
      %1877 = vst [vmem:[%s177 + $0xfc] sm:$0xf] %v1749
      %s1878 = smul.u32 32, %s14
      %p1879 = scmp.lt.s32.totalorder %s1878, 63
      %s1880 = scalar_select %p1879, %s1878, 63
      %s1881 = smul.addr %s1880, 2
      %s1882 = smul.addr %s1881, 4
      %s1883 = scalar_lea.vmem %s3, %s1882
      // Predicated region
      $region33: #{fashion_cnn_forward.3} parent=31 // pred_check
        %p1884 = pneg %p100
      $region34: #{fashion_cnn_forward.3} parent=31 // pred_check_branch
        %1886 = sbr.rel (%p1884) target = $region36
      $region35: #{fashion_cnn_forward.3} parent=31 // pred_region
        %s1887 = smul.u32 32, %s14
      $region36: #{fashion_cnn_forward.3} parent=31 // pred_fallthru
        _
    $region32: #{fashion_cnn_forward.3} parent=5 // pred_fallthru
      _
    %p1888 = scmp.le.s32.totalorder 2, %s9
    // Predicated region
    $region37: #{fashion_cnn_forward.3} parent=5 // pred_check
      %p1889 = pneg %p1888
    $region38: #{fashion_cnn_forward.3} parent=5 // pred_check_branch
      %1891 = sbr.rel (%p1889) target = $region40
    $region39: #{fashion_cnn_forward.3} parent=5 // pred_region
      %s1892 = ssub.s32 %s9, 2
      // Predicated region
      $region41: #{fashion_cnn_forward.3} parent=39 // pred_check
        %p1893 = pneg %p106
      $region42: #{fashion_cnn_forward.3} parent=39 // pred_check_branch
        %1895 = sbr.rel (%p1893) target = $region44
      $region43: #{fashion_cnn_forward.3} parent=39 // pred_region
        %s1896 = smul.u32 32, %s15
        %p1897 = scmp.lt.s32.totalorder %s1896, 63
        %s1898 = scalar_select %p1897, %s1896, 63
        %s1899 = smul.addr %s1898, 2
        %s1900 = smul.addr %s1899, 4
        %s1901 = scalar_lea.vmem %s3, %s1900
      $region44: #{fashion_cnn_forward.3} parent=39 // pred_fallthru
        _
    $region40: #{fashion_cnn_forward.3} parent=5 // pred_fallthru
      _
  $region6: #{fashion_cnn_forward.3} parent=0 // loop_footer
    %s13 = sadd.s32 1, %s9
  $region7: #{fashion_cnn_forward.3} parent=0 // loop_footer_branch
    %8 = sbr.rel target = $region3
  $region8: #{fashion_cnn_forward.3} parent=0 // loop_exit
    _

// kernel: fashion_cnn_forward.4
$region0: #{fashion_cnn_forward.4}
  #allocation0 [shape = 'u32[]', space=smem, size = 0x4, offset = 0x4, fixed_abs, tag = 'smem constant byte address 0x4 - core index']
  #allocation1 [shape = 'u32[144,128]{1,0:T(1,128)}', space=vmem, size = 0x12000, scoped, tag = 'internal scratch']
  %s0 = inlined_call_operand.vmem [shape: bf16[64,16,128], index: 0, kind: input, shape index: {}]
  %s1 = inlined_call_operand.vmem [shape: bf16[9,128,128], index: 1, kind: input, shape index: {}]
  %s2 = inlined_call_operand.vmem [shape: f32[1,128], index: 2, kind: input, shape index: {}]
  %s3 = inlined_call_operand.vmem [shape: bf16[32,16,128], index: 3, kind: output, shape index: {}]
  %s4 = sld [smem:[#allocation0]]
  $region45: #{fashion_cnn_forward.4} parent=0
    _
  %s6 = ssub.s32 1, %s4
  %s7 = scalar_select 0, %s6, %s4
  loop: start=0, step=1, limit=4
  $region2: #{fashion_cnn_forward.4} parent=0 // loop_pre_header
    _
  $region3: #{fashion_cnn_forward.4} parent=0 // loop_header
    %s9 = sphi 0, %s13
    %p10 = scmp.ge.s32.totalorder %s9, 4
    %s19 = sphi 0, %s21
    %s22 = sphi 0, %s19
    %s23 = sphi 0, %s22
    %s39 = sphi 0, %s23
    %s43 = sphi 0, %s43
    %s45 = sphi 0, %s43
    %s46 = sphi 0, %s45
    %s60 = sphi 0, %s46
    %s64 = sphi 0, %s64
    %s66 = sphi 0, %s64
    %s67 = sphi 0, %s66
    %s81 = sphi 0, %s67
    %s87 = sphi 0, %s89
    %s90 = sphi 0, %s87
    %s91 = sphi 0, %s90
    %s107 = sphi 0, %s91
  $region4: #{fashion_cnn_forward.4} parent=0 // loop_header_branch
    %12 = sbr.rel (%p10) target = $region8
  $region5: #{fashion_cnn_forward.4} parent=0 // loop_body
    %s14 = ssub.s32 %s9, 1
    %s15 = ssub.s32 %s9, 2
    %s16 = sadd.s32 %s9, 1
    %s17 = ssub.s32 %s9, %s16
    %p18 = scmp.eq.s32.totalorder %s17, 0
    %s20 = sadd.s32 %s19, 1
    %s21 = scalar_select %p18, %s19, %s20
    %p24 = pneg %p18
    %p25 = scmp.eq.s32.totalorder %s9, 1
    %p26 = por %p24, %p25
    %p27 = scmp.ne.s32.totalorder %s19, %s22
    %p28 = scmp.eq.s32.totalorder %s9, 0
    %p29 = por %p27, %p28
    %p30 = scmp.ne.s32.totalorder %s19, %s22
    %p31 = scmp.eq.s32.totalorder %s14, 1
    %p32 = por %p30, %p31
    %p33 = scmp.ne.s32.totalorder %s22, %s23
    %p34 = scmp.eq.s32.totalorder %s14, 0
    %p35 = por %p33, %p34
    %p36 = scmp.ne.s32.totalorder %s22, %s23
    %p37 = scmp.eq.s32.totalorder %s15, 1
    %p38 = por %p36, %p37
    %p40 = scmp.ne.s32.totalorder %s23, %s39
    %p41 = scmp.eq.s32.totalorder %s15, 0
    %p42 = por %p40, %p41
    %s44 = sadd.s32 %s43, 1
    %p47 = scmp.eq.s32.totalorder %s9, 1
    %p48 = scmp.ne.s32.totalorder %s43, %s45
    %p49 = scmp.eq.s32.totalorder %s9, 0
    %p50 = por %p48, %p49
    %p51 = scmp.ne.s32.totalorder %s43, %s45
    %p52 = scmp.eq.s32.totalorder %s14, 1
    %p53 = por %p51, %p52
    %p54 = scmp.ne.s32.totalorder %s45, %s46
    %p55 = scmp.eq.s32.totalorder %s14, 0
    %p56 = por %p54, %p55
    %p57 = scmp.ne.s32.totalorder %s45, %s46
    %p58 = scmp.eq.s32.totalorder %s15, 1
    %p59 = por %p57, %p58
    %p61 = scmp.ne.s32.totalorder %s46, %s60
    %p62 = scmp.eq.s32.totalorder %s15, 0
    %p63 = por %p61, %p62
    %s65 = sadd.s32 %s64, 1
    %p68 = scmp.eq.s32.totalorder %s9, 1
    %p69 = scmp.ne.s32.totalorder %s64, %s66
    %p70 = scmp.eq.s32.totalorder %s9, 0
    %p71 = por %p69, %p70
    %p72 = scmp.ne.s32.totalorder %s64, %s66
    %p73 = scmp.eq.s32.totalorder %s14, 1
    %p74 = por %p72, %p73
    %p75 = scmp.ne.s32.totalorder %s66, %s67
    %p76 = scmp.eq.s32.totalorder %s14, 0
    %p77 = por %p75, %p76
    %p78 = scmp.ne.s32.totalorder %s66, %s67
    %p79 = scmp.eq.s32.totalorder %s15, 1
    %p80 = por %p78, %p79
    %p82 = scmp.ne.s32.totalorder %s67, %s81
    %p83 = scmp.eq.s32.totalorder %s15, 0
    %p84 = por %p82, %p83
    %s85 = ssub.s32 %s9, %s16
    %p86 = scmp.eq.s32.totalorder %s85, 0
    %s88 = sadd.s32 %s87, 1
    %s89 = scalar_select %p86, %s87, %s88
    %p92 = pneg %p86
    %p93 = scmp.eq.s32.totalorder %s9, 1
    %p94 = por %p92, %p93
    %p95 = scmp.ne.s32.totalorder %s87, %s90
    %p96 = scmp.eq.s32.totalorder %s9, 0
    %p97 = por %p95, %p96
    %p98 = scmp.ne.s32.totalorder %s87, %s90
    %p99 = scmp.eq.s32.totalorder %s14, 1
    %p100 = por %p98, %p99
    %p101 = scmp.ne.s32.totalorder %s90, %s91
    %p102 = scmp.eq.s32.totalorder %s14, 0
    %p103 = por %p101, %p102
    %p104 = scmp.ne.s32.totalorder %s90, %s91
    %p105 = scmp.eq.s32.totalorder %s15, 1
    %p106 = por %p104, %p105
    %p108 = scmp.ne.s32.totalorder %s91, %s107
    %p109 = scmp.eq.s32.totalorder %s15, 0
    %p110 = por %p108, %p109
    %p111 = scmp.le.s32.totalorder 1, %s9
    %p112 = scmp.lt.s32.totalorder %s9, 3
    %p113 = pnand %p111, %p112
    %p114 = pneg %p113
    // Predicated region
    $region9: #{fashion_cnn_forward.4} parent=5 // pred_check
      _
    $region10: #{fashion_cnn_forward.4} parent=5 // pred_check_branch
      %116 = sbr.rel (%p113) target = $region12
    $region11: #{fashion_cnn_forward.4} parent=5 // pred_region
      %s117 = ssub.s32 %s9, 1
      // Predicated region
      $region13: #{fashion_cnn_forward.4} parent=11 // pred_check
        %p118 = pneg %p56
      $region14: #{fashion_cnn_forward.4} parent=11 // pred_check_branch
        %120 = sbr.rel (%p118) target = $region16
      $region15: #{fashion_cnn_forward.4} parent=11 // pred_region
        _
      $region16: #{fashion_cnn_forward.4} parent=11 // pred_fallthru
        _
      // Predicated region
      $region17: #{fashion_cnn_forward.4} parent=11 // pred_check
        %p121 = pneg %p77
      $region18: #{fashion_cnn_forward.4} parent=11 // pred_check_branch
        %123 = sbr.rel (%p121) target = $region20
      $region19: #{fashion_cnn_forward.4} parent=11 // pred_region
        _
      $region20: #{fashion_cnn_forward.4} parent=11 // pred_fallthru
        _
    $region12: #{fashion_cnn_forward.4} parent=5 // pred_fallthru
      _
    %p124 = scmp.lt.s32.totalorder %s9, 2
    // Predicated region
    $region21: #{fashion_cnn_forward.4} parent=5 // pred_check
      %p125 = pneg %p124
    $region22: #{fashion_cnn_forward.4} parent=5 // pred_check_branch
      %127 = sbr.rel (%p125) target = $region24
    $region23: #{fashion_cnn_forward.4} parent=5 // pred_region
      // Predicated region
      $region25: #{fashion_cnn_forward.4} parent=23 // pred_check
        %p128 = pneg %p29
      $region26: #{fashion_cnn_forward.4} parent=23 // pred_check_branch
        %130 = sbr.rel (%p128) target = $region28
      $region27: #{fashion_cnn_forward.4} parent=23 // pred_region
        %s131 = smul.u32 32, %s9
        %p132 = scmp.lt.s32.totalorder %s131, 63
        %s133 = scalar_select %p132, %s131, 63
        %s134 = smul.addr %s133, 2
        %s135 = smul.addr %s134, 4
        %s136 = scalar_lea.vmem %s0, %s135
        %s137 = smul.u32 32, %s9
      $region28: #{fashion_cnn_forward.4} parent=23 // pred_fallthru
        _
    $region24: #{fashion_cnn_forward.4} parent=5 // pred_fallthru
      _
    %p138 = scmp.le.s32.totalorder 1, %s9
    %p139 = scmp.lt.s32.totalorder %s9, 3
    %p140 = pnand %p138, %p139
    %p141 = pneg %p140
    // Predicated region
    $region29: #{fashion_cnn_forward.4} parent=5 // pred_check
      _
    $region30: #{fashion_cnn_forward.4} parent=5 // pred_check_branch
      %143 = sbr.rel (%p140) target = $region32
    $region31: #{fashion_cnn_forward.4} parent=5 // pred_region
      %s144 = ssub.s32 %s9, 1
      %s145 = smul.u32 32, %s14
      %p146 = scmp.lt.s32.totalorder %s145, 63
      %s147 = scalar_select %p146, %s145, 63
      %s148 = smul.addr %s147, 2
      %s149 = smul.addr %s148, 4
      %s150 = scalar_lea.vmem %s0, %s149
      %p151 = pneg %p35
      %p152 = pneg %p32
      %p153 = pneg %p56
      %p154 = pneg %p53
      %p155 = pneg %p77
      %p156 = pneg %p74
      %p157 = pneg %p103
      %p158 = pneg %p100
      %s159 = smul.u32 16, %s14
      %p160 = scmp.lt.s32.totalorder %s159, 31
      %s161 = scalar_select %p160, %s159, 31
      %s162 = smul.addr %s161, 2
      %s163 = smul.addr %s162, 4
      %s164 = scalar_lea.vmem %s3, %s163
      %s165 = smul.u32 32, %s14
      %p166 = scmp.lt.s32.totalorder %s165, 63
      %s167 = scalar_select %p166, %s165, 63
      %s168 = smul.addr %s167, 2
      %s169 = smul.addr %s168, 4
      %s170 = scalar_lea.vmem %s0, %s169
      %s171 = smul.u32 32, %s14
      %s172 = smul.u32 16, %s14
      %p173 = scmp.lt.s32.totalorder %s172, 31
      %s174 = scalar_select %p173, %s172, 31
      %s175 = smul.addr %s174, 2
      %s176 = smul.addr %s175, 4
      %s177 = scalar_lea.vmem %s3, %s176
      %s178 = smul.u32 16, %s14
      %v180 = vld [vmem:[%s170] sm:$0xf]
      %v181 = vld [vmem:[%s170 + $0x4] sm:$0xf]
      %v182 = vld [vmem:[%s170 + $0x8] sm:$0xf]
      %v183 = vld [vmem:[%s170 + $0xc] sm:$0xf]
      %v184 = vld [vmem:[%s170 + $0x10] sm:$0xf]
      %v185 = vld [vmem:[%s170 + $0x14] sm:$0xf]
      %v186 = vld [vmem:[%s170 + $0x18] sm:$0xf]
      %v187 = vld [vmem:[%s170 + $0x1c] sm:$0xf]
      %v188 = vld [vmem:[%s170 + $0x20] sm:$0xf]
      %v189 = vld [vmem:[%s170 + $0x24] sm:$0xf]
      %v190 = vld [vmem:[%s170 + $0x28] sm:$0xf]
      %v191 = vld [vmem:[%s170 + $0x2c] sm:$0xf]
      %v192 = vld [vmem:[%s170 + $0x30] sm:$0xf]
      %v193 = vld [vmem:[%s170 + $0x34] sm:$0xf]
      %v194 = vld [vmem:[%s170 + $0x38] sm:$0xf]
      %v195 = vld [vmem:[%s170 + $0x3c] sm:$0xf]
      %v196 = vld [vmem:[%s170 + $0x40] sm:$0xf]
      %v197 = vld [vmem:[%s170 + $0x44] sm:$0xf]
      %v198 = vld [vmem:[%s170 + $0x48] sm:$0xf]
      %v199 = vld [vmem:[%s170 + $0x4c] sm:$0xf]
      %v200 = vld [vmem:[%s170 + $0x50] sm:$0xf]
      %v201 = vld [vmem:[%s170 + $0x54] sm:$0xf]
      %v202 = vld [vmem:[%s170 + $0x58] sm:$0xf]
      %v203 = vld [vmem:[%s170 + $0x5c] sm:$0xf]
      %v204 = vld [vmem:[%s170 + $0x60] sm:$0xf]
      %v205 = vld [vmem:[%s170 + $0x64] sm:$0xf]
      %v206 = vld [vmem:[%s170 + $0x68] sm:$0xf]
      %v207 = vld [vmem:[%s170 + $0x6c] sm:$0xf]
      %v208 = vld [vmem:[%s170 + $0x70] sm:$0xf]
      %v209 = vld [vmem:[%s170 + $0x74] sm:$0xf]
      %v210 = vld [vmem:[%s170 + $0x78] sm:$0xf]
      %v211 = vld [vmem:[%s170 + $0x7c] sm:$0xf]
      %v212 = vld [vmem:[%s170 + $0x80] sm:$0xf]
      %v213 = vld [vmem:[%s170 + $0x84] sm:$0xf]
      %v214 = vld [vmem:[%s170 + $0x88] sm:$0xf]
      %v215 = vld [vmem:[%s170 + $0x8c] sm:$0xf]
      %v216 = vld [vmem:[%s170 + $0x90] sm:$0xf]
      %v217 = vld [vmem:[%s170 + $0x94] sm:$0xf]
      %v218 = vld [vmem:[%s170 + $0x98] sm:$0xf]
      %v219 = vld [vmem:[%s170 + $0x9c] sm:$0xf]
      %v220 = vld [vmem:[%s170 + $0xa0] sm:$0xf]
      %v221 = vld [vmem:[%s170 + $0xa4] sm:$0xf]
      %v222 = vld [vmem:[%s170 + $0xa8] sm:$0xf]
      %v223 = vld [vmem:[%s170 + $0xac] sm:$0xf]
      %v224 = vld [vmem:[%s170 + $0xb0] sm:$0xf]
      %v225 = vld [vmem:[%s170 + $0xb4] sm:$0xf]
      %v226 = vld [vmem:[%s170 + $0xb8] sm:$0xf]
      %v227 = vld [vmem:[%s170 + $0xbc] sm:$0xf]
      %v228 = vld [vmem:[%s170 + $0xc0] sm:$0xf]
      %v229 = vld [vmem:[%s170 + $0xc4] sm:$0xf]
      %v230 = vld [vmem:[%s170 + $0xc8] sm:$0xf]
      %v231 = vld [vmem:[%s170 + $0xcc] sm:$0xf]
      %v232 = vld [vmem:[%s170 + $0xd0] sm:$0xf]
      %v233 = vld [vmem:[%s170 + $0xd4] sm:$0xf]
      %v234 = vld [vmem:[%s170 + $0xd8] sm:$0xf]
      %v235 = vld [vmem:[%s170 + $0xdc] sm:$0xf]
      %v236 = vld [vmem:[%s170 + $0xe0] sm:$0xf]
      %v237 = vld [vmem:[%s170 + $0xe4] sm:$0xf]
      %v238 = vld [vmem:[%s170 + $0xe8] sm:$0xf]
      %v239 = vld [vmem:[%s170 + $0xec] sm:$0xf]
      %v240 = vld [vmem:[%s170 + $0xf0] sm:$0xf]
      %v241 = vld [vmem:[%s170 + $0xf4] sm:$0xf]
      %v242 = vld [vmem:[%s170 + $0xf8] sm:$0xf]
      %v243 = vld [vmem:[%s170 + $0xfc] sm:$0xf]
      %v244 = vld [vmem:[%s1] sm:$0xf]
      %v245 = vld [vmem:[%s1 + $0x4] sm:$0xf]
      %v246 = vld [vmem:[%s1 + $0x8] sm:$0xf]
      %v247 = vld [vmem:[%s1 + $0xc] sm:$0xf]
      %v248 = vld [vmem:[%s1 + $0x10] sm:$0xf]
      %v249 = vld [vmem:[%s1 + $0x14] sm:$0xf]
      %v250 = vld [vmem:[%s1 + $0x18] sm:$0xf]
      %v251 = vld [vmem:[%s1 + $0x1c] sm:$0xf]
      %v252 = vld [vmem:[%s1 + $0x20] sm:$0xf]
      %v253 = vld [vmem:[%s1 + $0x24] sm:$0xf]
      %v254 = vld [vmem:[%s1 + $0x28] sm:$0xf]
      %v255 = vld [vmem:[%s1 + $0x2c] sm:$0xf]
      %v256 = vld [vmem:[%s1 + $0x30] sm:$0xf]
      %v257 = vld [vmem:[%s1 + $0x34] sm:$0xf]
      %v258 = vld [vmem:[%s1 + $0x38] sm:$0xf]
      %v259 = vld [vmem:[%s1 + $0x3c] sm:$0xf]
      %v322 = vunpack.c.l.b16 %v182
      %v323 = vunpack.c.l.b16 %v183
      %v324 = vunpack.c.l.b16 %v184
      %v325 = vunpack.c.l.b16 %v185
      %v326 = vunpack.c.l.b16 %v186
      %v327 = vunpack.c.l.b16 %v187
      %v328 = vunpack.c.l.b16 %v188
      %v329 = vunpack.c.l.b16 %v189
      %v330 = vunpack.c.l.b16 %v190
      %v331 = vunpack.c.l.b16 %v191
      %v332 = vunpack.c.l.b16 %v192
      %v333 = vunpack.c.l.b16 %v193
      %v334 = vunpack.c.l.b16 %v194
      %v335 = vunpack.c.l.b16 %v195
      %v336 = vunpack.c.l.b16 %v196
      %v337 = vunpack.c.l.b16 %v197
      %v338 = vunpack.c.l.b16 %v198
      %v339 = vunpack.c.l.b16 %v199
      %v340 = vunpack.c.l.b16 %v200
      %v341 = vunpack.c.l.b16 %v201
      %v342 = vunpack.c.l.b16 %v202
      %v343 = vunpack.c.l.b16 %v203
      %v344 = vunpack.c.l.b16 %v204
      %v345 = vunpack.c.l.b16 %v205
      %v346 = vunpack.c.l.b16 %v206
      %v347 = vunpack.c.l.b16 %v207
      %v348 = vunpack.c.l.b16 %v208
      %v349 = vunpack.c.l.b16 %v209
      %v350 = vunpack.c.l.b16 %v210
      %v351 = vunpack.c.l.b16 %v211
      %v352 = vunpack.c.l.b16 %v212
      %v353 = vunpack.c.l.b16 %v213
      %v354 = vunpack.c.l.b16 %v214
      %v355 = vunpack.c.l.b16 %v215
      %v356 = vunpack.c.l.b16 %v216
      %v357 = vunpack.c.l.b16 %v217
      %v358 = vunpack.c.l.b16 %v218
      %v359 = vunpack.c.l.b16 %v219
      %v360 = vunpack.c.l.b16 %v220
      %v361 = vunpack.c.l.b16 %v221
      %v362 = vunpack.c.l.b16 %v222
      %v363 = vunpack.c.l.b16 %v223
      %v364 = vunpack.c.l.b16 %v224
      %v365 = vunpack.c.l.b16 %v225
      %v366 = vunpack.c.l.b16 %v226
      %v367 = vunpack.c.l.b16 %v227
      %v368 = vunpack.c.l.b16 %v228
      %v369 = vunpack.c.l.b16 %v229
      %v370 = vunpack.c.l.b16 %v230
      %v371 = vunpack.c.l.b16 %v231
      %v372 = vunpack.c.l.b16 %v232
      %v373 = vunpack.c.l.b16 %v233
      %v374 = vunpack.c.l.b16 %v234
      %v375 = vunpack.c.l.b16 %v235
      %v376 = vunpack.c.l.b16 %v236
      %v377 = vunpack.c.l.b16 %v237
      %v378 = vunpack.c.l.b16 %v238
      %v379 = vunpack.c.l.b16 %v239
      %v380 = vunpack.c.l.b16 %v240
      %v381 = vunpack.c.l.b16 %v241
      %v382 = vunpack.c.l.b16 %v242
      %v383 = vunpack.c.l.b16 %v243
      %v384 = vpack.c.b16 %v323, %v322
      %v385 = vpack.c.b16 %v325, %v324
      %v386 = vpack.c.b16 %v327, %v326
      %v387 = vpack.c.b16 %v329, %v328
      %v388 = vpack.c.b16 %v331, %v330
      %v389 = vpack.c.b16 %v333, %v332
      %v390 = vpack.c.b16 %v335, %v334
      %v391 = vpack.c.b16 %v337, %v336
      %v392 = vpack.c.b16 %v339, %v338
      %v393 = vpack.c.b16 %v341, %v340
      %v394 = vpack.c.b16 %v343, %v342
      %v395 = vpack.c.b16 %v345, %v344
      %v396 = vpack.c.b16 %v347, %v346
      %v397 = vpack.c.b16 %v349, %v348
      %v398 = vpack.c.b16 %v351, %v350
      %v399 = vpack.c.b16 %v353, %v352
      %v400 = vpack.c.b16 %v355, %v354
      %v401 = vpack.c.b16 %v357, %v356
      %v402 = vpack.c.b16 %v359, %v358
      %v403 = vpack.c.b16 %v361, %v360
      %v404 = vpack.c.b16 %v363, %v362
      %v405 = vpack.c.b16 %v365, %v364
      %v406 = vpack.c.b16 %v367, %v366
      %v407 = vpack.c.b16 %v369, %v368
      %v408 = vpack.c.b16 %v371, %v370
      %v409 = vpack.c.b16 %v373, %v372
      %v410 = vpack.c.b16 %v375, %v374
      %v411 = vpack.c.b16 %v377, %v376
      %v412 = vpack.c.b16 %v379, %v378
      %v413 = vpack.c.b16 %v381, %v380
      %v414 = vpack.c.b16 %v383, %v382
      %s446 = scalar_lea.vmem %s1, 192
      %v447 = vld [vmem:[%s446] sm:$0xf]
      %v448 = vld [vmem:[%s446 + $0x4] sm:$0xf]
      %v449 = vld [vmem:[%s446 + $0x8] sm:$0xf]
      %v450 = vld [vmem:[%s446 + $0xc] sm:$0xf]
      %v451 = vld [vmem:[%s446 + $0x10] sm:$0xf]
      %v452 = vld [vmem:[%s446 + $0x14] sm:$0xf]
      %v453 = vld [vmem:[%s446 + $0x18] sm:$0xf]
      %v454 = vld [vmem:[%s446 + $0x1c] sm:$0xf]
      %v455 = vld [vmem:[%s446 + $0x20] sm:$0xf]
      %v456 = vld [vmem:[%s446 + $0x24] sm:$0xf]
      %v457 = vld [vmem:[%s446 + $0x28] sm:$0xf]
      %v458 = vld [vmem:[%s446 + $0x2c] sm:$0xf]
      %v459 = vld [vmem:[%s446 + $0x30] sm:$0xf]
      %v460 = vld [vmem:[%s446 + $0x34] sm:$0xf]
      %v461 = vld [vmem:[%s446 + $0x38] sm:$0xf]
      %v462 = vld [vmem:[%s446 + $0x3c] sm:$0xf]
      %v479 = vunpack.c.l.b16 %v447
      %v480 = vunpack.c.l.b16 %v448
      %v481 = vunpack.c.l.b16 %v449
      %v482 = vunpack.c.l.b16 %v450
      %v483 = vunpack.c.l.b16 %v451
      %v484 = vunpack.c.l.b16 %v452
      %v485 = vunpack.c.l.b16 %v453
      %v486 = vunpack.c.l.b16 %v454
      %v487 = vunpack.c.l.b16 %v455
      %v488 = vunpack.c.l.b16 %v456
      %v489 = vunpack.c.l.b16 %v457
      %v490 = vunpack.c.l.b16 %v458
      %v491 = vunpack.c.l.b16 %v459
      %v492 = vunpack.c.l.b16 %v460
      %v493 = vunpack.c.l.b16 %v461
      %v494 = vunpack.c.l.b16 %v462
      %v495 = vpack.c.b16 %v480, %v479
      %v496 = vpack.c.b16 %v482, %v481
      %v497 = vpack.c.b16 %v484, %v483
      %v498 = vpack.c.b16 %v486, %v485
      %v499 = vpack.c.b16 %v488, %v487
      %v500 = vpack.c.b16 %v490, %v489
      %v501 = vpack.c.b16 %v492, %v491
      %v502 = vpack.c.b16 %v494, %v493
      %511 = vmatprep.subr.bf16.mxu0 0
      %512 = vmatpush1.bf16.msra.mxu0 %v495
      %513 = vmatprep.subr.bf16.mxu0 0
      %514 = vmatpush1.bf16.msra.mxu0 %v496
      %515 = vmatprep.subr.bf16.mxu0 0
      %516 = vmatpush1.bf16.msra.mxu0 %v497
      %517 = vmatprep.subr.bf16.mxu0 0
      %518 = vmatpush1.bf16.msra.mxu0 %v498
      %519 = vmatprep.subr.bf16.mxu0 0
      %520 = vmatpush1.bf16.msra.mxu0 %v499
      %521 = vmatprep.subr.bf16.mxu0 0
      %522 = vmatpush1.bf16.msra.mxu0 %v500
      %523 = vmatprep.subr.bf16.mxu0 0
      %524 = vmatpush1.bf16.msra.mxu0 %v501
      %525 = vmatprep.subr.bf16.mxu0 0
      %526 = vmatpush1.bf16.msra.mxu0 %v502
      %527 = vmatprep.subr.bf16.mxu0 0
      %528 = vmatpush1.bf16.msra.mxu0 0
      %529 = vmatprep.subr.bf16.mxu0 0
      %530 = vmatpush1.bf16.msra.mxu0 0
      %531 = vmatprep.subr.bf16.mxu0 0
      %532 = vmatpush1.bf16.msra.mxu0 0
      %533 = vmatprep.subr.bf16.mxu0 0
      %534 = vmatpush1.bf16.msra.mxu0 0
      %535 = vmatprep.subr.bf16.mxu0 0
      %536 = vmatpush1.bf16.msra.mxu0 0
      %537 = vmatprep.subr.bf16.mxu0 0
      %538 = vmatpush1.bf16.msra.mxu0 0
      %539 = vmatprep.subr.bf16.mxu0 0
      %540 = vmatpush1.bf16.msra.mxu0 0
      %541 = vmatprep.subr.bf16.mxu0 0
      %542 = vmatpush1.bf16.msra.mxu0 0
      %543 = vmatprep.mubr.bf16.mxu0 0
      %544 = vmatmul.mubr.bf16.gmra.mrb[0].mxu0 %v384
      %v545 = vpop.f32.mrb[0].mxu0
      %v546 = vadd.f32 0.0, %v545
      %v547 = vpop.f32.mrb[0].mxu0
      %v548 = vpop.f32.mrb[0].mxu0
      %v549 = vadd.f32 0.0, %v548
      %v550 = vpop.f32.mrb[0].mxu0
      %551 = vmatprep.mubr.bf16.mxu0 0
      %552 = vmatmul.mubr.bf16.gmra.mrb[0].mxu0 %v385
      %v553 = vpop.f32.mrb[0].mxu0
      %v554 = vadd.f32 0.0, %v553
      %v555 = vpop.f32.mrb[0].mxu0
      %v556 = vpop.f32.mrb[0].mxu0
      %v557 = vadd.f32 0.0, %v556
      %v558 = vpop.f32.mrb[0].mxu0
      %559 = vmatprep.mubr.bf16.mxu0 0
      %560 = vmatmul.mubr.bf16.gmra.mrb[0].mxu0 %v386
      %v561 = vpop.f32.mrb[0].mxu0
      %v562 = vadd.f32 0.0, %v561
      %v563 = vpop.f32.mrb[0].mxu0
      %v564 = vpop.f32.mrb[0].mxu0
      %v565 = vadd.f32 0.0, %v564
      %v566 = vpop.f32.mrb[0].mxu0
      %567 = vmatprep.mubr.bf16.mxu0 0
      %568 = vmatmul.mubr.bf16.gmra.mrb[0].mxu0 %v387
      %v569 = vpop.f32.mrb[0].mxu0
      %v570 = vadd.f32 0.0, %v569
      %v571 = vpop.f32.mrb[0].mxu0
      %v572 = vpop.f32.mrb[0].mxu0
      %v573 = vadd.f32 0.0, %v572
      %v574 = vpop.f32.mrb[0].mxu0
      %575 = vmatprep.mubr.bf16.mxu0 0
      %576 = vmatmul.mubr.bf16.gmra.mrb[0].mxu0 %v388
      %v577 = vpop.f32.mrb[0].mxu0
      %v578 = vadd.f32 0.0, %v577
      %v579 = vpop.f32.mrb[0].mxu0
      %v580 = vpop.f32.mrb[0].mxu0
      %v581 = vadd.f32 0.0, %v580
      %v582 = vpop.f32.mrb[0].mxu0
      %583 = vmatprep.mubr.bf16.mxu0 0
      %584 = vmatmul.mubr.bf16.gmra.mrb[0].mxu0 %v389
      %v585 = vpop.f32.mrb[0].mxu0
      %v586 = vadd.f32 0.0, %v585
      %v587 = vpop.f32.mrb[0].mxu0
      %v588 = vpop.f32.mrb[0].mxu0
      %v589 = vadd.f32 0.0, %v588
      %v590 = vpop.f32.mrb[0].mxu0
      %591 = vmatprep.mubr.bf16.mxu0 0
      %592 = vmatmul.mubr.bf16.gmra.mrb[0].mxu0 %v390
      %v593 = vpop.f32.mrb[0].mxu0
      %v594 = vadd.f32 0.0, %v593
      %v595 = vpop.f32.mrb[0].mxu0
      %v596 = vpop.f32.mrb[0].mxu0
      %v597 = vadd.f32 0.0, %v596
      %v598 = vpop.f32.mrb[0].mxu0
      %599 = vmatprep.mubr.bf16.mxu0 0
      %600 = vmatmul.mubr.bf16.gmra.mrb[0].mxu0 %v391
      %v601 = vpop.f32.mrb[0].mxu0
      %v602 = vadd.f32 0.0, %v601
      %v603 = vpop.f32.mrb[0].mxu0
      %v604 = vpop.f32.mrb[0].mxu0
      %v605 = vadd.f32 0.0, %v604
      %v606 = vpop.f32.mrb[0].mxu0
      %607 = vmatprep.mubr.bf16.mxu0 0
      %608 = vmatmul.mubr.bf16.gmra.mrb[0].mxu0 %v392
      %v609 = vpop.f32.mrb[0].mxu0
      %v610 = vadd.f32 0.0, %v609
      %v611 = vpop.f32.mrb[0].mxu0
      %v612 = vpop.f32.mrb[0].mxu0
      %v613 = vadd.f32 0.0, %v612
      %v614 = vpop.f32.mrb[0].mxu0
      %615 = vmatprep.mubr.bf16.mxu0 0
      %616 = vmatmul.mubr.bf16.gmra.mrb[0].mxu0 %v393
      %v617 = vpop.f32.mrb[0].mxu0
      %v618 = vadd.f32 0.0, %v617
      %v619 = vpop.f32.mrb[0].mxu0
      %v620 = vpop.f32.mrb[0].mxu0
      %v621 = vadd.f32 0.0, %v620
      %v622 = vpop.f32.mrb[0].mxu0
      %623 = vmatprep.mubr.bf16.mxu0 0
      %624 = vmatmul.mubr.bf16.gmra.mrb[0].mxu0 %v394
      %v625 = vpop.f32.mrb[0].mxu0
      %v626 = vadd.f32 0.0, %v625
      %v627 = vpop.f32.mrb[0].mxu0
      %v628 = vpop.f32.mrb[0].mxu0
      %v629 = vadd.f32 0.0, %v628
      %v630 = vpop.f32.mrb[0].mxu0
      %631 = vmatprep.mubr.bf16.mxu0 0
      %632 = vmatmul.mubr.bf16.gmra.mrb[0].mxu0 %v395
      %v633 = vpop.f32.mrb[0].mxu0
      %v634 = vadd.f32 0.0, %v633
      %v635 = vpop.f32.mrb[0].mxu0
      %v636 = vpop.f32.mrb[0].mxu0
      %v637 = vadd.f32 0.0, %v636
      %v638 = vpop.f32.mrb[0].mxu0
      %639 = vmatprep.mubr.bf16.mxu0 0
      %640 = vmatmul.mubr.bf16.gmra.mrb[0].mxu0 %v396
      %v641 = vpop.f32.mrb[0].mxu0
      %v642 = vadd.f32 0.0, %v641
      %v643 = vpop.f32.mrb[0].mxu0
      %v644 = vpop.f32.mrb[0].mxu0
      %v645 = vadd.f32 0.0, %v644
      %v646 = vpop.f32.mrb[0].mxu0
      %647 = vmatprep.mubr.bf16.mxu0 0
      %648 = vmatmul.mubr.bf16.gmra.mrb[0].mxu0 %v397
      %v649 = vpop.f32.mrb[0].mxu0
      %v650 = vadd.f32 0.0, %v649
      %v651 = vpop.f32.mrb[0].mxu0
      %v652 = vpop.f32.mrb[0].mxu0
      %v653 = vadd.f32 0.0, %v652
      %v654 = vpop.f32.mrb[0].mxu0
      %655 = vmatprep.mubr.bf16.mxu0 0
      %656 = vmatmul.mubr.bf16.gmra.mrb[0].mxu0 %v398
      %v657 = vpop.f32.mrb[0].mxu0
      %v658 = vadd.f32 0.0, %v657
      %v659 = vpop.f32.mrb[0].mxu0
      %v660 = vpop.f32.mrb[0].mxu0
      %v661 = vadd.f32 0.0, %v660
      %v662 = vpop.f32.mrb[0].mxu0
      %663 = vmatprep.mubr.bf16.mxu0 0
      %664 = vmatmul.mubr.bf16.gmra.mrb[0].mxu0 %v399
      %v665 = vpop.f32.mrb[0].mxu0
      %v666 = vadd.f32 0.0, %v665
      %v667 = vpop.f32.mrb[0].mxu0
      %v668 = vpop.f32.mrb[0].mxu0
      %v669 = vadd.f32 0.0, %v668
      %v670 = vpop.f32.mrb[0].mxu0
      %671 = vmatprep.mubr.bf16.mxu0 0
      %672 = vmatmul.mubr.bf16.gmra.mrb[0].mxu0 %v400
      %v673 = vpop.f32.mrb[0].mxu0
      %v674 = vadd.f32 0.0, %v673
      %v675 = vpop.f32.mrb[0].mxu0
      %v676 = vpop.f32.mrb[0].mxu0
      %v677 = vadd.f32 0.0, %v676
      %v678 = vpop.f32.mrb[0].mxu0
      %679 = vmatprep.mubr.bf16.mxu0 0
      %680 = vmatmul.mubr.bf16.gmra.mrb[0].mxu0 %v401
      %v681 = vpop.f32.mrb[0].mxu0
      %v682 = vadd.f32 0.0, %v681
      %v683 = vpop.f32.mrb[0].mxu0
      %v684 = vpop.f32.mrb[0].mxu0
      %v685 = vadd.f32 0.0, %v684
      %v686 = vpop.f32.mrb[0].mxu0
      %687 = vmatprep.mubr.bf16.mxu0 0
      %688 = vmatmul.mubr.bf16.gmra.mrb[0].mxu0 %v402
      %v689 = vpop.f32.mrb[0].mxu0
      %v690 = vadd.f32 0.0, %v689
      %v691 = vpop.f32.mrb[0].mxu0
      %v692 = vpop.f32.mrb[0].mxu0
      %v693 = vadd.f32 0.0, %v692
      %v694 = vpop.f32.mrb[0].mxu0
      %695 = vmatprep.mubr.bf16.mxu0 0
      %696 = vmatmul.mubr.bf16.gmra.mrb[0].mxu0 %v403
      %v697 = vpop.f32.mrb[0].mxu0
      %v698 = vadd.f32 0.0, %v697
      %v699 = vpop.f32.mrb[0].mxu0
      %v700 = vpop.f32.mrb[0].mxu0
      %v701 = vadd.f32 0.0, %v700
      %v702 = vpop.f32.mrb[0].mxu0
      %703 = vmatprep.mubr.bf16.mxu0 0
      %704 = vmatmul.mubr.bf16.gmra.mrb[0].mxu0 %v404
      %v705 = vpop.f32.mrb[0].mxu0
      %v706 = vadd.f32 0.0, %v705
      %v707 = vpop.f32.mrb[0].mxu0
      %v708 = vpop.f32.mrb[0].mxu0
      %v709 = vadd.f32 0.0, %v708
      %v710 = vpop.f32.mrb[0].mxu0
      %711 = vmatprep.mubr.bf16.mxu0 0
      %712 = vmatmul.mubr.bf16.gmra.mrb[0].mxu0 %v405
      %v713 = vpop.f32.mrb[0].mxu0
      %v714 = vadd.f32 0.0, %v713
      %v715 = vpop.f32.mrb[0].mxu0
      %v716 = vpop.f32.mrb[0].mxu0
      %v717 = vadd.f32 0.0, %v716
      %v718 = vpop.f32.mrb[0].mxu0
      %719 = vmatprep.mubr.bf16.mxu0 0
      %720 = vmatmul.mubr.bf16.gmra.mrb[0].mxu0 %v406
      %v721 = vpop.f32.mrb[0].mxu0
      %v722 = vadd.f32 0.0, %v721
      %v723 = vpop.f32.mrb[0].mxu0
      %v724 = vpop.f32.mrb[0].mxu0
      %v725 = vadd.f32 0.0, %v724
      %v726 = vpop.f32.mrb[0].mxu0
      %727 = vmatprep.mubr.bf16.mxu0 0
      %728 = vmatmul.mubr.bf16.gmra.mrb[0].mxu0 %v407
      %v729 = vpop.f32.mrb[0].mxu0
      %v730 = vadd.f32 0.0, %v729
      %v731 = vpop.f32.mrb[0].mxu0
      %v732 = vpop.f32.mrb[0].mxu0
      %v733 = vadd.f32 0.0, %v732
      %v734 = vpop.f32.mrb[0].mxu0
      %735 = vmatprep.mubr.bf16.mxu0 0
      %736 = vmatmul.mubr.bf16.gmra.mrb[0].mxu0 %v408
      %v737 = vpop.f32.mrb[0].mxu0
      %v738 = vadd.f32 0.0, %v737
      %v739 = vpop.f32.mrb[0].mxu0
      %v740 = vpop.f32.mrb[0].mxu0
      %v741 = vadd.f32 0.0, %v740
      %v742 = vpop.f32.mrb[0].mxu0
      %743 = vmatprep.mubr.bf16.mxu0 0
      %744 = vmatmul.mubr.bf16.gmra.mrb[0].mxu0 %v409
      %v745 = vpop.f32.mrb[0].mxu0
      %v746 = vadd.f32 0.0, %v745
      %v747 = vpop.f32.mrb[0].mxu0
      %v748 = vpop.f32.mrb[0].mxu0
      %v749 = vadd.f32 0.0, %v748
      %v750 = vpop.f32.mrb[0].mxu0
      %751 = vmatprep.mubr.bf16.mxu0 0
      %752 = vmatmul.mubr.bf16.gmra.mrb[0].mxu0 %v410
      %v753 = vpop.f32.mrb[0].mxu0
      %v754 = vadd.f32 0.0, %v753
      %v755 = vpop.f32.mrb[0].mxu0
      %v756 = vpop.f32.mrb[0].mxu0
      %v757 = vadd.f32 0.0, %v756
      %v758 = vpop.f32.mrb[0].mxu0
      %759 = vmatprep.mubr.bf16.mxu0 0
      %760 = vmatmul.mubr.bf16.gmra.mrb[0].mxu0 %v411
      %v761 = vpop.f32.mrb[0].mxu0
      %v762 = vadd.f32 0.0, %v761
      %v763 = vpop.f32.mrb[0].mxu0
      %v764 = vpop.f32.mrb[0].mxu0
      %v765 = vadd.f32 0.0, %v764
      %v766 = vpop.f32.mrb[0].mxu0
      %767 = vmatprep.mubr.bf16.mxu0 0
      %768 = vmatmul.mubr.bf16.gmra.mrb[0].mxu0 %v412
      %v769 = vpop.f32.mrb[0].mxu0
      %v770 = vadd.f32 0.0, %v769
      %v771 = vpop.f32.mrb[0].mxu0
      %v772 = vpop.f32.mrb[0].mxu0
      %v773 = vadd.f32 0.0, %v772
      %v774 = vpop.f32.mrb[0].mxu0
      %775 = vmatprep.mubr.bf16.mxu0 0
      %776 = vmatmul.mubr.bf16.gmra.mrb[0].mxu0 %v413
      %v777 = vpop.f32.mrb[0].mxu0
      %v778 = vadd.f32 0.0, %v777
      %v779 = vpop.f32.mrb[0].mxu0
      %v780 = vpop.f32.mrb[0].mxu0
      %v781 = vadd.f32 0.0, %v780
      %v782 = vpop.f32.mrb[0].mxu0
      %783 = vmatprep.mubr.bf16.mxu0 0
      %784 = vmatmul.mubr.bf16.gmra.mrb[0].mxu0 %v414
      %v785 = vpop.f32.mrb[0].mxu0
      %v786 = vadd.f32 0.0, %v785
      %v787 = vpop.f32.mrb[0].mxu0
      %v788 = vpop.f32.mrb[0].mxu0
      %v789 = vadd.f32 0.0, %v788
      %v790 = vpop.f32.mrb[0].mxu0
      %791 = vmatprep.mubr.bf16.mxu0 0
      %792 = vmatmul.mubr.bf16.gmra.mrb[0].mxu0 0
      %v793 = vpop.f32.mrb[0].mxu0
      %v794 = vadd.f32 0.0, %v793
      %v795 = vpop.f32.mrb[0].mxu0
      %v796 = vpop.f32.mrb[0].mxu0
      %v797 = vadd.f32 0.0, %v796
      %v798 = vpop.f32.mrb[0].mxu0
      %799 = vdwg.mxu0
      %v802 = vunpack.c.l.b16 %v180
      %v803 = vunpack.c.l.b16 %v181
      %v804 = vpack.c.b16 %v803, %v802
      %v822 = vunpack.c.l.b16 %v244
      %v823 = vunpack.c.l.b16 %v245
      %v824 = vunpack.c.l.b16 %v246
      %v825 = vunpack.c.l.b16 %v247
      %v826 = vunpack.c.l.b16 %v248
      %v827 = vunpack.c.l.b16 %v249
      %v828 = vunpack.c.l.b16 %v250
      %v829 = vunpack.c.l.b16 %v251
      %v830 = vunpack.c.l.b16 %v252
      %v831 = vunpack.c.l.b16 %v253
      %v832 = vunpack.c.l.b16 %v254
      %v833 = vunpack.c.l.b16 %v255
      %v834 = vunpack.c.l.b16 %v256
      %v835 = vunpack.c.l.b16 %v257
      %v836 = vunpack.c.l.b16 %v258
      %v837 = vunpack.c.l.b16 %v259
      %v838 = vpack.c.b16 %v823, %v822
      %v839 = vpack.c.b16 %v825, %v824
      %v840 = vpack.c.b16 %v827, %v826
      %v841 = vpack.c.b16 %v829, %v828
      %v842 = vpack.c.b16 %v831, %v830
      %v843 = vpack.c.b16 %v833, %v832
      %v844 = vpack.c.b16 %v835, %v834
      %v845 = vpack.c.b16 %v837, %v836
      %854 = vmatprep.subr.bf16.mxu0 0
      %855 = vmatpush1.bf16.msra.mxu0 %v838
      %856 = vmatprep.subr.bf16.mxu0 0
      %857 = vmatpush1.bf16.msra.mxu0 %v839
      %858 = vmatprep.subr.bf16.mxu0 0
      %859 = vmatpush1.bf16.msra.mxu0 %v840
      %860 = vmatprep.subr.bf16.mxu0 0
      %861 = vmatpush1.bf16.msra.mxu0 %v841
      %862 = vmatprep.subr.bf16.mxu0 0
      %863 = vmatpush1.bf16.msra.mxu0 %v842
      %864 = vmatprep.subr.bf16.mxu0 0
      %865 = vmatpush1.bf16.msra.mxu0 %v843
      %866 = vmatprep.subr.bf16.mxu0 0
      %867 = vmatpush1.bf16.msra.mxu0 %v844
      %868 = vmatprep.subr.bf16.mxu0 0
      %869 = vmatpush1.bf16.msra.mxu0 %v845
      %870 = vmatprep.subr.bf16.mxu0 0
      %871 = vmatpush1.bf16.msra.mxu0 0
      %872 = vmatprep.subr.bf16.mxu0 0
      %873 = vmatpush1.bf16.msra.mxu0 0
      %874 = vmatprep.subr.bf16.mxu0 0
      %875 = vmatpush1.bf16.msra.mxu0 0
      %876 = vmatprep.subr.bf16.mxu0 0
      %877 = vmatpush1.bf16.msra.mxu0 0
      %878 = vmatprep.subr.bf16.mxu0 0
      %879 = vmatpush1.bf16.msra.mxu0 0
      %880 = vmatprep.subr.bf16.mxu0 0
      %881 = vmatpush1.bf16.msra.mxu0 0
      %882 = vmatprep.subr.bf16.mxu0 0
      %883 = vmatpush1.bf16.msra.mxu0 0
      %884 = vmatprep.subr.bf16.mxu0 0
      %885 = vmatpush1.bf16.msra.mxu0 0
      %886 = vmatprep.mubr.bf16.mxu0 0
      %887 = vmatmul.mubr.bf16.gmra.mrb[0].mxu0 %v804
      %v888 = vpop.f32.mrb[0].mxu0
      %v889 = vadd.f32 %v546, %v888
      %v890 = vpop.f32.mrb[0].mxu0
      %v891 = vpop.f32.mrb[0].mxu0
      %v892 = vadd.f32 %v549, %v891
      %v893 = vpop.f32.mrb[0].mxu0
      %894 = vmatprep.mubr.bf16.mxu0 0
      %895 = vmatmul.mubr.bf16.gmra.mrb[0].mxu0 %v384
      %v896 = vpop.f32.mrb[0].mxu0
      %v897 = vadd.f32 %v554, %v896
      %v898 = vpop.f32.mrb[0].mxu0
      %v899 = vpop.f32.mrb[0].mxu0
      %v900 = vadd.f32 %v557, %v899
      %v901 = vpop.f32.mrb[0].mxu0
      %902 = vmatprep.mubr.bf16.mxu0 0
      %903 = vmatmul.mubr.bf16.gmra.mrb[0].mxu0 %v385
      %v904 = vpop.f32.mrb[0].mxu0
      %v905 = vadd.f32 %v562, %v904
      %v906 = vpop.f32.mrb[0].mxu0
      %v907 = vpop.f32.mrb[0].mxu0
      %v908 = vadd.f32 %v565, %v907
      %v909 = vpop.f32.mrb[0].mxu0
      %910 = vmatprep.mubr.bf16.mxu0 0
      %911 = vmatmul.mubr.bf16.gmra.mrb[0].mxu0 %v386
      %v912 = vpop.f32.mrb[0].mxu0
      %v913 = vadd.f32 %v570, %v912
      %v914 = vpop.f32.mrb[0].mxu0
      %v915 = vpop.f32.mrb[0].mxu0
      %v916 = vadd.f32 %v573, %v915
      %v917 = vpop.f32.mrb[0].mxu0
      %918 = vmatprep.mubr.bf16.mxu0 0
      %919 = vmatmul.mubr.bf16.gmra.mrb[0].mxu0 %v387
      %v920 = vpop.f32.mrb[0].mxu0
      %v921 = vadd.f32 %v578, %v920
      %v922 = vpop.f32.mrb[0].mxu0
      %v923 = vpop.f32.mrb[0].mxu0
      %v924 = vadd.f32 %v581, %v923
      %v925 = vpop.f32.mrb[0].mxu0
      %926 = vmatprep.mubr.bf16.mxu0 0
      %927 = vmatmul.mubr.bf16.gmra.mrb[0].mxu0 %v388
      %v928 = vpop.f32.mrb[0].mxu0
      %v929 = vadd.f32 %v586, %v928
      %v930 = vpop.f32.mrb[0].mxu0
      %v931 = vpop.f32.mrb[0].mxu0
      %v932 = vadd.f32 %v589, %v931
      %v933 = vpop.f32.mrb[0].mxu0
      %934 = vmatprep.mubr.bf16.mxu0 0
      %935 = vmatmul.mubr.bf16.gmra.mrb[0].mxu0 %v389
      %v936 = vpop.f32.mrb[0].mxu0
      %v937 = vadd.f32 %v594, %v936
      %v938 = vpop.f32.mrb[0].mxu0
      %v939 = vpop.f32.mrb[0].mxu0
      %v940 = vadd.f32 %v597, %v939
      %v941 = vpop.f32.mrb[0].mxu0
      %942 = vmatprep.mubr.bf16.mxu0 0
      %943 = vmatmul.mubr.bf16.gmra.mrb[0].mxu0 %v390
      %v944 = vpop.f32.mrb[0].mxu0
      %v945 = vadd.f32 %v602, %v944
      %v946 = vpop.f32.mrb[0].mxu0
      %v947 = vpop.f32.mrb[0].mxu0
      %v948 = vadd.f32 %v605, %v947
      %v949 = vpop.f32.mrb[0].mxu0
      %950 = vmatprep.mubr.bf16.mxu0 0
      %951 = vmatmul.mubr.bf16.gmra.mrb[0].mxu0 %v391
      %v952 = vpop.f32.mrb[0].mxu0
      %v953 = vadd.f32 %v610, %v952
      %v954 = vpop.f32.mrb[0].mxu0
      %v955 = vpop.f32.mrb[0].mxu0
      %v956 = vadd.f32 %v613, %v955
      %v957 = vpop.f32.mrb[0].mxu0
      %958 = vmatprep.mubr.bf16.mxu0 0
      %959 = vmatmul.mubr.bf16.gmra.mrb[0].mxu0 %v392
      %v960 = vpop.f32.mrb[0].mxu0
      %v961 = vadd.f32 %v618, %v960
      %v962 = vpop.f32.mrb[0].mxu0
      %v963 = vpop.f32.mrb[0].mxu0
      %v964 = vadd.f32 %v621, %v963
      %v965 = vpop.f32.mrb[0].mxu0
      %966 = vmatprep.mubr.bf16.mxu0 0
      %967 = vmatmul.mubr.bf16.gmra.mrb[0].mxu0 %v393
      %v968 = vpop.f32.mrb[0].mxu0
      %v969 = vadd.f32 %v626, %v968
      %v970 = vpop.f32.mrb[0].mxu0
      %v971 = vpop.f32.mrb[0].mxu0
      %v972 = vadd.f32 %v629, %v971
      %v973 = vpop.f32.mrb[0].mxu0
      %974 = vmatprep.mubr.bf16.mxu0 0
      %975 = vmatmul.mubr.bf16.gmra.mrb[0].mxu0 %v394
      %v976 = vpop.f32.mrb[0].mxu0
      %v977 = vadd.f32 %v634, %v976
      %v978 = vpop.f32.mrb[0].mxu0
      %v979 = vpop.f32.mrb[0].mxu0
      %v980 = vadd.f32 %v637, %v979
      %v981 = vpop.f32.mrb[0].mxu0
      %982 = vmatprep.mubr.bf16.mxu0 0
      %983 = vmatmul.mubr.bf16.gmra.mrb[0].mxu0 %v395
      %v984 = vpop.f32.mrb[0].mxu0
      %v985 = vadd.f32 %v642, %v984
      %v986 = vpop.f32.mrb[0].mxu0
      %v987 = vpop.f32.mrb[0].mxu0
      %v988 = vadd.f32 %v645, %v987
      %v989 = vpop.f32.mrb[0].mxu0
      %990 = vmatprep.mubr.bf16.mxu0 0
      %991 = vmatmul.mubr.bf16.gmra.mrb[0].mxu0 %v396
      %v992 = vpop.f32.mrb[0].mxu0
      %v993 = vadd.f32 %v650, %v992
      %v994 = vpop.f32.mrb[0].mxu0
      %v995 = vpop.f32.mrb[0].mxu0
      %v996 = vadd.f32 %v653, %v995
      %v997 = vpop.f32.mrb[0].mxu0
      %998 = vmatprep.mubr.bf16.mxu0 0
      %999 = vmatmul.mubr.bf16.gmra.mrb[0].mxu0 %v397
      %v1000 = vpop.f32.mrb[0].mxu0
      %v1001 = vadd.f32 %v658, %v1000
      %v1002 = vpop.f32.mrb[0].mxu0
      %v1003 = vpop.f32.mrb[0].mxu0
      %v1004 = vadd.f32 %v661, %v1003
      %v1005 = vpop.f32.mrb[0].mxu0
      %1006 = vmatprep.mubr.bf16.mxu0 0
      %1007 = vmatmul.mubr.bf16.gmra.mrb[0].mxu0 %v398
      %v1008 = vpop.f32.mrb[0].mxu0
      %v1009 = vadd.f32 %v666, %v1008
      %v1010 = vpop.f32.mrb[0].mxu0
      %v1011 = vpop.f32.mrb[0].mxu0
      %v1012 = vadd.f32 %v669, %v1011
      %v1013 = vpop.f32.mrb[0].mxu0
      %1014 = vmatprep.mubr.bf16.mxu0 0
      %1015 = vmatmul.mubr.bf16.gmra.mrb[0].mxu0 %v399
      %v1016 = vpop.f32.mrb[0].mxu0
      %v1017 = vadd.f32 %v674, %v1016
      %v1018 = vpop.f32.mrb[0].mxu0
      %v1019 = vpop.f32.mrb[0].mxu0
      %v1020 = vadd.f32 %v677, %v1019
      %v1021 = vpop.f32.mrb[0].mxu0
      %1022 = vmatprep.mubr.bf16.mxu0 0
      %1023 = vmatmul.mubr.bf16.gmra.mrb[0].mxu0 %v400
      %v1024 = vpop.f32.mrb[0].mxu0
      %v1025 = vadd.f32 %v682, %v1024
      %v1026 = vpop.f32.mrb[0].mxu0
      %v1027 = vpop.f32.mrb[0].mxu0
      %v1028 = vadd.f32 %v685, %v1027
      %v1029 = vpop.f32.mrb[0].mxu0
      %1030 = vmatprep.mubr.bf16.mxu0 0
      %1031 = vmatmul.mubr.bf16.gmra.mrb[0].mxu0 %v401
      %v1032 = vpop.f32.mrb[0].mxu0
      %v1033 = vadd.f32 %v690, %v1032
      %v1034 = vpop.f32.mrb[0].mxu0
      %v1035 = vpop.f32.mrb[0].mxu0
      %v1036 = vadd.f32 %v693, %v1035
      %v1037 = vpop.f32.mrb[0].mxu0
      %1038 = vmatprep.mubr.bf16.mxu0 0
      %1039 = vmatmul.mubr.bf16.gmra.mrb[0].mxu0 %v402
      %v1040 = vpop.f32.mrb[0].mxu0
      %v1041 = vadd.f32 %v698, %v1040
      %v1042 = vpop.f32.mrb[0].mxu0
      %v1043 = vpop.f32.mrb[0].mxu0
      %v1044 = vadd.f32 %v701, %v1043
      %v1045 = vpop.f32.mrb[0].mxu0
      %1046 = vmatprep.mubr.bf16.mxu0 0
      %1047 = vmatmul.mubr.bf16.gmra.mrb[0].mxu0 %v403
      %v1048 = vpop.f32.mrb[0].mxu0
      %v1049 = vadd.f32 %v706, %v1048
      %v1050 = vpop.f32.mrb[0].mxu0
      %v1051 = vpop.f32.mrb[0].mxu0
      %v1052 = vadd.f32 %v709, %v1051
      %v1053 = vpop.f32.mrb[0].mxu0
      %1054 = vmatprep.mubr.bf16.mxu0 0
      %1055 = vmatmul.mubr.bf16.gmra.mrb[0].mxu0 %v404
      %v1056 = vpop.f32.mrb[0].mxu0
      %v1057 = vadd.f32 %v714, %v1056
      %v1058 = vpop.f32.mrb[0].mxu0
      %v1059 = vpop.f32.mrb[0].mxu0
      %v1060 = vadd.f32 %v717, %v1059
      %v1061 = vpop.f32.mrb[0].mxu0
      %1062 = vmatprep.mubr.bf16.mxu0 0
      %1063 = vmatmul.mubr.bf16.gmra.mrb[0].mxu0 %v405
      %v1064 = vpop.f32.mrb[0].mxu0
      %v1065 = vadd.f32 %v722, %v1064
      %v1066 = vpop.f32.mrb[0].mxu0
      %v1067 = vpop.f32.mrb[0].mxu0
      %v1068 = vadd.f32 %v725, %v1067
      %v1069 = vpop.f32.mrb[0].mxu0
      %1070 = vmatprep.mubr.bf16.mxu0 0
      %1071 = vmatmul.mubr.bf16.gmra.mrb[0].mxu0 %v406
      %v1072 = vpop.f32.mrb[0].mxu0
      %v1073 = vadd.f32 %v730, %v1072
      %v1074 = vpop.f32.mrb[0].mxu0
      %v1075 = vpop.f32.mrb[0].mxu0
      %v1076 = vadd.f32 %v733, %v1075
      %v1077 = vpop.f32.mrb[0].mxu0
      %1078 = vmatprep.mubr.bf16.mxu0 0
      %1079 = vmatmul.mubr.bf16.gmra.mrb[0].mxu0 %v407
      %v1080 = vpop.f32.mrb[0].mxu0
      %v1081 = vadd.f32 %v738, %v1080
      %v1082 = vpop.f32.mrb[0].mxu0
      %v1083 = vpop.f32.mrb[0].mxu0
      %v1084 = vadd.f32 %v741, %v1083
      %v1085 = vpop.f32.mrb[0].mxu0
      %1086 = vmatprep.mubr.bf16.mxu0 0
      %1087 = vmatmul.mubr.bf16.gmra.mrb[0].mxu0 %v408
      %v1088 = vpop.f32.mrb[0].mxu0
      %v1089 = vadd.f32 %v746, %v1088
      %v1090 = vpop.f32.mrb[0].mxu0
      %v1091 = vpop.f32.mrb[0].mxu0
      %v1092 = vadd.f32 %v749, %v1091
      %v1093 = vpop.f32.mrb[0].mxu0
      %1094 = vmatprep.mubr.bf16.mxu0 0
      %1095 = vmatmul.mubr.bf16.gmra.mrb[0].mxu0 %v409
      %v1096 = vpop.f32.mrb[0].mxu0
      %v1097 = vadd.f32 %v754, %v1096
      %v1098 = vpop.f32.mrb[0].mxu0
      %v1099 = vpop.f32.mrb[0].mxu0
      %v1100 = vadd.f32 %v757, %v1099
      %v1101 = vpop.f32.mrb[0].mxu0
      %1102 = vmatprep.mubr.bf16.mxu0 0
      %1103 = vmatmul.mubr.bf16.gmra.mrb[0].mxu0 %v410
      %v1104 = vpop.f32.mrb[0].mxu0
      %v1105 = vadd.f32 %v762, %v1104
      %v1106 = vpop.f32.mrb[0].mxu0
      %v1107 = vpop.f32.mrb[0].mxu0
      %v1108 = vadd.f32 %v765, %v1107
      %v1109 = vpop.f32.mrb[0].mxu0
      %1110 = vmatprep.mubr.bf16.mxu0 0
      %1111 = vmatmul.mubr.bf16.gmra.mrb[0].mxu0 %v411
      %v1112 = vpop.f32.mrb[0].mxu0
      %v1113 = vadd.f32 %v770, %v1112
      %v1114 = vpop.f32.mrb[0].mxu0
      %v1115 = vpop.f32.mrb[0].mxu0
      %v1116 = vadd.f32 %v773, %v1115
      %v1117 = vpop.f32.mrb[0].mxu0
      %1118 = vmatprep.mubr.bf16.mxu0 0
      %1119 = vmatmul.mubr.bf16.gmra.mrb[0].mxu0 %v412
      %v1120 = vpop.f32.mrb[0].mxu0
      %v1121 = vadd.f32 %v778, %v1120
      %v1122 = vpop.f32.mrb[0].mxu0
      %v1123 = vpop.f32.mrb[0].mxu0
      %v1124 = vadd.f32 %v781, %v1123
      %v1125 = vpop.f32.mrb[0].mxu0
      %1126 = vmatprep.mubr.bf16.mxu0 0
      %1127 = vmatmul.mubr.bf16.gmra.mrb[0].mxu0 %v413
      %v1128 = vpop.f32.mrb[0].mxu0
      %v1129 = vadd.f32 %v786, %v1128
      %v1130 = vpop.f32.mrb[0].mxu0
      %v1131 = vpop.f32.mrb[0].mxu0
      %v1132 = vadd.f32 %v789, %v1131
      %v1133 = vpop.f32.mrb[0].mxu0
      %1134 = vmatprep.mubr.bf16.mxu0 0
      %1135 = vmatmul.mubr.bf16.gmra.mrb[0].mxu0 %v414
      %v1136 = vpop.f32.mrb[0].mxu0
      %v1137 = vadd.f32 %v794, %v1136
      %v1138 = vpop.f32.mrb[0].mxu0
      %v1139 = vpop.f32.mrb[0].mxu0
      %v1140 = vadd.f32 %v797, %v1139
      %v1141 = vpop.f32.mrb[0].mxu0
      %1142 = vdwg.mxu0
      %s1143 = scalar_lea.vmem %s1, 384
      %v1144 = vld [vmem:[%s1143] sm:$0xf]
      %v1145 = vld [vmem:[%s1143 + $0x4] sm:$0xf]
      %v1146 = vld [vmem:[%s1143 + $0x8] sm:$0xf]
      %v1147 = vld [vmem:[%s1143 + $0xc] sm:$0xf]
      %v1148 = vld [vmem:[%s1143 + $0x10] sm:$0xf]
      %v1149 = vld [vmem:[%s1143 + $0x14] sm:$0xf]
      %v1150 = vld [vmem:[%s1143 + $0x18] sm:$0xf]
      %v1151 = vld [vmem:[%s1143 + $0x1c] sm:$0xf]
      %v1152 = vld [vmem:[%s1143 + $0x20] sm:$0xf]
      %v1153 = vld [vmem:[%s1143 + $0x24] sm:$0xf]
      %v1154 = vld [vmem:[%s1143 + $0x28] sm:$0xf]
      %v1155 = vld [vmem:[%s1143 + $0x2c] sm:$0xf]
      %v1156 = vld [vmem:[%s1143 + $0x30] sm:$0xf]
      %v1157 = vld [vmem:[%s1143 + $0x34] sm:$0xf]
      %v1158 = vld [vmem:[%s1143 + $0x38] sm:$0xf]
      %v1159 = vld [vmem:[%s1143 + $0x3c] sm:$0xf]
      %v1176 = vunpack.c.l.b16 %v1144
      %v1177 = vunpack.c.l.b16 %v1145
      %v1178 = vunpack.c.l.b16 %v1146
      %v1179 = vunpack.c.l.b16 %v1147
      %v1180 = vunpack.c.l.b16 %v1148
      %v1181 = vunpack.c.l.b16 %v1149
      %v1182 = vunpack.c.l.b16 %v1150
      %v1183 = vunpack.c.l.b16 %v1151
      %v1184 = vunpack.c.l.b16 %v1152
      %v1185 = vunpack.c.l.b16 %v1153
      %v1186 = vunpack.c.l.b16 %v1154
      %v1187 = vunpack.c.l.b16 %v1155
      %v1188 = vunpack.c.l.b16 %v1156
      %v1189 = vunpack.c.l.b16 %v1157
      %v1190 = vunpack.c.l.b16 %v1158
      %v1191 = vunpack.c.l.b16 %v1159
      %v1192 = vpack.c.b16 %v1177, %v1176
      %v1193 = vpack.c.b16 %v1179, %v1178
      %v1194 = vpack.c.b16 %v1181, %v1180
      %v1195 = vpack.c.b16 %v1183, %v1182
      %v1196 = vpack.c.b16 %v1185, %v1184
      %v1197 = vpack.c.b16 %v1187, %v1186
      %v1198 = vpack.c.b16 %v1189, %v1188
      %v1199 = vpack.c.b16 %v1191, %v1190
      %1208 = vmatprep.subr.bf16.mxu0 0
      %1209 = vmatpush1.bf16.msra.mxu0 %v1192
      %1210 = vmatprep.subr.bf16.mxu0 0
      %1211 = vmatpush1.bf16.msra.mxu0 %v1193
      %1212 = vmatprep.subr.bf16.mxu0 0
      %1213 = vmatpush1.bf16.msra.mxu0 %v1194
      %1214 = vmatprep.subr.bf16.mxu0 0
      %1215 = vmatpush1.bf16.msra.mxu0 %v1195
      %1216 = vmatprep.subr.bf16.mxu0 0
      %1217 = vmatpush1.bf16.msra.mxu0 %v1196
      %1218 = vmatprep.subr.bf16.mxu0 0
      %1219 = vmatpush1.bf16.msra.mxu0 %v1197
      %1220 = vmatprep.subr.bf16.mxu0 0
      %1221 = vmatpush1.bf16.msra.mxu0 %v1198
      %1222 = vmatprep.subr.bf16.mxu0 0
      %1223 = vmatpush1.bf16.msra.mxu0 %v1199
      %1224 = vmatprep.subr.bf16.mxu0 0
      %1225 = vmatpush1.bf16.msra.mxu0 0
      %1226 = vmatprep.subr.bf16.mxu0 0
      %1227 = vmatpush1.bf16.msra.mxu0 0
      %1228 = vmatprep.subr.bf16.mxu0 0
      %1229 = vmatpush1.bf16.msra.mxu0 0
      %1230 = vmatprep.subr.bf16.mxu0 0
      %1231 = vmatpush1.bf16.msra.mxu0 0
      %1232 = vmatprep.subr.bf16.mxu0 0
      %1233 = vmatpush1.bf16.msra.mxu0 0
      %1234 = vmatprep.subr.bf16.mxu0 0
      %1235 = vmatpush1.bf16.msra.mxu0 0
      %1236 = vmatprep.subr.bf16.mxu0 0
      %1237 = vmatpush1.bf16.msra.mxu0 0
      %1238 = vmatprep.subr.bf16.mxu0 0
      %1239 = vmatpush1.bf16.msra.mxu0 0
      %1240 = vmatprep.mubr.bf16.mxu0 0
      %1241 = vmatmul.mubr.bf16.gmra.mrb[0].mxu0 %v385
      %v1242 = vpop.f32.mrb[0].mxu0
      %v1243 = vadd.f32 0.0, %v1242
      %v1244 = vpop.f32.mrb[0].mxu0
      %v1245 = vpop.f32.mrb[0].mxu0
      %v1246 = vadd.f32 0.0, %v1245
      %v1247 = vpop.f32.mrb[0].mxu0
      %1248 = vmatprep.mubr.bf16.mxu0 0
      %1249 = vmatmul.mubr.bf16.gmra.mrb[0].mxu0 %v386
      %v1250 = vpop.f32.mrb[0].mxu0
      %v1251 = vadd.f32 0.0, %v1250
      %v1252 = vpop.f32.mrb[0].mxu0
      %v1253 = vpop.f32.mrb[0].mxu0
      %v1254 = vadd.f32 0.0, %v1253
      %v1255 = vpop.f32.mrb[0].mxu0
      %1256 = vmatprep.mubr.bf16.mxu0 0
      %1257 = vmatmul.mubr.bf16.gmra.mrb[0].mxu0 %v387
      %v1258 = vpop.f32.mrb[0].mxu0
      %v1259 = vadd.f32 0.0, %v1258
      %v1260 = vpop.f32.mrb[0].mxu0
      %v1261 = vpop.f32.mrb[0].mxu0
      %v1262 = vadd.f32 0.0, %v1261
      %v1263 = vpop.f32.mrb[0].mxu0
      %1264 = vmatprep.mubr.bf16.mxu0 0
      %1265 = vmatmul.mubr.bf16.gmra.mrb[0].mxu0 %v388
      %v1266 = vpop.f32.mrb[0].mxu0
      %v1267 = vadd.f32 0.0, %v1266
      %v1268 = vpop.f32.mrb[0].mxu0
      %v1269 = vpop.f32.mrb[0].mxu0
      %v1270 = vadd.f32 0.0, %v1269
      %v1271 = vpop.f32.mrb[0].mxu0
      %1272 = vmatprep.mubr.bf16.mxu0 0
      %1273 = vmatmul.mubr.bf16.gmra.mrb[0].mxu0 %v389
      %v1274 = vpop.f32.mrb[0].mxu0
      %v1275 = vadd.f32 0.0, %v1274
      %v1276 = vpop.f32.mrb[0].mxu0
      %v1277 = vpop.f32.mrb[0].mxu0
      %v1278 = vadd.f32 0.0, %v1277
      %v1279 = vpop.f32.mrb[0].mxu0
      %1280 = vmatprep.mubr.bf16.mxu0 0
      %1281 = vmatmul.mubr.bf16.gmra.mrb[0].mxu0 %v390
      %v1282 = vpop.f32.mrb[0].mxu0
      %v1283 = vadd.f32 0.0, %v1282
      %v1284 = vpop.f32.mrb[0].mxu0
      %v1285 = vpop.f32.mrb[0].mxu0
      %v1286 = vadd.f32 0.0, %v1285
      %v1287 = vpop.f32.mrb[0].mxu0
      %1288 = vmatprep.mubr.bf16.mxu0 0
      %1289 = vmatmul.mubr.bf16.gmra.mrb[0].mxu0 %v391
      %v1290 = vpop.f32.mrb[0].mxu0
      %v1291 = vadd.f32 0.0, %v1290
      %v1292 = vpop.f32.mrb[0].mxu0
      %v1293 = vpop.f32.mrb[0].mxu0
      %v1294 = vadd.f32 0.0, %v1293
      %v1295 = vpop.f32.mrb[0].mxu0
      %1296 = vmatprep.mubr.bf16.mxu0 0
      %1297 = vmatmul.mubr.bf16.gmra.mrb[0].mxu0 %v392
      %v1298 = vpop.f32.mrb[0].mxu0
      %v1299 = vadd.f32 0.0, %v1298
      %v1300 = vpop.f32.mrb[0].mxu0
      %v1301 = vpop.f32.mrb[0].mxu0
      %v1302 = vadd.f32 0.0, %v1301
      %v1303 = vpop.f32.mrb[0].mxu0
      %1304 = vmatprep.mubr.bf16.mxu0 0
      %1305 = vmatmul.mubr.bf16.gmra.mrb[0].mxu0 %v393
      %v1306 = vpop.f32.mrb[0].mxu0
      %v1307 = vadd.f32 0.0, %v1306
      %v1308 = vpop.f32.mrb[0].mxu0
      %v1309 = vpop.f32.mrb[0].mxu0
      %v1310 = vadd.f32 0.0, %v1309
      %v1311 = vpop.f32.mrb[0].mxu0
      %1312 = vmatprep.mubr.bf16.mxu0 0
      %1313 = vmatmul.mubr.bf16.gmra.mrb[0].mxu0 %v394
      %v1314 = vpop.f32.mrb[0].mxu0
      %v1315 = vadd.f32 0.0, %v1314
      %v1316 = vpop.f32.mrb[0].mxu0
      %v1317 = vpop.f32.mrb[0].mxu0
      %v1318 = vadd.f32 0.0, %v1317
      %v1319 = vpop.f32.mrb[0].mxu0
      %1320 = vmatprep.mubr.bf16.mxu0 0
      %1321 = vmatmul.mubr.bf16.gmra.mrb[0].mxu0 %v395
      %v1322 = vpop.f32.mrb[0].mxu0
      %v1323 = vadd.f32 0.0, %v1322
      %v1324 = vpop.f32.mrb[0].mxu0
      %v1325 = vpop.f32.mrb[0].mxu0
      %v1326 = vadd.f32 0.0, %v1325
      %v1327 = vpop.f32.mrb[0].mxu0
      %1328 = vmatprep.mubr.bf16.mxu0 0
      %1329 = vmatmul.mubr.bf16.gmra.mrb[0].mxu0 %v396
      %v1330 = vpop.f32.mrb[0].mxu0
      %v1331 = vadd.f32 0.0, %v1330
      %v1332 = vpop.f32.mrb[0].mxu0
      %v1333 = vpop.f32.mrb[0].mxu0
      %v1334 = vadd.f32 0.0, %v1333
      %v1335 = vpop.f32.mrb[0].mxu0
      %1336 = vmatprep.mubr.bf16.mxu0 0
      %1337 = vmatmul.mubr.bf16.gmra.mrb[0].mxu0 %v397
      %v1338 = vpop.f32.mrb[0].mxu0
      %v1339 = vadd.f32 0.0, %v1338
      %v1340 = vpop.f32.mrb[0].mxu0
      %v1341 = vpop.f32.mrb[0].mxu0
      %v1342 = vadd.f32 0.0, %v1341
      %v1343 = vpop.f32.mrb[0].mxu0
      %1344 = vmatprep.mubr.bf16.mxu0 0
      %1345 = vmatmul.mubr.bf16.gmra.mrb[0].mxu0 %v398
      %v1346 = vpop.f32.mrb[0].mxu0
      %v1347 = vadd.f32 0.0, %v1346
      %v1348 = vpop.f32.mrb[0].mxu0
      %v1349 = vpop.f32.mrb[0].mxu0
      %v1350 = vadd.f32 0.0, %v1349
      %v1351 = vpop.f32.mrb[0].mxu0
      %1352 = vmatprep.mubr.bf16.mxu0 0
      %1353 = vmatmul.mubr.bf16.gmra.mrb[0].mxu0 %v399
      %v1354 = vpop.f32.mrb[0].mxu0
      %v1355 = vadd.f32 0.0, %v1354
      %v1356 = vpop.f32.mrb[0].mxu0
      %v1357 = vpop.f32.mrb[0].mxu0
      %v1358 = vadd.f32 0.0, %v1357
      %v1359 = vpop.f32.mrb[0].mxu0
      %1360 = vmatprep.mubr.bf16.mxu0 0
      %1361 = vmatmul.mubr.bf16.gmra.mrb[0].mxu0 %v400
      %v1362 = vpop.f32.mrb[0].mxu0
      %v1363 = vadd.f32 0.0, %v1362
      %v1364 = vpop.f32.mrb[0].mxu0
      %v1365 = vpop.f32.mrb[0].mxu0
      %v1366 = vadd.f32 0.0, %v1365
      %v1367 = vpop.f32.mrb[0].mxu0
      %1368 = vmatprep.mubr.bf16.mxu0 0
      %1369 = vmatmul.mubr.bf16.gmra.mrb[0].mxu0 %v401
      %v1370 = vpop.f32.mrb[0].mxu0
      %v1371 = vadd.f32 0.0, %v1370
      %v1372 = vpop.f32.mrb[0].mxu0
      %v1373 = vpop.f32.mrb[0].mxu0
      %v1374 = vadd.f32 0.0, %v1373
      %v1375 = vpop.f32.mrb[0].mxu0
      %1376 = vmatprep.mubr.bf16.mxu0 0
      %1377 = vmatmul.mubr.bf16.gmra.mrb[0].mxu0 %v402
      %v1378 = vpop.f32.mrb[0].mxu0
      %v1379 = vadd.f32 0.0, %v1378
      %v1380 = vpop.f32.mrb[0].mxu0
      %v1381 = vpop.f32.mrb[0].mxu0
      %v1382 = vadd.f32 0.0, %v1381
      %v1383 = vpop.f32.mrb[0].mxu0
      %1384 = vmatprep.mubr.bf16.mxu0 0
      %1385 = vmatmul.mubr.bf16.gmra.mrb[0].mxu0 %v403
      %v1386 = vpop.f32.mrb[0].mxu0
      %v1387 = vadd.f32 0.0, %v1386
      %v1388 = vpop.f32.mrb[0].mxu0
      %v1389 = vpop.f32.mrb[0].mxu0
      %v1390 = vadd.f32 0.0, %v1389
      %v1391 = vpop.f32.mrb[0].mxu0
      %1392 = vmatprep.mubr.bf16.mxu0 0
      %1393 = vmatmul.mubr.bf16.gmra.mrb[0].mxu0 %v404
      %v1394 = vpop.f32.mrb[0].mxu0
      %v1395 = vadd.f32 0.0, %v1394
      %v1396 = vpop.f32.mrb[0].mxu0
      %v1397 = vpop.f32.mrb[0].mxu0
      %v1398 = vadd.f32 0.0, %v1397
      %v1399 = vpop.f32.mrb[0].mxu0
      %1400 = vmatprep.mubr.bf16.mxu0 0
      %1401 = vmatmul.mubr.bf16.gmra.mrb[0].mxu0 %v405
      %v1402 = vpop.f32.mrb[0].mxu0
      %v1403 = vadd.f32 0.0, %v1402
      %v1404 = vpop.f32.mrb[0].mxu0
      %v1405 = vpop.f32.mrb[0].mxu0
      %v1406 = vadd.f32 0.0, %v1405
      %v1407 = vpop.f32.mrb[0].mxu0
      %1408 = vmatprep.mubr.bf16.mxu0 0
      %1409 = vmatmul.mubr.bf16.gmra.mrb[0].mxu0 %v406
      %v1410 = vpop.f32.mrb[0].mxu0
      %v1411 = vadd.f32 0.0, %v1410
      %v1412 = vpop.f32.mrb[0].mxu0
      %v1413 = vpop.f32.mrb[0].mxu0
      %v1414 = vadd.f32 0.0, %v1413
      %v1415 = vpop.f32.mrb[0].mxu0
      %1416 = vmatprep.mubr.bf16.mxu0 0
      %1417 = vmatmul.mubr.bf16.gmra.mrb[0].mxu0 %v407
      %v1418 = vpop.f32.mrb[0].mxu0
      %v1419 = vadd.f32 0.0, %v1418
      %v1420 = vpop.f32.mrb[0].mxu0
      %v1421 = vpop.f32.mrb[0].mxu0
      %v1422 = vadd.f32 0.0, %v1421
      %v1423 = vpop.f32.mrb[0].mxu0
      %1424 = vmatprep.mubr.bf16.mxu0 0
      %1425 = vmatmul.mubr.bf16.gmra.mrb[0].mxu0 %v408
      %v1426 = vpop.f32.mrb[0].mxu0
      %v1427 = vadd.f32 0.0, %v1426
      %v1428 = vpop.f32.mrb[0].mxu0
      %v1429 = vpop.f32.mrb[0].mxu0
      %v1430 = vadd.f32 0.0, %v1429
      %v1431 = vpop.f32.mrb[0].mxu0
      %1432 = vmatprep.mubr.bf16.mxu0 0
      %1433 = vmatmul.mubr.bf16.gmra.mrb[0].mxu0 %v409
      %v1434 = vpop.f32.mrb[0].mxu0
      %v1435 = vadd.f32 0.0, %v1434
      %v1436 = vpop.f32.mrb[0].mxu0
      %v1437 = vpop.f32.mrb[0].mxu0
      %v1438 = vadd.f32 0.0, %v1437
      %v1439 = vpop.f32.mrb[0].mxu0
      %1440 = vmatprep.mubr.bf16.mxu0 0
      %1441 = vmatmul.mubr.bf16.gmra.mrb[0].mxu0 %v410
      %v1442 = vpop.f32.mrb[0].mxu0
      %v1443 = vadd.f32 0.0, %v1442
      %v1444 = vpop.f32.mrb[0].mxu0
      %v1445 = vpop.f32.mrb[0].mxu0
      %v1446 = vadd.f32 0.0, %v1445
      %v1447 = vpop.f32.mrb[0].mxu0
      %1448 = vmatprep.mubr.bf16.mxu0 0
      %1449 = vmatmul.mubr.bf16.gmra.mrb[0].mxu0 %v411
      %v1450 = vpop.f32.mrb[0].mxu0
      %v1451 = vadd.f32 0.0, %v1450
      %v1452 = vpop.f32.mrb[0].mxu0
      %v1453 = vpop.f32.mrb[0].mxu0
      %v1454 = vadd.f32 0.0, %v1453
      %v1455 = vpop.f32.mrb[0].mxu0
      %1456 = vmatprep.mubr.bf16.mxu0 0
      %1457 = vmatmul.mubr.bf16.gmra.mrb[0].mxu0 %v412
      %v1458 = vpop.f32.mrb[0].mxu0
      %v1459 = vadd.f32 0.0, %v1458
      %v1460 = vpop.f32.mrb[0].mxu0
      %v1461 = vpop.f32.mrb[0].mxu0
      %v1462 = vadd.f32 0.0, %v1461
      %v1463 = vpop.f32.mrb[0].mxu0
      %1464 = vmatprep.mubr.bf16.mxu0 0
      %1465 = vmatmul.mubr.bf16.gmra.mrb[0].mxu0 %v413
      %v1466 = vpop.f32.mrb[0].mxu0
      %v1467 = vadd.f32 0.0, %v1466
      %v1468 = vpop.f32.mrb[0].mxu0
      %v1469 = vpop.f32.mrb[0].mxu0
      %v1470 = vadd.f32 0.0, %v1469
      %v1471 = vpop.f32.mrb[0].mxu0
      %1472 = vmatprep.mubr.bf16.mxu0 0
      %1473 = vmatmul.mubr.bf16.gmra.mrb[0].mxu0 %v414
      %v1474 = vpop.f32.mrb[0].mxu0
      %v1475 = vadd.f32 0.0, %v1474
      %v1476 = vpop.f32.mrb[0].mxu0
      %v1477 = vpop.f32.mrb[0].mxu0
      %v1478 = vadd.f32 0.0, %v1477
      %v1479 = vpop.f32.mrb[0].mxu0
      %1480 = vmatprep.mubr.bf16.mxu0 0
      %1481 = vmatmul.mubr.bf16.gmra.mrb[0].mxu0 0
      %v1482 = vpop.f32.mrb[0].mxu0
      %v1483 = vadd.f32 0.0, %v1482
      %v1484 = vpop.f32.mrb[0].mxu0
      %v1485 = vpop.f32.mrb[0].mxu0
      %v1486 = vadd.f32 0.0, %v1485
      %v1487 = vpop.f32.mrb[0].mxu0
      %1488 = vmatprep.mubr.bf16.mxu0 0
      %1489 = vmatmul.mubr.bf16.gmra.mrb[0].mxu0 0
      %v1490 = vpop.f32.mrb[0].mxu0
      %v1491 = vadd.f32 0.0, %v1490
      %v1492 = vpop.f32.mrb[0].mxu0
      %v1493 = vpop.f32.mrb[0].mxu0
      %v1494 = vadd.f32 0.0, %v1493
      %v1495 = vpop.f32.mrb[0].mxu0
      %1496 = vdwg.mxu0
      %v1497 = vadd.f32 %v889, %v1243
      %v1498 = vadd.f32 %v892, %v1246
      %v1499 = vadd.f32 %v897, %v1251
      %v1500 = vadd.f32 %v900, %v1254
      %v1501 = vadd.f32 %v905, %v1259
      %v1502 = vadd.f32 %v908, %v1262
      %v1503 = vadd.f32 %v913, %v1267
      %v1504 = vadd.f32 %v916, %v1270
      %v1505 = vadd.f32 %v921, %v1275
      %v1506 = vadd.f32 %v924, %v1278
      %v1507 = vadd.f32 %v929, %v1283
      %v1508 = vadd.f32 %v932, %v1286
      %v1509 = vadd.f32 %v937, %v1291
      %v1510 = vadd.f32 %v940, %v1294
      %v1511 = vadd.f32 %v945, %v1299
      %v1512 = vadd.f32 %v948, %v1302
      %v1513 = vadd.f32 %v953, %v1307
      %v1514 = vadd.f32 %v956, %v1310
      %v1515 = vadd.f32 %v961, %v1315
      %v1516 = vadd.f32 %v964, %v1318
      %v1517 = vadd.f32 %v969, %v1323
      %v1518 = vadd.f32 %v972, %v1326
      %v1519 = vadd.f32 %v977, %v1331
      %v1520 = vadd.f32 %v980, %v1334
      %v1521 = vadd.f32 %v985, %v1339
      %v1522 = vadd.f32 %v988, %v1342
      %v1523 = vadd.f32 %v993, %v1347
      %v1524 = vadd.f32 %v996, %v1350
      %v1525 = vadd.f32 %v1001, %v1355
      %v1526 = vadd.f32 %v1004, %v1358
      %v1527 = vadd.f32 %v1009, %v1363
      %v1528 = vadd.f32 %v1012, %v1366
      %v1529 = vadd.f32 %v1017, %v1371
      %v1530 = vadd.f32 %v1020, %v1374
      %v1531 = vadd.f32 %v1025, %v1379
      %v1532 = vadd.f32 %v1028, %v1382
      %v1533 = vadd.f32 %v1033, %v1387
      %v1534 = vadd.f32 %v1036, %v1390
      %v1535 = vadd.f32 %v1041, %v1395
      %v1536 = vadd.f32 %v1044, %v1398
      %v1537 = vadd.f32 %v1049, %v1403
      %v1538 = vadd.f32 %v1052, %v1406
      %v1539 = vadd.f32 %v1057, %v1411
      %v1540 = vadd.f32 %v1060, %v1414
      %v1541 = vadd.f32 %v1065, %v1419
      %v1542 = vadd.f32 %v1068, %v1422
      %v1543 = vadd.f32 %v1073, %v1427
      %v1544 = vadd.f32 %v1076, %v1430
      %v1545 = vadd.f32 %v1081, %v1435
      %v1546 = vadd.f32 %v1084, %v1438
      %v1547 = vadd.f32 %v1089, %v1443
      %v1548 = vadd.f32 %v1092, %v1446
      %v1549 = vadd.f32 %v1097, %v1451
      %v1550 = vadd.f32 %v1100, %v1454
      %v1551 = vadd.f32 %v1105, %v1459
      %v1552 = vadd.f32 %v1108, %v1462
      %v1553 = vadd.f32 %v1113, %v1467
      %v1554 = vadd.f32 %v1116, %v1470
      %v1555 = vadd.f32 %v1121, %v1475
      %v1556 = vadd.f32 %v1124, %v1478
      %v1557 = vadd.f32 %v1129, %v1483
      %v1558 = vadd.f32 %v1132, %v1486
      %v1559 = vadd.f32 %v1137, %v1491
      %v1560 = vadd.f32 %v1140, %v1494
      %s1561 = scalar_lea.vmem %s1, 64
      %v1562 = vld [vmem:[%s1561] sm:$0xf]
      %v1563 = vld [vmem:[%s1561 + $0x4] sm:$0xf]
      %v1564 = vld [vmem:[%s1561 + $0x8] sm:$0xf]
      %v1565 = vld [vmem:[%s1561 + $0xc] sm:$0xf]
      %v1566 = vld [vmem:[%s1561 + $0x10] sm:$0xf]
      %v1567 = vld [vmem:[%s1561 + $0x14] sm:$0xf]
      %v1568 = vld [vmem:[%s1561 + $0x18] sm:$0xf]
      %v1569 = vld [vmem:[%s1561 + $0x1c] sm:$0xf]
      %v1570 = vld [vmem:[%s1561 + $0x20] sm:$0xf]
      %v1571 = vld [vmem:[%s1561 + $0x24] sm:$0xf]
      %v1572 = vld [vmem:[%s1561 + $0x28] sm:$0xf]
      %v1573 = vld [vmem:[%s1561 + $0x2c] sm:$0xf]
      %v1574 = vld [vmem:[%s1561 + $0x30] sm:$0xf]
      %v1575 = vld [vmem:[%s1561 + $0x34] sm:$0xf]
      %v1576 = vld [vmem:[%s1561 + $0x38] sm:$0xf]
      %v1577 = vld [vmem:[%s1561 + $0x3c] sm:$0xf]
      %s1578 = scalar_lea.vmem %s1, 256
      %v1579 = vld [vmem:[%s1578] sm:$0xf]
      %v1580 = vld [vmem:[%s1578 + $0x4] sm:$0xf]
      %v1581 = vld [vmem:[%s1578 + $0x8] sm:$0xf]
      %v1582 = vld [vmem:[%s1578 + $0xc] sm:$0xf]
      %v1583 = vld [vmem:[%s1578 + $0x10] sm:$0xf]
      %v1584 = vld [vmem:[%s1578 + $0x14] sm:$0xf]
      %v1585 = vld [vmem:[%s1578 + $0x18] sm:$0xf]
      %v1586 = vld [vmem:[%s1578 + $0x1c] sm:$0xf]
      %v1587 = vld [vmem:[%s1578 + $0x20] sm:$0xf]
      %v1588 = vld [vmem:[%s1578 + $0x24] sm:$0xf]
      %v1589 = vld [vmem:[%s1578 + $0x28] sm:$0xf]
      %v1590 = vld [vmem:[%s1578 + $0x2c] sm:$0xf]
      %v1591 = vld [vmem:[%s1578 + $0x30] sm:$0xf]
      %v1592 = vld [vmem:[%s1578 + $0x34] sm:$0xf]
      %v1593 = vld [vmem:[%s1578 + $0x38] sm:$0xf]
      %v1594 = vld [vmem:[%s1578 + $0x3c] sm:$0xf]
      %v1611 = vunpack.c.l.b16 %v1579
      %v1612 = vunpack.c.l.b16 %v1580
      %v1613 = vunpack.c.l.b16 %v1581
      %v1614 = vunpack.c.l.b16 %v1582
      %v1615 = vunpack.c.l.b16 %v1583
      %v1616 = vunpack.c.l.b16 %v1584
      %v1617 = vunpack.c.l.b16 %v1585
      %v1618 = vunpack.c.l.b16 %v1586
      %v1619 = vunpack.c.l.b16 %v1587
      %v1620 = vunpack.c.l.b16 %v1588
      %v1621 = vunpack.c.l.b16 %v1589
      %v1622 = vunpack.c.l.b16 %v1590
      %v1623 = vunpack.c.l.b16 %v1591
      %v1624 = vunpack.c.l.b16 %v1592
      %v1625 = vunpack.c.l.b16 %v1593
      %v1626 = vunpack.c.l.b16 %v1594
      %v1627 = vpack.c.b16 %v1612, %v1611
      %v1628 = vpack.c.b16 %v1614, %v1613
      %v1629 = vpack.c.b16 %v1616, %v1615
      %v1630 = vpack.c.b16 %v1618, %v1617
      %v1631 = vpack.c.b16 %v1620, %v1619
      %v1632 = vpack.c.b16 %v1622, %v1621
      %v1633 = vpack.c.b16 %v1624, %v1623
      %v1634 = vpack.c.b16 %v1626, %v1625
      %1643 = vmatprep.subr.bf16.mxu0 0
      %1644 = vmatpush1.bf16.msra.mxu0 %v1627
      %1645 = vmatprep.subr.bf16.mxu0 0
      %1646 = vmatpush1.bf16.msra.mxu0 %v1628
      %1647 = vmatprep.subr.bf16.mxu0 0
      %1648 = vmatpush1.bf16.msra.mxu0 %v1629
      %1649 = vmatprep.subr.bf16.mxu0 0
      %1650 = vmatpush1.bf16.msra.mxu0 %v1630
      %1651 = vmatprep.subr.bf16.mxu0 0
      %1652 = vmatpush1.bf16.msra.mxu0 %v1631
      %1653 = vmatprep.subr.bf16.mxu0 0
      %1654 = vmatpush1.bf16.msra.mxu0 %v1632
      %1655 = vmatprep.subr.bf16.mxu0 0
      %1656 = vmatpush1.bf16.msra.mxu0 %v1633
      %1657 = vmatprep.subr.bf16.mxu0 0
      %1658 = vmatpush1.bf16.msra.mxu0 %v1634
      %1659 = vmatprep.subr.bf16.mxu0 0
      %1660 = vmatpush1.bf16.msra.mxu0 0
      %1661 = vmatprep.subr.bf16.mxu0 0
      %1662 = vmatpush1.bf16.msra.mxu0 0
      %1663 = vmatprep.subr.bf16.mxu0 0
      %1664 = vmatpush1.bf16.msra.mxu0 0
      %1665 = vmatprep.subr.bf16.mxu0 0
      %1666 = vmatpush1.bf16.msra.mxu0 0
      %1667 = vmatprep.subr.bf16.mxu0 0
      %1668 = vmatpush1.bf16.msra.mxu0 0
      %1669 = vmatprep.subr.bf16.mxu0 0
      %1670 = vmatpush1.bf16.msra.mxu0 0
      %1671 = vmatprep.subr.bf16.mxu0 0
      %1672 = vmatpush1.bf16.msra.mxu0 0
      %1673 = vmatprep.subr.bf16.mxu0 0
      %1674 = vmatpush1.bf16.msra.mxu0 0
      %1675 = vmatprep.mubr.bf16.mxu0 0
      %1676 = vmatmul.mubr.bf16.gmra.mrb[0].mxu0 %v384
      %v1677 = vpop.f32.mrb[0].mxu0
      %v1678 = vadd.f32 0.0, %v1677
      %v1679 = vpop.f32.mrb[0].mxu0
      %v1680 = vpop.f32.mrb[0].mxu0
      %v1681 = vadd.f32 0.0, %v1680
      %v1682 = vpop.f32.mrb[0].mxu0
      %1683 = vmatprep.mubr.bf16.mxu0 0
      %1684 = vmatmul.mubr.bf16.gmra.mrb[0].mxu0 %v385
      %v1685 = vpop.f32.mrb[0].mxu0
      %v1686 = vadd.f32 0.0, %v1685
      %v1687 = vpop.f32.mrb[0].mxu0
      %v1688 = vpop.f32.mrb[0].mxu0
      %v1689 = vadd.f32 0.0, %v1688
      %v1690 = vpop.f32.mrb[0].mxu0
      %1691 = vmatprep.mubr.bf16.mxu0 0
      %1692 = vmatmul.mubr.bf16.gmra.mrb[0].mxu0 %v386
      %v1693 = vpop.f32.mrb[0].mxu0
      %v1694 = vadd.f32 0.0, %v1693
      %v1695 = vpop.f32.mrb[0].mxu0
      %v1696 = vpop.f32.mrb[0].mxu0
      %v1697 = vadd.f32 0.0, %v1696
      %v1698 = vpop.f32.mrb[0].mxu0
      %1699 = vmatprep.mubr.bf16.mxu0 0
      %1700 = vmatmul.mubr.bf16.gmra.mrb[0].mxu0 %v387
      %v1701 = vpop.f32.mrb[0].mxu0
      %v1702 = vadd.f32 0.0, %v1701
      %v1703 = vpop.f32.mrb[0].mxu0
      %v1704 = vpop.f32.mrb[0].mxu0
      %v1705 = vadd.f32 0.0, %v1704
      %v1706 = vpop.f32.mrb[0].mxu0
      %1707 = vmatprep.mubr.bf16.mxu0 0
      %1708 = vmatmul.mubr.bf16.gmra.mrb[0].mxu0 %v388
      %v1709 = vpop.f32.mrb[0].mxu0
      %v1710 = vadd.f32 0.0, %v1709
      %v1711 = vpop.f32.mrb[0].mxu0
      %v1712 = vpop.f32.mrb[0].mxu0
      %v1713 = vadd.f32 0.0, %v1712
      %v1714 = vpop.f32.mrb[0].mxu0
      %1715 = vmatprep.mubr.bf16.mxu0 0
      %1716 = vmatmul.mubr.bf16.gmra.mrb[0].mxu0 %v389
      %v1717 = vpop.f32.mrb[0].mxu0
      %v1718 = vadd.f32 0.0, %v1717
      %v1719 = vpop.f32.mrb[0].mxu0
      %v1720 = vpop.f32.mrb[0].mxu0
      %v1721 = vadd.f32 0.0, %v1720
      %v1722 = vpop.f32.mrb[0].mxu0
      %1723 = vmatprep.mubr.bf16.mxu0 0
      %1724 = vmatmul.mubr.bf16.gmra.mrb[0].mxu0 %v390
      %v1725 = vpop.f32.mrb[0].mxu0
      %v1726 = vadd.f32 0.0, %v1725
      %v1727 = vpop.f32.mrb[0].mxu0
      %v1728 = vpop.f32.mrb[0].mxu0
      %v1729 = vadd.f32 0.0, %v1728
      %v1730 = vpop.f32.mrb[0].mxu0
      %1731 = vmatprep.mubr.bf16.mxu0 0
      %1732 = vmatmul.mubr.bf16.gmra.mrb[0].mxu0 %v391
      %v1733 = vpop.f32.mrb[0].mxu0
      %v1734 = vadd.f32 0.0, %v1733
      %v1735 = vpop.f32.mrb[0].mxu0
      %v1736 = vpop.f32.mrb[0].mxu0
      %v1737 = vadd.f32 0.0, %v1736
      %v1738 = vpop.f32.mrb[0].mxu0
      %1739 = vmatprep.mubr.bf16.mxu0 0
      %1740 = vmatmul.mubr.bf16.gmra.mrb[0].mxu0 %v392
      %v1741 = vpop.f32.mrb[0].mxu0
      %v1742 = vadd.f32 0.0, %v1741
      %v1743 = vpop.f32.mrb[0].mxu0
      %v1744 = vpop.f32.mrb[0].mxu0
      %v1745 = vadd.f32 0.0, %v1744
      %v1746 = vpop.f32.mrb[0].mxu0
      %1747 = vmatprep.mubr.bf16.mxu0 0
      %1748 = vmatmul.mubr.bf16.gmra.mrb[0].mxu0 %v393
      %v1749 = vpop.f32.mrb[0].mxu0
      %v1750 = vadd.f32 0.0, %v1749
      %v1751 = vpop.f32.mrb[0].mxu0
      %v1752 = vpop.f32.mrb[0].mxu0
      %v1753 = vadd.f32 0.0, %v1752
      %v1754 = vpop.f32.mrb[0].mxu0
      %1755 = vmatprep.mubr.bf16.mxu0 0
      %1756 = vmatmul.mubr.bf16.gmra.mrb[0].mxu0 %v394
      %v1757 = vpop.f32.mrb[0].mxu0
      %v1758 = vadd.f32 0.0, %v1757
      %v1759 = vpop.f32.mrb[0].mxu0
      %v1760 = vpop.f32.mrb[0].mxu0
      %v1761 = vadd.f32 0.0, %v1760
      %v1762 = vpop.f32.mrb[0].mxu0
      %1763 = vmatprep.mubr.bf16.mxu0 0
      %1764 = vmatmul.mubr.bf16.gmra.mrb[0].mxu0 %v395
      %v1765 = vpop.f32.mrb[0].mxu0
      %v1766 = vadd.f32 0.0, %v1765
      %v1767 = vpop.f32.mrb[0].mxu0
      %v1768 = vpop.f32.mrb[0].mxu0
      %v1769 = vadd.f32 0.0, %v1768
      %v1770 = vpop.f32.mrb[0].mxu0
      %1771 = vmatprep.mubr.bf16.mxu0 0
      %1772 = vmatmul.mubr.bf16.gmra.mrb[0].mxu0 %v396
      %v1773 = vpop.f32.mrb[0].mxu0
      %v1774 = vadd.f32 0.0, %v1773
      %v1775 = vpop.f32.mrb[0].mxu0
      %v1776 = vpop.f32.mrb[0].mxu0
      %v1777 = vadd.f32 0.0, %v1776
      %v1778 = vpop.f32.mrb[0].mxu0
      %1779 = vmatprep.mubr.bf16.mxu0 0
      %1780 = vmatmul.mubr.bf16.gmra.mrb[0].mxu0 %v397
      %v1781 = vpop.f32.mrb[0].mxu0
      %v1782 = vadd.f32 0.0, %v1781
      %v1783 = vpop.f32.mrb[0].mxu0
      %v1784 = vpop.f32.mrb[0].mxu0
      %v1785 = vadd.f32 0.0, %v1784
      %v1786 = vpop.f32.mrb[0].mxu0
      %1787 = vmatprep.mubr.bf16.mxu0 0
      %1788 = vmatmul.mubr.bf16.gmra.mrb[0].mxu0 %v398
      %v1789 = vpop.f32.mrb[0].mxu0
      %v1790 = vadd.f32 0.0, %v1789
      %v1791 = vpop.f32.mrb[0].mxu0
      %v1792 = vpop.f32.mrb[0].mxu0
      %v1793 = vadd.f32 0.0, %v1792
      %v1794 = vpop.f32.mrb[0].mxu0
      %1795 = vmatprep.mubr.bf16.mxu0 0
      %1796 = vmatmul.mubr.bf16.gmra.mrb[0].mxu0 %v399
      %v1797 = vpop.f32.mrb[0].mxu0
      %v1798 = vadd.f32 0.0, %v1797
      %v1799 = vpop.f32.mrb[0].mxu0
      %v1800 = vpop.f32.mrb[0].mxu0
      %v1801 = vadd.f32 0.0, %v1800
      %v1802 = vpop.f32.mrb[0].mxu0
      %1803 = vmatprep.mubr.bf16.mxu0 0
      %1804 = vmatmul.mubr.bf16.gmra.mrb[0].mxu0 %v400
      %v1805 = vpop.f32.mrb[0].mxu0
      %v1806 = vadd.f32 0.0, %v1805
      %v1807 = vpop.f32.mrb[0].mxu0
      %v1808 = vpop.f32.mrb[0].mxu0
      %v1809 = vadd.f32 0.0, %v1808
      %v1810 = vpop.f32.mrb[0].mxu0
      %1811 = vmatprep.mubr.bf16.mxu0 0
      %1812 = vmatmul.mubr.bf16.gmra.mrb[0].mxu0 %v401
      %v1813 = vpop.f32.mrb[0].mxu0
      %v1814 = vadd.f32 0.0, %v1813
      %v1815 = vpop.f32.mrb[0].mxu0
      %v1816 = vpop.f32.mrb[0].mxu0
      %v1817 = vadd.f32 0.0, %v1816
      %v1818 = vpop.f32.mrb[0].mxu0
      %1819 = vmatprep.mubr.bf16.mxu0 0
      %1820 = vmatmul.mubr.bf16.gmra.mrb[0].mxu0 %v402
      %v1821 = vpop.f32.mrb[0].mxu0
      %v1822 = vadd.f32 0.0, %v1821
      %v1823 = vpop.f32.mrb[0].mxu0
      %v1824 = vpop.f32.mrb[0].mxu0
      %v1825 = vadd.f32 0.0, %v1824
      %v1826 = vpop.f32.mrb[0].mxu0
      %1827 = vmatprep.mubr.bf16.mxu0 0
      %1828 = vmatmul.mubr.bf16.gmra.mrb[0].mxu0 %v403
      %v1829 = vpop.f32.mrb[0].mxu0
      %v1830 = vadd.f32 0.0, %v1829
      %v1831 = vpop.f32.mrb[0].mxu0
      %v1832 = vpop.f32.mrb[0].mxu0
      %v1833 = vadd.f32 0.0, %v1832
      %v1834 = vpop.f32.mrb[0].mxu0
      %1835 = vmatprep.mubr.bf16.mxu0 0
      %1836 = vmatmul.mubr.bf16.gmra.mrb[0].mxu0 %v404
      %v1837 = vpop.f32.mrb[0].mxu0
      %v1838 = vadd.f32 0.0, %v1837
      %v1839 = vpop.f32.mrb[0].mxu0
      %v1840 = vpop.f32.mrb[0].mxu0
      %v1841 = vadd.f32 0.0, %v1840
      %v1842 = vpop.f32.mrb[0].mxu0
      %1843 = vmatprep.mubr.bf16.mxu0 0
      %1844 = vmatmul.mubr.bf16.gmra.mrb[0].mxu0 %v405
      %v1845 = vpop.f32.mrb[0].mxu0
      %v1846 = vadd.f32 0.0, %v1845
      %v1847 = vpop.f32.mrb[0].mxu0
      %v1848 = vpop.f32.mrb[0].mxu0
      %v1849 = vadd.f32 0.0, %v1848
      %v1850 = vpop.f32.mrb[0].mxu0
      %1851 = vmatprep.mubr.bf16.mxu0 0
      %1852 = vmatmul.mubr.bf16.gmra.mrb[0].mxu0 %v406
      %v1853 = vpop.f32.mrb[0].mxu0
      %v1854 = vadd.f32 0.0, %v1853
      %v1855 = vpop.f32.mrb[0].mxu0
      %v1856 = vpop.f32.mrb[0].mxu0
      %v1857 = vadd.f32 0.0, %v1856
      %v1858 = vpop.f32.mrb[0].mxu0
      %1859 = vmatprep.mubr.bf16.mxu0 0
      %1860 = vmatmul.mubr.bf16.gmra.mrb[0].mxu0 %v407
      %v1861 = vpop.f32.mrb[0].mxu0
      %v1862 = vadd.f32 0.0, %v1861
      %v1863 = vpop.f32.mrb[0].mxu0
      %v1864 = vpop.f32.mrb[0].mxu0
      %v1865 = vadd.f32 0.0, %v1864
      %v1866 = vpop.f32.mrb[0].mxu0
      %1867 = vmatprep.mubr.bf16.mxu0 0
      %1868 = vmatmul.mubr.bf16.gmra.mrb[0].mxu0 %v408
      %v1869 = vpop.f32.mrb[0].mxu0
      %v1870 = vadd.f32 0.0, %v1869
      %v1871 = vpop.f32.mrb[0].mxu0
      %v1872 = vpop.f32.mrb[0].mxu0
      %v1873 = vadd.f32 0.0, %v1872
      %v1874 = vpop.f32.mrb[0].mxu0
      %1875 = vmatprep.mubr.bf16.mxu0 0
      %1876 = vmatmul.mubr.bf16.gmra.mrb[0].mxu0 %v409
      %v1877 = vpop.f32.mrb[0].mxu0
      %v1878 = vadd.f32 0.0, %v1877
      %v1879 = vpop.f32.mrb[0].mxu0
      %v1880 = vpop.f32.mrb[0].mxu0
      %v1881 = vadd.f32 0.0, %v1880
      %v1882 = vpop.f32.mrb[0].mxu0
      %1883 = vmatprep.mubr.bf16.mxu0 0
      %1884 = vmatmul.mubr.bf16.gmra.mrb[0].mxu0 %v410
      %v1885 = vpop.f32.mrb[0].mxu0
      %v1886 = vadd.f32 0.0, %v1885
      %v1887 = vpop.f32.mrb[0].mxu0
      %v1888 = vpop.f32.mrb[0].mxu0
      %v1889 = vadd.f32 0.0, %v1888
      %v1890 = vpop.f32.mrb[0].mxu0
      %1891 = vmatprep.mubr.bf16.mxu0 0
      %1892 = vmatmul.mubr.bf16.gmra.mrb[0].mxu0 %v411
      %v1893 = vpop.f32.mrb[0].mxu0
      %v1894 = vadd.f32 0.0, %v1893
      %v1895 = vpop.f32.mrb[0].mxu0
      %v1896 = vpop.f32.mrb[0].mxu0
      %v1897 = vadd.f32 0.0, %v1896
      %v1898 = vpop.f32.mrb[0].mxu0
      %1899 = vmatprep.mubr.bf16.mxu0 0
      %1900 = vmatmul.mubr.bf16.gmra.mrb[0].mxu0 %v412
      %v1901 = vpop.f32.mrb[0].mxu0
      %v1902 = vadd.f32 0.0, %v1901
      %v1903 = vpop.f32.mrb[0].mxu0
      %v1904 = vpop.f32.mrb[0].mxu0
      %v1905 = vadd.f32 0.0, %v1904
      %v1906 = vpop.f32.mrb[0].mxu0
      %1907 = vmatprep.mubr.bf16.mxu0 0
      %1908 = vmatmul.mubr.bf16.gmra.mrb[0].mxu0 %v413
      %v1909 = vpop.f32.mrb[0].mxu0
      %v1910 = vadd.f32 0.0, %v1909
      %v1911 = vpop.f32.mrb[0].mxu0
      %v1912 = vpop.f32.mrb[0].mxu0
      %v1913 = vadd.f32 0.0, %v1912
      %v1914 = vpop.f32.mrb[0].mxu0
      %1915 = vmatprep.mubr.bf16.mxu0 0
      %1916 = vmatmul.mubr.bf16.gmra.mrb[0].mxu0 %v414
      %v1917 = vpop.f32.mrb[0].mxu0
      %v1918 = vadd.f32 0.0, %v1917
      %v1919 = vpop.f32.mrb[0].mxu0
      %v1920 = vpop.f32.mrb[0].mxu0
      %v1921 = vadd.f32 0.0, %v1920
      %v1922 = vpop.f32.mrb[0].mxu0
      %1923 = vmatprep.mubr.bf16.mxu0 0
      %1924 = vmatmul.mubr.bf16.gmra.mrb[0].mxu0 0
      %v1925 = vpop.f32.mrb[0].mxu0
      %v1926 = vadd.f32 0.0, %v1925
      %v1927 = vpop.f32.mrb[0].mxu0
      %v1928 = vpop.f32.mrb[0].mxu0
      %v1929 = vadd.f32 0.0, %v1928
      %v1930 = vpop.f32.mrb[0].mxu0
      %1931 = vdwg.mxu0
      %v1948 = vunpack.c.l.b16 %v1562
      %v1949 = vunpack.c.l.b16 %v1563
      %v1950 = vunpack.c.l.b16 %v1564
      %v1951 = vunpack.c.l.b16 %v1565
      %v1952 = vunpack.c.l.b16 %v1566
      %v1953 = vunpack.c.l.b16 %v1567
      %v1954 = vunpack.c.l.b16 %v1568
      %v1955 = vunpack.c.l.b16 %v1569
      %v1956 = vunpack.c.l.b16 %v1570
      %v1957 = vunpack.c.l.b16 %v1571
      %v1958 = vunpack.c.l.b16 %v1572
      %v1959 = vunpack.c.l.b16 %v1573
      %v1960 = vunpack.c.l.b16 %v1574
      %v1961 = vunpack.c.l.b16 %v1575
      %v1962 = vunpack.c.l.b16 %v1576
      %v1963 = vunpack.c.l.b16 %v1577
      %v1964 = vpack.c.b16 %v1949, %v1948
      %v1965 = vpack.c.b16 %v1951, %v1950
      %v1966 = vpack.c.b16 %v1953, %v1952
      %v1967 = vpack.c.b16 %v1955, %v1954
      %v1968 = vpack.c.b16 %v1957, %v1956
      %v1969 = vpack.c.b16 %v1959, %v1958
      %v1970 = vpack.c.b16 %v1961, %v1960
      %v1971 = vpack.c.b16 %v1963, %v1962
      %1980 = vmatprep.subr.bf16.mxu0 0
      %1981 = vmatpush1.bf16.msra.mxu0 %v1964
      %1982 = vmatprep.subr.bf16.mxu0 0
      %1983 = vmatpush1.bf16.msra.mxu0 %v1965
      %1984 = vmatprep.subr.bf16.mxu0 0
      %1985 = vmatpush1.bf16.msra.mxu0 %v1966
      %1986 = vmatprep.subr.bf16.mxu0 0
      %1987 = vmatpush1.bf16.msra.mxu0 %v1967
      %1988 = vmatprep.subr.bf16.mxu0 0
      %1989 = vmatpush1.bf16.msra.mxu0 %v1968
      %1990 = vmatprep.subr.bf16.mxu0 0
      %1991 = vmatpush1.bf16.msra.mxu0 %v1969
      %1992 = vmatprep.subr.bf16.mxu0 0
      %1993 = vmatpush1.bf16.msra.mxu0 %v1970
      %1994 = vmatprep.subr.bf16.mxu0 0
      %1995 = vmatpush1.bf16.msra.mxu0 %v1971
      %1996 = vmatprep.subr.bf16.mxu0 0
      %1997 = vmatpush1.bf16.msra.mxu0 0
      %1998 = vmatprep.subr.bf16.mxu0 0
      %1999 = vmatpush1.bf16.msra.mxu0 0
      %2000 = vmatprep.subr.bf16.mxu0 0
      %2001 = vmatpush1.bf16.msra.mxu0 0
      %2002 = vmatprep.subr.bf16.mxu0 0
      %2003 = vmatpush1.bf16.msra.mxu0 0
      %2004 = vmatprep.subr.bf16.mxu0 0
      %2005 = vmatpush1.bf16.msra.mxu0 0
      %2006 = vmatprep.subr.bf16.mxu0 0
      %2007 = vmatpush1.bf16.msra.mxu0 0
      %2008 = vmatprep.subr.bf16.mxu0 0
      %2009 = vmatpush1.bf16.msra.mxu0 0
      %2010 = vmatprep.subr.bf16.mxu0 0
      %2011 = vmatpush1.bf16.msra.mxu0 0
      %2012 = vmatprep.mubr.bf16.mxu0 0
      %2013 = vmatmul.mubr.bf16.gmra.mrb[0].mxu0 %v804
      %v2014 = vpop.f32.mrb[0].mxu0
      %v2015 = vadd.f32 %v1678, %v2014
      %v2016 = vpop.f32.mrb[0].mxu0
      %v2017 = vpop.f32.mrb[0].mxu0
      %v2018 = vadd.f32 %v1681, %v2017
      %v2019 = vpop.f32.mrb[0].mxu0
      %2020 = vmatprep.mubr.bf16.mxu0 0
      %2021 = vmatmul.mubr.bf16.gmra.mrb[0].mxu0 %v384
      %v2022 = vpop.f32.mrb[0].mxu0
      %v2023 = vadd.f32 %v1686, %v2022
      %v2024 = vpop.f32.mrb[0].mxu0
      %v2025 = vpop.f32.mrb[0].mxu0
      %v2026 = vadd.f32 %v1689, %v2025
      %v2027 = vpop.f32.mrb[0].mxu0
      %2028 = vmatprep.mubr.bf16.mxu0 0
      %2029 = vmatmul.mubr.bf16.gmra.mrb[0].mxu0 %v385
      %v2030 = vpop.f32.mrb[0].mxu0
      %v2031 = vadd.f32 %v1694, %v2030
      %v2032 = vpop.f32.mrb[0].mxu0
      %v2033 = vpop.f32.mrb[0].mxu0
      %v2034 = vadd.f32 %v1697, %v2033
      %v2035 = vpop.f32.mrb[0].mxu0
      %2036 = vmatprep.mubr.bf16.mxu0 0
      %2037 = vmatmul.mubr.bf16.gmra.mrb[0].mxu0 %v386
      %v2038 = vpop.f32.mrb[0].mxu0
      %v2039 = vadd.f32 %v1702, %v2038
      %v2040 = vpop.f32.mrb[0].mxu0
      %v2041 = vpop.f32.mrb[0].mxu0
      %v2042 = vadd.f32 %v1705, %v2041
      %v2043 = vpop.f32.mrb[0].mxu0
      %2044 = vmatprep.mubr.bf16.mxu0 0
      %2045 = vmatmul.mubr.bf16.gmra.mrb[0].mxu0 %v387
      %v2046 = vpop.f32.mrb[0].mxu0
      %v2047 = vadd.f32 %v1710, %v2046
      %v2048 = vpop.f32.mrb[0].mxu0
      %v2049 = vpop.f32.mrb[0].mxu0
      %v2050 = vadd.f32 %v1713, %v2049
      %v2051 = vpop.f32.mrb[0].mxu0
      %2052 = vmatprep.mubr.bf16.mxu0 0
      %2053 = vmatmul.mubr.bf16.gmra.mrb[0].mxu0 %v388
      %v2054 = vpop.f32.mrb[0].mxu0
      %v2055 = vadd.f32 %v1718, %v2054
      %v2056 = vpop.f32.mrb[0].mxu0
      %v2057 = vpop.f32.mrb[0].mxu0
      %v2058 = vadd.f32 %v1721, %v2057
      %v2059 = vpop.f32.mrb[0].mxu0
      %2060 = vmatprep.mubr.bf16.mxu0 0
      %2061 = vmatmul.mubr.bf16.gmra.mrb[0].mxu0 %v389
      %v2062 = vpop.f32.mrb[0].mxu0
      %v2063 = vadd.f32 %v1726, %v2062
      %v2064 = vpop.f32.mrb[0].mxu0
      %v2065 = vpop.f32.mrb[0].mxu0
      %v2066 = vadd.f32 %v1729, %v2065
      %v2067 = vpop.f32.mrb[0].mxu0
      %2068 = vmatprep.mubr.bf16.mxu0 0
      %2069 = vmatmul.mubr.bf16.gmra.mrb[0].mxu0 %v390
      %v2070 = vpop.f32.mrb[0].mxu0
      %v2071 = vadd.f32 %v1734, %v2070
      %v2072 = vpop.f32.mrb[0].mxu0
      %v2073 = vpop.f32.mrb[0].mxu0
      %v2074 = vadd.f32 %v1737, %v2073
      %v2075 = vpop.f32.mrb[0].mxu0
      %2076 = vmatprep.mubr.bf16.mxu0 0
      %2077 = vmatmul.mubr.bf16.gmra.mrb[0].mxu0 %v391
      %v2078 = vpop.f32.mrb[0].mxu0
      %v2079 = vadd.f32 %v1742, %v2078
      %v2080 = vpop.f32.mrb[0].mxu0
      %v2081 = vpop.f32.mrb[0].mxu0
      %v2082 = vadd.f32 %v1745, %v2081
      %v2083 = vpop.f32.mrb[0].mxu0
      %2084 = vmatprep.mubr.bf16.mxu0 0
      %2085 = vmatmul.mubr.bf16.gmra.mrb[0].mxu0 %v392
      %v2086 = vpop.f32.mrb[0].mxu0
      %v2087 = vadd.f32 %v1750, %v2086
      %v2088 = vpop.f32.mrb[0].mxu0
      %v2089 = vpop.f32.mrb[0].mxu0
      %v2090 = vadd.f32 %v1753, %v2089
      %v2091 = vpop.f32.mrb[0].mxu0
      %2092 = vmatprep.mubr.bf16.mxu0 0
      %2093 = vmatmul.mubr.bf16.gmra.mrb[0].mxu0 %v393
      %v2094 = vpop.f32.mrb[0].mxu0
      %v2095 = vadd.f32 %v1758, %v2094
      %v2096 = vpop.f32.mrb[0].mxu0
      %v2097 = vpop.f32.mrb[0].mxu0
      %v2098 = vadd.f32 %v1761, %v2097
      %v2099 = vpop.f32.mrb[0].mxu0
      %2100 = vmatprep.mubr.bf16.mxu0 0
      %2101 = vmatmul.mubr.bf16.gmra.mrb[0].mxu0 %v394
      %v2102 = vpop.f32.mrb[0].mxu0
      %v2103 = vadd.f32 %v1766, %v2102
      %v2104 = vpop.f32.mrb[0].mxu0
      %v2105 = vpop.f32.mrb[0].mxu0
      %v2106 = vadd.f32 %v1769, %v2105
      %v2107 = vpop.f32.mrb[0].mxu0
      %2108 = vmatprep.mubr.bf16.mxu0 0
      %2109 = vmatmul.mubr.bf16.gmra.mrb[0].mxu0 %v395
      %v2110 = vpop.f32.mrb[0].mxu0
      %v2111 = vadd.f32 %v1774, %v2110
      %v2112 = vpop.f32.mrb[0].mxu0
      %v2113 = vpop.f32.mrb[0].mxu0
      %v2114 = vadd.f32 %v1777, %v2113
      %v2115 = vpop.f32.mrb[0].mxu0
      %2116 = vmatprep.mubr.bf16.mxu0 0
      %2117 = vmatmul.mubr.bf16.gmra.mrb[0].mxu0 %v396
      %v2118 = vpop.f32.mrb[0].mxu0
      %v2119 = vadd.f32 %v1782, %v2118
      %v2120 = vpop.f32.mrb[0].mxu0
      %v2121 = vpop.f32.mrb[0].mxu0
      %v2122 = vadd.f32 %v1785, %v2121
      %v2123 = vpop.f32.mrb[0].mxu0
      %2124 = vmatprep.mubr.bf16.mxu0 0
      %2125 = vmatmul.mubr.bf16.gmra.mrb[0].mxu0 %v397
      %v2126 = vpop.f32.mrb[0].mxu0
      %v2127 = vadd.f32 %v1790, %v2126
      %v2128 = vpop.f32.mrb[0].mxu0
      %v2129 = vpop.f32.mrb[0].mxu0
      %v2130 = vadd.f32 %v1793, %v2129
      %v2131 = vpop.f32.mrb[0].mxu0
      %2132 = vmatprep.mubr.bf16.mxu0 0
      %2133 = vmatmul.mubr.bf16.gmra.mrb[0].mxu0 %v398
      %v2134 = vpop.f32.mrb[0].mxu0
      %v2135 = vadd.f32 %v1798, %v2134
      %v2136 = vpop.f32.mrb[0].mxu0
      %v2137 = vpop.f32.mrb[0].mxu0
      %v2138 = vadd.f32 %v1801, %v2137
      %v2139 = vpop.f32.mrb[0].mxu0
      %2140 = vmatprep.mubr.bf16.mxu0 0
      %2141 = vmatmul.mubr.bf16.gmra.mrb[0].mxu0 %v399
      %v2142 = vpop.f32.mrb[0].mxu0
      %v2143 = vadd.f32 %v1806, %v2142
      %v2144 = vpop.f32.mrb[0].mxu0
      %v2145 = vpop.f32.mrb[0].mxu0
      %v2146 = vadd.f32 %v1809, %v2145
      %v2147 = vpop.f32.mrb[0].mxu0
      %2148 = vmatprep.mubr.bf16.mxu0 0
      %2149 = vmatmul.mubr.bf16.gmra.mrb[0].mxu0 %v400
      %v2150 = vpop.f32.mrb[0].mxu0
      %v2151 = vadd.f32 %v1814, %v2150
      %v2152 = vpop.f32.mrb[0].mxu0
      %v2153 = vpop.f32.mrb[0].mxu0
      %v2154 = vadd.f32 %v1817, %v2153
      %v2155 = vpop.f32.mrb[0].mxu0
      %2156 = vmatprep.mubr.bf16.mxu0 0
      %2157 = vmatmul.mubr.bf16.gmra.mrb[0].mxu0 %v401
      %v2158 = vpop.f32.mrb[0].mxu0
      %v2159 = vadd.f32 %v1822, %v2158
      %v2160 = vpop.f32.mrb[0].mxu0
      %v2161 = vpop.f32.mrb[0].mxu0
      %v2162 = vadd.f32 %v1825, %v2161
      %v2163 = vpop.f32.mrb[0].mxu0
      %2164 = vmatprep.mubr.bf16.mxu0 0
      %2165 = vmatmul.mubr.bf16.gmra.mrb[0].mxu0 %v402
      %v2166 = vpop.f32.mrb[0].mxu0
      %v2167 = vadd.f32 %v1830, %v2166
      %v2168 = vpop.f32.mrb[0].mxu0
      %v2169 = vpop.f32.mrb[0].mxu0
      %v2170 = vadd.f32 %v1833, %v2169
      %v2171 = vpop.f32.mrb[0].mxu0
      %2172 = vmatprep.mubr.bf16.mxu0 0
      %2173 = vmatmul.mubr.bf16.gmra.mrb[0].mxu0 %v403
      %v2174 = vpop.f32.mrb[0].mxu0
      %v2175 = vadd.f32 %v1838, %v2174
      %v2176 = vpop.f32.mrb[0].mxu0
      %v2177 = vpop.f32.mrb[0].mxu0
      %v2178 = vadd.f32 %v1841, %v2177
      %v2179 = vpop.f32.mrb[0].mxu0
      %2180 = vmatprep.mubr.bf16.mxu0 0
      %2181 = vmatmul.mubr.bf16.gmra.mrb[0].mxu0 %v404
      %v2182 = vpop.f32.mrb[0].mxu0
      %v2183 = vadd.f32 %v1846, %v2182
      %v2184 = vpop.f32.mrb[0].mxu0
      %v2185 = vpop.f32.mrb[0].mxu0
      %v2186 = vadd.f32 %v1849, %v2185
      %v2187 = vpop.f32.mrb[0].mxu0
      %2188 = vmatprep.mubr.bf16.mxu0 0
      %2189 = vmatmul.mubr.bf16.gmra.mrb[0].mxu0 %v405
      %v2190 = vpop.f32.mrb[0].mxu0
      %v2191 = vadd.f32 %v1854, %v2190
      %v2192 = vpop.f32.mrb[0].mxu0
      %v2193 = vpop.f32.mrb[0].mxu0
      %v2194 = vadd.f32 %v1857, %v2193
      %v2195 = vpop.f32.mrb[0].mxu0
      %2196 = vmatprep.mubr.bf16.mxu0 0
      %2197 = vmatmul.mubr.bf16.gmra.mrb[0].mxu0 %v406
      %v2198 = vpop.f32.mrb[0].mxu0
      %v2199 = vadd.f32 %v1862, %v2198
      %v2200 = vpop.f32.mrb[0].mxu0
      %v2201 = vpop.f32.mrb[0].mxu0
      %v2202 = vadd.f32 %v1865, %v2201
      %v2203 = vpop.f32.mrb[0].mxu0
      %2204 = vmatprep.mubr.bf16.mxu0 0
      %2205 = vmatmul.mubr.bf16.gmra.mrb[0].mxu0 %v407
      %v2206 = vpop.f32.mrb[0].mxu0
      %v2207 = vadd.f32 %v1870, %v2206
      %v2208 = vpop.f32.mrb[0].mxu0
      %v2209 = vpop.f32.mrb[0].mxu0
      %v2210 = vadd.f32 %v1873, %v2209
      %v2211 = vpop.f32.mrb[0].mxu0
      %2212 = vmatprep.mubr.bf16.mxu0 0
      %2213 = vmatmul.mubr.bf16.gmra.mrb[0].mxu0 %v408
      %v2214 = vpop.f32.mrb[0].mxu0
      %v2215 = vadd.f32 %v1878, %v2214
      %v2216 = vpop.f32.mrb[0].mxu0
      %v2217 = vpop.f32.mrb[0].mxu0
      %v2218 = vadd.f32 %v1881, %v2217
      %v2219 = vpop.f32.mrb[0].mxu0
      %2220 = vmatprep.mubr.bf16.mxu0 0
      %2221 = vmatmul.mubr.bf16.gmra.mrb[0].mxu0 %v409
      %v2222 = vpop.f32.mrb[0].mxu0
      %v2223 = vadd.f32 %v1886, %v2222
      %v2224 = vpop.f32.mrb[0].mxu0
      %v2225 = vpop.f32.mrb[0].mxu0
      %v2226 = vadd.f32 %v1889, %v2225
      %v2227 = vpop.f32.mrb[0].mxu0
      %2228 = vmatprep.mubr.bf16.mxu0 0
      %2229 = vmatmul.mubr.bf16.gmra.mrb[0].mxu0 %v410
      %v2230 = vpop.f32.mrb[0].mxu0
      %v2231 = vadd.f32 %v1894, %v2230
      %v2232 = vpop.f32.mrb[0].mxu0
      %v2233 = vpop.f32.mrb[0].mxu0
      %v2234 = vadd.f32 %v1897, %v2233
      %v2235 = vpop.f32.mrb[0].mxu0
      %2236 = vmatprep.mubr.bf16.mxu0 0
      %2237 = vmatmul.mubr.bf16.gmra.mrb[0].mxu0 %v411
      %v2238 = vpop.f32.mrb[0].mxu0
      %v2239 = vadd.f32 %v1902, %v2238
      %v2240 = vpop.f32.mrb[0].mxu0
      %v2241 = vpop.f32.mrb[0].mxu0
      %v2242 = vadd.f32 %v1905, %v2241
      %v2243 = vpop.f32.mrb[0].mxu0
      %2244 = vmatprep.mubr.bf16.mxu0 0
      %2245 = vmatmul.mubr.bf16.gmra.mrb[0].mxu0 %v412
      %v2246 = vpop.f32.mrb[0].mxu0
      %v2247 = vadd.f32 %v1910, %v2246
      %v2248 = vpop.f32.mrb[0].mxu0
      %v2249 = vpop.f32.mrb[0].mxu0
      %v2250 = vadd.f32 %v1913, %v2249
      %v2251 = vpop.f32.mrb[0].mxu0
      %2252 = vmatprep.mubr.bf16.mxu0 0
      %2253 = vmatmul.mubr.bf16.gmra.mrb[0].mxu0 %v413
      %v2254 = vpop.f32.mrb[0].mxu0
      %v2255 = vadd.f32 %v1918, %v2254
      %v2256 = vpop.f32.mrb[0].mxu0
      %v2257 = vpop.f32.mrb[0].mxu0
      %v2258 = vadd.f32 %v1921, %v2257
      %v2259 = vpop.f32.mrb[0].mxu0
      %2260 = vmatprep.mubr.bf16.mxu0 0
      %2261 = vmatmul.mubr.bf16.gmra.mrb[0].mxu0 %v414
      %v2262 = vpop.f32.mrb[0].mxu0
      %v2263 = vadd.f32 %v1926, %v2262
      %v2264 = vpop.f32.mrb[0].mxu0
      %v2265 = vpop.f32.mrb[0].mxu0
      %v2266 = vadd.f32 %v1929, %v2265
      %v2267 = vpop.f32.mrb[0].mxu0
      %2268 = vdwg.mxu0
      %s2269 = scalar_lea.vmem %s1, 448
      %v2270 = vld [vmem:[%s2269] sm:$0xf]
      %v2271 = vld [vmem:[%s2269 + $0x4] sm:$0xf]
      %v2272 = vld [vmem:[%s2269 + $0x8] sm:$0xf]
      %v2273 = vld [vmem:[%s2269 + $0xc] sm:$0xf]
      %v2274 = vld [vmem:[%s2269 + $0x10] sm:$0xf]
      %v2275 = vld [vmem:[%s2269 + $0x14] sm:$0xf]
      %v2276 = vld [vmem:[%s2269 + $0x18] sm:$0xf]
      %v2277 = vld [vmem:[%s2269 + $0x1c] sm:$0xf]
      %v2278 = vld [vmem:[%s2269 + $0x20] sm:$0xf]
      %v2279 = vld [vmem:[%s2269 + $0x24] sm:$0xf]
      %v2280 = vld [vmem:[%s2269 + $0x28] sm:$0xf]
      %v2281 = vld [vmem:[%s2269 + $0x2c] sm:$0xf]
      %v2282 = vld [vmem:[%s2269 + $0x30] sm:$0xf]
      %v2283 = vld [vmem:[%s2269 + $0x34] sm:$0xf]
      %v2284 = vld [vmem:[%s2269 + $0x38] sm:$0xf]
      %v2285 = vld [vmem:[%s2269 + $0x3c] sm:$0xf]
      %v2302 = vunpack.c.l.b16 %v2270
      %v2303 = vunpack.c.l.b16 %v2271
      %v2304 = vunpack.c.l.b16 %v2272
      %v2305 = vunpack.c.l.b16 %v2273
      %v2306 = vunpack.c.l.b16 %v2274
      %v2307 = vunpack.c.l.b16 %v2275
      %v2308 = vunpack.c.l.b16 %v2276
      %v2309 = vunpack.c.l.b16 %v2277
      %v2310 = vunpack.c.l.b16 %v2278
      %v2311 = vunpack.c.l.b16 %v2279
      %v2312 = vunpack.c.l.b16 %v2280
      %v2313 = vunpack.c.l.b16 %v2281
      %v2314 = vunpack.c.l.b16 %v2282
      %v2315 = vunpack.c.l.b16 %v2283
      %v2316 = vunpack.c.l.b16 %v2284
      %v2317 = vunpack.c.l.b16 %v2285
      %v2318 = vpack.c.b16 %v2303, %v2302
      %v2319 = vpack.c.b16 %v2305, %v2304
      %v2320 = vpack.c.b16 %v2307, %v2306
      %v2321 = vpack.c.b16 %v2309, %v2308
      %v2322 = vpack.c.b16 %v2311, %v2310
      %v2323 = vpack.c.b16 %v2313, %v2312
      %v2324 = vpack.c.b16 %v2315, %v2314
      %v2325 = vpack.c.b16 %v2317, %v2316
      %2334 = vmatprep.subr.bf16.mxu0 0
      %2335 = vmatpush1.bf16.msra.mxu0 %v2318
      %2336 = vmatprep.subr.bf16.mxu0 0
      %2337 = vmatpush1.bf16.msra.mxu0 %v2319
      %2338 = vmatprep.subr.bf16.mxu0 0
      %2339 = vmatpush1.bf16.msra.mxu0 %v2320
      %2340 = vmatprep.subr.bf16.mxu0 0
      %2341 = vmatpush1.bf16.msra.mxu0 %v2321
      %2342 = vmatprep.subr.bf16.mxu0 0
      %2343 = vmatpush1.bf16.msra.mxu0 %v2322
      %2344 = vmatprep.subr.bf16.mxu0 0
      %2345 = vmatpush1.bf16.msra.mxu0 %v2323
      %2346 = vmatprep.subr.bf16.mxu0 0
      %2347 = vmatpush1.bf16.msra.mxu0 %v2324
      %2348 = vmatprep.subr.bf16.mxu0 0
      %2349 = vmatpush1.bf16.msra.mxu0 %v2325
      %2350 = vmatprep.subr.bf16.mxu0 0
      %2351 = vmatpush1.bf16.msra.mxu0 0
      %2352 = vmatprep.subr.bf16.mxu0 0
      %2353 = vmatpush1.bf16.msra.mxu0 0
      %2354 = vmatprep.subr.bf16.mxu0 0
      %2355 = vmatpush1.bf16.msra.mxu0 0
      %2356 = vmatprep.subr.bf16.mxu0 0
      %2357 = vmatpush1.bf16.msra.mxu0 0
      %2358 = vmatprep.subr.bf16.mxu0 0
      %2359 = vmatpush1.bf16.msra.mxu0 0
      %2360 = vmatprep.subr.bf16.mxu0 0
      %2361 = vmatpush1.bf16.msra.mxu0 0
      %2362 = vmatprep.subr.bf16.mxu0 0
      %2363 = vmatpush1.bf16.msra.mxu0 0
      %2364 = vmatprep.subr.bf16.mxu0 0
      %2365 = vmatpush1.bf16.msra.mxu0 0
      %2366 = vmatprep.mubr.bf16.mxu0 0
      %2367 = vmatmul.mubr.bf16.gmra.mrb[0].mxu0 %v385
      %v2368 = vpop.f32.mrb[0].mxu0
      %v2369 = vadd.f32 0.0, %v2368
      %v2370 = vpop.f32.mrb[0].mxu0
      %v2371 = vpop.f32.mrb[0].mxu0
      %v2372 = vadd.f32 0.0, %v2371
      %v2373 = vpop.f32.mrb[0].mxu0
      %2374 = vmatprep.mubr.bf16.mxu0 0
      %2375 = vmatmul.mubr.bf16.gmra.mrb[0].mxu0 %v386
      %v2376 = vpop.f32.mrb[0].mxu0
      %v2377 = vadd.f32 0.0, %v2376
      %v2378 = vpop.f32.mrb[0].mxu0
      %v2379 = vpop.f32.mrb[0].mxu0
      %v2380 = vadd.f32 0.0, %v2379
      %v2381 = vpop.f32.mrb[0].mxu0
      %2382 = vmatprep.mubr.bf16.mxu0 0
      %2383 = vmatmul.mubr.bf16.gmra.mrb[0].mxu0 %v387
      %v2384 = vpop.f32.mrb[0].mxu0
      %v2385 = vadd.f32 0.0, %v2384
      %v2386 = vpop.f32.mrb[0].mxu0
      %v2387 = vpop.f32.mrb[0].mxu0
      %v2388 = vadd.f32 0.0, %v2387
      %v2389 = vpop.f32.mrb[0].mxu0
      %2390 = vmatprep.mubr.bf16.mxu0 0
      %2391 = vmatmul.mubr.bf16.gmra.mrb[0].mxu0 %v388
      %v2392 = vpop.f32.mrb[0].mxu0
      %v2393 = vadd.f32 0.0, %v2392
      %v2394 = vpop.f32.mrb[0].mxu0
      %v2395 = vpop.f32.mrb[0].mxu0
      %v2396 = vadd.f32 0.0, %v2395
      %v2397 = vpop.f32.mrb[0].mxu0
      %2398 = vmatprep.mubr.bf16.mxu0 0
      %2399 = vmatmul.mubr.bf16.gmra.mrb[0].mxu0 %v389
      %v2400 = vpop.f32.mrb[0].mxu0
      %v2401 = vadd.f32 0.0, %v2400
      %v2402 = vpop.f32.mrb[0].mxu0
      %v2403 = vpop.f32.mrb[0].mxu0
      %v2404 = vadd.f32 0.0, %v2403
      %v2405 = vpop.f32.mrb[0].mxu0
      %2406 = vmatprep.mubr.bf16.mxu0 0
      %2407 = vmatmul.mubr.bf16.gmra.mrb[0].mxu0 %v390
      %v2408 = vpop.f32.mrb[0].mxu0
      %v2409 = vadd.f32 0.0, %v2408
      %v2410 = vpop.f32.mrb[0].mxu0
      %v2411 = vpop.f32.mrb[0].mxu0
      %v2412 = vadd.f32 0.0, %v2411
      %v2413 = vpop.f32.mrb[0].mxu0
      %2414 = vmatprep.mubr.bf16.mxu0 0
      %2415 = vmatmul.mubr.bf16.gmra.mrb[0].mxu0 %v391
      %v2416 = vpop.f32.mrb[0].mxu0
      %v2417 = vadd.f32 0.0, %v2416
      %v2418 = vpop.f32.mrb[0].mxu0
      %v2419 = vpop.f32.mrb[0].mxu0
      %v2420 = vadd.f32 0.0, %v2419
      %v2421 = vpop.f32.mrb[0].mxu0
      %2422 = vmatprep.mubr.bf16.mxu0 0
      %2423 = vmatmul.mubr.bf16.gmra.mrb[0].mxu0 %v392
      %v2424 = vpop.f32.mrb[0].mxu0
      %v2425 = vadd.f32 0.0, %v2424
      %v2426 = vpop.f32.mrb[0].mxu0
      %v2427 = vpop.f32.mrb[0].mxu0
      %v2428 = vadd.f32 0.0, %v2427
      %v2429 = vpop.f32.mrb[0].mxu0
      %2430 = vmatprep.mubr.bf16.mxu0 0
      %2431 = vmatmul.mubr.bf16.gmra.mrb[0].mxu0 %v393
      %v2432 = vpop.f32.mrb[0].mxu0
      %v2433 = vadd.f32 0.0, %v2432
      %v2434 = vpop.f32.mrb[0].mxu0
      %v2435 = vpop.f32.mrb[0].mxu0
      %v2436 = vadd.f32 0.0, %v2435
      %v2437 = vpop.f32.mrb[0].mxu0
      %2438 = vmatprep.mubr.bf16.mxu0 0
      %2439 = vmatmul.mubr.bf16.gmra.mrb[0].mxu0 %v394
      %v2440 = vpop.f32.mrb[0].mxu0
      %v2441 = vadd.f32 0.0, %v2440
      %v2442 = vpop.f32.mrb[0].mxu0
      %v2443 = vpop.f32.mrb[0].mxu0
      %v2444 = vadd.f32 0.0, %v2443
      %v2445 = vpop.f32.mrb[0].mxu0
      %2446 = vmatprep.mubr.bf16.mxu0 0
      %2447 = vmatmul.mubr.bf16.gmra.mrb[0].mxu0 %v395
      %v2448 = vpop.f32.mrb[0].mxu0
      %v2449 = vadd.f32 0.0, %v2448
      %v2450 = vpop.f32.mrb[0].mxu0
      %v2451 = vpop.f32.mrb[0].mxu0
      %v2452 = vadd.f32 0.0, %v2451
      %v2453 = vpop.f32.mrb[0].mxu0
      %2454 = vmatprep.mubr.bf16.mxu0 0
      %2455 = vmatmul.mubr.bf16.gmra.mrb[0].mxu0 %v396
      %v2456 = vpop.f32.mrb[0].mxu0
      %v2457 = vadd.f32 0.0, %v2456
      %v2458 = vpop.f32.mrb[0].mxu0
      %v2459 = vpop.f32.mrb[0].mxu0
      %v2460 = vadd.f32 0.0, %v2459
      %v2461 = vpop.f32.mrb[0].mxu0
      %2462 = vmatprep.mubr.bf16.mxu0 0
      %2463 = vmatmul.mubr.bf16.gmra.mrb[0].mxu0 %v397
      %v2464 = vpop.f32.mrb[0].mxu0
      %v2465 = vadd.f32 0.0, %v2464
      %v2466 = vpop.f32.mrb[0].mxu0
      %v2467 = vpop.f32.mrb[0].mxu0
      %v2468 = vadd.f32 0.0, %v2467
      %v2469 = vpop.f32.mrb[0].mxu0
      %2470 = vmatprep.mubr.bf16.mxu0 0
      %2471 = vmatmul.mubr.bf16.gmra.mrb[0].mxu0 %v398
      %v2472 = vpop.f32.mrb[0].mxu0
      %v2473 = vadd.f32 0.0, %v2472
      %v2474 = vpop.f32.mrb[0].mxu0
      %v2475 = vpop.f32.mrb[0].mxu0
      %v2476 = vadd.f32 0.0, %v2475
      %v2477 = vpop.f32.mrb[0].mxu0
      %2478 = vmatprep.mubr.bf16.mxu0 0
      %2479 = vmatmul.mubr.bf16.gmra.mrb[0].mxu0 %v399
      %v2480 = vpop.f32.mrb[0].mxu0
      %v2481 = vadd.f32 0.0, %v2480
      %v2482 = vpop.f32.mrb[0].mxu0
      %v2483 = vpop.f32.mrb[0].mxu0
      %v2484 = vadd.f32 0.0, %v2483
      %v2485 = vpop.f32.mrb[0].mxu0
      %2486 = vmatprep.mubr.bf16.mxu0 0
      %2487 = vmatmul.mubr.bf16.gmra.mrb[0].mxu0 %v400
      %v2488 = vpop.f32.mrb[0].mxu0
      %v2489 = vadd.f32 0.0, %v2488
      %v2490 = vpop.f32.mrb[0].mxu0
      %v2491 = vpop.f32.mrb[0].mxu0
      %v2492 = vadd.f32 0.0, %v2491
      %v2493 = vpop.f32.mrb[0].mxu0
      %2494 = vmatprep.mubr.bf16.mxu0 0
      %2495 = vmatmul.mubr.bf16.gmra.mrb[0].mxu0 %v401
      %v2496 = vpop.f32.mrb[0].mxu0
      %v2497 = vadd.f32 0.0, %v2496
      %v2498 = vpop.f32.mrb[0].mxu0
      %v2499 = vpop.f32.mrb[0].mxu0
      %v2500 = vadd.f32 0.0, %v2499
      %v2501 = vpop.f32.mrb[0].mxu0
      %2502 = vmatprep.mubr.bf16.mxu0 0
      %2503 = vmatmul.mubr.bf16.gmra.mrb[0].mxu0 %v402
      %v2504 = vpop.f32.mrb[0].mxu0
      %v2505 = vadd.f32 0.0, %v2504
      %v2506 = vpop.f32.mrb[0].mxu0
      %v2507 = vpop.f32.mrb[0].mxu0
      %v2508 = vadd.f32 0.0, %v2507
      %v2509 = vpop.f32.mrb[0].mxu0
      %2510 = vmatprep.mubr.bf16.mxu0 0
      %2511 = vmatmul.mubr.bf16.gmra.mrb[0].mxu0 %v403
      %v2512 = vpop.f32.mrb[0].mxu0
      %v2513 = vadd.f32 0.0, %v2512
      %v2514 = vpop.f32.mrb[0].mxu0
      %v2515 = vpop.f32.mrb[0].mxu0
      %v2516 = vadd.f32 0.0, %v2515
      %v2517 = vpop.f32.mrb[0].mxu0
      %2518 = vmatprep.mubr.bf16.mxu0 0
      %2519 = vmatmul.mubr.bf16.gmra.mrb[0].mxu0 %v404
      %v2520 = vpop.f32.mrb[0].mxu0
      %v2521 = vadd.f32 0.0, %v2520
      %v2522 = vpop.f32.mrb[0].mxu0
      %v2523 = vpop.f32.mrb[0].mxu0
      %v2524 = vadd.f32 0.0, %v2523
      %v2525 = vpop.f32.mrb[0].mxu0
      %2526 = vmatprep.mubr.bf16.mxu0 0
      %2527 = vmatmul.mubr.bf16.gmra.mrb[0].mxu0 %v405
      %v2528 = vpop.f32.mrb[0].mxu0
      %v2529 = vadd.f32 0.0, %v2528
      %v2530 = vpop.f32.mrb[0].mxu0
      %v2531 = vpop.f32.mrb[0].mxu0
      %v2532 = vadd.f32 0.0, %v2531
      %v2533 = vpop.f32.mrb[0].mxu0
      %2534 = vmatprep.mubr.bf16.mxu0 0
      %2535 = vmatmul.mubr.bf16.gmra.mrb[0].mxu0 %v406
      %v2536 = vpop.f32.mrb[0].mxu0
      %v2537 = vadd.f32 0.0, %v2536
      %v2538 = vpop.f32.mrb[0].mxu0
      %v2539 = vpop.f32.mrb[0].mxu0
      %v2540 = vadd.f32 0.0, %v2539
      %v2541 = vpop.f32.mrb[0].mxu0
      %2542 = vmatprep.mubr.bf16.mxu0 0
      %2543 = vmatmul.mubr.bf16.gmra.mrb[0].mxu0 %v407
      %v2544 = vpop.f32.mrb[0].mxu0
      %v2545 = vadd.f32 0.0, %v2544
      %v2546 = vpop.f32.mrb[0].mxu0
      %v2547 = vpop.f32.mrb[0].mxu0
      %v2548 = vadd.f32 0.0, %v2547
      %v2549 = vpop.f32.mrb[0].mxu0
      %2550 = vmatprep.mubr.bf16.mxu0 0
      %2551 = vmatmul.mubr.bf16.gmra.mrb[0].mxu0 %v408
      %v2552 = vpop.f32.mrb[0].mxu0
      %v2553 = vadd.f32 0.0, %v2552
      %v2554 = vpop.f32.mrb[0].mxu0
      %v2555 = vpop.f32.mrb[0].mxu0
      %v2556 = vadd.f32 0.0, %v2555
      %v2557 = vpop.f32.mrb[0].mxu0
      %2558 = vmatprep.mubr.bf16.mxu0 0
      %2559 = vmatmul.mubr.bf16.gmra.mrb[0].mxu0 %v409
      %v2560 = vpop.f32.mrb[0].mxu0
      %v2561 = vadd.f32 0.0, %v2560
      %v2562 = vpop.f32.mrb[0].mxu0
      %v2563 = vpop.f32.mrb[0].mxu0
      %v2564 = vadd.f32 0.0, %v2563
      %v2565 = vpop.f32.mrb[0].mxu0
      %2566 = vmatprep.mubr.bf16.mxu0 0
      %2567 = vmatmul.mubr.bf16.gmra.mrb[0].mxu0 %v410
      %v2568 = vpop.f32.mrb[0].mxu0
      %v2569 = vadd.f32 0.0, %v2568
      %v2570 = vpop.f32.mrb[0].mxu0
      %v2571 = vpop.f32.mrb[0].mxu0
      %v2572 = vadd.f32 0.0, %v2571
      %v2573 = vpop.f32.mrb[0].mxu0
      %2574 = vmatprep.mubr.bf16.mxu0 0
      %2575 = vmatmul.mubr.bf16.gmra.mrb[0].mxu0 %v411
      %v2576 = vpop.f32.mrb[0].mxu0
      %v2577 = vadd.f32 0.0, %v2576
      %v2578 = vpop.f32.mrb[0].mxu0
      %v2579 = vpop.f32.mrb[0].mxu0
      %v2580 = vadd.f32 0.0, %v2579
      %v2581 = vpop.f32.mrb[0].mxu0
      %2582 = vmatprep.mubr.bf16.mxu0 0
      %2583 = vmatmul.mubr.bf16.gmra.mrb[0].mxu0 %v412
      %v2584 = vpop.f32.mrb[0].mxu0
      %v2585 = vadd.f32 0.0, %v2584
      %v2586 = vpop.f32.mrb[0].mxu0
      %v2587 = vpop.f32.mrb[0].mxu0
      %v2588 = vadd.f32 0.0, %v2587
      %v2589 = vpop.f32.mrb[0].mxu0
      %2590 = vmatprep.mubr.bf16.mxu0 0
      %2591 = vmatmul.mubr.bf16.gmra.mrb[0].mxu0 %v413
      %v2592 = vpop.f32.mrb[0].mxu0
      %v2593 = vadd.f32 0.0, %v2592
      %v2594 = vpop.f32.mrb[0].mxu0
      %v2595 = vpop.f32.mrb[0].mxu0
      %v2596 = vadd.f32 0.0, %v2595
      %v2597 = vpop.f32.mrb[0].mxu0
      %2598 = vmatprep.mubr.bf16.mxu0 0
      %2599 = vmatmul.mubr.bf16.gmra.mrb[0].mxu0 %v414
      %v2600 = vpop.f32.mrb[0].mxu0
      %v2601 = vadd.f32 0.0, %v2600
      %v2602 = vpop.f32.mrb[0].mxu0
      %v2603 = vpop.f32.mrb[0].mxu0
      %v2604 = vadd.f32 0.0, %v2603
      %v2605 = vpop.f32.mrb[0].mxu0
      %2606 = vmatprep.mubr.bf16.mxu0 0
      %2607 = vmatmul.mubr.bf16.gmra.mrb[0].mxu0 0
      %v2608 = vpop.f32.mrb[0].mxu0
      %v2609 = vadd.f32 0.0, %v2608
      %v2610 = vpop.f32.mrb[0].mxu0
      %v2611 = vpop.f32.mrb[0].mxu0
      %v2612 = vadd.f32 0.0, %v2611
      %v2613 = vpop.f32.mrb[0].mxu0
      %2614 = vmatprep.mubr.bf16.mxu0 0
      %2615 = vmatmul.mubr.bf16.gmra.mrb[0].mxu0 0
      %v2616 = vpop.f32.mrb[0].mxu0
      %v2617 = vadd.f32 0.0, %v2616
      %v2618 = vpop.f32.mrb[0].mxu0
      %v2619 = vpop.f32.mrb[0].mxu0
      %v2620 = vadd.f32 0.0, %v2619
      %v2621 = vpop.f32.mrb[0].mxu0
      %2622 = vdwg.mxu0
      %v2623 = vadd.f32 %v2015, %v2369
      %v2624 = vadd.f32 %v2018, %v2372
      %v2625 = vadd.f32 %v2023, %v2377
      %v2626 = vadd.f32 %v2026, %v2380
      %v2627 = vadd.f32 %v2031, %v2385
      %v2628 = vadd.f32 %v2034, %v2388
      %v2629 = vadd.f32 %v2039, %v2393
      %v2630 = vadd.f32 %v2042, %v2396
      %v2631 = vadd.f32 %v2047, %v2401
      %v2632 = vadd.f32 %v2050, %v2404
      %v2633 = vadd.f32 %v2055, %v2409
      %v2634 = vadd.f32 %v2058, %v2412
      %v2635 = vadd.f32 %v2063, %v2417
      %v2636 = vadd.f32 %v2066, %v2420
      %v2637 = vadd.f32 %v2071, %v2425
      %v2638 = vadd.f32 %v2074, %v2428
      %v2639 = vadd.f32 %v2079, %v2433
      %v2640 = vadd.f32 %v2082, %v2436
      %v2641 = vadd.f32 %v2087, %v2441
      %v2642 = vadd.f32 %v2090, %v2444
      %v2643 = vadd.f32 %v2095, %v2449
      %v2644 = vadd.f32 %v2098, %v2452
      %v2645 = vadd.f32 %v2103, %v2457
      %v2646 = vadd.f32 %v2106, %v2460
      %v2647 = vadd.f32 %v2111, %v2465
      %v2648 = vadd.f32 %v2114, %v2468
      %v2649 = vadd.f32 %v2119, %v2473
      %v2650 = vadd.f32 %v2122, %v2476
      %v2651 = vadd.f32 %v2127, %v2481
      %v2652 = vadd.f32 %v2130, %v2484
      %v2653 = vadd.f32 %v2135, %v2489
      %v2654 = vadd.f32 %v2138, %v2492
      %v2655 = vadd.f32 %v2143, %v2497
      %v2656 = vadd.f32 %v2146, %v2500
      %v2657 = vadd.f32 %v2151, %v2505
      %v2658 = vadd.f32 %v2154, %v2508
      %v2659 = vadd.f32 %v2159, %v2513
      %v2660 = vadd.f32 %v2162, %v2516
      %v2661 = vadd.f32 %v2167, %v2521
      %v2662 = vadd.f32 %v2170, %v2524
      %v2663 = vadd.f32 %v2175, %v2529
      %v2664 = vadd.f32 %v2178, %v2532
      %v2665 = vadd.f32 %v2183, %v2537
      %v2666 = vadd.f32 %v2186, %v2540
      %v2667 = vadd.f32 %v2191, %v2545
      %v2668 = vadd.f32 %v2194, %v2548
      %v2669 = vadd.f32 %v2199, %v2553
      %v2670 = vadd.f32 %v2202, %v2556
      %v2671 = vadd.f32 %v2207, %v2561
      %v2672 = vadd.f32 %v2210, %v2564
      %v2673 = vadd.f32 %v2215, %v2569
      %v2674 = vadd.f32 %v2218, %v2572
      %v2675 = vadd.f32 %v2223, %v2577
      %v2676 = vadd.f32 %v2226, %v2580
      %v2677 = vadd.f32 %v2231, %v2585
      %v2678 = vadd.f32 %v2234, %v2588
      %v2679 = vadd.f32 %v2239, %v2593
      %v2680 = vadd.f32 %v2242, %v2596
      %v2681 = vadd.f32 %v2247, %v2601
      %v2682 = vadd.f32 %v2250, %v2604
      %v2683 = vadd.f32 %v2255, %v2609
      %v2684 = vadd.f32 %v2258, %v2612
      %v2685 = vadd.f32 %v2263, %v2617
      %v2686 = vadd.f32 %v2266, %v2620
      %vm2751 = vcmask 1046528
      %v2752 = vrot.slane %v2623, 1
      %v2753 = vrot.slane %v2624, 1
      %v2754 = vsel %vm2751, %v2752, %v2753
      %v2755 = vrot.slane %v2625, 1
      %v2756 = vsel %vm2751, %v2753, %v2755
      %v2757 = vrot.slane %v2626, 1
      %v2758 = vsel %vm2751, %v2755, %v2757
      %v2759 = vrot.slane %v2627, 1
      %v2760 = vsel %vm2751, %v2757, %v2759
      %v2761 = vrot.slane %v2628, 1
      %v2762 = vsel %vm2751, %v2759, %v2761
      %v2763 = vrot.slane %v2629, 1
      %v2764 = vsel %vm2751, %v2761, %v2763
      %v2765 = vrot.slane %v2630, 1
      %v2766 = vsel %vm2751, %v2763, %v2765
      %v2767 = vrot.slane %v2631, 1
      %v2768 = vsel %vm2751, %v2765, %v2767
      %v2769 = vrot.slane %v2632, 1
      %v2770 = vsel %vm2751, %v2767, %v2769
      %v2771 = vrot.slane %v2633, 1
      %v2772 = vsel %vm2751, %v2769, %v2771
      %v2773 = vrot.slane %v2634, 1
      %v2774 = vsel %vm2751, %v2771, %v2773
      %v2775 = vrot.slane %v2635, 1
      %v2776 = vsel %vm2751, %v2773, %v2775
      %v2777 = vrot.slane %v2636, 1
      %v2778 = vsel %vm2751, %v2775, %v2777
      %v2779 = vrot.slane %v2637, 1
      %v2780 = vsel %vm2751, %v2777, %v2779
      %v2781 = vrot.slane %v2638, 1
      %v2782 = vsel %vm2751, %v2779, %v2781
      %v2783 = vrot.slane %v2639, 1
      %v2784 = vsel %vm2751, %v2781, %v2783
      %v2785 = vrot.slane %v2640, 1
      %v2786 = vsel %vm2751, %v2783, %v2785
      %v2787 = vrot.slane %v2641, 1
      %v2788 = vsel %vm2751, %v2785, %v2787
      %v2789 = vrot.slane %v2642, 1
      %v2790 = vsel %vm2751, %v2787, %v2789
      %v2791 = vrot.slane %v2643, 1
      %v2792 = vsel %vm2751, %v2789, %v2791
      %v2793 = vrot.slane %v2644, 1
      %v2794 = vsel %vm2751, %v2791, %v2793
      %v2795 = vrot.slane %v2645, 1
      %v2796 = vsel %vm2751, %v2793, %v2795
      %v2797 = vrot.slane %v2646, 1
      %v2798 = vsel %vm2751, %v2795, %v2797
      %v2799 = vrot.slane %v2647, 1
      %v2800 = vsel %vm2751, %v2797, %v2799
      %v2801 = vrot.slane %v2648, 1
      %v2802 = vsel %vm2751, %v2799, %v2801
      %v2803 = vrot.slane %v2649, 1
      %v2804 = vsel %vm2751, %v2801, %v2803
      %v2805 = vrot.slane %v2650, 1
      %v2806 = vsel %vm2751, %v2803, %v2805
      %v2807 = vrot.slane %v2651, 1
      %v2808 = vsel %vm2751, %v2805, %v2807
      %v2809 = vrot.slane %v2652, 1
      %v2810 = vsel %vm2751, %v2807, %v2809
      %v2811 = vrot.slane %v2653, 1
      %v2812 = vsel %vm2751, %v2809, %v2811
      %v2813 = vrot.slane %v2654, 1
      %v2814 = vsel %vm2751, %v2811, %v2813
      %v2815 = vrot.slane %v2655, 1
      %v2816 = vsel %vm2751, %v2813, %v2815
      %v2817 = vrot.slane %v2656, 1
      %v2818 = vsel %vm2751, %v2815, %v2817
      %v2819 = vrot.slane %v2657, 1
      %v2820 = vsel %vm2751, %v2817, %v2819
      %v2821 = vrot.slane %v2658, 1
      %v2822 = vsel %vm2751, %v2819, %v2821
      %v2823 = vrot.slane %v2659, 1
      %v2824 = vsel %vm2751, %v2821, %v2823
      %v2825 = vrot.slane %v2660, 1
      %v2826 = vsel %vm2751, %v2823, %v2825
      %v2827 = vrot.slane %v2661, 1
      %v2828 = vsel %vm2751, %v2825, %v2827
      %v2829 = vrot.slane %v2662, 1
      %v2830 = vsel %vm2751, %v2827, %v2829
      %v2831 = vrot.slane %v2663, 1
      %v2832 = vsel %vm2751, %v2829, %v2831
      %v2833 = vrot.slane %v2664, 1
      %v2834 = vsel %vm2751, %v2831, %v2833
      %v2835 = vrot.slane %v2665, 1
      %v2836 = vsel %vm2751, %v2833, %v2835
      %v2837 = vrot.slane %v2666, 1
      %v2838 = vsel %vm2751, %v2835, %v2837
      %v2839 = vrot.slane %v2667, 1
      %v2840 = vsel %vm2751, %v2837, %v2839
      %v2841 = vrot.slane %v2668, 1
      %v2842 = vsel %vm2751, %v2839, %v2841
      %v2843 = vrot.slane %v2669, 1
      %v2844 = vsel %vm2751, %v2841, %v2843
      %v2845 = vrot.slane %v2670, 1
      %v2846 = vsel %vm2751, %v2843, %v2845
      %v2847 = vrot.slane %v2671, 1
      %v2848 = vsel %vm2751, %v2845, %v2847
      %v2849 = vrot.slane %v2672, 1
      %v2850 = vsel %vm2751, %v2847, %v2849
      %v2851 = vrot.slane %v2673, 1
      %v2852 = vsel %vm2751, %v2849, %v2851
      %v2853 = vrot.slane %v2674, 1
      %v2854 = vsel %vm2751, %v2851, %v2853
      %v2855 = vrot.slane %v2675, 1
      %v2856 = vsel %vm2751, %v2853, %v2855
      %v2857 = vrot.slane %v2676, 1
      %v2858 = vsel %vm2751, %v2855, %v2857
      %v2859 = vrot.slane %v2677, 1
      %v2860 = vsel %vm2751, %v2857, %v2859
      %v2861 = vrot.slane %v2678, 1
      %v2862 = vsel %vm2751, %v2859, %v2861
      %v2863 = vrot.slane %v2679, 1
      %v2864 = vsel %vm2751, %v2861, %v2863
      %v2865 = vrot.slane %v2680, 1
      %v2866 = vsel %vm2751, %v2863, %v2865
      %v2867 = vrot.slane %v2681, 1
      %v2868 = vsel %vm2751, %v2865, %v2867
      %v2869 = vrot.slane %v2682, 1
      %v2870 = vsel %vm2751, %v2867, %v2869
      %v2871 = vrot.slane %v2683, 1
      %v2872 = vsel %vm2751, %v2869, %v2871
      %v2873 = vrot.slane %v2684, 1
      %v2874 = vsel %vm2751, %v2871, %v2873
      %v2875 = vrot.slane %v2685, 1
      %v2876 = vsel %vm2751, %v2873, %v2875
      %v2877 = vrot.slane %v2686, 1
      %v2878 = vsel %vm2751, %v2875, %v2877
      %v2943 = vsel %vm2751, %v2877, 0.0
      %v2944 = vadd.f32 %v1497, %v2754
      %v2945 = vadd.f32 %v1498, %v2756
      %v2946 = vadd.f32 %v1499, %v2758
      %v2947 = vadd.f32 %v1500, %v2760
      %v2948 = vadd.f32 %v1501, %v2762
      %v2949 = vadd.f32 %v1502, %v2764
      %v2950 = vadd.f32 %v1503, %v2766
      %v2951 = vadd.f32 %v1504, %v2768
      %v2952 = vadd.f32 %v1505, %v2770
      %v2953 = vadd.f32 %v1506, %v2772
      %v2954 = vadd.f32 %v1507, %v2774
      %v2955 = vadd.f32 %v1508, %v2776
      %v2956 = vadd.f32 %v1509, %v2778
      %v2957 = vadd.f32 %v1510, %v2780
      %v2958 = vadd.f32 %v1511, %v2782
      %v2959 = vadd.f32 %v1512, %v2784
      %v2960 = vadd.f32 %v1513, %v2786
      %v2961 = vadd.f32 %v1514, %v2788
      %v2962 = vadd.f32 %v1515, %v2790
      %v2963 = vadd.f32 %v1516, %v2792
      %v2964 = vadd.f32 %v1517, %v2794
      %v2965 = vadd.f32 %v1518, %v2796
      %v2966 = vadd.f32 %v1519, %v2798
      %v2967 = vadd.f32 %v1520, %v2800
      %v2968 = vadd.f32 %v1521, %v2802
      %v2969 = vadd.f32 %v1522, %v2804
      %v2970 = vadd.f32 %v1523, %v2806
      %v2971 = vadd.f32 %v1524, %v2808
      %v2972 = vadd.f32 %v1525, %v2810
      %v2973 = vadd.f32 %v1526, %v2812
      %v2974 = vadd.f32 %v1527, %v2814
      %v2975 = vadd.f32 %v1528, %v2816
      %v2976 = vadd.f32 %v1529, %v2818
      %v2977 = vadd.f32 %v1530, %v2820
      %v2978 = vadd.f32 %v1531, %v2822
      %v2979 = vadd.f32 %v1532, %v2824
      %v2980 = vadd.f32 %v1533, %v2826
      %v2981 = vadd.f32 %v1534, %v2828
      %v2982 = vadd.f32 %v1535, %v2830
      %v2983 = vadd.f32 %v1536, %v2832
      %v2984 = vadd.f32 %v1537, %v2834
      %v2985 = vadd.f32 %v1538, %v2836
      %v2986 = vadd.f32 %v1539, %v2838
      %v2987 = vadd.f32 %v1540, %v2840
      %v2988 = vadd.f32 %v1541, %v2842
      %v2989 = vadd.f32 %v1542, %v2844
      %v2990 = vadd.f32 %v1543, %v2846
      %v2991 = vadd.f32 %v1544, %v2848
      %v2992 = vadd.f32 %v1545, %v2850
      %v2993 = vadd.f32 %v1546, %v2852
      %v2994 = vadd.f32 %v1547, %v2854
      %v2995 = vadd.f32 %v1548, %v2856
      %v2996 = vadd.f32 %v1549, %v2858
      %v2997 = vadd.f32 %v1550, %v2860
      %v2998 = vadd.f32 %v1551, %v2862
      %v2999 = vadd.f32 %v1552, %v2864
      %v3000 = vadd.f32 %v1553, %v2866
      %v3001 = vadd.f32 %v1554, %v2868
      %v3002 = vadd.f32 %v1555, %v2870
      %v3003 = vadd.f32 %v1556, %v2872
      %v3004 = vadd.f32 %v1557, %v2874
      %v3005 = vadd.f32 %v1558, %v2876
      %v3006 = vadd.f32 %v1559, %v2878
      %v3007 = vadd.f32 %v1560, %v2943
      %s3008 = scalar_lea.vmem %s1, 128
      %v3009 = vld [vmem:[%s3008] sm:$0xf]
      %v3010 = vld [vmem:[%s3008 + $0x4] sm:$0xf]
      %v3011 = vld [vmem:[%s3008 + $0x8] sm:$0xf]
      %v3012 = vld [vmem:[%s3008 + $0xc] sm:$0xf]
      %v3013 = vld [vmem:[%s3008 + $0x10] sm:$0xf]
      %v3014 = vld [vmem:[%s3008 + $0x14] sm:$0xf]
      %v3015 = vld [vmem:[%s3008 + $0x18] sm:$0xf]
      %v3016 = vld [vmem:[%s3008 + $0x1c] sm:$0xf]
      %v3017 = vld [vmem:[%s3008 + $0x20] sm:$0xf]
      %v3018 = vld [vmem:[%s3008 + $0x24] sm:$0xf]
      %v3019 = vld [vmem:[%s3008 + $0x28] sm:$0xf]
      %v3020 = vld [vmem:[%s3008 + $0x2c] sm:$0xf]
      %v3021 = vld [vmem:[%s3008 + $0x30] sm:$0xf]
      %v3022 = vld [vmem:[%s3008 + $0x34] sm:$0xf]
      %v3023 = vld [vmem:[%s3008 + $0x38] sm:$0xf]
      %v3024 = vld [vmem:[%s3008 + $0x3c] sm:$0xf]
      %s3025 = scalar_lea.vmem %s1, 320
      %v3026 = vld [vmem:[%s3025] sm:$0xf]
      %v3027 = vld [vmem:[%s3025 + $0x4] sm:$0xf]
      %v3028 = vld [vmem:[%s3025 + $0x8] sm:$0xf]
      %v3029 = vld [vmem:[%s3025 + $0xc] sm:$0xf]
      %v3030 = vld [vmem:[%s3025 + $0x10] sm:$0xf]
      %v3031 = vld [vmem:[%s3025 + $0x14] sm:$0xf]
      %v3032 = vld [vmem:[%s3025 + $0x18] sm:$0xf]
      %v3033 = vld [vmem:[%s3025 + $0x1c] sm:$0xf]
      %v3034 = vld [vmem:[%s3025 + $0x20] sm:$0xf]
      %v3035 = vld [vmem:[%s3025 + $0x24] sm:$0xf]
      %v3036 = vld [vmem:[%s3025 + $0x28] sm:$0xf]
      %v3037 = vld [vmem:[%s3025 + $0x2c] sm:$0xf]
      %v3038 = vld [vmem:[%s3025 + $0x30] sm:$0xf]
      %v3039 = vld [vmem:[%s3025 + $0x34] sm:$0xf]
      %v3040 = vld [vmem:[%s3025 + $0x38] sm:$0xf]
      %v3041 = vld [vmem:[%s3025 + $0x3c] sm:$0xf]
      %v3058 = vunpack.c.l.b16 %v3026
      %v3059 = vunpack.c.l.b16 %v3027
      %v3060 = vunpack.c.l.b16 %v3028
      %v3061 = vunpack.c.l.b16 %v3029
      %v3062 = vunpack.c.l.b16 %v3030
      %v3063 = vunpack.c.l.b16 %v3031
      %v3064 = vunpack.c.l.b16 %v3032
      %v3065 = vunpack.c.l.b16 %v3033
      %v3066 = vunpack.c.l.b16 %v3034
      %v3067 = vunpack.c.l.b16 %v3035
      %v3068 = vunpack.c.l.b16 %v3036
      %v3069 = vunpack.c.l.b16 %v3037
      %v3070 = vunpack.c.l.b16 %v3038
      %v3071 = vunpack.c.l.b16 %v3039
      %v3072 = vunpack.c.l.b16 %v3040
      %v3073 = vunpack.c.l.b16 %v3041
      %v3074 = vpack.c.b16 %v3059, %v3058
      %v3075 = vpack.c.b16 %v3061, %v3060
      %v3076 = vpack.c.b16 %v3063, %v3062
      %v3077 = vpack.c.b16 %v3065, %v3064
      %v3078 = vpack.c.b16 %v3067, %v3066
      %v3079 = vpack.c.b16 %v3069, %v3068
      %v3080 = vpack.c.b16 %v3071, %v3070
      %v3081 = vpack.c.b16 %v3073, %v3072
      %3090 = vmatprep.subr.bf16.mxu0 0
      %3091 = vmatpush1.bf16.msra.mxu0 %v3074
      %3092 = vmatprep.subr.bf16.mxu0 0
      %3093 = vmatpush1.bf16.msra.mxu0 %v3075
      %3094 = vmatprep.subr.bf16.mxu0 0
      %3095 = vmatpush1.bf16.msra.mxu0 %v3076
      %3096 = vmatprep.subr.bf16.mxu0 0
      %3097 = vmatpush1.bf16.msra.mxu0 %v3077
      %3098 = vmatprep.subr.bf16.mxu0 0
      %3099 = vmatpush1.bf16.msra.mxu0 %v3078
      %3100 = vmatprep.subr.bf16.mxu0 0
      %3101 = vmatpush1.bf16.msra.mxu0 %v3079
      %3102 = vmatprep.subr.bf16.mxu0 0
      %3103 = vmatpush1.bf16.msra.mxu0 %v3080
      %3104 = vmatprep.subr.bf16.mxu0 0
      %3105 = vmatpush1.bf16.msra.mxu0 %v3081
      %3106 = vmatprep.subr.bf16.mxu0 0
      %3107 = vmatpush1.bf16.msra.mxu0 0
      %3108 = vmatprep.subr.bf16.mxu0 0
      %3109 = vmatpush1.bf16.msra.mxu0 0
      %3110 = vmatprep.subr.bf16.mxu0 0
      %3111 = vmatpush1.bf16.msra.mxu0 0
      %3112 = vmatprep.subr.bf16.mxu0 0
      %3113 = vmatpush1.bf16.msra.mxu0 0
      %3114 = vmatprep.subr.bf16.mxu0 0
      %3115 = vmatpush1.bf16.msra.mxu0 0
      %3116 = vmatprep.subr.bf16.mxu0 0
      %3117 = vmatpush1.bf16.msra.mxu0 0
      %3118 = vmatprep.subr.bf16.mxu0 0
      %3119 = vmatpush1.bf16.msra.mxu0 0
      %3120 = vmatprep.subr.bf16.mxu0 0
      %3121 = vmatpush1.bf16.msra.mxu0 0
      %3122 = vmatprep.mubr.bf16.mxu0 0
      %3123 = vmatmul.mubr.bf16.gmra.mrb[0].mxu0 %v384
      %v3124 = vpop.f32.mrb[0].mxu0
      %v3125 = vadd.f32 0.0, %v3124
      %v3126 = vpop.f32.mrb[0].mxu0
      %v3127 = vpop.f32.mrb[0].mxu0
      %v3128 = vadd.f32 0.0, %v3127
      %v3129 = vpop.f32.mrb[0].mxu0
      %3130 = vmatprep.mubr.bf16.mxu0 0
      %3131 = vmatmul.mubr.bf16.gmra.mrb[0].mxu0 %v385
      %v3132 = vpop.f32.mrb[0].mxu0
      %v3133 = vadd.f32 0.0, %v3132
      %v3134 = vpop.f32.mrb[0].mxu0
      %v3135 = vpop.f32.mrb[0].mxu0
      %v3136 = vadd.f32 0.0, %v3135
      %v3137 = vpop.f32.mrb[0].mxu0
      %3138 = vmatprep.mubr.bf16.mxu0 0
      %3139 = vmatmul.mubr.bf16.gmra.mrb[0].mxu0 %v386
      %v3140 = vpop.f32.mrb[0].mxu0
      %v3141 = vadd.f32 0.0, %v3140
      %v3142 = vpop.f32.mrb[0].mxu0
      %v3143 = vpop.f32.mrb[0].mxu0
      %v3144 = vadd.f32 0.0, %v3143
      %v3145 = vpop.f32.mrb[0].mxu0
      %3146 = vmatprep.mubr.bf16.mxu0 0
      %3147 = vmatmul.mubr.bf16.gmra.mrb[0].mxu0 %v387
      %v3148 = vpop.f32.mrb[0].mxu0
      %v3149 = vadd.f32 0.0, %v3148
      %v3150 = vpop.f32.mrb[0].mxu0
      %v3151 = vpop.f32.mrb[0].mxu0
      %v3152 = vadd.f32 0.0, %v3151
      %v3153 = vpop.f32.mrb[0].mxu0
      %3154 = vmatprep.mubr.bf16.mxu0 0
      %3155 = vmatmul.mubr.bf16.gmra.mrb[0].mxu0 %v388
      %v3156 = vpop.f32.mrb[0].mxu0
      %v3157 = vadd.f32 0.0, %v3156
      %v3158 = vpop.f32.mrb[0].mxu0
      %v3159 = vpop.f32.mrb[0].mxu0
      %v3160 = vadd.f32 0.0, %v3159
      %v3161 = vpop.f32.mrb[0].mxu0
      %3162 = vmatprep.mubr.bf16.mxu0 0
      %3163 = vmatmul.mubr.bf16.gmra.mrb[0].mxu0 %v389
      %v3164 = vpop.f32.mrb[0].mxu0
      %v3165 = vadd.f32 0.0, %v3164
      %v3166 = vpop.f32.mrb[0].mxu0
      %v3167 = vpop.f32.mrb[0].mxu0
      %v3168 = vadd.f32 0.0, %v3167
      %v3169 = vpop.f32.mrb[0].mxu0
      %3170 = vmatprep.mubr.bf16.mxu0 0
      %3171 = vmatmul.mubr.bf16.gmra.mrb[0].mxu0 %v390
      %v3172 = vpop.f32.mrb[0].mxu0
      %v3173 = vadd.f32 0.0, %v3172
      %v3174 = vpop.f32.mrb[0].mxu0
      %v3175 = vpop.f32.mrb[0].mxu0
      %v3176 = vadd.f32 0.0, %v3175
      %v3177 = vpop.f32.mrb[0].mxu0
      %3178 = vmatprep.mubr.bf16.mxu0 0
      %3179 = vmatmul.mubr.bf16.gmra.mrb[0].mxu0 %v391
      %v3180 = vpop.f32.mrb[0].mxu0
      %v3181 = vadd.f32 0.0, %v3180
      %v3182 = vpop.f32.mrb[0].mxu0
      %v3183 = vpop.f32.mrb[0].mxu0
      %v3184 = vadd.f32 0.0, %v3183
      %v3185 = vpop.f32.mrb[0].mxu0
      %3186 = vmatprep.mubr.bf16.mxu0 0
      %3187 = vmatmul.mubr.bf16.gmra.mrb[0].mxu0 %v392
      %v3188 = vpop.f32.mrb[0].mxu0
      %v3189 = vadd.f32 0.0, %v3188
      %v3190 = vpop.f32.mrb[0].mxu0
      %v3191 = vpop.f32.mrb[0].mxu0
      %v3192 = vadd.f32 0.0, %v3191
      %v3193 = vpop.f32.mrb[0].mxu0
      %3194 = vmatprep.mubr.bf16.mxu0 0
      %3195 = vmatmul.mubr.bf16.gmra.mrb[0].mxu0 %v393
      %v3196 = vpop.f32.mrb[0].mxu0
      %v3197 = vadd.f32 0.0, %v3196
      %v3198 = vpop.f32.mrb[0].mxu0
      %v3199 = vpop.f32.mrb[0].mxu0
      %v3200 = vadd.f32 0.0, %v3199
      %v3201 = vpop.f32.mrb[0].mxu0
      %3202 = vmatprep.mubr.bf16.mxu0 0
      %3203 = vmatmul.mubr.bf16.gmra.mrb[0].mxu0 %v394
      %v3204 = vpop.f32.mrb[0].mxu0
      %v3205 = vadd.f32 0.0, %v3204
      %v3206 = vpop.f32.mrb[0].mxu0
      %v3207 = vpop.f32.mrb[0].mxu0
      %v3208 = vadd.f32 0.0, %v3207
      %v3209 = vpop.f32.mrb[0].mxu0
      %3210 = vmatprep.mubr.bf16.mxu0 0
      %3211 = vmatmul.mubr.bf16.gmra.mrb[0].mxu0 %v395
      %v3212 = vpop.f32.mrb[0].mxu0
      %v3213 = vadd.f32 0.0, %v3212
      %v3214 = vpop.f32.mrb[0].mxu0
      %v3215 = vpop.f32.mrb[0].mxu0
      %v3216 = vadd.f32 0.0, %v3215
      %v3217 = vpop.f32.mrb[0].mxu0
      %3218 = vmatprep.mubr.bf16.mxu0 0
      %3219 = vmatmul.mubr.bf16.gmra.mrb[0].mxu0 %v396
      %v3220 = vpop.f32.mrb[0].mxu0
      %v3221 = vadd.f32 0.0, %v3220
      %v3222 = vpop.f32.mrb[0].mxu0
      %v3223 = vpop.f32.mrb[0].mxu0
      %v3224 = vadd.f32 0.0, %v3223
      %v3225 = vpop.f32.mrb[0].mxu0
      %3226 = vmatprep.mubr.bf16.mxu0 0
      %3227 = vmatmul.mubr.bf16.gmra.mrb[0].mxu0 %v397
      %v3228 = vpop.f32.mrb[0].mxu0
      %v3229 = vadd.f32 0.0, %v3228
      %v3230 = vpop.f32.mrb[0].mxu0
      %v3231 = vpop.f32.mrb[0].mxu0
      %v3232 = vadd.f32 0.0, %v3231
      %v3233 = vpop.f32.mrb[0].mxu0
      %3234 = vmatprep.mubr.bf16.mxu0 0
      %3235 = vmatmul.mubr.bf16.gmra.mrb[0].mxu0 %v398
      %v3236 = vpop.f32.mrb[0].mxu0
      %v3237 = vadd.f32 0.0, %v3236
      %v3238 = vpop.f32.mrb[0].mxu0
      %v3239 = vpop.f32.mrb[0].mxu0
      %v3240 = vadd.f32 0.0, %v3239
      %v3241 = vpop.f32.mrb[0].mxu0
      %3242 = vmatprep.mubr.bf16.mxu0 0
      %3243 = vmatmul.mubr.bf16.gmra.mrb[0].mxu0 %v399
      %v3244 = vpop.f32.mrb[0].mxu0
      %v3245 = vadd.f32 0.0, %v3244
      %v3246 = vpop.f32.mrb[0].mxu0
      %v3247 = vpop.f32.mrb[0].mxu0
      %v3248 = vadd.f32 0.0, %v3247
      %v3249 = vpop.f32.mrb[0].mxu0
      %3250 = vmatprep.mubr.bf16.mxu0 0
      %3251 = vmatmul.mubr.bf16.gmra.mrb[0].mxu0 %v400
      %v3252 = vpop.f32.mrb[0].mxu0
      %v3253 = vadd.f32 0.0, %v3252
      %v3254 = vpop.f32.mrb[0].mxu0
      %v3255 = vpop.f32.mrb[0].mxu0
      %v3256 = vadd.f32 0.0, %v3255
      %v3257 = vpop.f32.mrb[0].mxu0
      %3258 = vmatprep.mubr.bf16.mxu0 0
      %3259 = vmatmul.mubr.bf16.gmra.mrb[0].mxu0 %v401
      %v3260 = vpop.f32.mrb[0].mxu0
      %v3261 = vadd.f32 0.0, %v3260
      %v3262 = vpop.f32.mrb[0].mxu0
      %v3263 = vpop.f32.mrb[0].mxu0
      %v3264 = vadd.f32 0.0, %v3263
      %v3265 = vpop.f32.mrb[0].mxu0
      %3266 = vmatprep.mubr.bf16.mxu0 0
      %3267 = vmatmul.mubr.bf16.gmra.mrb[0].mxu0 %v402
      %v3268 = vpop.f32.mrb[0].mxu0
      %v3269 = vadd.f32 0.0, %v3268
      %v3270 = vpop.f32.mrb[0].mxu0
      %v3271 = vpop.f32.mrb[0].mxu0
      %v3272 = vadd.f32 0.0, %v3271
      %v3273 = vpop.f32.mrb[0].mxu0
      %3274 = vmatprep.mubr.bf16.mxu0 0
      %3275 = vmatmul.mubr.bf16.gmra.mrb[0].mxu0 %v403
      %v3276 = vpop.f32.mrb[0].mxu0
      %v3277 = vadd.f32 0.0, %v3276
      %v3278 = vpop.f32.mrb[0].mxu0
      %v3279 = vpop.f32.mrb[0].mxu0
      %v3280 = vadd.f32 0.0, %v3279
      %v3281 = vpop.f32.mrb[0].mxu0
      %3282 = vmatprep.mubr.bf16.mxu0 0
      %3283 = vmatmul.mubr.bf16.gmra.mrb[0].mxu0 %v404
      %v3284 = vpop.f32.mrb[0].mxu0
      %v3285 = vadd.f32 0.0, %v3284
      %v3286 = vpop.f32.mrb[0].mxu0
      %v3287 = vpop.f32.mrb[0].mxu0
      %v3288 = vadd.f32 0.0, %v3287
      %v3289 = vpop.f32.mrb[0].mxu0
      %3290 = vmatprep.mubr.bf16.mxu0 0
      %3291 = vmatmul.mubr.bf16.gmra.mrb[0].mxu0 %v405
      %v3292 = vpop.f32.mrb[0].mxu0
      %v3293 = vadd.f32 0.0, %v3292
      %v3294 = vpop.f32.mrb[0].mxu0
      %v3295 = vpop.f32.mrb[0].mxu0
      %v3296 = vadd.f32 0.0, %v3295
      %v3297 = vpop.f32.mrb[0].mxu0
      %3298 = vmatprep.mubr.bf16.mxu0 0
      %3299 = vmatmul.mubr.bf16.gmra.mrb[0].mxu0 %v406
      %v3300 = vpop.f32.mrb[0].mxu0
      %v3301 = vadd.f32 0.0, %v3300
      %v3302 = vpop.f32.mrb[0].mxu0
      %v3303 = vpop.f32.mrb[0].mxu0
      %v3304 = vadd.f32 0.0, %v3303
      %v3305 = vpop.f32.mrb[0].mxu0
      %3306 = vmatprep.mubr.bf16.mxu0 0
      %3307 = vmatmul.mubr.bf16.gmra.mrb[0].mxu0 %v407
      %v3308 = vpop.f32.mrb[0].mxu0
      %v3309 = vadd.f32 0.0, %v3308
      %v3310 = vpop.f32.mrb[0].mxu0
      %v3311 = vpop.f32.mrb[0].mxu0
      %v3312 = vadd.f32 0.0, %v3311
      %v3313 = vpop.f32.mrb[0].mxu0
      %3314 = vmatprep.mubr.bf16.mxu0 0
      %3315 = vmatmul.mubr.bf16.gmra.mrb[0].mxu0 %v408
      %v3316 = vpop.f32.mrb[0].mxu0
      %v3317 = vadd.f32 0.0, %v3316
      %v3318 = vpop.f32.mrb[0].mxu0
      %v3319 = vpop.f32.mrb[0].mxu0
      %v3320 = vadd.f32 0.0, %v3319
      %v3321 = vpop.f32.mrb[0].mxu0
      %3322 = vmatprep.mubr.bf16.mxu0 0
      %3323 = vmatmul.mubr.bf16.gmra.mrb[0].mxu0 %v409
      %v3324 = vpop.f32.mrb[0].mxu0
      %v3325 = vadd.f32 0.0, %v3324
      %v3326 = vpop.f32.mrb[0].mxu0
      %v3327 = vpop.f32.mrb[0].mxu0
      %v3328 = vadd.f32 0.0, %v3327
      %v3329 = vpop.f32.mrb[0].mxu0
      %3330 = vmatprep.mubr.bf16.mxu0 0
      %3331 = vmatmul.mubr.bf16.gmra.mrb[0].mxu0 %v410
      %v3332 = vpop.f32.mrb[0].mxu0
      %v3333 = vadd.f32 0.0, %v3332
      %v3334 = vpop.f32.mrb[0].mxu0
      %v3335 = vpop.f32.mrb[0].mxu0
      %v3336 = vadd.f32 0.0, %v3335
      %v3337 = vpop.f32.mrb[0].mxu0
      %3338 = vmatprep.mubr.bf16.mxu0 0
      %3339 = vmatmul.mubr.bf16.gmra.mrb[0].mxu0 %v411
      %v3340 = vpop.f32.mrb[0].mxu0
      %v3341 = vadd.f32 0.0, %v3340
      %v3342 = vpop.f32.mrb[0].mxu0
      %v3343 = vpop.f32.mrb[0].mxu0
      %v3344 = vadd.f32 0.0, %v3343
      %v3345 = vpop.f32.mrb[0].mxu0
      %3346 = vmatprep.mubr.bf16.mxu0 0
      %3347 = vmatmul.mubr.bf16.gmra.mrb[0].mxu0 %v412
      %v3348 = vpop.f32.mrb[0].mxu0
      %v3349 = vadd.f32 0.0, %v3348
      %v3350 = vpop.f32.mrb[0].mxu0
      %v3351 = vpop.f32.mrb[0].mxu0
      %v3352 = vadd.f32 0.0, %v3351
      %v3353 = vpop.f32.mrb[0].mxu0
      %3354 = vmatprep.mubr.bf16.mxu0 0
      %3355 = vmatmul.mubr.bf16.gmra.mrb[0].mxu0 %v413
      %v3356 = vpop.f32.mrb[0].mxu0
      %v3357 = vadd.f32 0.0, %v3356
      %v3358 = vpop.f32.mrb[0].mxu0
      %v3359 = vpop.f32.mrb[0].mxu0
      %v3360 = vadd.f32 0.0, %v3359
      %v3361 = vpop.f32.mrb[0].mxu0
      %3362 = vmatprep.mubr.bf16.mxu0 0
      %3363 = vmatmul.mubr.bf16.gmra.mrb[0].mxu0 %v414
      %v3364 = vpop.f32.mrb[0].mxu0
      %v3365 = vadd.f32 0.0, %v3364
      %v3366 = vpop.f32.mrb[0].mxu0
      %v3367 = vpop.f32.mrb[0].mxu0
      %v3368 = vadd.f32 0.0, %v3367
      %v3369 = vpop.f32.mrb[0].mxu0
      %3370 = vmatprep.mubr.bf16.mxu0 0
      %3371 = vmatmul.mubr.bf16.gmra.mrb[0].mxu0 0
      %v3372 = vpop.f32.mrb[0].mxu0
      %v3373 = vadd.f32 0.0, %v3372
      %v3374 = vpop.f32.mrb[0].mxu0
      %v3375 = vpop.f32.mrb[0].mxu0
      %v3376 = vadd.f32 0.0, %v3375
      %v3377 = vpop.f32.mrb[0].mxu0
      %3378 = vdwg.mxu0
      %v3395 = vunpack.c.l.b16 %v3009
      %v3396 = vunpack.c.l.b16 %v3010
      %v3397 = vunpack.c.l.b16 %v3011
      %v3398 = vunpack.c.l.b16 %v3012
      %v3399 = vunpack.c.l.b16 %v3013
      %v3400 = vunpack.c.l.b16 %v3014
      %v3401 = vunpack.c.l.b16 %v3015
      %v3402 = vunpack.c.l.b16 %v3016
      %v3403 = vunpack.c.l.b16 %v3017
      %v3404 = vunpack.c.l.b16 %v3018
      %v3405 = vunpack.c.l.b16 %v3019
      %v3406 = vunpack.c.l.b16 %v3020
      %v3407 = vunpack.c.l.b16 %v3021
      %v3408 = vunpack.c.l.b16 %v3022
      %v3409 = vunpack.c.l.b16 %v3023
      %v3410 = vunpack.c.l.b16 %v3024
      %v3411 = vpack.c.b16 %v3396, %v3395
      %v3412 = vpack.c.b16 %v3398, %v3397
      %v3413 = vpack.c.b16 %v3400, %v3399
      %v3414 = vpack.c.b16 %v3402, %v3401
      %v3415 = vpack.c.b16 %v3404, %v3403
      %v3416 = vpack.c.b16 %v3406, %v3405
      %v3417 = vpack.c.b16 %v3408, %v3407
      %v3418 = vpack.c.b16 %v3410, %v3409
      %3427 = vmatprep.subr.bf16.mxu0 0
      %3428 = vmatpush1.bf16.msra.mxu0 %v3411
      %3429 = vmatprep.subr.bf16.mxu0 0
      %3430 = vmatpush1.bf16.msra.mxu0 %v3412
      %3431 = vmatprep.subr.bf16.mxu0 0
      %3432 = vmatpush1.bf16.msra.mxu0 %v3413
      %3433 = vmatprep.subr.bf16.mxu0 0
      %3434 = vmatpush1.bf16.msra.mxu0 %v3414
      %3435 = vmatprep.subr.bf16.mxu0 0
      %3436 = vmatpush1.bf16.msra.mxu0 %v3415
      %3437 = vmatprep.subr.bf16.mxu0 0
      %3438 = vmatpush1.bf16.msra.mxu0 %v3416
      %3439 = vmatprep.subr.bf16.mxu0 0
      %3440 = vmatpush1.bf16.msra.mxu0 %v3417
      %3441 = vmatprep.subr.bf16.mxu0 0
      %3442 = vmatpush1.bf16.msra.mxu0 %v3418
      %3443 = vmatprep.subr.bf16.mxu0 0
      %3444 = vmatpush1.bf16.msra.mxu0 0
      %3445 = vmatprep.subr.bf16.mxu0 0
      %3446 = vmatpush1.bf16.msra.mxu0 0
      %3447 = vmatprep.subr.bf16.mxu0 0
      %3448 = vmatpush1.bf16.msra.mxu0 0
      %3449 = vmatprep.subr.bf16.mxu0 0
      %3450 = vmatpush1.bf16.msra.mxu0 0
      %3451 = vmatprep.subr.bf16.mxu0 0
      %3452 = vmatpush1.bf16.msra.mxu0 0
      %3453 = vmatprep.subr.bf16.mxu0 0
      %3454 = vmatpush1.bf16.msra.mxu0 0
      %3455 = vmatprep.subr.bf16.mxu0 0
      %3456 = vmatpush1.bf16.msra.mxu0 0
      %3457 = vmatprep.subr.bf16.mxu0 0
      %3458 = vmatpush1.bf16.msra.mxu0 0
      %3459 = vmatprep.mubr.bf16.mxu0 0
      %3460 = vmatmul.mubr.bf16.gmra.mrb[0].mxu0 %v804
      %v3461 = vpop.f32.mrb[0].mxu0
      %v3462 = vadd.f32 %v3125, %v3461
      %v3463 = vpop.f32.mrb[0].mxu0
      %v3464 = vpop.f32.mrb[0].mxu0
      %v3465 = vadd.f32 %v3128, %v3464
      %v3466 = vpop.f32.mrb[0].mxu0
      %3467 = vmatprep.mubr.bf16.mxu0 0
      %3468 = vmatmul.mubr.bf16.gmra.mrb[0].mxu0 %v384
      %v3469 = vpop.f32.mrb[0].mxu0
      %v3470 = vadd.f32 %v3133, %v3469
      %v3471 = vpop.f32.mrb[0].mxu0
      %v3472 = vpop.f32.mrb[0].mxu0
      %v3473 = vadd.f32 %v3136, %v3472
      %v3474 = vpop.f32.mrb[0].mxu0
      %3475 = vmatprep.mubr.bf16.mxu0 0
      %3476 = vmatmul.mubr.bf16.gmra.mrb[0].mxu0 %v385
      %v3477 = vpop.f32.mrb[0].mxu0
      %v3478 = vadd.f32 %v3141, %v3477
      %v3479 = vpop.f32.mrb[0].mxu0
      %v3480 = vpop.f32.mrb[0].mxu0
      %v3481 = vadd.f32 %v3144, %v3480
      %v3482 = vpop.f32.mrb[0].mxu0
      %3483 = vmatprep.mubr.bf16.mxu0 0
      %3484 = vmatmul.mubr.bf16.gmra.mrb[0].mxu0 %v386
      %v3485 = vpop.f32.mrb[0].mxu0
      %v3486 = vadd.f32 %v3149, %v3485
      %v3487 = vpop.f32.mrb[0].mxu0
      %v3488 = vpop.f32.mrb[0].mxu0
      %v3489 = vadd.f32 %v3152, %v3488
      %v3490 = vpop.f32.mrb[0].mxu0
      %3491 = vmatprep.mubr.bf16.mxu0 0
      %3492 = vmatmul.mubr.bf16.gmra.mrb[0].mxu0 %v387
      %v3493 = vpop.f32.mrb[0].mxu0
      %v3494 = vadd.f32 %v3157, %v3493
      %v3495 = vpop.f32.mrb[0].mxu0
      %v3496 = vpop.f32.mrb[0].mxu0
      %v3497 = vadd.f32 %v3160, %v3496
      %v3498 = vpop.f32.mrb[0].mxu0
      %3499 = vmatprep.mubr.bf16.mxu0 0
      %3500 = vmatmul.mubr.bf16.gmra.mrb[0].mxu0 %v388
      %v3501 = vpop.f32.mrb[0].mxu0
      %v3502 = vadd.f32 %v3165, %v3501
      %v3503 = vpop.f32.mrb[0].mxu0
      %v3504 = vpop.f32.mrb[0].mxu0
      %v3505 = vadd.f32 %v3168, %v3504
      %v3506 = vpop.f32.mrb[0].mxu0
      %3507 = vmatprep.mubr.bf16.mxu0 0
      %3508 = vmatmul.mubr.bf16.gmra.mrb[0].mxu0 %v389
      %v3509 = vpop.f32.mrb[0].mxu0
      %v3510 = vadd.f32 %v3173, %v3509
      %v3511 = vpop.f32.mrb[0].mxu0
      %v3512 = vpop.f32.mrb[0].mxu0
      %v3513 = vadd.f32 %v3176, %v3512
      %v3514 = vpop.f32.mrb[0].mxu0
      %3515 = vmatprep.mubr.bf16.mxu0 0
      %3516 = vmatmul.mubr.bf16.gmra.mrb[0].mxu0 %v390
      %v3517 = vpop.f32.mrb[0].mxu0
      %v3518 = vadd.f32 %v3181, %v3517
      %v3519 = vpop.f32.mrb[0].mxu0
      %v3520 = vpop.f32.mrb[0].mxu0
      %v3521 = vadd.f32 %v3184, %v3520
      %v3522 = vpop.f32.mrb[0].mxu0
      %3523 = vmatprep.mubr.bf16.mxu0 0
      %3524 = vmatmul.mubr.bf16.gmra.mrb[0].mxu0 %v391
      %v3525 = vpop.f32.mrb[0].mxu0
      %v3526 = vadd.f32 %v3189, %v3525
      %v3527 = vpop.f32.mrb[0].mxu0
      %v3528 = vpop.f32.mrb[0].mxu0
      %v3529 = vadd.f32 %v3192, %v3528
      %v3530 = vpop.f32.mrb[0].mxu0
      %3531 = vmatprep.mubr.bf16.mxu0 0
      %3532 = vmatmul.mubr.bf16.gmra.mrb[0].mxu0 %v392
      %v3533 = vpop.f32.mrb[0].mxu0
      %v3534 = vadd.f32 %v3197, %v3533
      %v3535 = vpop.f32.mrb[0].mxu0
      %v3536 = vpop.f32.mrb[0].mxu0
      %v3537 = vadd.f32 %v3200, %v3536
      %v3538 = vpop.f32.mrb[0].mxu0
      %3539 = vmatprep.mubr.bf16.mxu0 0
      %3540 = vmatmul.mubr.bf16.gmra.mrb[0].mxu0 %v393
      %v3541 = vpop.f32.mrb[0].mxu0
      %v3542 = vadd.f32 %v3205, %v3541
      %v3543 = vpop.f32.mrb[0].mxu0
      %v3544 = vpop.f32.mrb[0].mxu0
      %v3545 = vadd.f32 %v3208, %v3544
      %v3546 = vpop.f32.mrb[0].mxu0
      %3547 = vmatprep.mubr.bf16.mxu0 0
      %3548 = vmatmul.mubr.bf16.gmra.mrb[0].mxu0 %v394
      %v3549 = vpop.f32.mrb[0].mxu0
      %v3550 = vadd.f32 %v3213, %v3549
      %v3551 = vpop.f32.mrb[0].mxu0
      %v3552 = vpop.f32.mrb[0].mxu0
      %v3553 = vadd.f32 %v3216, %v3552
      %v3554 = vpop.f32.mrb[0].mxu0
      %3555 = vmatprep.mubr.bf16.mxu0 0
      %3556 = vmatmul.mubr.bf16.gmra.mrb[0].mxu0 %v395
      %v3557 = vpop.f32.mrb[0].mxu0
      %v3558 = vadd.f32 %v3221, %v3557
      %v3559 = vpop.f32.mrb[0].mxu0
      %v3560 = vpop.f32.mrb[0].mxu0
      %v3561 = vadd.f32 %v3224, %v3560
      %v3562 = vpop.f32.mrb[0].mxu0
      %3563 = vmatprep.mubr.bf16.mxu0 0
      %3564 = vmatmul.mubr.bf16.gmra.mrb[0].mxu0 %v396
      %v3565 = vpop.f32.mrb[0].mxu0
      %v3566 = vadd.f32 %v3229, %v3565
      %v3567 = vpop.f32.mrb[0].mxu0
      %v3568 = vpop.f32.mrb[0].mxu0
      %v3569 = vadd.f32 %v3232, %v3568
      %v3570 = vpop.f32.mrb[0].mxu0
      %3571 = vmatprep.mubr.bf16.mxu0 0
      %3572 = vmatmul.mubr.bf16.gmra.mrb[0].mxu0 %v397
      %v3573 = vpop.f32.mrb[0].mxu0
      %v3574 = vadd.f32 %v3237, %v3573
      %v3575 = vpop.f32.mrb[0].mxu0
      %v3576 = vpop.f32.mrb[0].mxu0
      %v3577 = vadd.f32 %v3240, %v3576
      %v3578 = vpop.f32.mrb[0].mxu0
      %3579 = vmatprep.mubr.bf16.mxu0 0
      %3580 = vmatmul.mubr.bf16.gmra.mrb[0].mxu0 %v398
      %v3581 = vpop.f32.mrb[0].mxu0
      %v3582 = vadd.f32 %v3245, %v3581
      %v3583 = vpop.f32.mrb[0].mxu0
      %v3584 = vpop.f32.mrb[0].mxu0
      %v3585 = vadd.f32 %v3248, %v3584
      %v3586 = vpop.f32.mrb[0].mxu0
      %3587 = vmatprep.mubr.bf16.mxu0 0
      %3588 = vmatmul.mubr.bf16.gmra.mrb[0].mxu0 %v399
      %v3589 = vpop.f32.mrb[0].mxu0
      %v3590 = vadd.f32 %v3253, %v3589
      %v3591 = vpop.f32.mrb[0].mxu0
      %v3592 = vpop.f32.mrb[0].mxu0
      %v3593 = vadd.f32 %v3256, %v3592
      %v3594 = vpop.f32.mrb[0].mxu0
      %3595 = vmatprep.mubr.bf16.mxu0 0
      %3596 = vmatmul.mubr.bf16.gmra.mrb[0].mxu0 %v400
      %v3597 = vpop.f32.mrb[0].mxu0
      %v3598 = vadd.f32 %v3261, %v3597
      %v3599 = vpop.f32.mrb[0].mxu0
      %v3600 = vpop.f32.mrb[0].mxu0
      %v3601 = vadd.f32 %v3264, %v3600
      %v3602 = vpop.f32.mrb[0].mxu0
      %3603 = vmatprep.mubr.bf16.mxu0 0
      %3604 = vmatmul.mubr.bf16.gmra.mrb[0].mxu0 %v401
      %v3605 = vpop.f32.mrb[0].mxu0
      %v3606 = vadd.f32 %v3269, %v3605
      %v3607 = vpop.f32.mrb[0].mxu0
      %v3608 = vpop.f32.mrb[0].mxu0
      %v3609 = vadd.f32 %v3272, %v3608
      %v3610 = vpop.f32.mrb[0].mxu0
      %3611 = vmatprep.mubr.bf16.mxu0 0
      %3612 = vmatmul.mubr.bf16.gmra.mrb[0].mxu0 %v402
      %v3613 = vpop.f32.mrb[0].mxu0
      %v3614 = vadd.f32 %v3277, %v3613
      %v3615 = vpop.f32.mrb[0].mxu0
      %v3616 = vpop.f32.mrb[0].mxu0
      %v3617 = vadd.f32 %v3280, %v3616
      %v3618 = vpop.f32.mrb[0].mxu0
      %3619 = vmatprep.mubr.bf16.mxu0 0
      %3620 = vmatmul.mubr.bf16.gmra.mrb[0].mxu0 %v403
      %v3621 = vpop.f32.mrb[0].mxu0
      %v3622 = vadd.f32 %v3285, %v3621
      %v3623 = vpop.f32.mrb[0].mxu0
      %v3624 = vpop.f32.mrb[0].mxu0
      %v3625 = vadd.f32 %v3288, %v3624
      %v3626 = vpop.f32.mrb[0].mxu0
      %3627 = vmatprep.mubr.bf16.mxu0 0
      %3628 = vmatmul.mubr.bf16.gmra.mrb[0].mxu0 %v404
      %v3629 = vpop.f32.mrb[0].mxu0
      %v3630 = vadd.f32 %v3293, %v3629
      %v3631 = vpop.f32.mrb[0].mxu0
      %v3632 = vpop.f32.mrb[0].mxu0
      %v3633 = vadd.f32 %v3296, %v3632
      %v3634 = vpop.f32.mrb[0].mxu0
      %3635 = vmatprep.mubr.bf16.mxu0 0
      %3636 = vmatmul.mubr.bf16.gmra.mrb[0].mxu0 %v405
      %v3637 = vpop.f32.mrb[0].mxu0
      %v3638 = vadd.f32 %v3301, %v3637
      %v3639 = vpop.f32.mrb[0].mxu0
      %v3640 = vpop.f32.mrb[0].mxu0
      %v3641 = vadd.f32 %v3304, %v3640
      %v3642 = vpop.f32.mrb[0].mxu0
      %3643 = vmatprep.mubr.bf16.mxu0 0
      %3644 = vmatmul.mubr.bf16.gmra.mrb[0].mxu0 %v406
      %v3645 = vpop.f32.mrb[0].mxu0
      %v3646 = vadd.f32 %v3309, %v3645
      %v3647 = vpop.f32.mrb[0].mxu0
      %v3648 = vpop.f32.mrb[0].mxu0
      %v3649 = vadd.f32 %v3312, %v3648
      %v3650 = vpop.f32.mrb[0].mxu0
      %3651 = vmatprep.mubr.bf16.mxu0 0
      %3652 = vmatmul.mubr.bf16.gmra.mrb[0].mxu0 %v407
      %v3653 = vpop.f32.mrb[0].mxu0
      %v3654 = vadd.f32 %v3317, %v3653
      %v3655 = vpop.f32.mrb[0].mxu0
      %v3656 = vpop.f32.mrb[0].mxu0
      %v3657 = vadd.f32 %v3320, %v3656
      %v3658 = vpop.f32.mrb[0].mxu0
      %3659 = vmatprep.mubr.bf16.mxu0 0
      %3660 = vmatmul.mubr.bf16.gmra.mrb[0].mxu0 %v408
      %v3661 = vpop.f32.mrb[0].mxu0
      %v3662 = vadd.f32 %v3325, %v3661
      %v3663 = vpop.f32.mrb[0].mxu0
      %v3664 = vpop.f32.mrb[0].mxu0
      %v3665 = vadd.f32 %v3328, %v3664
      %v3666 = vpop.f32.mrb[0].mxu0
      %3667 = vmatprep.mubr.bf16.mxu0 0
      %3668 = vmatmul.mubr.bf16.gmra.mrb[0].mxu0 %v409
      %v3669 = vpop.f32.mrb[0].mxu0
      %v3670 = vadd.f32 %v3333, %v3669
      %v3671 = vpop.f32.mrb[0].mxu0
      %v3672 = vpop.f32.mrb[0].mxu0
      %v3673 = vadd.f32 %v3336, %v3672
      %v3674 = vpop.f32.mrb[0].mxu0
      %3675 = vmatprep.mubr.bf16.mxu0 0
      %3676 = vmatmul.mubr.bf16.gmra.mrb[0].mxu0 %v410
      %v3677 = vpop.f32.mrb[0].mxu0
      %v3678 = vadd.f32 %v3341, %v3677
      %v3679 = vpop.f32.mrb[0].mxu0
      %v3680 = vpop.f32.mrb[0].mxu0
      %v3681 = vadd.f32 %v3344, %v3680
      %v3682 = vpop.f32.mrb[0].mxu0
      %3683 = vmatprep.mubr.bf16.mxu0 0
      %3684 = vmatmul.mubr.bf16.gmra.mrb[0].mxu0 %v411
      %v3685 = vpop.f32.mrb[0].mxu0
      %v3686 = vadd.f32 %v3349, %v3685
      %v3687 = vpop.f32.mrb[0].mxu0
      %v3688 = vpop.f32.mrb[0].mxu0
      %v3689 = vadd.f32 %v3352, %v3688
      %v3690 = vpop.f32.mrb[0].mxu0
      %3691 = vmatprep.mubr.bf16.mxu0 0
      %3692 = vmatmul.mubr.bf16.gmra.mrb[0].mxu0 %v412
      %v3693 = vpop.f32.mrb[0].mxu0
      %v3694 = vadd.f32 %v3357, %v3693
      %v3695 = vpop.f32.mrb[0].mxu0
      %v3696 = vpop.f32.mrb[0].mxu0
      %v3697 = vadd.f32 %v3360, %v3696
      %v3698 = vpop.f32.mrb[0].mxu0
      %3699 = vmatprep.mubr.bf16.mxu0 0
      %3700 = vmatmul.mubr.bf16.gmra.mrb[0].mxu0 %v413
      %v3701 = vpop.f32.mrb[0].mxu0
      %v3702 = vadd.f32 %v3365, %v3701
      %v3703 = vpop.f32.mrb[0].mxu0
      %v3704 = vpop.f32.mrb[0].mxu0
      %v3705 = vadd.f32 %v3368, %v3704
      %v3706 = vpop.f32.mrb[0].mxu0
      %3707 = vmatprep.mubr.bf16.mxu0 0
      %3708 = vmatmul.mubr.bf16.gmra.mrb[0].mxu0 %v414
      %v3709 = vpop.f32.mrb[0].mxu0
      %v3710 = vadd.f32 %v3373, %v3709
      %v3711 = vpop.f32.mrb[0].mxu0
      %v3712 = vpop.f32.mrb[0].mxu0
      %v3713 = vadd.f32 %v3376, %v3712
      %v3714 = vpop.f32.mrb[0].mxu0
      %3715 = vdwg.mxu0
      %s3716 = scalar_lea.vmem %s1, 512
      %v3717 = vld [vmem:[%s3716] sm:$0xf]
      %v3718 = vld [vmem:[%s3716 + $0x4] sm:$0xf]
      %v3719 = vld [vmem:[%s3716 + $0x8] sm:$0xf]
      %v3720 = vld [vmem:[%s3716 + $0xc] sm:$0xf]
      %v3721 = vld [vmem:[%s3716 + $0x10] sm:$0xf]
      %v3722 = vld [vmem:[%s3716 + $0x14] sm:$0xf]
      %v3723 = vld [vmem:[%s3716 + $0x18] sm:$0xf]
      %v3724 = vld [vmem:[%s3716 + $0x1c] sm:$0xf]
      %v3725 = vld [vmem:[%s3716 + $0x20] sm:$0xf]
      %v3726 = vld [vmem:[%s3716 + $0x24] sm:$0xf]
      %v3727 = vld [vmem:[%s3716 + $0x28] sm:$0xf]
      %v3728 = vld [vmem:[%s3716 + $0x2c] sm:$0xf]
      %v3729 = vld [vmem:[%s3716 + $0x30] sm:$0xf]
      %v3730 = vld [vmem:[%s3716 + $0x34] sm:$0xf]
      %v3731 = vld [vmem:[%s3716 + $0x38] sm:$0xf]
      %v3732 = vld [vmem:[%s3716 + $0x3c] sm:$0xf]
      %v3749 = vunpack.c.l.b16 %v3717
      %v3750 = vunpack.c.l.b16 %v3718
      %v3751 = vunpack.c.l.b16 %v3719
      %v3752 = vunpack.c.l.b16 %v3720
      %v3753 = vunpack.c.l.b16 %v3721
      %v3754 = vunpack.c.l.b16 %v3722
      %v3755 = vunpack.c.l.b16 %v3723
      %v3756 = vunpack.c.l.b16 %v3724
      %v3757 = vunpack.c.l.b16 %v3725
      %v3758 = vunpack.c.l.b16 %v3726
      %v3759 = vunpack.c.l.b16 %v3727
      %v3760 = vunpack.c.l.b16 %v3728
      %v3761 = vunpack.c.l.b16 %v3729
      %v3762 = vunpack.c.l.b16 %v3730
      %v3763 = vunpack.c.l.b16 %v3731
      %v3764 = vunpack.c.l.b16 %v3732
      %v3765 = vpack.c.b16 %v3750, %v3749
      %v3766 = vpack.c.b16 %v3752, %v3751
      %v3767 = vpack.c.b16 %v3754, %v3753
      %v3768 = vpack.c.b16 %v3756, %v3755
      %v3769 = vpack.c.b16 %v3758, %v3757
      %v3770 = vpack.c.b16 %v3760, %v3759
      %v3771 = vpack.c.b16 %v3762, %v3761
      %v3772 = vpack.c.b16 %v3764, %v3763
      %3781 = vmatprep.subr.bf16.mxu0 0
      %3782 = vmatpush1.bf16.msra.mxu0 %v3765
      %3783 = vmatprep.subr.bf16.mxu0 0
      %3784 = vmatpush1.bf16.msra.mxu0 %v3766
      %3785 = vmatprep.subr.bf16.mxu0 0
      %3786 = vmatpush1.bf16.msra.mxu0 %v3767
      %3787 = vmatprep.subr.bf16.mxu0 0
      %3788 = vmatpush1.bf16.msra.mxu0 %v3768
      %3789 = vmatprep.subr.bf16.mxu0 0
      %3790 = vmatpush1.bf16.msra.mxu0 %v3769
      %3791 = vmatprep.subr.bf16.mxu0 0
      %3792 = vmatpush1.bf16.msra.mxu0 %v3770
      %3793 = vmatprep.subr.bf16.mxu0 0
      %3794 = vmatpush1.bf16.msra.mxu0 %v3771
      %3795 = vmatprep.subr.bf16.mxu0 0
      %3796 = vmatpush1.bf16.msra.mxu0 %v3772
      %3797 = vmatprep.subr.bf16.mxu0 0
      %3798 = vmatpush1.bf16.msra.mxu0 0
      %3799 = vmatprep.subr.bf16.mxu0 0
      %3800 = vmatpush1.bf16.msra.mxu0 0
      %3801 = vmatprep.subr.bf16.mxu0 0
      %3802 = vmatpush1.bf16.msra.mxu0 0
      %3803 = vmatprep.subr.bf16.mxu0 0
      %3804 = vmatpush1.bf16.msra.mxu0 0
      %3805 = vmatprep.subr.bf16.mxu0 0
      %3806 = vmatpush1.bf16.msra.mxu0 0
      %3807 = vmatprep.subr.bf16.mxu0 0
      %3808 = vmatpush1.bf16.msra.mxu0 0
      %3809 = vmatprep.subr.bf16.mxu0 0
      %3810 = vmatpush1.bf16.msra.mxu0 0
      %3811 = vmatprep.subr.bf16.mxu0 0
      %3812 = vmatpush1.bf16.msra.mxu0 0
      %3813 = vmatprep.mubr.bf16.mxu0 0
      %3814 = vmatmul.mubr.bf16.gmra.mrb[0].mxu0 %v385
      %v3815 = vpop.f32.mrb[0].mxu0
      %v3816 = vadd.f32 0.0, %v3815
      %v3817 = vpop.f32.mrb[0].mxu0
      %v3818 = vpop.f32.mrb[0].mxu0
      %v3819 = vadd.f32 0.0, %v3818
      %v3820 = vpop.f32.mrb[0].mxu0
      %3821 = vmatprep.mubr.bf16.mxu0 0
      %3822 = vmatmul.mubr.bf16.gmra.mrb[0].mxu0 %v386
      %v3823 = vpop.f32.mrb[0].mxu0
      %v3824 = vadd.f32 0.0, %v3823
      %v3825 = vpop.f32.mrb[0].mxu0
      %v3826 = vpop.f32.mrb[0].mxu0
      %v3827 = vadd.f32 0.0, %v3826
      %v3828 = vpop.f32.mrb[0].mxu0
      %3829 = vmatprep.mubr.bf16.mxu0 0
      %3830 = vmatmul.mubr.bf16.gmra.mrb[0].mxu0 %v387
      %v3831 = vpop.f32.mrb[0].mxu0
      %v3832 = vadd.f32 0.0, %v3831
      %v3833 = vpop.f32.mrb[0].mxu0
      %v3834 = vpop.f32.mrb[0].mxu0
      %v3835 = vadd.f32 0.0, %v3834
      %v3836 = vpop.f32.mrb[0].mxu0
      %3837 = vmatprep.mubr.bf16.mxu0 0
      %3838 = vmatmul.mubr.bf16.gmra.mrb[0].mxu0 %v388
      %v3839 = vpop.f32.mrb[0].mxu0
      %v3840 = vadd.f32 0.0, %v3839
      %v3841 = vpop.f32.mrb[0].mxu0
      %v3842 = vpop.f32.mrb[0].mxu0
      %v3843 = vadd.f32 0.0, %v3842
      %v3844 = vpop.f32.mrb[0].mxu0
      %3845 = vmatprep.mubr.bf16.mxu0 0
      %3846 = vmatmul.mubr.bf16.gmra.mrb[0].mxu0 %v389
      %v3847 = vpop.f32.mrb[0].mxu0
      %v3848 = vadd.f32 0.0, %v3847
      %v3849 = vpop.f32.mrb[0].mxu0
      %v3850 = vpop.f32.mrb[0].mxu0
      %v3851 = vadd.f32 0.0, %v3850
      %v3852 = vpop.f32.mrb[0].mxu0
      %3853 = vmatprep.mubr.bf16.mxu0 0
      %3854 = vmatmul.mubr.bf16.gmra.mrb[0].mxu0 %v390
      %v3855 = vpop.f32.mrb[0].mxu0
      %v3856 = vadd.f32 0.0, %v3855
      %v3857 = vpop.f32.mrb[0].mxu0
      %v3858 = vpop.f32.mrb[0].mxu0
      %v3859 = vadd.f32 0.0, %v3858
      %v3860 = vpop.f32.mrb[0].mxu0
      %3861 = vmatprep.mubr.bf16.mxu0 0
      %3862 = vmatmul.mubr.bf16.gmra.mrb[0].mxu0 %v391
      %v3863 = vpop.f32.mrb[0].mxu0
      %v3864 = vadd.f32 0.0, %v3863
      %v3865 = vpop.f32.mrb[0].mxu0
      %v3866 = vpop.f32.mrb[0].mxu0
      %v3867 = vadd.f32 0.0, %v3866
      %v3868 = vpop.f32.mrb[0].mxu0
      %3869 = vmatprep.mubr.bf16.mxu0 0
      %3870 = vmatmul.mubr.bf16.gmra.mrb[0].mxu0 %v392
      %v3871 = vpop.f32.mrb[0].mxu0
      %v3872 = vadd.f32 0.0, %v3871
      %v3873 = vpop.f32.mrb[0].mxu0
      %v3874 = vpop.f32.mrb[0].mxu0
      %v3875 = vadd.f32 0.0, %v3874
      %v3876 = vpop.f32.mrb[0].mxu0
      %3877 = vmatprep.mubr.bf16.mxu0 0
      %3878 = vmatmul.mubr.bf16.gmra.mrb[0].mxu0 %v393
      %v3879 = vpop.f32.mrb[0].mxu0
      %v3880 = vadd.f32 0.0, %v3879
      %v3881 = vpop.f32.mrb[0].mxu0
      %v3882 = vpop.f32.mrb[0].mxu0
      %v3883 = vadd.f32 0.0, %v3882
      %v3884 = vpop.f32.mrb[0].mxu0
      %3885 = vmatprep.mubr.bf16.mxu0 0
      %3886 = vmatmul.mubr.bf16.gmra.mrb[0].mxu0 %v394
      %v3887 = vpop.f32.mrb[0].mxu0
      %v3888 = vadd.f32 0.0, %v3887
      %v3889 = vpop.f32.mrb[0].mxu0
      %v3890 = vpop.f32.mrb[0].mxu0
      %v3891 = vadd.f32 0.0, %v3890
      %v3892 = vpop.f32.mrb[0].mxu0
      %3893 = vmatprep.mubr.bf16.mxu0 0
      %3894 = vmatmul.mubr.bf16.gmra.mrb[0].mxu0 %v395
      %v3895 = vpop.f32.mrb[0].mxu0
      %v3896 = vadd.f32 0.0, %v3895
      %v3897 = vpop.f32.mrb[0].mxu0
      %v3898 = vpop.f32.mrb[0].mxu0
      %v3899 = vadd.f32 0.0, %v3898
      %v3900 = vpop.f32.mrb[0].mxu0
      %3901 = vmatprep.mubr.bf16.mxu0 0
      %3902 = vmatmul.mubr.bf16.gmra.mrb[0].mxu0 %v396
      %v3903 = vpop.f32.mrb[0].mxu0
      %v3904 = vadd.f32 0.0, %v3903
      %v3905 = vpop.f32.mrb[0].mxu0
      %v3906 = vpop.f32.mrb[0].mxu0
      %v3907 = vadd.f32 0.0, %v3906
      %v3908 = vpop.f32.mrb[0].mxu0
      %3909 = vmatprep.mubr.bf16.mxu0 0
      %3910 = vmatmul.mubr.bf16.gmra.mrb[0].mxu0 %v397
      %v3911 = vpop.f32.mrb[0].mxu0
      %v3912 = vadd.f32 0.0, %v3911
      %v3913 = vpop.f32.mrb[0].mxu0
      %v3914 = vpop.f32.mrb[0].mxu0
      %v3915 = vadd.f32 0.0, %v3914
      %v3916 = vpop.f32.mrb[0].mxu0
      %3917 = vmatprep.mubr.bf16.mxu0 0
      %3918 = vmatmul.mubr.bf16.gmra.mrb[0].mxu0 %v398
      %v3919 = vpop.f32.mrb[0].mxu0
      %v3920 = vadd.f32 0.0, %v3919
      %v3921 = vpop.f32.mrb[0].mxu0
      %v3922 = vpop.f32.mrb[0].mxu0
      %v3923 = vadd.f32 0.0, %v3922
      %v3924 = vpop.f32.mrb[0].mxu0
      %3925 = vmatprep.mubr.bf16.mxu0 0
      %3926 = vmatmul.mubr.bf16.gmra.mrb[0].mxu0 %v399
      %v3927 = vpop.f32.mrb[0].mxu0
      %v3928 = vadd.f32 0.0, %v3927
      %v3929 = vpop.f32.mrb[0].mxu0
      %v3930 = vpop.f32.mrb[0].mxu0
      %v3931 = vadd.f32 0.0, %v3930
      %v3932 = vpop.f32.mrb[0].mxu0
      %3933 = vmatprep.mubr.bf16.mxu0 0
      %3934 = vmatmul.mubr.bf16.gmra.mrb[0].mxu0 %v400
      %v3935 = vpop.f32.mrb[0].mxu0
      %v3936 = vadd.f32 0.0, %v3935
      %v3937 = vpop.f32.mrb[0].mxu0
      %v3938 = vpop.f32.mrb[0].mxu0
      %v3939 = vadd.f32 0.0, %v3938
      %v3940 = vpop.f32.mrb[0].mxu0
      %3941 = vmatprep.mubr.bf16.mxu0 0
      %3942 = vmatmul.mubr.bf16.gmra.mrb[0].mxu0 %v401
      %v3943 = vpop.f32.mrb[0].mxu0
      %v3944 = vadd.f32 0.0, %v3943
      %v3945 = vpop.f32.mrb[0].mxu0
      %v3946 = vpop.f32.mrb[0].mxu0
      %v3947 = vadd.f32 0.0, %v3946
      %v3948 = vpop.f32.mrb[0].mxu0
      %3949 = vmatprep.mubr.bf16.mxu0 0
      %3950 = vmatmul.mubr.bf16.gmra.mrb[0].mxu0 %v402
      %v3951 = vpop.f32.mrb[0].mxu0
      %v3952 = vadd.f32 0.0, %v3951
      %v3953 = vpop.f32.mrb[0].mxu0
      %v3954 = vpop.f32.mrb[0].mxu0
      %v3955 = vadd.f32 0.0, %v3954
      %v3956 = vpop.f32.mrb[0].mxu0
      %3957 = vmatprep.mubr.bf16.mxu0 0
      %3958 = vmatmul.mubr.bf16.gmra.mrb[0].mxu0 %v403
      %v3959 = vpop.f32.mrb[0].mxu0
      %v3960 = vadd.f32 0.0, %v3959
      %v3961 = vpop.f32.mrb[0].mxu0
      %v3962 = vpop.f32.mrb[0].mxu0
      %v3963 = vadd.f32 0.0, %v3962
      %v3964 = vpop.f32.mrb[0].mxu0
      %3965 = vmatprep.mubr.bf16.mxu0 0
      %3966 = vmatmul.mubr.bf16.gmra.mrb[0].mxu0 %v404
      %v3967 = vpop.f32.mrb[0].mxu0
      %v3968 = vadd.f32 0.0, %v3967
      %v3969 = vpop.f32.mrb[0].mxu0
      %v3970 = vpop.f32.mrb[0].mxu0
      %v3971 = vadd.f32 0.0, %v3970
      %v3972 = vpop.f32.mrb[0].mxu0
      %3973 = vmatprep.mubr.bf16.mxu0 0
      %3974 = vmatmul.mubr.bf16.gmra.mrb[0].mxu0 %v405
      %v3975 = vpop.f32.mrb[0].mxu0
      %v3976 = vadd.f32 0.0, %v3975
      %v3977 = vpop.f32.mrb[0].mxu0
      %v3978 = vpop.f32.mrb[0].mxu0
      %v3979 = vadd.f32 0.0, %v3978
      %v3980 = vpop.f32.mrb[0].mxu0
      %3981 = vmatprep.mubr.bf16.mxu0 0
      %3982 = vmatmul.mubr.bf16.gmra.mrb[0].mxu0 %v406
      %v3983 = vpop.f32.mrb[0].mxu0
      %v3984 = vadd.f32 0.0, %v3983
      %v3985 = vpop.f32.mrb[0].mxu0
      %v3986 = vpop.f32.mrb[0].mxu0
      %v3987 = vadd.f32 0.0, %v3986
      %v3988 = vpop.f32.mrb[0].mxu0
      %3989 = vmatprep.mubr.bf16.mxu0 0
      %3990 = vmatmul.mubr.bf16.gmra.mrb[0].mxu0 %v407
      %v3991 = vpop.f32.mrb[0].mxu0
      %v3992 = vadd.f32 0.0, %v3991
      %v3993 = vpop.f32.mrb[0].mxu0
      %v3994 = vpop.f32.mrb[0].mxu0
      %v3995 = vadd.f32 0.0, %v3994
      %v3996 = vpop.f32.mrb[0].mxu0
      %3997 = vmatprep.mubr.bf16.mxu0 0
      %3998 = vmatmul.mubr.bf16.gmra.mrb[0].mxu0 %v408
      %v3999 = vpop.f32.mrb[0].mxu0
      %v4000 = vadd.f32 0.0, %v3999
      %v4001 = vpop.f32.mrb[0].mxu0
      %v4002 = vpop.f32.mrb[0].mxu0
      %v4003 = vadd.f32 0.0, %v4002
      %v4004 = vpop.f32.mrb[0].mxu0
      %4005 = vmatprep.mubr.bf16.mxu0 0
      %4006 = vmatmul.mubr.bf16.gmra.mrb[0].mxu0 %v409
      %v4007 = vpop.f32.mrb[0].mxu0
      %v4008 = vadd.f32 0.0, %v4007
      %v4009 = vpop.f32.mrb[0].mxu0
      %v4010 = vpop.f32.mrb[0].mxu0
      %v4011 = vadd.f32 0.0, %v4010
      %v4012 = vpop.f32.mrb[0].mxu0
      %4013 = vmatprep.mubr.bf16.mxu0 0
      %4014 = vmatmul.mubr.bf16.gmra.mrb[0].mxu0 %v410
      %v4015 = vpop.f32.mrb[0].mxu0
      %v4016 = vadd.f32 0.0, %v4015
      %v4017 = vpop.f32.mrb[0].mxu0
      %v4018 = vpop.f32.mrb[0].mxu0
      %v4019 = vadd.f32 0.0, %v4018
      %v4020 = vpop.f32.mrb[0].mxu0
      %4021 = vmatprep.mubr.bf16.mxu0 0
      %4022 = vmatmul.mubr.bf16.gmra.mrb[0].mxu0 %v411
      %v4023 = vpop.f32.mrb[0].mxu0
      %v4024 = vadd.f32 0.0, %v4023
      %v4025 = vpop.f32.mrb[0].mxu0
      %v4026 = vpop.f32.mrb[0].mxu0
      %v4027 = vadd.f32 0.0, %v4026
      %v4028 = vpop.f32.mrb[0].mxu0
      %4029 = vmatprep.mubr.bf16.mxu0 0
      %4030 = vmatmul.mubr.bf16.gmra.mrb[0].mxu0 %v412
      %v4031 = vpop.f32.mrb[0].mxu0
      %v4032 = vadd.f32 0.0, %v4031
      %v4033 = vpop.f32.mrb[0].mxu0
      %v4034 = vpop.f32.mrb[0].mxu0
      %v4035 = vadd.f32 0.0, %v4034
      %v4036 = vpop.f32.mrb[0].mxu0
      %4037 = vmatprep.mubr.bf16.mxu0 0
      %4038 = vmatmul.mubr.bf16.gmra.mrb[0].mxu0 %v413
      %v4039 = vpop.f32.mrb[0].mxu0
      %v4040 = vadd.f32 0.0, %v4039
      %v4041 = vpop.f32.mrb[0].mxu0
      %v4042 = vpop.f32.mrb[0].mxu0
      %v4043 = vadd.f32 0.0, %v4042
      %v4044 = vpop.f32.mrb[0].mxu0
      %4045 = vmatprep.mubr.bf16.mxu0 0
      %4046 = vmatmul.mubr.bf16.gmra.mrb[0].mxu0 %v414
      %v4047 = vpop.f32.mrb[0].mxu0
      %v4048 = vadd.f32 0.0, %v4047
      %v4049 = vpop.f32.mrb[0].mxu0
      %v4050 = vpop.f32.mrb[0].mxu0
      %v4051 = vadd.f32 0.0, %v4050
      %v4052 = vpop.f32.mrb[0].mxu0
      %4053 = vmatprep.mubr.bf16.mxu0 0
      %4054 = vmatmul.mubr.bf16.gmra.mrb[0].mxu0 0
      %v4055 = vpop.f32.mrb[0].mxu0
      %v4056 = vadd.f32 0.0, %v4055
      %v4057 = vpop.f32.mrb[0].mxu0
      %v4058 = vpop.f32.mrb[0].mxu0
      %v4059 = vadd.f32 0.0, %v4058
      %v4060 = vpop.f32.mrb[0].mxu0
      %4061 = vmatprep.mubr.bf16.mxu0 0
      %4062 = vmatmul.mubr.bf16.gmra.mrb[0].mxu0 0
      %v4063 = vpop.f32.mrb[0].mxu0
      %v4064 = vadd.f32 0.0, %v4063
      %v4065 = vpop.f32.mrb[0].mxu0
      %v4066 = vpop.f32.mrb[0].mxu0
      %v4067 = vadd.f32 0.0, %v4066
      %v4068 = vpop.f32.mrb[0].mxu0
      %4069 = vdwg.mxu0
      %v4070 = vadd.f32 %v3462, %v3816
      %v4071 = vadd.f32 %v3465, %v3819
      %v4072 = vadd.f32 %v3470, %v3824
      %v4073 = vadd.f32 %v3473, %v3827
      %v4074 = vadd.f32 %v3478, %v3832
      %v4075 = vadd.f32 %v3481, %v3835
      %v4076 = vadd.f32 %v3486, %v3840
      %v4077 = vadd.f32 %v3489, %v3843
      %v4078 = vadd.f32 %v3494, %v3848
      %v4079 = vadd.f32 %v3497, %v3851
      %v4080 = vadd.f32 %v3502, %v3856
      %v4081 = vadd.f32 %v3505, %v3859
      %v4082 = vadd.f32 %v3510, %v3864
      %v4083 = vadd.f32 %v3513, %v3867
      %v4084 = vadd.f32 %v3518, %v3872
      %v4085 = vadd.f32 %v3521, %v3875
      %v4086 = vadd.f32 %v3526, %v3880
      %v4087 = vadd.f32 %v3529, %v3883
      %v4088 = vadd.f32 %v3534, %v3888
      %v4089 = vadd.f32 %v3537, %v3891
      %v4090 = vadd.f32 %v3542, %v3896
      %v4091 = vadd.f32 %v3545, %v3899
      %v4092 = vadd.f32 %v3550, %v3904
      %v4093 = vadd.f32 %v3553, %v3907
      %v4094 = vadd.f32 %v3558, %v3912
      %v4095 = vadd.f32 %v3561, %v3915
      %v4096 = vadd.f32 %v3566, %v3920
      %v4097 = vadd.f32 %v3569, %v3923
      %v4098 = vadd.f32 %v3574, %v3928
      %v4099 = vadd.f32 %v3577, %v3931
      %v4100 = vadd.f32 %v3582, %v3936
      %v4101 = vadd.f32 %v3585, %v3939
      %v4102 = vadd.f32 %v3590, %v3944
      %v4103 = vadd.f32 %v3593, %v3947
      %v4104 = vadd.f32 %v3598, %v3952
      %v4105 = vadd.f32 %v3601, %v3955
      %v4106 = vadd.f32 %v3606, %v3960
      %v4107 = vadd.f32 %v3609, %v3963
      %v4108 = vadd.f32 %v3614, %v3968
      %v4109 = vadd.f32 %v3617, %v3971
      %v4110 = vadd.f32 %v3622, %v3976
      %v4111 = vadd.f32 %v3625, %v3979
      %v4112 = vadd.f32 %v3630, %v3984
      %v4113 = vadd.f32 %v3633, %v3987
      %v4114 = vadd.f32 %v3638, %v3992
      %v4115 = vadd.f32 %v3641, %v3995
      %v4116 = vadd.f32 %v3646, %v4000
      %v4117 = vadd.f32 %v3649, %v4003
      %v4118 = vadd.f32 %v3654, %v4008
      %v4119 = vadd.f32 %v3657, %v4011
      %v4120 = vadd.f32 %v3662, %v4016
      %v4121 = vadd.f32 %v3665, %v4019
      %v4122 = vadd.f32 %v3670, %v4024
      %v4123 = vadd.f32 %v3673, %v4027
      %v4124 = vadd.f32 %v3678, %v4032
      %v4125 = vadd.f32 %v3681, %v4035
      %v4126 = vadd.f32 %v3686, %v4040
      %v4127 = vadd.f32 %v3689, %v4043
      %v4128 = vadd.f32 %v3694, %v4048
      %v4129 = vadd.f32 %v3697, %v4051
      %v4130 = vadd.f32 %v3702, %v4056
      %v4131 = vadd.f32 %v3705, %v4059
      %v4132 = vadd.f32 %v3710, %v4064
      %v4133 = vadd.f32 %v3713, %v4067
      %vm4198 = vcmask 1045504
      %v4199 = vrot.slane %v4070, 2
      %v4200 = vrot.slane %v4071, 2
      %v4201 = vsel %vm4198, %v4199, %v4200
      %v4202 = vrot.slane %v4072, 2
      %v4203 = vsel %vm4198, %v4200, %v4202
      %v4204 = vrot.slane %v4073, 2
      %v4205 = vsel %vm4198, %v4202, %v4204
      %v4206 = vrot.slane %v4074, 2
      %v4207 = vsel %vm4198, %v4204, %v4206
      %v4208 = vrot.slane %v4075, 2
      %v4209 = vsel %vm4198, %v4206, %v4208
      %v4210 = vrot.slane %v4076, 2
      %v4211 = vsel %vm4198, %v4208, %v4210
      %v4212 = vrot.slane %v4077, 2
      %v4213 = vsel %vm4198, %v4210, %v4212
      %v4214 = vrot.slane %v4078, 2
      %v4215 = vsel %vm4198, %v4212, %v4214
      %v4216 = vrot.slane %v4079, 2
      %v4217 = vsel %vm4198, %v4214, %v4216
      %v4218 = vrot.slane %v4080, 2
      %v4219 = vsel %vm4198, %v4216, %v4218
      %v4220 = vrot.slane %v4081, 2
      %v4221 = vsel %vm4198, %v4218, %v4220
      %v4222 = vrot.slane %v4082, 2
      %v4223 = vsel %vm4198, %v4220, %v4222
      %v4224 = vrot.slane %v4083, 2
      %v4225 = vsel %vm4198, %v4222, %v4224
      %v4226 = vrot.slane %v4084, 2
      %v4227 = vsel %vm4198, %v4224, %v4226
      %v4228 = vrot.slane %v4085, 2
      %v4229 = vsel %vm4198, %v4226, %v4228
      %v4230 = vrot.slane %v4086, 2
      %v4231 = vsel %vm4198, %v4228, %v4230
      %v4232 = vrot.slane %v4087, 2
      %v4233 = vsel %vm4198, %v4230, %v4232
      %v4234 = vrot.slane %v4088, 2
      %v4235 = vsel %vm4198, %v4232, %v4234
      %v4236 = vrot.slane %v4089, 2
      %v4237 = vsel %vm4198, %v4234, %v4236
      %v4238 = vrot.slane %v4090, 2
      %v4239 = vsel %vm4198, %v4236, %v4238
      %v4240 = vrot.slane %v4091, 2
      %v4241 = vsel %vm4198, %v4238, %v4240
      %v4242 = vrot.slane %v4092, 2
      %v4243 = vsel %vm4198, %v4240, %v4242
      %v4244 = vrot.slane %v4093, 2
      %v4245 = vsel %vm4198, %v4242, %v4244
      %v4246 = vrot.slane %v4094, 2
      %v4247 = vsel %vm4198, %v4244, %v4246
      %v4248 = vrot.slane %v4095, 2
      %v4249 = vsel %vm4198, %v4246, %v4248
      %v4250 = vrot.slane %v4096, 2
      %v4251 = vsel %vm4198, %v4248, %v4250
      %v4252 = vrot.slane %v4097, 2
      %v4253 = vsel %vm4198, %v4250, %v4252
      %v4254 = vrot.slane %v4098, 2
      %v4255 = vsel %vm4198, %v4252, %v4254
      %v4256 = vrot.slane %v4099, 2
      %v4257 = vsel %vm4198, %v4254, %v4256
      %v4258 = vrot.slane %v4100, 2
      %v4259 = vsel %vm4198, %v4256, %v4258
      %v4260 = vrot.slane %v4101, 2
      %v4261 = vsel %vm4198, %v4258, %v4260
      %v4262 = vrot.slane %v4102, 2
      %v4263 = vsel %vm4198, %v4260, %v4262
      %v4264 = vrot.slane %v4103, 2
      %v4265 = vsel %vm4198, %v4262, %v4264
      %v4266 = vrot.slane %v4104, 2
      %v4267 = vsel %vm4198, %v4264, %v4266
      %v4268 = vrot.slane %v4105, 2
      %v4269 = vsel %vm4198, %v4266, %v4268
      %v4270 = vrot.slane %v4106, 2
      %v4271 = vsel %vm4198, %v4268, %v4270
      %v4272 = vrot.slane %v4107, 2
      %v4273 = vsel %vm4198, %v4270, %v4272
      %v4274 = vrot.slane %v4108, 2
      %v4275 = vsel %vm4198, %v4272, %v4274
      %v4276 = vrot.slane %v4109, 2
      %v4277 = vsel %vm4198, %v4274, %v4276
      %v4278 = vrot.slane %v4110, 2
      %v4279 = vsel %vm4198, %v4276, %v4278
      %v4280 = vrot.slane %v4111, 2
      %v4281 = vsel %vm4198, %v4278, %v4280
      %v4282 = vrot.slane %v4112, 2
      %v4283 = vsel %vm4198, %v4280, %v4282
      %v4284 = vrot.slane %v4113, 2
      %v4285 = vsel %vm4198, %v4282, %v4284
      %v4286 = vrot.slane %v4114, 2
      %v4287 = vsel %vm4198, %v4284, %v4286
      %v4288 = vrot.slane %v4115, 2
      %v4289 = vsel %vm4198, %v4286, %v4288
      %v4290 = vrot.slane %v4116, 2
      %v4291 = vsel %vm4198, %v4288, %v4290
      %v4292 = vrot.slane %v4117, 2
      %v4293 = vsel %vm4198, %v4290, %v4292
      %v4294 = vrot.slane %v4118, 2
      %v4295 = vsel %vm4198, %v4292, %v4294
      %v4296 = vrot.slane %v4119, 2
      %v4297 = vsel %vm4198, %v4294, %v4296
      %v4298 = vrot.slane %v4120, 2
      %v4299 = vsel %vm4198, %v4296, %v4298
      %v4300 = vrot.slane %v4121, 2
      %v4301 = vsel %vm4198, %v4298, %v4300
      %v4302 = vrot.slane %v4122, 2
      %v4303 = vsel %vm4198, %v4300, %v4302
      %v4304 = vrot.slane %v4123, 2
      %v4305 = vsel %vm4198, %v4302, %v4304
      %v4306 = vrot.slane %v4124, 2
      %v4307 = vsel %vm4198, %v4304, %v4306
      %v4308 = vrot.slane %v4125, 2
      %v4309 = vsel %vm4198, %v4306, %v4308
      %v4310 = vrot.slane %v4126, 2
      %v4311 = vsel %vm4198, %v4308, %v4310
      %v4312 = vrot.slane %v4127, 2
      %v4313 = vsel %vm4198, %v4310, %v4312
      %v4314 = vrot.slane %v4128, 2
      %v4315 = vsel %vm4198, %v4312, %v4314
      %v4316 = vrot.slane %v4129, 2
      %v4317 = vsel %vm4198, %v4314, %v4316
      %v4318 = vrot.slane %v4130, 2
      %v4319 = vsel %vm4198, %v4316, %v4318
      %v4320 = vrot.slane %v4131, 2
      %v4321 = vsel %vm4198, %v4318, %v4320
      %v4322 = vrot.slane %v4132, 2
      %v4323 = vsel %vm4198, %v4320, %v4322
      %v4324 = vrot.slane %v4133, 2
      %v4325 = vsel %vm4198, %v4322, %v4324
      %v4390 = vsel %vm4198, %v4324, 0.0
      %v4391 = vadd.f32 %v2944, %v4201
      %v4392 = vadd.f32 %v2945, %v4203
      %v4393 = vadd.f32 %v2946, %v4205
      %v4394 = vadd.f32 %v2947, %v4207
      %v4395 = vadd.f32 %v2948, %v4209
      %v4396 = vadd.f32 %v2949, %v4211
      %v4397 = vadd.f32 %v2950, %v4213
      %v4398 = vadd.f32 %v2951, %v4215
      %v4399 = vadd.f32 %v2952, %v4217
      %v4400 = vadd.f32 %v2953, %v4219
      %v4401 = vadd.f32 %v2954, %v4221
      %v4402 = vadd.f32 %v2955, %v4223
      %v4403 = vadd.f32 %v2956, %v4225
      %v4404 = vadd.f32 %v2957, %v4227
      %v4405 = vadd.f32 %v2958, %v4229
      %v4406 = vadd.f32 %v2959, %v4231
      %v4407 = vadd.f32 %v2960, %v4233
      %v4408 = vadd.f32 %v2961, %v4235
      %v4409 = vadd.f32 %v2962, %v4237
      %v4410 = vadd.f32 %v2963, %v4239
      %v4411 = vadd.f32 %v2964, %v4241
      %v4412 = vadd.f32 %v2965, %v4243
      %v4413 = vadd.f32 %v2966, %v4245
      %v4414 = vadd.f32 %v2967, %v4247
      %v4415 = vadd.f32 %v2968, %v4249
      %v4416 = vadd.f32 %v2969, %v4251
      %v4417 = vadd.f32 %v2970, %v4253
      %v4418 = vadd.f32 %v2971, %v4255
      %v4419 = vadd.f32 %v2972, %v4257
      %v4420 = vadd.f32 %v2973, %v4259
      %v4421 = vadd.f32 %v2974, %v4261
      %v4422 = vadd.f32 %v2975, %v4263
      %v4423 = vadd.f32 %v2976, %v4265
      %v4424 = vadd.f32 %v2977, %v4267
      %v4425 = vadd.f32 %v2978, %v4269
      %v4426 = vadd.f32 %v2979, %v4271
      %v4427 = vadd.f32 %v2980, %v4273
      %v4428 = vadd.f32 %v2981, %v4275
      %v4429 = vadd.f32 %v2982, %v4277
      %v4430 = vadd.f32 %v2983, %v4279
      %v4431 = vadd.f32 %v2984, %v4281
      %v4432 = vadd.f32 %v2985, %v4283
      %v4433 = vadd.f32 %v2986, %v4285
      %v4434 = vadd.f32 %v2987, %v4287
      %v4435 = vadd.f32 %v2988, %v4289
      %v4436 = vadd.f32 %v2989, %v4291
      %v4437 = vadd.f32 %v2990, %v4293
      %v4438 = vadd.f32 %v2991, %v4295
      %v4439 = vadd.f32 %v2992, %v4297
      %v4440 = vadd.f32 %v2993, %v4299
      %v4441 = vadd.f32 %v2994, %v4301
      %v4442 = vadd.f32 %v2995, %v4303
      %v4443 = vadd.f32 %v2996, %v4305
      %v4444 = vadd.f32 %v2997, %v4307
      %v4445 = vadd.f32 %v2998, %v4309
      %v4446 = vadd.f32 %v2999, %v4311
      %v4447 = vadd.f32 %v3000, %v4313
      %v4448 = vadd.f32 %v3001, %v4315
      %v4449 = vadd.f32 %v3002, %v4317
      %v4450 = vadd.f32 %v3003, %v4319
      %v4451 = vadd.f32 %v3004, %v4321
      %v4452 = vadd.f32 %v3005, %v4323
      %v4453 = vadd.f32 %v3006, %v4325
      %v4454 = vadd.f32 %v3007, %v4390
      %v4519 = vrot.slane %v4391, 1
      %v4520 = vrot.slane %v4392, 1
      %v4521 = vsel %vm2751, %v4519, %v4520
      %v4522 = vrot.slane %v4393, 1
      %v4523 = vsel %vm2751, %v4520, %v4522
      %v4524 = vrot.slane %v4394, 1
      %v4525 = vsel %vm2751, %v4522, %v4524
      %v4526 = vrot.slane %v4395, 1
      %v4527 = vsel %vm2751, %v4524, %v4526
      %v4528 = vrot.slane %v4396, 1
      %v4529 = vsel %vm2751, %v4526, %v4528
      %v4530 = vrot.slane %v4397, 1
      %v4531 = vsel %vm2751, %v4528, %v4530
      %v4532 = vrot.slane %v4398, 1
      %v4533 = vsel %vm2751, %v4530, %v4532
      %v4534 = vrot.slane %v4399, 1
      %v4535 = vsel %vm2751, %v4532, %v4534
      %v4536 = vrot.slane %v4400, 1
      %v4537 = vsel %vm2751, %v4534, %v4536
      %v4538 = vrot.slane %v4401, 1
      %v4539 = vsel %vm2751, %v4536, %v4538
      %v4540 = vrot.slane %v4402, 1
      %v4541 = vsel %vm2751, %v4538, %v4540
      %v4542 = vrot.slane %v4403, 1
      %v4543 = vsel %vm2751, %v4540, %v4542
      %v4544 = vrot.slane %v4404, 1
      %v4545 = vsel %vm2751, %v4542, %v4544
      %v4546 = vrot.slane %v4405, 1
      %v4547 = vsel %vm2751, %v4544, %v4546
      %v4548 = vrot.slane %v4406, 1
      %v4549 = vsel %vm2751, %v4546, %v4548
      %v4550 = vrot.slane %v4407, 1
      %v4551 = vsel %vm2751, %v4548, %v4550
      %v4552 = vrot.slane %v4408, 1
      %v4553 = vsel %vm2751, %v4550, %v4552
      %v4554 = vrot.slane %v4409, 1
      %v4555 = vsel %vm2751, %v4552, %v4554
      %v4556 = vrot.slane %v4410, 1
      %v4557 = vsel %vm2751, %v4554, %v4556
      %v4558 = vrot.slane %v4411, 1
      %v4559 = vsel %vm2751, %v4556, %v4558
      %v4560 = vrot.slane %v4412, 1
      %v4561 = vsel %vm2751, %v4558, %v4560
      %v4562 = vrot.slane %v4413, 1
      %v4563 = vsel %vm2751, %v4560, %v4562
      %v4564 = vrot.slane %v4414, 1
      %v4565 = vsel %vm2751, %v4562, %v4564
      %v4566 = vrot.slane %v4415, 1
      %v4567 = vsel %vm2751, %v4564, %v4566
      %v4568 = vrot.slane %v4416, 1
      %v4569 = vsel %vm2751, %v4566, %v4568
      %v4570 = vrot.slane %v4417, 1
      %v4571 = vsel %vm2751, %v4568, %v4570
      %v4572 = vrot.slane %v4418, 1
      %v4573 = vsel %vm2751, %v4570, %v4572
      %v4574 = vrot.slane %v4419, 1
      %v4575 = vsel %vm2751, %v4572, %v4574
      %v4576 = vrot.slane %v4420, 1
      %v4577 = vsel %vm2751, %v4574, %v4576
      %v4578 = vrot.slane %v4421, 1
      %v4579 = vsel %vm2751, %v4576, %v4578
      %v4580 = vrot.slane %v4422, 1
      %v4581 = vsel %vm2751, %v4578, %v4580
      %v4582 = vrot.slane %v4423, 1
      %v4583 = vsel %vm2751, %v4580, %v4582
      %v4584 = vrot.slane %v4424, 1
      %v4585 = vsel %vm2751, %v4582, %v4584
      %v4586 = vrot.slane %v4425, 1
      %v4587 = vsel %vm2751, %v4584, %v4586
      %v4588 = vrot.slane %v4426, 1
      %v4589 = vsel %vm2751, %v4586, %v4588
      %v4590 = vrot.slane %v4427, 1
      %v4591 = vsel %vm2751, %v4588, %v4590
      %v4592 = vrot.slane %v4428, 1
      %v4593 = vsel %vm2751, %v4590, %v4592
      %v4594 = vrot.slane %v4429, 1
      %v4595 = vsel %vm2751, %v4592, %v4594
      %v4596 = vrot.slane %v4430, 1
      %v4597 = vsel %vm2751, %v4594, %v4596
      %v4598 = vrot.slane %v4431, 1
      %v4599 = vsel %vm2751, %v4596, %v4598
      %v4600 = vrot.slane %v4432, 1
      %v4601 = vsel %vm2751, %v4598, %v4600
      %v4602 = vrot.slane %v4433, 1
      %v4603 = vsel %vm2751, %v4600, %v4602
      %v4604 = vrot.slane %v4434, 1
      %v4605 = vsel %vm2751, %v4602, %v4604
      %v4606 = vrot.slane %v4435, 1
      %v4607 = vsel %vm2751, %v4604, %v4606
      %v4608 = vrot.slane %v4436, 1
      %v4609 = vsel %vm2751, %v4606, %v4608
      %v4610 = vrot.slane %v4437, 1
      %v4611 = vsel %vm2751, %v4608, %v4610
      %v4612 = vrot.slane %v4438, 1
      %v4613 = vsel %vm2751, %v4610, %v4612
      %v4614 = vrot.slane %v4439, 1
      %v4615 = vsel %vm2751, %v4612, %v4614
      %v4616 = vrot.slane %v4440, 1
      %v4617 = vsel %vm2751, %v4614, %v4616
      %v4618 = vrot.slane %v4441, 1
      %v4619 = vsel %vm2751, %v4616, %v4618
      %v4620 = vrot.slane %v4442, 1
      %v4621 = vsel %vm2751, %v4618, %v4620
      %v4622 = vrot.slane %v4443, 1
      %v4623 = vsel %vm2751, %v4620, %v4622
      %v4624 = vrot.slane %v4444, 1
      %v4625 = vsel %vm2751, %v4622, %v4624
      %v4626 = vrot.slane %v4445, 1
      %v4627 = vsel %vm2751, %v4624, %v4626
      %v4628 = vrot.slane %v4446, 1
      %v4629 = vsel %vm2751, %v4626, %v4628
      %v4630 = vrot.slane %v4447, 1
      %v4631 = vsel %vm2751, %v4628, %v4630
      %v4632 = vrot.slane %v4448, 1
      %v4633 = vsel %vm2751, %v4630, %v4632
      %v4634 = vrot.slane %v4449, 1
      %v4635 = vsel %vm2751, %v4632, %v4634
      %v4636 = vrot.slane %v4450, 1
      %v4637 = vsel %vm2751, %v4634, %v4636
      %v4638 = vrot.slane %v4451, 1
      %v4639 = vsel %vm2751, %v4636, %v4638
      %v4640 = vrot.slane %v4452, 1
      %v4641 = vsel %vm2751, %v4638, %v4640
      %v4642 = vrot.slane %v4453, 1
      %v4643 = vsel %vm2751, %v4640, %v4642
      %v4644 = vrot.slane %v4454, 1
      %v4645 = vsel %vm2751, %v4642, %v4644
      %v4710 = vsel %vm2751, %v4644, 0.0
      %v4711 = vmax.f32 %v4391, %v4521
      %v4712 = vmax.f32 %v4392, %v4523
      %v4713 = vmax.f32 %v4393, %v4525
      %v4714 = vmax.f32 %v4394, %v4527
      %v4715 = vmax.f32 %v4395, %v4529
      %v4716 = vmax.f32 %v4396, %v4531
      %v4717 = vmax.f32 %v4397, %v4533
      %v4718 = vmax.f32 %v4398, %v4535
      %v4719 = vmax.f32 %v4399, %v4537
      %v4720 = vmax.f32 %v4400, %v4539
      %v4721 = vmax.f32 %v4401, %v4541
      %v4722 = vmax.f32 %v4402, %v4543
      %v4723 = vmax.f32 %v4403, %v4545
      %v4724 = vmax.f32 %v4404, %v4547
      %v4725 = vmax.f32 %v4405, %v4549
      %v4726 = vmax.f32 %v4406, %v4551
      %v4727 = vmax.f32 %v4407, %v4553
      %v4728 = vmax.f32 %v4408, %v4555
      %v4729 = vmax.f32 %v4409, %v4557
      %v4730 = vmax.f32 %v4410, %v4559
      %v4731 = vmax.f32 %v4411, %v4561
      %v4732 = vmax.f32 %v4412, %v4563
      %v4733 = vmax.f32 %v4413, %v4565
      %v4734 = vmax.f32 %v4414, %v4567
      %v4735 = vmax.f32 %v4415, %v4569
      %v4736 = vmax.f32 %v4416, %v4571
      %v4737 = vmax.f32 %v4417, %v4573
      %v4738 = vmax.f32 %v4418, %v4575
      %v4739 = vmax.f32 %v4419, %v4577
      %v4740 = vmax.f32 %v4420, %v4579
      %v4741 = vmax.f32 %v4421, %v4581
      %v4742 = vmax.f32 %v4422, %v4583
      %v4743 = vmax.f32 %v4423, %v4585
      %v4744 = vmax.f32 %v4424, %v4587
      %v4745 = vmax.f32 %v4425, %v4589
      %v4746 = vmax.f32 %v4426, %v4591
      %v4747 = vmax.f32 %v4427, %v4593
      %v4748 = vmax.f32 %v4428, %v4595
      %v4749 = vmax.f32 %v4429, %v4597
      %v4750 = vmax.f32 %v4430, %v4599
      %v4751 = vmax.f32 %v4431, %v4601
      %v4752 = vmax.f32 %v4432, %v4603
      %v4753 = vmax.f32 %v4433, %v4605
      %v4754 = vmax.f32 %v4434, %v4607
      %v4755 = vmax.f32 %v4435, %v4609
      %v4756 = vmax.f32 %v4436, %v4611
      %v4757 = vmax.f32 %v4437, %v4613
      %v4758 = vmax.f32 %v4438, %v4615
      %v4759 = vmax.f32 %v4439, %v4617
      %v4760 = vmax.f32 %v4440, %v4619
      %v4761 = vmax.f32 %v4441, %v4621
      %v4762 = vmax.f32 %v4442, %v4623
      %v4763 = vmax.f32 %v4443, %v4625
      %v4764 = vmax.f32 %v4444, %v4627
      %v4765 = vmax.f32 %v4445, %v4629
      %v4766 = vmax.f32 %v4446, %v4631
      %v4767 = vmax.f32 %v4447, %v4633
      %v4768 = vmax.f32 %v4448, %v4635
      %v4769 = vmax.f32 %v4449, %v4637
      %v4770 = vmax.f32 %v4450, %v4639
      %v4771 = vmax.f32 %v4451, %v4641
      %v4772 = vmax.f32 %v4452, %v4643
      %v4773 = vmax.f32 %v4453, %v4645
      %v4774 = vmax.f32 %v4454, %v4710
      %v4775 = vmax.f32 %v4711, %v4713
      %v4776 = vmax.f32 %v4712, %v4714
      %v4777 = vmax.f32 %v4715, %v4717
      %v4778 = vmax.f32 %v4716, %v4718
      %v4779 = vmax.f32 %v4719, %v4721
      %v4780 = vmax.f32 %v4720, %v4722
      %v4781 = vmax.f32 %v4723, %v4725
      %v4782 = vmax.f32 %v4724, %v4726
      %v4783 = vmax.f32 %v4727, %v4729
      %v4784 = vmax.f32 %v4728, %v4730
      %v4785 = vmax.f32 %v4731, %v4733
      %v4786 = vmax.f32 %v4732, %v4734
      %v4787 = vmax.f32 %v4735, %v4737
      %v4788 = vmax.f32 %v4736, %v4738
      %v4789 = vmax.f32 %v4739, %v4741
      %v4790 = vmax.f32 %v4740, %v4742
      %v4791 = vmax.f32 %v4743, %v4745
      %v4792 = vmax.f32 %v4744, %v4746
      %v4793 = vmax.f32 %v4747, %v4749
      %v4794 = vmax.f32 %v4748, %v4750
      %v4795 = vmax.f32 %v4751, %v4753
      %v4796 = vmax.f32 %v4752, %v4754
      %v4797 = vmax.f32 %v4755, %v4757
      %v4798 = vmax.f32 %v4756, %v4758
      %v4799 = vmax.f32 %v4759, %v4761
      %v4800 = vmax.f32 %v4760, %v4762
      %v4801 = vmax.f32 %v4763, %v4765
      %v4802 = vmax.f32 %v4764, %v4766
      %v4803 = vmax.f32 %v4767, %v4769
      %v4804 = vmax.f32 %v4768, %v4770
      %v4805 = vmax.f32 %v4771, %v4773
      %v4806 = vmax.f32 %v4772, %v4774
      %v4807 = vld [vmem:[%s2] sm:$0x1]
      %v4809 = vlaneseq
      %v4810 = vshrl.u32 %v4809, 7
      %v4811 = vsub.s32 0, %v4810
      %v4812 = vrot.slane %v4807, %v4811
      %v4814 = vadd.f32 %v4775, %v4812
      %v4815 = vadd.f32 %v4776, %v4812
      %v4816 = vadd.f32 %v4777, %v4812
      %v4817 = vadd.f32 %v4778, %v4812
      %v4818 = vadd.f32 %v4779, %v4812
      %v4819 = vadd.f32 %v4780, %v4812
      %v4820 = vadd.f32 %v4781, %v4812
      %v4821 = vadd.f32 %v4782, %v4812
      %v4822 = vadd.f32 %v4783, %v4812
      %v4823 = vadd.f32 %v4784, %v4812
      %v4824 = vadd.f32 %v4785, %v4812
      %v4825 = vadd.f32 %v4786, %v4812
      %v4826 = vadd.f32 %v4787, %v4812
      %v4827 = vadd.f32 %v4788, %v4812
      %v4828 = vadd.f32 %v4789, %v4812
      %v4829 = vadd.f32 %v4790, %v4812
      %v4830 = vadd.f32 %v4791, %v4812
      %v4831 = vadd.f32 %v4792, %v4812
      %v4832 = vadd.f32 %v4793, %v4812
      %v4833 = vadd.f32 %v4794, %v4812
      %v4834 = vadd.f32 %v4795, %v4812
      %v4835 = vadd.f32 %v4796, %v4812
      %v4836 = vadd.f32 %v4797, %v4812
      %v4837 = vadd.f32 %v4798, %v4812
      %v4838 = vadd.f32 %v4799, %v4812
      %v4839 = vadd.f32 %v4800, %v4812
      %v4840 = vadd.f32 %v4801, %v4812
      %v4841 = vadd.f32 %v4802, %v4812
      %v4842 = vadd.f32 %v4803, %v4812
      %v4843 = vadd.f32 %v4804, %v4812
      %v4844 = vadd.f32 %v4805, %v4812
      %v4845 = vadd.f32 %v4806, %v4812
      %v4846 = vmax.f32 %v4814, 0.0
      %v4847 = vmax.f32 %v4815, 0.0
      %v4848 = vmax.f32 %v4816, 0.0
      %v4849 = vmax.f32 %v4817, 0.0
      %v4850 = vmax.f32 %v4818, 0.0
      %v4851 = vmax.f32 %v4819, 0.0
      %v4852 = vmax.f32 %v4820, 0.0
      %v4853 = vmax.f32 %v4821, 0.0
      %v4854 = vmax.f32 %v4822, 0.0
      %v4855 = vmax.f32 %v4823, 0.0
      %v4856 = vmax.f32 %v4824, 0.0
      %v4857 = vmax.f32 %v4825, 0.0
      %v4858 = vmax.f32 %v4826, 0.0
      %v4859 = vmax.f32 %v4827, 0.0
      %v4860 = vmax.f32 %v4828, 0.0
      %v4861 = vmax.f32 %v4829, 0.0
      %v4862 = vmax.f32 %v4830, 0.0
      %v4863 = vmax.f32 %v4831, 0.0
      %v4864 = vmax.f32 %v4832, 0.0
      %v4865 = vmax.f32 %v4833, 0.0
      %v4866 = vmax.f32 %v4834, 0.0
      %v4867 = vmax.f32 %v4835, 0.0
      %v4868 = vmax.f32 %v4836, 0.0
      %v4869 = vmax.f32 %v4837, 0.0
      %v4870 = vmax.f32 %v4838, 0.0
      %v4871 = vmax.f32 %v4839, 0.0
      %v4872 = vmax.f32 %v4840, 0.0
      %v4873 = vmax.f32 %v4841, 0.0
      %v4874 = vmax.f32 %v4842, 0.0
      %v4875 = vmax.f32 %v4843, 0.0
      %v4876 = vmax.f32 %v4844, 0.0
      %v4877 = vmax.f32 %v4845, 0.0
      %v4878 = vpack.c.bf16 %v4847, %v4846
      %v4879 = vpack.c.bf16 %v4849, %v4848
      %v4880 = vpack.c.bf16 %v4851, %v4850
      %v4881 = vpack.c.bf16 %v4853, %v4852
      %v4882 = vpack.c.bf16 %v4855, %v4854
      %v4883 = vpack.c.bf16 %v4857, %v4856
      %v4884 = vpack.c.bf16 %v4859, %v4858
      %v4885 = vpack.c.bf16 %v4861, %v4860
      %v4886 = vpack.c.bf16 %v4863, %v4862
      %v4887 = vpack.c.bf16 %v4865, %v4864
      %v4888 = vpack.c.bf16 %v4867, %v4866
      %v4889 = vpack.c.bf16 %v4869, %v4868
      %v4890 = vpack.c.bf16 %v4871, %v4870
      %v4891 = vpack.c.bf16 %v4873, %v4872
      %v4892 = vpack.c.bf16 %v4875, %v4874
      %v4893 = vpack.c.bf16 %v4877, %v4876
      %v4910 = vunpack.c.l.b16 %v4878
      %v4911 = vunpack.c.h.b16 %v4878
      %v4912 = vunpack.c.l.b16 %v4879
      %v4913 = vunpack.c.h.b16 %v4879
      %v4914 = vunpack.c.l.b16 %v4880
      %v4915 = vunpack.c.h.b16 %v4880
      %v4916 = vunpack.c.l.b16 %v4881
      %v4917 = vunpack.c.h.b16 %v4881
      %v4918 = vunpack.c.l.b16 %v4882
      %v4919 = vunpack.c.h.b16 %v4882
      %v4920 = vunpack.c.l.b16 %v4883
      %v4921 = vunpack.c.h.b16 %v4883
      %v4922 = vunpack.c.l.b16 %v4884
      %v4923 = vunpack.c.h.b16 %v4884
      %v4924 = vunpack.c.l.b16 %v4885
      %v4925 = vunpack.c.h.b16 %v4885
      %v4926 = vunpack.c.l.b16 %v4886
      %v4927 = vunpack.c.h.b16 %v4886
      %v4928 = vunpack.c.l.b16 %v4887
      %v4929 = vunpack.c.h.b16 %v4887
      %v4930 = vunpack.c.l.b16 %v4888
      %v4931 = vunpack.c.h.b16 %v4888
      %v4932 = vunpack.c.l.b16 %v4889
      %v4933 = vunpack.c.h.b16 %v4889
      %v4934 = vunpack.c.l.b16 %v4890
      %v4935 = vunpack.c.h.b16 %v4890
      %v4936 = vunpack.c.l.b16 %v4891
      %v4937 = vunpack.c.h.b16 %v4891
      %v4938 = vunpack.c.l.b16 %v4892
      %v4939 = vunpack.c.h.b16 %v4892
      %v4940 = vunpack.c.l.b16 %v4893
      %v4941 = vunpack.c.h.b16 %v4893
      %v4942 = vpack.c.b16 %v4910, %v4910
      %v4943 = vpack.c.b16 %v4911, %v4911
      %v4944 = vpack.c.b16 %v4912, %v4912
      %v4945 = vpack.c.b16 %v4913, %v4913
      %v4946 = vpack.c.b16 %v4914, %v4914
      %v4947 = vpack.c.b16 %v4915, %v4915
      %v4948 = vpack.c.b16 %v4916, %v4916
      %v4949 = vpack.c.b16 %v4917, %v4917
      %v4950 = vpack.c.b16 %v4918, %v4918
      %v4951 = vpack.c.b16 %v4919, %v4919
      %v4952 = vpack.c.b16 %v4920, %v4920
      %v4953 = vpack.c.b16 %v4921, %v4921
      %v4954 = vpack.c.b16 %v4922, %v4922
      %v4955 = vpack.c.b16 %v4923, %v4923
      %v4956 = vpack.c.b16 %v4924, %v4924
      %v4957 = vpack.c.b16 %v4925, %v4925
      %v4958 = vpack.c.b16 %v4926, %v4926
      %v4959 = vpack.c.b16 %v4927, %v4927
      %v4960 = vpack.c.b16 %v4928, %v4928
      %v4961 = vpack.c.b16 %v4929, %v4929
      %v4962 = vpack.c.b16 %v4930, %v4930
      %v4963 = vpack.c.b16 %v4931, %v4931
      %v4964 = vpack.c.b16 %v4932, %v4932
      %v4965 = vpack.c.b16 %v4933, %v4933
      %v4966 = vpack.c.b16 %v4934, %v4934
      %v4967 = vpack.c.b16 %v4935, %v4935
      %v4968 = vpack.c.b16 %v4936, %v4936
      %v4969 = vpack.c.b16 %v4937, %v4937
      %v4970 = vpack.c.b16 %v4938, %v4938
      %v4971 = vpack.c.b16 %v4939, %v4939
      %v4972 = vpack.c.b16 %v4940, %v4940
      %v4973 = vpack.c.b16 %v4941, %v4941
      %5006 = vst [vmem:[%s177] sm:$0xf] %v4942
      %5007 = vst [vmem:[%s177 + $0x4] sm:$0xf] %v4943
      %5008 = vst [vmem:[%s177 + $0x8] sm:$0xf] %v4944
      %5009 = vst [vmem:[%s177 + $0xc] sm:$0xf] %v4945
      %5010 = vst [vmem:[%s177 + $0x10] sm:$0xf] %v4946
      %5011 = vst [vmem:[%s177 + $0x14] sm:$0xf] %v4947
      %5012 = vst [vmem:[%s177 + $0x18] sm:$0xf] %v4948
      %5013 = vst [vmem:[%s177 + $0x1c] sm:$0xf] %v4949
      %5014 = vst [vmem:[%s177 + $0x20] sm:$0xf] %v4950
      %5015 = vst [vmem:[%s177 + $0x24] sm:$0xf] %v4951
      %5016 = vst [vmem:[%s177 + $0x28] sm:$0xf] %v4952
      %5017 = vst [vmem:[%s177 + $0x2c] sm:$0xf] %v4953
      %5018 = vst [vmem:[%s177 + $0x30] sm:$0xf] %v4954
      %5019 = vst [vmem:[%s177 + $0x34] sm:$0xf] %v4955
      %5020 = vst [vmem:[%s177 + $0x38] sm:$0xf] %v4956
      %5021 = vst [vmem:[%s177 + $0x3c] sm:$0xf] %v4957
      %5022 = vst [vmem:[%s177 + $0x40] sm:$0xf] %v4958
      %5023 = vst [vmem:[%s177 + $0x44] sm:$0xf] %v4959
      %5024 = vst [vmem:[%s177 + $0x48] sm:$0xf] %v4960
      %5025 = vst [vmem:[%s177 + $0x4c] sm:$0xf] %v4961
      %5026 = vst [vmem:[%s177 + $0x50] sm:$0xf] %v4962
      %5027 = vst [vmem:[%s177 + $0x54] sm:$0xf] %v4963
      %5028 = vst [vmem:[%s177 + $0x58] sm:$0xf] %v4964
      %5029 = vst [vmem:[%s177 + $0x5c] sm:$0xf] %v4965
      %5030 = vst [vmem:[%s177 + $0x60] sm:$0xf] %v4966
      %5031 = vst [vmem:[%s177 + $0x64] sm:$0xf] %v4967
      %5032 = vst [vmem:[%s177 + $0x68] sm:$0xf] %v4968
      %5033 = vst [vmem:[%s177 + $0x6c] sm:$0xf] %v4969
      %5034 = vst [vmem:[%s177 + $0x70] sm:$0xf] %v4970
      %5035 = vst [vmem:[%s177 + $0x74] sm:$0xf] %v4971
      %5036 = vst [vmem:[%s177 + $0x78] sm:$0xf] %v4972
      %5037 = vst [vmem:[%s177 + $0x7c] sm:$0xf] %v4973
      %s5038 = smul.u32 16, %s14
      %p5039 = scmp.lt.s32.totalorder %s5038, 31
      %s5040 = scalar_select %p5039, %s5038, 31
      %s5041 = smul.addr %s5040, 2
      %s5042 = smul.addr %s5041, 4
      %s5043 = scalar_lea.vmem %s3, %s5042
      // Predicated region
      $region33: #{fashion_cnn_forward.4} parent=31 // pred_check
        %p5044 = pneg %p100
      $region34: #{fashion_cnn_forward.4} parent=31 // pred_check_branch
        %5046 = sbr.rel (%p5044) target = $region36
      $region35: #{fashion_cnn_forward.4} parent=31 // pred_region
        %s5047 = smul.u32 16, %s14
      $region36: #{fashion_cnn_forward.4} parent=31 // pred_fallthru
        _
    $region32: #{fashion_cnn_forward.4} parent=5 // pred_fallthru
      _
    %p5048 = scmp.le.s32.totalorder 2, %s9
    // Predicated region
    $region37: #{fashion_cnn_forward.4} parent=5 // pred_check
      %p5049 = pneg %p5048
    $region38: #{fashion_cnn_forward.4} parent=5 // pred_check_branch
      %5051 = sbr.rel (%p5049) target = $region40
    $region39: #{fashion_cnn_forward.4} parent=5 // pred_region
      %s5052 = ssub.s32 %s9, 2
      // Predicated region
      $region41: #{fashion_cnn_forward.4} parent=39 // pred_check
        %p5053 = pneg %p106
      $region42: #{fashion_cnn_forward.4} parent=39 // pred_check_branch
        %5055 = sbr.rel (%p5053) target = $region44
      $region43: #{fashion_cnn_forward.4} parent=39 // pred_region
        %s5056 = smul.u32 16, %s15
        %p5057 = scmp.lt.s32.totalorder %s5056, 31
        %s5058 = scalar_select %p5057, %s5056, 31
        %s5059 = smul.addr %s5058, 2
        %s5060 = smul.addr %s5059, 4
        %s5061 = scalar_lea.vmem %s3, %s5060
      $region44: #{fashion_cnn_forward.4} parent=39 // pred_fallthru
        _
    $region40: #{fashion_cnn_forward.4} parent=5 // pred_fallthru
      _
  $region6: #{fashion_cnn_forward.4} parent=0 // loop_footer
    %s13 = sadd.s32 1, %s9
  $region7: #{fashion_cnn_forward.4} parent=0 // loop_footer_branch
    %8 = sbr.rel target = $region3
  $region8: #{fashion_cnn_forward.4} parent=0 // loop_exit
    _

// kernel: fashion_cnn_forward.5
$region0: #{fashion_cnn_forward.5}
  #allocation0 [shape = 'u32[]', space=smem, size = 0x4, offset = 0x4, fixed_abs, tag = 'smem constant byte address 0x4 - core index']
  #allocation1 [shape = 'u32[144,128]{1,0:T(1,128)}', space=vmem, size = 0x12000, scoped, tag = 'internal scratch']
  %s0 = inlined_call_operand.vmem [shape: bf16[4,2304], index: 0, kind: input, shape index: {}]
  %s1 = inlined_call_operand.vmem [shape: bf16[2304,128], index: 1, kind: input, shape index: {}]
  %s2 = inlined_call_operand.vmem [shape: f32[1,128], index: 2, kind: input, shape index: {}]
  %s3 = inlined_call_operand.vmem [shape: f32[4,128], index: 3, kind: output, shape index: {}]
  %s4 = sld [smem:[#allocation0]]
  $region22: #{fashion_cnn_forward.5} parent=0
    _
  %s6 = ssub.s32 1, %s4
  %s7 = scalar_select 0, %s6, %s4
  // Predicated region
  $region2: #{fashion_cnn_forward.5} parent=0 // pred_check
    _
  $region3: #{fashion_cnn_forward.5} parent=0 // pred_check_branch
    %9 = sbr.rel (0) target = $region5
  $region4: #{fashion_cnn_forward.5} parent=0 // pred_region
    _
  $region5: #{fashion_cnn_forward.5} parent=0 // pred_fallthru
    _
  // Predicated region
  $region6: #{fashion_cnn_forward.5} parent=0 // pred_check
    _
  $region7: #{fashion_cnn_forward.5} parent=0 // pred_check_branch
    %11 = sbr.rel (0) target = $region9
  $region8: #{fashion_cnn_forward.5} parent=0 // pred_region
    _
  $region9: #{fashion_cnn_forward.5} parent=0 // pred_fallthru
    _
  // Predicated region
  $region10: #{fashion_cnn_forward.5} parent=0 // pred_check
    _
  $region11: #{fashion_cnn_forward.5} parent=0 // pred_check_branch
    %13 = sbr.rel (0) target = $region13
  $region12: #{fashion_cnn_forward.5} parent=0 // pred_region
    _
  $region13: #{fashion_cnn_forward.5} parent=0 // pred_fallthru
    _
  %v15 = vld [vmem:[%s0] sm:$0xff]
  %v16 = vld [vmem:[%s0 + $0x8] sm:$0xff]
  %v17 = vld [vmem:[%s0 + $0x10] sm:$0xff]
  %v18 = vld [vmem:[%s0 + $0x18] sm:$0xff]
  %v19 = vld [vmem:[%s0 + $0x20] sm:$0xf]
  %v20 = vld [vmem:[%s1] sm:$0xf]
  %v21 = vld [vmem:[%s1 + $0x4] sm:$0xf]
  %v22 = vld [vmem:[%s1 + $0x8] sm:$0xf]
  %v23 = vld [vmem:[%s1 + $0xc] sm:$0xf]
  %v24 = vld [vmem:[%s1 + $0x10] sm:$0xf]
  %v25 = vld [vmem:[%s1 + $0x14] sm:$0xf]
  %v26 = vld [vmem:[%s1 + $0x18] sm:$0xf]
  %v27 = vld [vmem:[%s1 + $0x1c] sm:$0xf]
  %v28 = vld [vmem:[%s1 + $0x20] sm:$0xf]
  %v29 = vld [vmem:[%s1 + $0x24] sm:$0xf]
  %v30 = vld [vmem:[%s1 + $0x28] sm:$0xf]
  %v31 = vld [vmem:[%s1 + $0x2c] sm:$0xf]
  %v32 = vld [vmem:[%s1 + $0x30] sm:$0xf]
  %v33 = vld [vmem:[%s1 + $0x34] sm:$0xf]
  %v34 = vld [vmem:[%s1 + $0x38] sm:$0xf]
  %v35 = vld [vmem:[%s1 + $0x3c] sm:$0xf]
  %v36 = vld [vmem:[%s1 + $0x40] sm:$0xf]
  %v37 = vld [vmem:[%s1 + $0x44] sm:$0xf]
  %v38 = vld [vmem:[%s1 + $0x48] sm:$0xf]
  %v39 = vld [vmem:[%s1 + $0x4c] sm:$0xf]
  %v40 = vld [vmem:[%s1 + $0x50] sm:$0xf]
  %v41 = vld [vmem:[%s1 + $0x54] sm:$0xf]
  %v42 = vld [vmem:[%s1 + $0x58] sm:$0xf]
  %v43 = vld [vmem:[%s1 + $0x5c] sm:$0xf]
  %v44 = vld [vmem:[%s1 + $0x60] sm:$0xf]
  %v45 = vld [vmem:[%s1 + $0x64] sm:$0xf]
  %v46 = vld [vmem:[%s1 + $0x68] sm:$0xf]
  %v47 = vld [vmem:[%s1 + $0x6c] sm:$0xf]
  %v48 = vld [vmem:[%s1 + $0x70] sm:$0xf]
  %v49 = vld [vmem:[%s1 + $0x74] sm:$0xf]
  %v50 = vld [vmem:[%s1 + $0x78] sm:$0xf]
  %v51 = vld [vmem:[%s1 + $0x7c] sm:$0xf]
  %v52 = vld [vmem:[%s1 + $0x80] sm:$0xf]
  %v53 = vld [vmem:[%s1 + $0x84] sm:$0xf]
  %v54 = vld [vmem:[%s1 + $0x88] sm:$0xf]
  %v55 = vld [vmem:[%s1 + $0x8c] sm:$0xf]
  %v56 = vld [vmem:[%s1 + $0x90] sm:$0xf]
  %v57 = vld [vmem:[%s1 + $0x94] sm:$0xf]
  %v58 = vld [vmem:[%s1 + $0x98] sm:$0xf]
  %v59 = vld [vmem:[%s1 + $0x9c] sm:$0xf]
  %v60 = vld [vmem:[%s1 + $0xa0] sm:$0xf]
  %v61 = vld [vmem:[%s1 + $0xa4] sm:$0xf]
  %v62 = vld [vmem:[%s1 + $0xa8] sm:$0xf]
  %v63 = vld [vmem:[%s1 + $0xac] sm:$0xf]
  %v64 = vld [vmem:[%s1 + $0xb0] sm:$0xf]
  %v65 = vld [vmem:[%s1 + $0xb4] sm:$0xf]
  %v66 = vld [vmem:[%s1 + $0xb8] sm:$0xf]
  %v67 = vld [vmem:[%s1 + $0xbc] sm:$0xf]
  %v68 = vld [vmem:[%s1 + $0xc0] sm:$0xf]
  %v69 = vld [vmem:[%s1 + $0xc4] sm:$0xf]
  %v70 = vld [vmem:[%s1 + $0xc8] sm:$0xf]
  %v71 = vld [vmem:[%s1 + $0xcc] sm:$0xf]
  %v72 = vld [vmem:[%s1 + $0xd0] sm:$0xf]
  %v73 = vld [vmem:[%s1 + $0xd4] sm:$0xf]
  %v74 = vld [vmem:[%s1 + $0xd8] sm:$0xf]
  %v75 = vld [vmem:[%s1 + $0xdc] sm:$0xf]
  %v76 = vld [vmem:[%s1 + $0xe0] sm:$0xf]
  %v77 = vld [vmem:[%s1 + $0xe4] sm:$0xf]
  %v78 = vld [vmem:[%s1 + $0xe8] sm:$0xf]
  %v79 = vld [vmem:[%s1 + $0xec] sm:$0xf]
  %v80 = vld [vmem:[%s1 + $0xf0] sm:$0xf]
  %v81 = vld [vmem:[%s1 + $0xf4] sm:$0xf]
  %v82 = vld [vmem:[%s1 + $0xf8] sm:$0xf]
  %v83 = vld [vmem:[%s1 + $0xfc] sm:$0xf]
  %v84 = vld [vmem:[%s1 + $0x100] sm:$0xf]
  %v85 = vld [vmem:[%s1 + $0x104] sm:$0xf]
  %v86 = vld [vmem:[%s1 + $0x108] sm:$0xf]
  %v87 = vld [vmem:[%s1 + $0x10c] sm:$0xf]
  %v88 = vld [vmem:[%s1 + $0x110] sm:$0xf]
  %v89 = vld [vmem:[%s1 + $0x114] sm:$0xf]
  %v90 = vld [vmem:[%s1 + $0x118] sm:$0xf]
  %v91 = vld [vmem:[%s1 + $0x11c] sm:$0xf]
  %v92 = vld [vmem:[%s1 + $0x120] sm:$0xf]
  %v93 = vld [vmem:[%s1 + $0x124] sm:$0xf]
  %v94 = vld [vmem:[%s1 + $0x128] sm:$0xf]
  %v95 = vld [vmem:[%s1 + $0x12c] sm:$0xf]
  %v96 = vld [vmem:[%s1 + $0x130] sm:$0xf]
  %v97 = vld [vmem:[%s1 + $0x134] sm:$0xf]
  %v98 = vld [vmem:[%s1 + $0x138] sm:$0xf]
  %v99 = vld [vmem:[%s1 + $0x13c] sm:$0xf]
  %v100 = vld [vmem:[%s1 + $0x140] sm:$0xf]
  %v101 = vld [vmem:[%s1 + $0x144] sm:$0xf]
  %v102 = vld [vmem:[%s1 + $0x148] sm:$0xf]
  %v103 = vld [vmem:[%s1 + $0x14c] sm:$0xf]
  %v104 = vld [vmem:[%s1 + $0x150] sm:$0xf]
  %v105 = vld [vmem:[%s1 + $0x154] sm:$0xf]
  %v106 = vld [vmem:[%s1 + $0x158] sm:$0xf]
  %v107 = vld [vmem:[%s1 + $0x15c] sm:$0xf]
  %v108 = vld [vmem:[%s1 + $0x160] sm:$0xf]
  %v109 = vld [vmem:[%s1 + $0x164] sm:$0xf]
  %v110 = vld [vmem:[%s1 + $0x168] sm:$0xf]
  %v111 = vld [vmem:[%s1 + $0x16c] sm:$0xf]
  %v112 = vld [vmem:[%s1 + $0x170] sm:$0xf]
  %v113 = vld [vmem:[%s1 + $0x174] sm:$0xf]
  %v114 = vld [vmem:[%s1 + $0x178] sm:$0xf]
  %v115 = vld [vmem:[%s1 + $0x17c] sm:$0xf]
  %v116 = vld [vmem:[%s1 + $0x180] sm:$0xf]
  %v117 = vld [vmem:[%s1 + $0x184] sm:$0xf]
  %v118 = vld [vmem:[%s1 + $0x188] sm:$0xf]
  %v119 = vld [vmem:[%s1 + $0x18c] sm:$0xf]
  %v120 = vld [vmem:[%s1 + $0x190] sm:$0xf]
  %v121 = vld [vmem:[%s1 + $0x194] sm:$0xf]
  %v122 = vld [vmem:[%s1 + $0x198] sm:$0xf]
  %v123 = vld [vmem:[%s1 + $0x19c] sm:$0xf]
  %v124 = vld [vmem:[%s1 + $0x1a0] sm:$0xf]
  %v125 = vld [vmem:[%s1 + $0x1a4] sm:$0xf]
  %v126 = vld [vmem:[%s1 + $0x1a8] sm:$0xf]
  %v127 = vld [vmem:[%s1 + $0x1ac] sm:$0xf]
  %v128 = vld [vmem:[%s1 + $0x1b0] sm:$0xf]
  %v129 = vld [vmem:[%s1 + $0x1b4] sm:$0xf]
  %v130 = vld [vmem:[%s1 + $0x1b8] sm:$0xf]
  %v131 = vld [vmem:[%s1 + $0x1bc] sm:$0xf]
  %v132 = vld [vmem:[%s1 + $0x1c0] sm:$0xf]
  %v133 = vld [vmem:[%s1 + $0x1c4] sm:$0xf]
  %v134 = vld [vmem:[%s1 + $0x1c8] sm:$0xf]
  %v135 = vld [vmem:[%s1 + $0x1cc] sm:$0xf]
  %v136 = vld [vmem:[%s1 + $0x1d0] sm:$0xf]
  %v137 = vld [vmem:[%s1 + $0x1d4] sm:$0xf]
  %v138 = vld [vmem:[%s1 + $0x1d8] sm:$0xf]
  %v139 = vld [vmem:[%s1 + $0x1dc] sm:$0xf]
  %v140 = vld [vmem:[%s1 + $0x1e0] sm:$0xf]
  %v141 = vld [vmem:[%s1 + $0x1e4] sm:$0xf]
  %v142 = vld [vmem:[%s1 + $0x1e8] sm:$0xf]
  %v143 = vld [vmem:[%s1 + $0x1ec] sm:$0xf]
  %v144 = vld [vmem:[%s1 + $0x1f0] sm:$0xf]
  %v145 = vld [vmem:[%s1 + $0x1f4] sm:$0xf]
  %v146 = vld [vmem:[%s1 + $0x1f8] sm:$0xf]
  %v147 = vld [vmem:[%s1 + $0x1fc] sm:$0xf]
  %v148 = vld [vmem:[%s1 + $0x200] sm:$0xf]
  %v149 = vld [vmem:[%s1 + $0x204] sm:$0xf]
  %v150 = vld [vmem:[%s1 + $0x208] sm:$0xf]
  %v151 = vld [vmem:[%s1 + $0x20c] sm:$0xf]
  %v152 = vld [vmem:[%s1 + $0x210] sm:$0xf]
  %v153 = vld [vmem:[%s1 + $0x214] sm:$0xf]
  %v154 = vld [vmem:[%s1 + $0x218] sm:$0xf]
  %v155 = vld [vmem:[%s1 + $0x21c] sm:$0xf]
  %v156 = vld [vmem:[%s1 + $0x220] sm:$0xf]
  %v157 = vld [vmem:[%s1 + $0x224] sm:$0xf]
  %v158 = vld [vmem:[%s1 + $0x228] sm:$0xf]
  %v159 = vld [vmem:[%s1 + $0x22c] sm:$0xf]
  %v160 = vld [vmem:[%s1 + $0x230] sm:$0xf]
  %v161 = vld [vmem:[%s1 + $0x234] sm:$0xf]
  %v162 = vld [vmem:[%s1 + $0x238] sm:$0xf]
  %v163 = vld [vmem:[%s1 + $0x23c] sm:$0xf]
  %v164 = vld [vmem:[%s1 + $0x240] sm:$0xf]
  %v165 = vld [vmem:[%s1 + $0x244] sm:$0xf]
  %v166 = vld [vmem:[%s1 + $0x248] sm:$0xf]
  %v167 = vld [vmem:[%s1 + $0x24c] sm:$0xf]
  %v168 = vld [vmem:[%s1 + $0x250] sm:$0xf]
  %v169 = vld [vmem:[%s1 + $0x254] sm:$0xf]
  %v170 = vld [vmem:[%s1 + $0x258] sm:$0xf]
  %v171 = vld [vmem:[%s1 + $0x25c] sm:$0xf]
  %v172 = vld [vmem:[%s1 + $0x260] sm:$0xf]
  %v173 = vld [vmem:[%s1 + $0x264] sm:$0xf]
  %v174 = vld [vmem:[%s1 + $0x268] sm:$0xf]
  %v175 = vld [vmem:[%s1 + $0x26c] sm:$0xf]
  %v176 = vld [vmem:[%s1 + $0x270] sm:$0xf]
  %v177 = vld [vmem:[%s1 + $0x274] sm:$0xf]
  %v178 = vld [vmem:[%s1 + $0x278] sm:$0xf]
  %v179 = vld [vmem:[%s1 + $0x27c] sm:$0xf]
  %v180 = vld [vmem:[%s1 + $0x280] sm:$0xf]
  %v181 = vld [vmem:[%s1 + $0x284] sm:$0xf]
  %v182 = vld [vmem:[%s1 + $0x288] sm:$0xf]
  %v183 = vld [vmem:[%s1 + $0x28c] sm:$0xf]
  %v184 = vld [vmem:[%s1 + $0x290] sm:$0xf]
  %v185 = vld [vmem:[%s1 + $0x294] sm:$0xf]
  %v186 = vld [vmem:[%s1 + $0x298] sm:$0xf]
  %v187 = vld [vmem:[%s1 + $0x29c] sm:$0xf]
  %v188 = vld [vmem:[%s1 + $0x2a0] sm:$0xf]
  %v189 = vld [vmem:[%s1 + $0x2a4] sm:$0xf]
  %v190 = vld [vmem:[%s1 + $0x2a8] sm:$0xf]
  %v191 = vld [vmem:[%s1 + $0x2ac] sm:$0xf]
  %v192 = vld [vmem:[%s1 + $0x2b0] sm:$0xf]
  %v193 = vld [vmem:[%s1 + $0x2b4] sm:$0xf]
  %v194 = vld [vmem:[%s1 + $0x2b8] sm:$0xf]
  %v195 = vld [vmem:[%s1 + $0x2bc] sm:$0xf]
  %v196 = vld [vmem:[%s1 + $0x2c0] sm:$0xf]
  %v197 = vld [vmem:[%s1 + $0x2c4] sm:$0xf]
  %v198 = vld [vmem:[%s1 + $0x2c8] sm:$0xf]
  %v199 = vld [vmem:[%s1 + $0x2cc] sm:$0xf]
  %v200 = vld [vmem:[%s1 + $0x2d0] sm:$0xf]
  %v201 = vld [vmem:[%s1 + $0x2d4] sm:$0xf]
  %v202 = vld [vmem:[%s1 + $0x2d8] sm:$0xf]
  %v203 = vld [vmem:[%s1 + $0x2dc] sm:$0xf]
  %v204 = vld [vmem:[%s1 + $0x2e0] sm:$0xf]
  %v205 = vld [vmem:[%s1 + $0x2e4] sm:$0xf]
  %v206 = vld [vmem:[%s1 + $0x2e8] sm:$0xf]
  %v207 = vld [vmem:[%s1 + $0x2ec] sm:$0xf]
  %v208 = vld [vmem:[%s1 + $0x2f0] sm:$0xf]
  %v209 = vld [vmem:[%s1 + $0x2f4] sm:$0xf]
  %v210 = vld [vmem:[%s1 + $0x2f8] sm:$0xf]
  %v211 = vld [vmem:[%s1 + $0x2fc] sm:$0xf]
  %v212 = vld [vmem:[%s1 + $0x300] sm:$0xf]
  %v213 = vld [vmem:[%s1 + $0x304] sm:$0xf]
  %v214 = vld [vmem:[%s1 + $0x308] sm:$0xf]
  %v215 = vld [vmem:[%s1 + $0x30c] sm:$0xf]
  %v216 = vld [vmem:[%s1 + $0x310] sm:$0xf]
  %v217 = vld [vmem:[%s1 + $0x314] sm:$0xf]
  %v218 = vld [vmem:[%s1 + $0x318] sm:$0xf]
  %v219 = vld [vmem:[%s1 + $0x31c] sm:$0xf]
  %v220 = vld [vmem:[%s1 + $0x320] sm:$0xf]
  %v221 = vld [vmem:[%s1 + $0x324] sm:$0xf]
  %v222 = vld [vmem:[%s1 + $0x328] sm:$0xf]
  %v223 = vld [vmem:[%s1 + $0x32c] sm:$0xf]
  %v224 = vld [vmem:[%s1 + $0x330] sm:$0xf]
  %v225 = vld [vmem:[%s1 + $0x334] sm:$0xf]
  %v226 = vld [vmem:[%s1 + $0x338] sm:$0xf]
  %v227 = vld [vmem:[%s1 + $0x33c] sm:$0xf]
  %v228 = vld [vmem:[%s1 + $0x340] sm:$0xf]
  %v229 = vld [vmem:[%s1 + $0x344] sm:$0xf]
  %v230 = vld [vmem:[%s1 + $0x348] sm:$0xf]
  %v231 = vld [vmem:[%s1 + $0x34c] sm:$0xf]
  %v232 = vld [vmem:[%s1 + $0x350] sm:$0xf]
  %v233 = vld [vmem:[%s1 + $0x354] sm:$0xf]
  %v234 = vld [vmem:[%s1 + $0x358] sm:$0xf]
  %v235 = vld [vmem:[%s1 + $0x35c] sm:$0xf]
  %v236 = vld [vmem:[%s1 + $0x360] sm:$0xf]
  %v237 = vld [vmem:[%s1 + $0x364] sm:$0xf]
  %v238 = vld [vmem:[%s1 + $0x368] sm:$0xf]
  %v239 = vld [vmem:[%s1 + $0x36c] sm:$0xf]
  %v240 = vld [vmem:[%s1 + $0x370] sm:$0xf]
  %v241 = vld [vmem:[%s1 + $0x374] sm:$0xf]
  %v242 = vld [vmem:[%s1 + $0x378] sm:$0xf]
  %v243 = vld [vmem:[%s1 + $0x37c] sm:$0xf]
  %v244 = vld [vmem:[%s1 + $0x380] sm:$0xf]
  %v245 = vld [vmem:[%s1 + $0x384] sm:$0xf]
  %v246 = vld [vmem:[%s1 + $0x388] sm:$0xf]
  %v247 = vld [vmem:[%s1 + $0x38c] sm:$0xf]
  %v248 = vld [vmem:[%s1 + $0x390] sm:$0xf]
  %v249 = vld [vmem:[%s1 + $0x394] sm:$0xf]
  %v250 = vld [vmem:[%s1 + $0x398] sm:$0xf]
  %v251 = vld [vmem:[%s1 + $0x39c] sm:$0xf]
  %v252 = vld [vmem:[%s1 + $0x3a0] sm:$0xf]
  %v253 = vld [vmem:[%s1 + $0x3a4] sm:$0xf]
  %v254 = vld [vmem:[%s1 + $0x3a8] sm:$0xf]
  %v255 = vld [vmem:[%s1 + $0x3ac] sm:$0xf]
  %v256 = vld [vmem:[%s1 + $0x3b0] sm:$0xf]
  %v257 = vld [vmem:[%s1 + $0x3b4] sm:$0xf]
  %v258 = vld [vmem:[%s1 + $0x3b8] sm:$0xf]
  %v259 = vld [vmem:[%s1 + $0x3bc] sm:$0xf]
  %v260 = vld [vmem:[%s1 + $0x3c0] sm:$0xf]
  %v261 = vld [vmem:[%s1 + $0x3c4] sm:$0xf]
  %v262 = vld [vmem:[%s1 + $0x3c8] sm:$0xf]
  %v263 = vld [vmem:[%s1 + $0x3cc] sm:$0xf]
  %v264 = vld [vmem:[%s1 + $0x3d0] sm:$0xf]
  %v265 = vld [vmem:[%s1 + $0x3d4] sm:$0xf]
  %v266 = vld [vmem:[%s1 + $0x3d8] sm:$0xf]
  %v267 = vld [vmem:[%s1 + $0x3dc] sm:$0xf]
  %v268 = vld [vmem:[%s1 + $0x3e0] sm:$0xf]
  %v269 = vld [vmem:[%s1 + $0x3e4] sm:$0xf]
  %v270 = vld [vmem:[%s1 + $0x3e8] sm:$0xf]
  %v271 = vld [vmem:[%s1 + $0x3ec] sm:$0xf]
  %v272 = vld [vmem:[%s1 + $0x3f0] sm:$0xf]
  %v273 = vld [vmem:[%s1 + $0x3f4] sm:$0xf]
  %v274 = vld [vmem:[%s1 + $0x3f8] sm:$0xf]
  %v275 = vld [vmem:[%s1 + $0x3fc] sm:$0xf]
  %v276 = vld [vmem:[%s1 + $0x400] sm:$0xf]
  %v277 = vld [vmem:[%s1 + $0x404] sm:$0xf]
  %v278 = vld [vmem:[%s1 + $0x408] sm:$0xf]
  %v279 = vld [vmem:[%s1 + $0x40c] sm:$0xf]
  %v280 = vld [vmem:[%s1 + $0x410] sm:$0xf]
  %v281 = vld [vmem:[%s1 + $0x414] sm:$0xf]
  %v282 = vld [vmem:[%s1 + $0x418] sm:$0xf]
  %v283 = vld [vmem:[%s1 + $0x41c] sm:$0xf]
  %v284 = vld [vmem:[%s1 + $0x420] sm:$0xf]
  %v285 = vld [vmem:[%s1 + $0x424] sm:$0xf]
  %v286 = vld [vmem:[%s1 + $0x428] sm:$0xf]
  %v287 = vld [vmem:[%s1 + $0x42c] sm:$0xf]
  %v288 = vld [vmem:[%s1 + $0x430] sm:$0xf]
  %v289 = vld [vmem:[%s1 + $0x434] sm:$0xf]
  %v290 = vld [vmem:[%s1 + $0x438] sm:$0xf]
  %v291 = vld [vmem:[%s1 + $0x43c] sm:$0xf]
  %v292 = vld [vmem:[%s1 + $0x440] sm:$0xf]
  %v293 = vld [vmem:[%s1 + $0x444] sm:$0xf]
  %v294 = vld [vmem:[%s1 + $0x448] sm:$0xf]
  %v295 = vld [vmem:[%s1 + $0x44c] sm:$0xf]
  %v296 = vld [vmem:[%s1 + $0x450] sm:$0xf]
  %v297 = vld [vmem:[%s1 + $0x454] sm:$0xf]
  %v298 = vld [vmem:[%s1 + $0x458] sm:$0xf]
  %v299 = vld [vmem:[%s1 + $0x45c] sm:$0xf]
  %v300 = vld [vmem:[%s1 + $0x460] sm:$0xf]
  %v301 = vld [vmem:[%s1 + $0x464] sm:$0xf]
  %v302 = vld [vmem:[%s1 + $0x468] sm:$0xf]
  %v303 = vld [vmem:[%s1 + $0x46c] sm:$0xf]
  %v304 = vld [vmem:[%s1 + $0x470] sm:$0xf]
  %v305 = vld [vmem:[%s1 + $0x474] sm:$0xf]
  %v306 = vld [vmem:[%s1 + $0x478] sm:$0xf]
  %v307 = vld [vmem:[%s1 + $0x47c] sm:$0xf]
  %v308 = vld [vmem:[%s2] sm:$0x1]
  %v310 = vlaneseq
  %v311 = vshrl.u32 %v310, 7
  %v312 = vsub.s32 0, %v311
  %v313 = vrot.slane %v308, %v312
  %v320 = vcombine.high %v15, %v15
  %v322 = vunpack.c.l.s4 1983009808
  %v323 = vunpack.c.0.s8 %v322
  %v324 = vlaneseq
  %v325 = vshrl.u32 %v324, 7
  %v326 = vsub.s32 %v323, %v325
  %v327 = vrot.slane %v15, %v326
  %v329 = vunpack.c.l.s4 1983009808
  %v330 = vunpack.c.0.s8 %v329
  %v331 = vlaneseq
  %v332 = vshrl.u32 %v331, 7
  %v333 = vsub.s32 %v330, %v332
  %v334 = vrot.slane %v320, %v333
  %v335 = vcombine.high %v327, %v327
  %v336 = vcombine.high %v334, %v334
  %v337 = vcombine.high %v16, %v16
  %v339 = vunpack.c.l.s4 1983009808
  %v340 = vunpack.c.0.s8 %v339
  %v341 = vlaneseq
  %v342 = vshrl.u32 %v341, 7
  %v343 = vsub.s32 %v340, %v342
  %v344 = vrot.slane %v16, %v343
  %v346 = vunpack.c.l.s4 1983009808
  %v347 = vunpack.c.0.s8 %v346
  %v348 = vlaneseq
  %v349 = vshrl.u32 %v348, 7
  %v350 = vsub.s32 %v347, %v349
  %v351 = vrot.slane %v337, %v350
  %v352 = vcombine.high %v344, %v344
  %v353 = vcombine.high %v351, %v351
  %v354 = vcombine.high %v17, %v17
  %v356 = vunpack.c.l.s4 1983009808
  %v357 = vunpack.c.0.s8 %v356
  %v358 = vlaneseq
  %v359 = vshrl.u32 %v358, 7
  %v360 = vsub.s32 %v357, %v359
  %v361 = vrot.slane %v17, %v360
  %v363 = vunpack.c.l.s4 1983009808
  %v364 = vunpack.c.0.s8 %v363
  %v365 = vlaneseq
  %v366 = vshrl.u32 %v365, 7
  %v367 = vsub.s32 %v364, %v366
  %v368 = vrot.slane %v354, %v367
  %v369 = vcombine.high %v361, %v361
  %v370 = vcombine.high %v368, %v368
  %v371 = vcombine.high %v18, %v18
  %v373 = vunpack.c.l.s4 1983009808
  %v374 = vunpack.c.0.s8 %v373
  %v375 = vlaneseq
  %v376 = vshrl.u32 %v375, 7
  %v377 = vsub.s32 %v374, %v376
  %v378 = vrot.slane %v18, %v377
  %v380 = vunpack.c.l.s4 1983009808
  %v381 = vunpack.c.0.s8 %v380
  %v382 = vlaneseq
  %v383 = vshrl.u32 %v382, 7
  %v384 = vsub.s32 %v381, %v383
  %v385 = vrot.slane %v371, %v384
  %v386 = vcombine.high %v378, %v378
  %v387 = vcombine.high %v385, %v385
  %v389 = vunpack.c.l.s4 1983009808
  %v390 = vunpack.c.0.s8 %v389
  %v391 = vlaneseq
  %v392 = vshrl.u32 %v391, 7
  %v393 = vsub.s32 %v390, %v392
  %v394 = vrot.slane %v19, %v393
  %v395 = vcombine.high %v394, %v394
  %v702 = vunpack.c.l.b16 %v20
  %v703 = vunpack.c.l.b16 %v21
  %v704 = vunpack.c.l.b16 %v22
  %v705 = vunpack.c.l.b16 %v23
  %v706 = vunpack.c.l.b16 %v24
  %v707 = vunpack.c.l.b16 %v25
  %v708 = vunpack.c.l.b16 %v26
  %v709 = vunpack.c.l.b16 %v27
  %v710 = vunpack.c.l.b16 %v28
  %v711 = vunpack.c.l.b16 %v29
  %v712 = vunpack.c.l.b16 %v30
  %v713 = vunpack.c.l.b16 %v31
  %v714 = vunpack.c.l.b16 %v32
  %v715 = vunpack.c.l.b16 %v33
  %v716 = vunpack.c.l.b16 %v34
  %v717 = vunpack.c.l.b16 %v35
  %v718 = vunpack.c.l.b16 %v36
  %v719 = vunpack.c.l.b16 %v37
  %v720 = vunpack.c.l.b16 %v38
  %v721 = vunpack.c.l.b16 %v39
  %v722 = vunpack.c.l.b16 %v40
  %v723 = vunpack.c.l.b16 %v41
  %v724 = vunpack.c.l.b16 %v42
  %v725 = vunpack.c.l.b16 %v43
  %v726 = vunpack.c.l.b16 %v44
  %v727 = vunpack.c.l.b16 %v45
  %v728 = vunpack.c.l.b16 %v46
  %v729 = vunpack.c.l.b16 %v47
  %v730 = vunpack.c.l.b16 %v48
  %v731 = vunpack.c.l.b16 %v49
  %v732 = vunpack.c.l.b16 %v50
  %v733 = vunpack.c.l.b16 %v51
  %v734 = vunpack.c.l.b16 %v52
  %v735 = vunpack.c.l.b16 %v53
  %v736 = vunpack.c.l.b16 %v54
  %v737 = vunpack.c.l.b16 %v55
  %v738 = vunpack.c.l.b16 %v56
  %v739 = vunpack.c.l.b16 %v57
  %v740 = vunpack.c.l.b16 %v58
  %v741 = vunpack.c.l.b16 %v59
  %v742 = vunpack.c.l.b16 %v60
  %v743 = vunpack.c.l.b16 %v61
  %v744 = vunpack.c.l.b16 %v62
  %v745 = vunpack.c.l.b16 %v63
  %v746 = vunpack.c.l.b16 %v64
  %v747 = vunpack.c.l.b16 %v65
  %v748 = vunpack.c.l.b16 %v66
  %v749 = vunpack.c.l.b16 %v67
  %v750 = vunpack.c.l.b16 %v68
  %v751 = vunpack.c.l.b16 %v69
  %v752 = vunpack.c.l.b16 %v70
  %v753 = vunpack.c.l.b16 %v71
  %v754 = vunpack.c.l.b16 %v72
  %v755 = vunpack.c.l.b16 %v73
  %v756 = vunpack.c.l.b16 %v74
  %v757 = vunpack.c.l.b16 %v75
  %v758 = vunpack.c.l.b16 %v76
  %v759 = vunpack.c.l.b16 %v77
  %v760 = vunpack.c.l.b16 %v78
  %v761 = vunpack.c.l.b16 %v79
  %v762 = vunpack.c.l.b16 %v80
  %v763 = vunpack.c.l.b16 %v81
  %v764 = vunpack.c.l.b16 %v82
  %v765 = vunpack.c.l.b16 %v83
  %v766 = vunpack.c.l.b16 %v84
  %v767 = vunpack.c.l.b16 %v85
  %v768 = vunpack.c.l.b16 %v86
  %v769 = vunpack.c.l.b16 %v87
  %v770 = vunpack.c.l.b16 %v88
  %v771 = vunpack.c.l.b16 %v89
  %v772 = vunpack.c.l.b16 %v90
  %v773 = vunpack.c.l.b16 %v91
  %v774 = vunpack.c.l.b16 %v92
  %v775 = vunpack.c.l.b16 %v93
  %v776 = vunpack.c.l.b16 %v94
  %v777 = vunpack.c.l.b16 %v95
  %v778 = vunpack.c.l.b16 %v96
  %v779 = vunpack.c.l.b16 %v97
  %v780 = vunpack.c.l.b16 %v98
  %v781 = vunpack.c.l.b16 %v99
  %v782 = vunpack.c.l.b16 %v100
  %v783 = vunpack.c.l.b16 %v101
  %v784 = vunpack.c.l.b16 %v102
  %v785 = vunpack.c.l.b16 %v103
  %v786 = vunpack.c.l.b16 %v104
  %v787 = vunpack.c.l.b16 %v105
  %v788 = vunpack.c.l.b16 %v106
  %v789 = vunpack.c.l.b16 %v107
  %v790 = vunpack.c.l.b16 %v108
  %v791 = vunpack.c.l.b16 %v109
  %v792 = vunpack.c.l.b16 %v110
  %v793 = vunpack.c.l.b16 %v111
  %v794 = vunpack.c.l.b16 %v112
  %v795 = vunpack.c.l.b16 %v113
  %v796 = vunpack.c.l.b16 %v114
  %v797 = vunpack.c.l.b16 %v115
  %v798 = vunpack.c.l.b16 %v116
  %v799 = vunpack.c.l.b16 %v117
  %v800 = vunpack.c.l.b16 %v118
  %v801 = vunpack.c.l.b16 %v119
  %v802 = vunpack.c.l.b16 %v120
  %v803 = vunpack.c.l.b16 %v121
  %v804 = vunpack.c.l.b16 %v122
  %v805 = vunpack.c.l.b16 %v123
  %v806 = vunpack.c.l.b16 %v124
  %v807 = vunpack.c.l.b16 %v125
  %v808 = vunpack.c.l.b16 %v126
  %v809 = vunpack.c.l.b16 %v127
  %v810 = vunpack.c.l.b16 %v128
  %v811 = vunpack.c.l.b16 %v129
  %v812 = vunpack.c.l.b16 %v130
  %v813 = vunpack.c.l.b16 %v131
  %v814 = vunpack.c.l.b16 %v132
  %v815 = vunpack.c.l.b16 %v133
  %v816 = vunpack.c.l.b16 %v134
  %v817 = vunpack.c.l.b16 %v135
  %v818 = vunpack.c.l.b16 %v136
  %v819 = vunpack.c.l.b16 %v137
  %v820 = vunpack.c.l.b16 %v138
  %v821 = vunpack.c.l.b16 %v139
  %v822 = vunpack.c.l.b16 %v140
  %v823 = vunpack.c.l.b16 %v141
  %v824 = vunpack.c.l.b16 %v142
  %v825 = vunpack.c.l.b16 %v143
  %v826 = vunpack.c.l.b16 %v144
  %v827 = vunpack.c.l.b16 %v145
  %v828 = vunpack.c.l.b16 %v146
  %v829 = vunpack.c.l.b16 %v147
  %v830 = vunpack.c.l.b16 %v148
  %v831 = vunpack.c.l.b16 %v149
  %v832 = vunpack.c.l.b16 %v150
  %v833 = vunpack.c.l.b16 %v151
  %v834 = vunpack.c.l.b16 %v152
  %v835 = vunpack.c.l.b16 %v153
  %v836 = vunpack.c.l.b16 %v154
  %v837 = vunpack.c.l.b16 %v155
  %v838 = vunpack.c.l.b16 %v156
  %v839 = vunpack.c.l.b16 %v157
  %v840 = vunpack.c.l.b16 %v158
  %v841 = vunpack.c.l.b16 %v159
  %v842 = vunpack.c.l.b16 %v160
  %v843 = vunpack.c.l.b16 %v161
  %v844 = vunpack.c.l.b16 %v162
  %v845 = vunpack.c.l.b16 %v163
  %v846 = vunpack.c.l.b16 %v164
  %v847 = vunpack.c.l.b16 %v165
  %v848 = vunpack.c.l.b16 %v166
  %v849 = vunpack.c.l.b16 %v167
  %v850 = vunpack.c.l.b16 %v168
  %v851 = vunpack.c.l.b16 %v169
  %v852 = vunpack.c.l.b16 %v170
  %v853 = vunpack.c.l.b16 %v171
  %v854 = vunpack.c.l.b16 %v172
  %v855 = vunpack.c.l.b16 %v173
  %v856 = vunpack.c.l.b16 %v174
  %v857 = vunpack.c.l.b16 %v175
  %v858 = vunpack.c.l.b16 %v176
  %v859 = vunpack.c.l.b16 %v177
  %v860 = vunpack.c.l.b16 %v178
  %v861 = vunpack.c.l.b16 %v179
  %v862 = vunpack.c.l.b16 %v180
  %v863 = vunpack.c.l.b16 %v181
  %v864 = vunpack.c.l.b16 %v182
  %v865 = vunpack.c.l.b16 %v183
  %v866 = vunpack.c.l.b16 %v184
  %v867 = vunpack.c.l.b16 %v185
  %v868 = vunpack.c.l.b16 %v186
  %v869 = vunpack.c.l.b16 %v187
  %v870 = vunpack.c.l.b16 %v188
  %v871 = vunpack.c.l.b16 %v189
  %v872 = vunpack.c.l.b16 %v190
  %v873 = vunpack.c.l.b16 %v191
  %v874 = vunpack.c.l.b16 %v192
  %v875 = vunpack.c.l.b16 %v193
  %v876 = vunpack.c.l.b16 %v194
  %v877 = vunpack.c.l.b16 %v195
  %v878 = vunpack.c.l.b16 %v196
  %v879 = vunpack.c.l.b16 %v197
  %v880 = vunpack.c.l.b16 %v198
  %v881 = vunpack.c.l.b16 %v199
  %v882 = vunpack.c.l.b16 %v200
  %v883 = vunpack.c.l.b16 %v201
  %v884 = vunpack.c.l.b16 %v202
  %v885 = vunpack.c.l.b16 %v203
  %v886 = vunpack.c.l.b16 %v204
  %v887 = vunpack.c.l.b16 %v205
  %v888 = vunpack.c.l.b16 %v206
  %v889 = vunpack.c.l.b16 %v207
  %v890 = vunpack.c.l.b16 %v208
  %v891 = vunpack.c.l.b16 %v209
  %v892 = vunpack.c.l.b16 %v210
  %v893 = vunpack.c.l.b16 %v211
  %v894 = vunpack.c.l.b16 %v212
  %v895 = vunpack.c.l.b16 %v213
  %v896 = vunpack.c.l.b16 %v214
  %v897 = vunpack.c.l.b16 %v215
  %v898 = vunpack.c.l.b16 %v216
  %v899 = vunpack.c.l.b16 %v217
  %v900 = vunpack.c.l.b16 %v218
  %v901 = vunpack.c.l.b16 %v219
  %v902 = vunpack.c.l.b16 %v220
  %v903 = vunpack.c.l.b16 %v221
  %v904 = vunpack.c.l.b16 %v222
  %v905 = vunpack.c.l.b16 %v223
  %v906 = vunpack.c.l.b16 %v224
  %v907 = vunpack.c.l.b16 %v225
  %v908 = vunpack.c.l.b16 %v226
  %v909 = vunpack.c.l.b16 %v227
  %v910 = vunpack.c.l.b16 %v228
  %v911 = vunpack.c.l.b16 %v229
  %v912 = vunpack.c.l.b16 %v230
  %v913 = vunpack.c.l.b16 %v231
  %v914 = vunpack.c.l.b16 %v232
  %v915 = vunpack.c.l.b16 %v233
  %v916 = vunpack.c.l.b16 %v234
  %v917 = vunpack.c.l.b16 %v235
  %v918 = vunpack.c.l.b16 %v236
  %v919 = vunpack.c.l.b16 %v237
  %v920 = vunpack.c.l.b16 %v238
  %v921 = vunpack.c.l.b16 %v239
  %v922 = vunpack.c.l.b16 %v240
  %v923 = vunpack.c.l.b16 %v241
  %v924 = vunpack.c.l.b16 %v242
  %v925 = vunpack.c.l.b16 %v243
  %v926 = vunpack.c.l.b16 %v244
  %v927 = vunpack.c.l.b16 %v245
  %v928 = vunpack.c.l.b16 %v246
  %v929 = vunpack.c.l.b16 %v247
  %v930 = vunpack.c.l.b16 %v248
  %v931 = vunpack.c.l.b16 %v249
  %v932 = vunpack.c.l.b16 %v250
  %v933 = vunpack.c.l.b16 %v251
  %v934 = vunpack.c.l.b16 %v252
  %v935 = vunpack.c.l.b16 %v253
  %v936 = vunpack.c.l.b16 %v254
  %v937 = vunpack.c.l.b16 %v255
  %v938 = vunpack.c.l.b16 %v256
  %v939 = vunpack.c.l.b16 %v257
  %v940 = vunpack.c.l.b16 %v258
  %v941 = vunpack.c.l.b16 %v259
  %v942 = vunpack.c.l.b16 %v260
  %v943 = vunpack.c.l.b16 %v261
  %v944 = vunpack.c.l.b16 %v262
  %v945 = vunpack.c.l.b16 %v263
  %v946 = vunpack.c.l.b16 %v264
  %v947 = vunpack.c.l.b16 %v265
  %v948 = vunpack.c.l.b16 %v266
  %v949 = vunpack.c.l.b16 %v267
  %v950 = vunpack.c.l.b16 %v268
  %v951 = vunpack.c.l.b16 %v269
  %v952 = vunpack.c.l.b16 %v270
  %v953 = vunpack.c.l.b16 %v271
  %v954 = vunpack.c.l.b16 %v272
  %v955 = vunpack.c.l.b16 %v273
  %v956 = vunpack.c.l.b16 %v274
  %v957 = vunpack.c.l.b16 %v275
  %v958 = vunpack.c.l.b16 %v276
  %v959 = vunpack.c.l.b16 %v277
  %v960 = vunpack.c.l.b16 %v278
  %v961 = vunpack.c.l.b16 %v279
  %v962 = vunpack.c.l.b16 %v280
  %v963 = vunpack.c.l.b16 %v281
  %v964 = vunpack.c.l.b16 %v282
  %v965 = vunpack.c.l.b16 %v283
  %v966 = vunpack.c.l.b16 %v284
  %v967 = vunpack.c.l.b16 %v285
  %v968 = vunpack.c.l.b16 %v286
  %v969 = vunpack.c.l.b16 %v287
  %v970 = vunpack.c.l.b16 %v288
  %v971 = vunpack.c.l.b16 %v289
  %v972 = vunpack.c.l.b16 %v290
  %v973 = vunpack.c.l.b16 %v291
  %v974 = vunpack.c.l.b16 %v292
  %v975 = vunpack.c.l.b16 %v293
  %v976 = vunpack.c.l.b16 %v294
  %v977 = vunpack.c.l.b16 %v295
  %v978 = vunpack.c.l.b16 %v296
  %v979 = vunpack.c.l.b16 %v297
  %v980 = vunpack.c.l.b16 %v298
  %v981 = vunpack.c.l.b16 %v299
  %v982 = vunpack.c.l.b16 %v300
  %v983 = vunpack.c.l.b16 %v301
  %v984 = vunpack.c.l.b16 %v302
  %v985 = vunpack.c.l.b16 %v303
  %v986 = vunpack.c.l.b16 %v304
  %v987 = vunpack.c.l.b16 %v305
  %v988 = vunpack.c.l.b16 %v306
  %v989 = vunpack.c.l.b16 %v307
  %v990 = vpack.c.b16 %v703, %v702
  %v991 = vpack.c.b16 %v705, %v704
  %v992 = vpack.c.b16 %v707, %v706
  %v993 = vpack.c.b16 %v709, %v708
  %v994 = vpack.c.b16 %v711, %v710
  %v995 = vpack.c.b16 %v713, %v712
  %v996 = vpack.c.b16 %v715, %v714
  %v997 = vpack.c.b16 %v717, %v716
  %v998 = vpack.c.b16 %v719, %v718
  %v999 = vpack.c.b16 %v721, %v720
  %v1000 = vpack.c.b16 %v723, %v722
  %v1001 = vpack.c.b16 %v725, %v724
  %v1002 = vpack.c.b16 %v727, %v726
  %v1003 = vpack.c.b16 %v729, %v728
  %v1004 = vpack.c.b16 %v731, %v730
  %v1005 = vpack.c.b16 %v733, %v732
  %v1006 = vpack.c.b16 %v735, %v734
  %v1007 = vpack.c.b16 %v737, %v736
  %v1008 = vpack.c.b16 %v739, %v738
  %v1009 = vpack.c.b16 %v741, %v740
  %v1010 = vpack.c.b16 %v743, %v742
  %v1011 = vpack.c.b16 %v745, %v744
  %v1012 = vpack.c.b16 %v747, %v746
  %v1013 = vpack.c.b16 %v749, %v748
  %v1014 = vpack.c.b16 %v751, %v750
  %v1015 = vpack.c.b16 %v753, %v752
  %v1016 = vpack.c.b16 %v755, %v754
  %v1017 = vpack.c.b16 %v757, %v756
  %v1018 = vpack.c.b16 %v759, %v758
  %v1019 = vpack.c.b16 %v761, %v760
  %v1020 = vpack.c.b16 %v763, %v762
  %v1021 = vpack.c.b16 %v765, %v764
  %v1022 = vpack.c.b16 %v767, %v766
  %v1023 = vpack.c.b16 %v769, %v768
  %v1024 = vpack.c.b16 %v771, %v770
  %v1025 = vpack.c.b16 %v773, %v772
  %v1026 = vpack.c.b16 %v775, %v774
  %v1027 = vpack.c.b16 %v777, %v776
  %v1028 = vpack.c.b16 %v779, %v778
  %v1029 = vpack.c.b16 %v781, %v780
  %v1030 = vpack.c.b16 %v783, %v782
  %v1031 = vpack.c.b16 %v785, %v784
  %v1032 = vpack.c.b16 %v787, %v786
  %v1033 = vpack.c.b16 %v789, %v788
  %v1034 = vpack.c.b16 %v791, %v790
  %v1035 = vpack.c.b16 %v793, %v792
  %v1036 = vpack.c.b16 %v795, %v794
  %v1037 = vpack.c.b16 %v797, %v796
  %v1038 = vpack.c.b16 %v799, %v798
  %v1039 = vpack.c.b16 %v801, %v800
  %v1040 = vpack.c.b16 %v803, %v802
  %v1041 = vpack.c.b16 %v805, %v804
  %v1042 = vpack.c.b16 %v807, %v806
  %v1043 = vpack.c.b16 %v809, %v808
  %v1044 = vpack.c.b16 %v811, %v810
  %v1045 = vpack.c.b16 %v813, %v812
  %v1046 = vpack.c.b16 %v815, %v814
  %v1047 = vpack.c.b16 %v817, %v816
  %v1048 = vpack.c.b16 %v819, %v818
  %v1049 = vpack.c.b16 %v821, %v820
  %v1050 = vpack.c.b16 %v823, %v822
  %v1051 = vpack.c.b16 %v825, %v824
  %v1052 = vpack.c.b16 %v827, %v826
  %v1053 = vpack.c.b16 %v829, %v828
  %v1054 = vpack.c.b16 %v831, %v830
  %v1055 = vpack.c.b16 %v833, %v832
  %v1056 = vpack.c.b16 %v835, %v834
  %v1057 = vpack.c.b16 %v837, %v836
  %v1058 = vpack.c.b16 %v839, %v838
  %v1059 = vpack.c.b16 %v841, %v840
  %v1060 = vpack.c.b16 %v843, %v842
  %v1061 = vpack.c.b16 %v845, %v844
  %v1062 = vpack.c.b16 %v847, %v846
  %v1063 = vpack.c.b16 %v849, %v848
  %v1064 = vpack.c.b16 %v851, %v850
  %v1065 = vpack.c.b16 %v853, %v852
  %v1066 = vpack.c.b16 %v855, %v854
  %v1067 = vpack.c.b16 %v857, %v856
  %v1068 = vpack.c.b16 %v859, %v858
  %v1069 = vpack.c.b16 %v861, %v860
  %v1070 = vpack.c.b16 %v863, %v862
  %v1071 = vpack.c.b16 %v865, %v864
  %v1072 = vpack.c.b16 %v867, %v866
  %v1073 = vpack.c.b16 %v869, %v868
  %v1074 = vpack.c.b16 %v871, %v870
  %v1075 = vpack.c.b16 %v873, %v872
  %v1076 = vpack.c.b16 %v875, %v874
  %v1077 = vpack.c.b16 %v877, %v876
  %v1078 = vpack.c.b16 %v879, %v878
  %v1079 = vpack.c.b16 %v881, %v880
  %v1080 = vpack.c.b16 %v883, %v882
  %v1081 = vpack.c.b16 %v885, %v884
  %v1082 = vpack.c.b16 %v887, %v886
  %v1083 = vpack.c.b16 %v889, %v888
  %v1084 = vpack.c.b16 %v891, %v890
  %v1085 = vpack.c.b16 %v893, %v892
  %v1086 = vpack.c.b16 %v895, %v894
  %v1087 = vpack.c.b16 %v897, %v896
  %v1088 = vpack.c.b16 %v899, %v898
  %v1089 = vpack.c.b16 %v901, %v900
  %v1090 = vpack.c.b16 %v903, %v902
  %v1091 = vpack.c.b16 %v905, %v904
  %v1092 = vpack.c.b16 %v907, %v906
  %v1093 = vpack.c.b16 %v909, %v908
  %v1094 = vpack.c.b16 %v911, %v910
  %v1095 = vpack.c.b16 %v913, %v912
  %v1096 = vpack.c.b16 %v915, %v914
  %v1097 = vpack.c.b16 %v917, %v916
  %v1098 = vpack.c.b16 %v919, %v918
  %v1099 = vpack.c.b16 %v921, %v920
  %v1100 = vpack.c.b16 %v923, %v922
  %v1101 = vpack.c.b16 %v925, %v924
  %v1102 = vpack.c.b16 %v927, %v926
  %v1103 = vpack.c.b16 %v929, %v928
  %v1104 = vpack.c.b16 %v931, %v930
  %v1105 = vpack.c.b16 %v933, %v932
  %v1106 = vpack.c.b16 %v935, %v934
  %v1107 = vpack.c.b16 %v937, %v936
  %v1108 = vpack.c.b16 %v939, %v938
  %v1109 = vpack.c.b16 %v941, %v940
  %v1110 = vpack.c.b16 %v943, %v942
  %v1111 = vpack.c.b16 %v945, %v944
  %v1112 = vpack.c.b16 %v947, %v946
  %v1113 = vpack.c.b16 %v949, %v948
  %v1114 = vpack.c.b16 %v951, %v950
  %v1115 = vpack.c.b16 %v953, %v952
  %v1116 = vpack.c.b16 %v955, %v954
  %v1117 = vpack.c.b16 %v957, %v956
  %v1118 = vpack.c.b16 %v959, %v958
  %v1119 = vpack.c.b16 %v961, %v960
  %v1120 = vpack.c.b16 %v963, %v962
  %v1121 = vpack.c.b16 %v965, %v964
  %v1122 = vpack.c.b16 %v967, %v966
  %v1123 = vpack.c.b16 %v969, %v968
  %v1124 = vpack.c.b16 %v971, %v970
  %v1125 = vpack.c.b16 %v973, %v972
  %v1126 = vpack.c.b16 %v975, %v974
  %v1127 = vpack.c.b16 %v977, %v976
  %v1128 = vpack.c.b16 %v979, %v978
  %v1129 = vpack.c.b16 %v981, %v980
  %v1130 = vpack.c.b16 %v983, %v982
  %v1131 = vpack.c.b16 %v985, %v984
  %v1132 = vpack.c.b16 %v987, %v986
  %v1133 = vpack.c.b16 %v989, %v988
  %1278 = vmatprep.subr.bf16.mxu0 0
  %1279 = vmatpush1.bf16.msra.mxu0 %v990
  %1280 = vmatprep.subr.bf16.mxu0 0
  %1281 = vmatpush1.bf16.msra.mxu0 %v991
  %1282 = vmatprep.subr.bf16.mxu0 0
  %1283 = vmatpush1.bf16.msra.mxu0 %v992
  %1284 = vmatprep.subr.bf16.mxu0 0
  %1285 = vmatpush1.bf16.msra.mxu0 %v993
  %1286 = vmatprep.subr.bf16.mxu0 0
  %1287 = vmatpush1.bf16.msra.mxu0 %v994
  %1288 = vmatprep.subr.bf16.mxu0 0
  %1289 = vmatpush1.bf16.msra.mxu0 %v995
  %1290 = vmatprep.subr.bf16.mxu0 0
  %1291 = vmatpush1.bf16.msra.mxu0 %v996
  %1292 = vmatprep.subr.bf16.mxu0 0
  %1293 = vmatpush1.bf16.msra.mxu0 %v997
  %1294 = vmatprep.subr.bf16.mxu0 0
  %1295 = vmatpush1.bf16.msra.mxu0 %v998
  %1296 = vmatprep.subr.bf16.mxu0 0
  %1297 = vmatpush1.bf16.msra.mxu0 %v999
  %1298 = vmatprep.subr.bf16.mxu0 0
  %1299 = vmatpush1.bf16.msra.mxu0 %v1000
  %1300 = vmatprep.subr.bf16.mxu0 0
  %1301 = vmatpush1.bf16.msra.mxu0 %v1001
  %1302 = vmatprep.subr.bf16.mxu0 0
  %1303 = vmatpush1.bf16.msra.mxu0 %v1002
  %1304 = vmatprep.subr.bf16.mxu0 0
  %1305 = vmatpush1.bf16.msra.mxu0 %v1003
  %1306 = vmatprep.subr.bf16.mxu0 0
  %1307 = vmatpush1.bf16.msra.mxu0 %v1004
  %1308 = vmatprep.subr.bf16.mxu0 0
  %1309 = vmatpush1.bf16.msra.mxu0 %v1005
  %1310 = vmatprep.mubr.bf16.mxu0 %v335
  %1311 = vmatmul.mubr.bf16.gmra.mrb[0].mxu0 %v327
  %v1312 = vpop.f32.mrb[0].mxu0
  %v1313 = vadd.f32 %v313, %v1312
  %v1314 = vpop.f32.mrb[0].mxu0
  %v1315 = vpop.f32.mrb[0].mxu0
  %v1316 = vpop.f32.mrb[0].mxu0
  %1317 = vdwg.mxu0
  %1318 = vmatprep.subr.bf16.mxu0 0
  %1319 = vmatpush1.bf16.msra.mxu0 %v1006
  %1320 = vmatprep.subr.bf16.mxu0 0
  %1321 = vmatpush1.bf16.msra.mxu0 %v1007
  %1322 = vmatprep.subr.bf16.mxu0 0
  %1323 = vmatpush1.bf16.msra.mxu0 %v1008
  %1324 = vmatprep.subr.bf16.mxu0 0
  %1325 = vmatpush1.bf16.msra.mxu0 %v1009
  %1326 = vmatprep.subr.bf16.mxu0 0
  %1327 = vmatpush1.bf16.msra.mxu0 %v1010
  %1328 = vmatprep.subr.bf16.mxu0 0
  %1329 = vmatpush1.bf16.msra.mxu0 %v1011
  %1330 = vmatprep.subr.bf16.mxu0 0
  %1331 = vmatpush1.bf16.msra.mxu0 %v1012
  %1332 = vmatprep.subr.bf16.mxu0 0
  %1333 = vmatpush1.bf16.msra.mxu0 %v1013
  %1334 = vmatprep.subr.bf16.mxu0 0
  %1335 = vmatpush1.bf16.msra.mxu0 %v1014
  %1336 = vmatprep.subr.bf16.mxu0 0
  %1337 = vmatpush1.bf16.msra.mxu0 %v1015
  %1338 = vmatprep.subr.bf16.mxu0 0
  %1339 = vmatpush1.bf16.msra.mxu0 %v1016
  %1340 = vmatprep.subr.bf16.mxu0 0
  %1341 = vmatpush1.bf16.msra.mxu0 %v1017
  %1342 = vmatprep.subr.bf16.mxu0 0
  %1343 = vmatpush1.bf16.msra.mxu0 %v1018
  %1344 = vmatprep.subr.bf16.mxu0 0
  %1345 = vmatpush1.bf16.msra.mxu0 %v1019
  %1346 = vmatprep.subr.bf16.mxu0 0
  %1347 = vmatpush1.bf16.msra.mxu0 %v1020
  %1348 = vmatprep.subr.bf16.mxu0 0
  %1349 = vmatpush1.bf16.msra.mxu0 %v1021
  %1350 = vmatprep.mubr.bf16.mxu0 %v336
  %1351 = vmatmul.mubr.bf16.gmra.mrb[0].mxu0 %v334
  %v1352 = vpop.f32.mrb[0].mxu0
  %v1353 = vadd.f32 %v1313, %v1352
  %v1354 = vpop.f32.mrb[0].mxu0
  %v1355 = vpop.f32.mrb[0].mxu0
  %v1356 = vpop.f32.mrb[0].mxu0
  %1357 = vdwg.mxu0
  %1358 = vmatprep.subr.bf16.mxu0 0
  %1359 = vmatpush1.bf16.msra.mxu0 %v1022
  %1360 = vmatprep.subr.bf16.mxu0 0
  %1361 = vmatpush1.bf16.msra.mxu0 %v1023
  %1362 = vmatprep.subr.bf16.mxu0 0
  %1363 = vmatpush1.bf16.msra.mxu0 %v1024
  %1364 = vmatprep.subr.bf16.mxu0 0
  %1365 = vmatpush1.bf16.msra.mxu0 %v1025
  %1366 = vmatprep.subr.bf16.mxu0 0
  %1367 = vmatpush1.bf16.msra.mxu0 %v1026
  %1368 = vmatprep.subr.bf16.mxu0 0
  %1369 = vmatpush1.bf16.msra.mxu0 %v1027
  %1370 = vmatprep.subr.bf16.mxu0 0
  %1371 = vmatpush1.bf16.msra.mxu0 %v1028
  %1372 = vmatprep.subr.bf16.mxu0 0
  %1373 = vmatpush1.bf16.msra.mxu0 %v1029
  %1374 = vmatprep.subr.bf16.mxu0 0
  %1375 = vmatpush1.bf16.msra.mxu0 %v1030
  %1376 = vmatprep.subr.bf16.mxu0 0
  %1377 = vmatpush1.bf16.msra.mxu0 %v1031
  %1378 = vmatprep.subr.bf16.mxu0 0
  %1379 = vmatpush1.bf16.msra.mxu0 %v1032
  %1380 = vmatprep.subr.bf16.mxu0 0
  %1381 = vmatpush1.bf16.msra.mxu0 %v1033
  %1382 = vmatprep.subr.bf16.mxu0 0
  %1383 = vmatpush1.bf16.msra.mxu0 %v1034
  %1384 = vmatprep.subr.bf16.mxu0 0
  %1385 = vmatpush1.bf16.msra.mxu0 %v1035
  %1386 = vmatprep.subr.bf16.mxu0 0
  %1387 = vmatpush1.bf16.msra.mxu0 %v1036
  %1388 = vmatprep.subr.bf16.mxu0 0
  %1389 = vmatpush1.bf16.msra.mxu0 %v1037
  %1390 = vmatprep.mubr.bf16.mxu0 %v352
  %1391 = vmatmul.mubr.bf16.gmra.mrb[0].mxu0 %v344
  %v1392 = vpop.f32.mrb[0].mxu0
  %v1393 = vadd.f32 %v1353, %v1392
  %v1394 = vpop.f32.mrb[0].mxu0
  %v1395 = vpop.f32.mrb[0].mxu0
  %v1396 = vpop.f32.mrb[0].mxu0
  %1397 = vdwg.mxu0
  %1398 = vmatprep.subr.bf16.mxu0 0
  %1399 = vmatpush1.bf16.msra.mxu0 %v1038
  %1400 = vmatprep.subr.bf16.mxu0 0
  %1401 = vmatpush1.bf16.msra.mxu0 %v1039
  %1402 = vmatprep.subr.bf16.mxu0 0
  %1403 = vmatpush1.bf16.msra.mxu0 %v1040
  %1404 = vmatprep.subr.bf16.mxu0 0
  %1405 = vmatpush1.bf16.msra.mxu0 %v1041
  %1406 = vmatprep.subr.bf16.mxu0 0
  %1407 = vmatpush1.bf16.msra.mxu0 %v1042
  %1408 = vmatprep.subr.bf16.mxu0 0
  %1409 = vmatpush1.bf16.msra.mxu0 %v1043
  %1410 = vmatprep.subr.bf16.mxu0 0
  %1411 = vmatpush1.bf16.msra.mxu0 %v1044
  %1412 = vmatprep.subr.bf16.mxu0 0
  %1413 = vmatpush1.bf16.msra.mxu0 %v1045
  %1414 = vmatprep.subr.bf16.mxu0 0
  %1415 = vmatpush1.bf16.msra.mxu0 %v1046
  %1416 = vmatprep.subr.bf16.mxu0 0
  %1417 = vmatpush1.bf16.msra.mxu0 %v1047
  %1418 = vmatprep.subr.bf16.mxu0 0
  %1419 = vmatpush1.bf16.msra.mxu0 %v1048
  %1420 = vmatprep.subr.bf16.mxu0 0
  %1421 = vmatpush1.bf16.msra.mxu0 %v1049
  %1422 = vmatprep.subr.bf16.mxu0 0
  %1423 = vmatpush1.bf16.msra.mxu0 %v1050
  %1424 = vmatprep.subr.bf16.mxu0 0
  %1425 = vmatpush1.bf16.msra.mxu0 %v1051
  %1426 = vmatprep.subr.bf16.mxu0 0
  %1427 = vmatpush1.bf16.msra.mxu0 %v1052
  %1428 = vmatprep.subr.bf16.mxu0 0
  %1429 = vmatpush1.bf16.msra.mxu0 %v1053
  %1430 = vmatprep.mubr.bf16.mxu0 %v353
  %1431 = vmatmul.mubr.bf16.gmra.mrb[0].mxu0 %v351
  %v1432 = vpop.f32.mrb[0].mxu0
  %v1433 = vadd.f32 %v1393, %v1432
  %v1434 = vpop.f32.mrb[0].mxu0
  %v1435 = vpop.f32.mrb[0].mxu0
  %v1436 = vpop.f32.mrb[0].mxu0
  %1437 = vdwg.mxu0
  %1438 = vmatprep.subr.bf16.mxu0 0
  %1439 = vmatpush1.bf16.msra.mxu0 %v1054
  %1440 = vmatprep.subr.bf16.mxu0 0
  %1441 = vmatpush1.bf16.msra.mxu0 %v1055
  %1442 = vmatprep.subr.bf16.mxu0 0
  %1443 = vmatpush1.bf16.msra.mxu0 %v1056
  %1444 = vmatprep.subr.bf16.mxu0 0
  %1445 = vmatpush1.bf16.msra.mxu0 %v1057
  %1446 = vmatprep.subr.bf16.mxu0 0
  %1447 = vmatpush1.bf16.msra.mxu0 %v1058
  %1448 = vmatprep.subr.bf16.mxu0 0
  %1449 = vmatpush1.bf16.msra.mxu0 %v1059
  %1450 = vmatprep.subr.bf16.mxu0 0
  %1451 = vmatpush1.bf16.msra.mxu0 %v1060
  %1452 = vmatprep.subr.bf16.mxu0 0
  %1453 = vmatpush1.bf16.msra.mxu0 %v1061
  %1454 = vmatprep.subr.bf16.mxu0 0
  %1455 = vmatpush1.bf16.msra.mxu0 %v1062
  %1456 = vmatprep.subr.bf16.mxu0 0
  %1457 = vmatpush1.bf16.msra.mxu0 %v1063
  %1458 = vmatprep.subr.bf16.mxu0 0
  %1459 = vmatpush1.bf16.msra.mxu0 %v1064
  %1460 = vmatprep.subr.bf16.mxu0 0
  %1461 = vmatpush1.bf16.msra.mxu0 %v1065
  %1462 = vmatprep.subr.bf16.mxu0 0
  %1463 = vmatpush1.bf16.msra.mxu0 %v1066
  %1464 = vmatprep.subr.bf16.mxu0 0
  %1465 = vmatpush1.bf16.msra.mxu0 %v1067
  %1466 = vmatprep.subr.bf16.mxu0 0
  %1467 = vmatpush1.bf16.msra.mxu0 %v1068
  %1468 = vmatprep.subr.bf16.mxu0 0
  %1469 = vmatpush1.bf16.msra.mxu0 %v1069
  %1470 = vmatprep.mubr.bf16.mxu0 %v369
  %1471 = vmatmul.mubr.bf16.gmra.mrb[0].mxu0 %v361
  %v1472 = vpop.f32.mrb[0].mxu0
  %v1473 = vadd.f32 %v1433, %v1472
  %v1474 = vpop.f32.mrb[0].mxu0
  %v1475 = vpop.f32.mrb[0].mxu0
  %v1476 = vpop.f32.mrb[0].mxu0
  %1477 = vdwg.mxu0
  %1478 = vmatprep.subr.bf16.mxu0 0
  %1479 = vmatpush1.bf16.msra.mxu0 %v1070
  %1480 = vmatprep.subr.bf16.mxu0 0
  %1481 = vmatpush1.bf16.msra.mxu0 %v1071
  %1482 = vmatprep.subr.bf16.mxu0 0
  %1483 = vmatpush1.bf16.msra.mxu0 %v1072
  %1484 = vmatprep.subr.bf16.mxu0 0
  %1485 = vmatpush1.bf16.msra.mxu0 %v1073
  %1486 = vmatprep.subr.bf16.mxu0 0
  %1487 = vmatpush1.bf16.msra.mxu0 %v1074
  %1488 = vmatprep.subr.bf16.mxu0 0
  %1489 = vmatpush1.bf16.msra.mxu0 %v1075
  %1490 = vmatprep.subr.bf16.mxu0 0
  %1491 = vmatpush1.bf16.msra.mxu0 %v1076
  %1492 = vmatprep.subr.bf16.mxu0 0
  %1493 = vmatpush1.bf16.msra.mxu0 %v1077
  %1494 = vmatprep.subr.bf16.mxu0 0
  %1495 = vmatpush1.bf16.msra.mxu0 %v1078
  %1496 = vmatprep.subr.bf16.mxu0 0
  %1497 = vmatpush1.bf16.msra.mxu0 %v1079
  %1498 = vmatprep.subr.bf16.mxu0 0
  %1499 = vmatpush1.bf16.msra.mxu0 %v1080
  %1500 = vmatprep.subr.bf16.mxu0 0
  %1501 = vmatpush1.bf16.msra.mxu0 %v1081
  %1502 = vmatprep.subr.bf16.mxu0 0
  %1503 = vmatpush1.bf16.msra.mxu0 %v1082
  %1504 = vmatprep.subr.bf16.mxu0 0
  %1505 = vmatpush1.bf16.msra.mxu0 %v1083
  %1506 = vmatprep.subr.bf16.mxu0 0
  %1507 = vmatpush1.bf16.msra.mxu0 %v1084
  %1508 = vmatprep.subr.bf16.mxu0 0
  %1509 = vmatpush1.bf16.msra.mxu0 %v1085
  %1510 = vmatprep.mubr.bf16.mxu0 %v370
  %1511 = vmatmul.mubr.bf16.gmra.mrb[0].mxu0 %v368
  %v1512 = vpop.f32.mrb[0].mxu0
  %v1513 = vadd.f32 %v1473, %v1512
  %v1514 = vpop.f32.mrb[0].mxu0
  %v1515 = vpop.f32.mrb[0].mxu0
  %v1516 = vpop.f32.mrb[0].mxu0
  %1517 = vdwg.mxu0
  %1518 = vmatprep.subr.bf16.mxu0 0
  %1519 = vmatpush1.bf16.msra.mxu0 %v1086
  %1520 = vmatprep.subr.bf16.mxu0 0
  %1521 = vmatpush1.bf16.msra.mxu0 %v1087
  %1522 = vmatprep.subr.bf16.mxu0 0
  %1523 = vmatpush1.bf16.msra.mxu0 %v1088
  %1524 = vmatprep.subr.bf16.mxu0 0
  %1525 = vmatpush1.bf16.msra.mxu0 %v1089
  %1526 = vmatprep.subr.bf16.mxu0 0
  %1527 = vmatpush1.bf16.msra.mxu0 %v1090
  %1528 = vmatprep.subr.bf16.mxu0 0
  %1529 = vmatpush1.bf16.msra.mxu0 %v1091
  %1530 = vmatprep.subr.bf16.mxu0 0
  %1531 = vmatpush1.bf16.msra.mxu0 %v1092
  %1532 = vmatprep.subr.bf16.mxu0 0
  %1533 = vmatpush1.bf16.msra.mxu0 %v1093
  %1534 = vmatprep.subr.bf16.mxu0 0
  %1535 = vmatpush1.bf16.msra.mxu0 %v1094
  %1536 = vmatprep.subr.bf16.mxu0 0
  %1537 = vmatpush1.bf16.msra.mxu0 %v1095
  %1538 = vmatprep.subr.bf16.mxu0 0
  %1539 = vmatpush1.bf16.msra.mxu0 %v1096
  %1540 = vmatprep.subr.bf16.mxu0 0
  %1541 = vmatpush1.bf16.msra.mxu0 %v1097
  %1542 = vmatprep.subr.bf16.mxu0 0
  %1543 = vmatpush1.bf16.msra.mxu0 %v1098
  %1544 = vmatprep.subr.bf16.mxu0 0
  %1545 = vmatpush1.bf16.msra.mxu0 %v1099
  %1546 = vmatprep.subr.bf16.mxu0 0
  %1547 = vmatpush1.bf16.msra.mxu0 %v1100
  %1548 = vmatprep.subr.bf16.mxu0 0
  %1549 = vmatpush1.bf16.msra.mxu0 %v1101
  %1550 = vmatprep.mubr.bf16.mxu0 %v386
  %1551 = vmatmul.mubr.bf16.gmra.mrb[0].mxu0 %v378
  %v1552 = vpop.f32.mrb[0].mxu0
  %v1553 = vadd.f32 %v1513, %v1552
  %v1554 = vpop.f32.mrb[0].mxu0
  %v1555 = vpop.f32.mrb[0].mxu0
  %v1556 = vpop.f32.mrb[0].mxu0
  %1557 = vdwg.mxu0
  %1558 = vmatprep.subr.bf16.mxu0 0
  %1559 = vmatpush1.bf16.msra.mxu0 %v1102
  %1560 = vmatprep.subr.bf16.mxu0 0
  %1561 = vmatpush1.bf16.msra.mxu0 %v1103
  %1562 = vmatprep.subr.bf16.mxu0 0
  %1563 = vmatpush1.bf16.msra.mxu0 %v1104
  %1564 = vmatprep.subr.bf16.mxu0 0
  %1565 = vmatpush1.bf16.msra.mxu0 %v1105
  %1566 = vmatprep.subr.bf16.mxu0 0
  %1567 = vmatpush1.bf16.msra.mxu0 %v1106
  %1568 = vmatprep.subr.bf16.mxu0 0
  %1569 = vmatpush1.bf16.msra.mxu0 %v1107
  %1570 = vmatprep.subr.bf16.mxu0 0
  %1571 = vmatpush1.bf16.msra.mxu0 %v1108
  %1572 = vmatprep.subr.bf16.mxu0 0
  %1573 = vmatpush1.bf16.msra.mxu0 %v1109
  %1574 = vmatprep.subr.bf16.mxu0 0
  %1575 = vmatpush1.bf16.msra.mxu0 %v1110
  %1576 = vmatprep.subr.bf16.mxu0 0
  %1577 = vmatpush1.bf16.msra.mxu0 %v1111
  %1578 = vmatprep.subr.bf16.mxu0 0
  %1579 = vmatpush1.bf16.msra.mxu0 %v1112
  %1580 = vmatprep.subr.bf16.mxu0 0
  %1581 = vmatpush1.bf16.msra.mxu0 %v1113
  %1582 = vmatprep.subr.bf16.mxu0 0
  %1583 = vmatpush1.bf16.msra.mxu0 %v1114
  %1584 = vmatprep.subr.bf16.mxu0 0
  %1585 = vmatpush1.bf16.msra.mxu0 %v1115
  %1586 = vmatprep.subr.bf16.mxu0 0
  %1587 = vmatpush1.bf16.msra.mxu0 %v1116
  %1588 = vmatprep.subr.bf16.mxu0 0
  %1589 = vmatpush1.bf16.msra.mxu0 %v1117
  %1590 = vmatprep.mubr.bf16.mxu0 %v387
  %1591 = vmatmul.mubr.bf16.gmra.mrb[0].mxu0 %v385
  %v1592 = vpop.f32.mrb[0].mxu0
  %v1593 = vadd.f32 %v1553, %v1592
  %v1594 = vpop.f32.mrb[0].mxu0
  %v1595 = vpop.f32.mrb[0].mxu0
  %v1596 = vpop.f32.mrb[0].mxu0
  %1597 = vdwg.mxu0
  %1598 = vmatprep.subr.bf16.mxu0 0
  %1599 = vmatpush1.bf16.msra.mxu0 %v1118
  %1600 = vmatprep.subr.bf16.mxu0 0
  %1601 = vmatpush1.bf16.msra.mxu0 %v1119
  %1602 = vmatprep.subr.bf16.mxu0 0
  %1603 = vmatpush1.bf16.msra.mxu0 %v1120
  %1604 = vmatprep.subr.bf16.mxu0 0
  %1605 = vmatpush1.bf16.msra.mxu0 %v1121
  %1606 = vmatprep.subr.bf16.mxu0 0
  %1607 = vmatpush1.bf16.msra.mxu0 %v1122
  %1608 = vmatprep.subr.bf16.mxu0 0
  %1609 = vmatpush1.bf16.msra.mxu0 %v1123
  %1610 = vmatprep.subr.bf16.mxu0 0
  %1611 = vmatpush1.bf16.msra.mxu0 %v1124
  %1612 = vmatprep.subr.bf16.mxu0 0
  %1613 = vmatpush1.bf16.msra.mxu0 %v1125
  %1614 = vmatprep.subr.bf16.mxu0 0
  %1615 = vmatpush1.bf16.msra.mxu0 %v1126
  %1616 = vmatprep.subr.bf16.mxu0 0
  %1617 = vmatpush1.bf16.msra.mxu0 %v1127
  %1618 = vmatprep.subr.bf16.mxu0 0
  %1619 = vmatpush1.bf16.msra.mxu0 %v1128
  %1620 = vmatprep.subr.bf16.mxu0 0
  %1621 = vmatpush1.bf16.msra.mxu0 %v1129
  %1622 = vmatprep.subr.bf16.mxu0 0
  %1623 = vmatpush1.bf16.msra.mxu0 %v1130
  %1624 = vmatprep.subr.bf16.mxu0 0
  %1625 = vmatpush1.bf16.msra.mxu0 %v1131
  %1626 = vmatprep.subr.bf16.mxu0 0
  %1627 = vmatpush1.bf16.msra.mxu0 %v1132
  %1628 = vmatprep.subr.bf16.mxu0 0
  %1629 = vmatpush1.bf16.msra.mxu0 %v1133
  %1630 = vmatprep.mubr.bf16.mxu0 %v395
  %1631 = vmatmul.mubr.bf16.gmra.mrb[0].mxu0 %v394
  %v1632 = vpop.f32.mrb[0].mxu0
  %v1633 = vadd.f32 %v1593, %v1632
  %v1634 = vpop.f32.mrb[0].mxu0
  %v1635 = vpop.f32.mrb[0].mxu0
  %v1636 = vpop.f32.mrb[0].mxu0
  %1637 = vdwg.mxu0
  %1638 = vst [vmem:[%s3] sm:$0xf] %v1633
  // Predicated region
  $region14: #{fashion_cnn_forward.5} parent=0 // pred_check
    _
  $region15: #{fashion_cnn_forward.5} parent=0 // pred_check_branch
    %1640 = sbr.rel (0) target = $region17
  $region16: #{fashion_cnn_forward.5} parent=0 // pred_region
    _
  $region17: #{fashion_cnn_forward.5} parent=0 // pred_fallthru
    _
  // Predicated region
  $region18: #{fashion_cnn_forward.5} parent=0 // pred_check
    _
  $region19: #{fashion_cnn_forward.5} parent=0 // pred_check_branch
    %1642 = sbr.rel (0) target = $region21
  $region20: #{fashion_cnn_forward.5} parent=0 // pred_region
    _
  $region21: #{fashion_cnn_forward.5} parent=0 // pred_fallthru
    _

</llo_original>
